<compile_context>
chip_gen: v6e
topology: v6e:2x2x1
jax: 0.10.0
libtpu: 0.0.40
codegen_flags: <defaults>
</compile_context>

<pallas_src>
import jax
import jax.numpy as jnp
from jax.experimental import pallas as pl
from jax.experimental.pallas import tpu as pltpu

# Constants from the reference module.  N_ACTIONS is not defined in the snippet
# (it comes from the surrounding test file); we pick a small deterministic value.
N_ACTIONS = 6
N_OPTIONS = 10
N_QUANT = 200
STATE_LEN = 4


# ----------------------------------------------------------------------------
# Kernel 1: fused conv stack.  One grid step = `bb` images; all inter-layer
# activations live in VMEM scratch and never touch HBM.
#
# Row layouts (per image):
#   h1  : conv1 output (20x20x32) in space-to-depth order
#           row = ((h%2)*2 + (w%2))*100 + (h//2)*10 + (w//2), 8 zero pad rows.
#   p2  : conv2 im2col, row = h2*10 + w2ext (w2ext 0..9; col 9 is junk), 90 rows.
#   h2  : conv2 output, same row layout as p2, padded to 96 rows (pads zeroed).
#   p3  : conv3 im2col, row = h3*10 + w3ext (w3ext 0..9; cols 7..9 junk), 70 rows.
# These layouts make every im2col contribution a single contiguous row-range copy.
# ----------------------------------------------------------------------------
def _conv_stack_kernel(p1_ref, w1_ref, b1_ref, w2_ref, b2_ref, w3_ref, b3_ref,
                       out_ref, h1_s, p2_s, h2_s, p3_s):
    bb = p1_ref.shape[0]

    # ---- conv1 (8x8 stride 4): ONE (bb*400,256)@(256,32) bf16 dot.
    x1 = p1_ref[...].reshape(bb * 400, 256)                      # bf16
    y1 = jnp.dot(x1, w1_ref[...], preferred_element_type=jnp.float32) + b1_ref[...]
    h1_s[:, 0:400, :] = jnp.maximum(y1, 0.0).reshape(bb, 400, 32)
    h1_s[:, 400:408, :] = jnp.zeros((bb, 8, 32), jnp.float32)    # pad rows (read by k=15)

    # ---- conv2 (4x4 stride 2): im2col = 16 contiguous 90-row copies / image,
    #      then ONE (bb*90,512)@(512,64) bf16 dot.
    for b in range(bb):
        for k in range(16):
            ki, kj = k // 4, k % 4
            s = (ki % 2) * 2 + (kj % 2)
            src0 = s * 100 + (ki // 2) * 10 + (kj // 2)
            p2_s[b * 90:(b + 1) * 90, k * 32:(k + 1) * 32] = \
                h1_s[b, src0:src0 + 90, :]
    y2 = jnp.dot(p2_s[...].astype(jnp.bfloat16), w2_ref[...],
                 preferred_element_type=jnp.float32) + b2_ref[...]
    h2_s[:, 0:90, :] = jnp.maximum(y2, 0.0).reshape(bb, 90, 64)
    h2_s[:, 90:96, :] = jnp.zeros((bb, 6, 64), jnp.float32)      # pad rows for conv3 reads

    # ---- conv3 (3x3 stride 1): im2col = 9 contiguous 70-row copies / image,
    #      then ONE (bb*70,576)@(576,64) bf16 dot.
    for b in range(bb):
        for k in range(9):
            ki, kj = k // 3, k % 3
            src0 = ki * 10 + kj
            p3_s[b * 70:(b + 1) * 70, k * 64:(k + 1) * 64] = \
                h2_s[b, src0:src0 + 70, :]
    y3 = jnp.dot(p3_s[...].astype(jnp.bfloat16), w3_ref[...],
                 preferred_element_type=jnp.float32) + b3_ref[...]
    z3 = jnp.maximum(y3, 0.0).reshape(bb, 70, 64)
    # Keep only the 7 valid output columns per row (w3ext 0..6): 7 batched stores.
    for h3 in range(7):
        out_ref[:, h3 * 7:(h3 + 1) * 7, :] = \
            z3[:, h3 * 10:h3 * 10 + 7, :].astype(out_ref.dtype)


def conv_stack(p1, w1, b1, w2, b2, w3, b3):
    B = p1.shape[0]
    bb = max(1, min(8, pl.cdiv(B, 2)))     # >=2 grid steps whenever B >= 2 (v7x megacore)
    return pl.pallas_call(
        _conv_stack_kernel,
        out_shape=jax.ShapeDtypeStruct((B, 49, 64), jnp.bfloat16),
        grid_spec=pltpu.PrefetchScalarGridSpec(
            num_scalar_prefetch=0,
            grid=(pl.cdiv(B, bb),),
            in_specs=[
                pl.BlockSpec((bb, 400, 256), lambda i: (i, 0, 0)),  # conv1 patches (bf16)
                pl.BlockSpec((256, 32), lambda i: (0, 0)),          # w1 (bf16)
                pl.BlockSpec((1, 32), lambda i: (0, 0)),            # b1
                pl.BlockSpec((512, 64), lambda i: (0, 0)),          # w2 (bf16)
                pl.BlockSpec((1, 64), lambda i: (0, 0)),            # b2
                pl.BlockSpec((576, 64), lambda i: (0, 0)),          # w3 (bf16)
                pl.BlockSpec((1, 64), lambda i: (0, 0)),            # b3
            ],
            out_specs=pl.BlockSpec((bb, 49, 64), lambda i: (i, 0, 0)),
            scratch_shapes=[
                pltpu.VMEM((bb, 408, 32), jnp.float32),   # conv1 activations (+pad rows)
                pltpu.VMEM((bb * 90, 512), jnp.float32),  # conv2 im2col
                pltpu.VMEM((bb, 96, 64), jnp.float32),    # conv2 activations (+pad rows)
                pltpu.VMEM((bb * 70, 576), jnp.float32),  # conv3 im2col
            ],
        ),
        compiler_params=pltpu.CompilerParams(
            dimension_semantics=("parallel",),
            vmem_limit_bytes=32 * 1024 * 1024,
        ),
    )(p1, w1, b1, w2, b2, w3, b3)


# ----------------------------------------------------------------------------
# Kernel 2: fused fc + ReLU + merged heads (lane-dense 1280-wide padded output).
# Grid is (batch tiles, head column blocks); the column split is only enabled
# when the batch axis has a single tile so v7x's 2 TensorCores both get a step.
# ----------------------------------------------------------------------------
def _fc_head_kernel(x_ref, fcw_ref, fcb_ref, hw_ref, hb_ref, out_ref):
    y = jnp.dot(x_ref[...], fcw_ref[...], preferred_element_type=jnp.float32)
    y = jnp.maximum(y + fcb_ref[...], 0.0).astype(jnp.bfloat16)
    out_ref[...] = (jnp.dot(y, hw_ref[...], preferred_element_type=jnp.float32)
                    + hb_ref[...]).astype(out_ref.dtype)


def fc_heads(feats, fc_w, fc_b, head_w, head_b):
    B, K = feats.shape
    F = fc_w.shape[1]
    N = head_w.shape[1]                                   # 1280 (padded, multiple of 256)
    # Batch tile: multiple of 16 (bf16 sublane packing); aim for >=2 batch tiles.
    tm = min(128, max(16, ((pl.cdiv(B, 2) + 15) // 16) * 16))
    m_steps = pl.cdiv(B, tm)
    nj = 2 if m_steps < 2 else 1                          # column-split only at tiny B
    nb = N // nj
    # NOTE: edge batch tiles (B < m_steps*tm) flow garbage rows through the matmuls;
    # results are row-contained and masked away at the store, so outputs stay exact.
    return pl.pallas_call(
        _fc_head_kernel,
        out_shape=jax.ShapeDtypeStruct((B, N), jnp.float32),
        grid_spec=pltpu.PrefetchScalarGridSpec(
            num_scalar_prefetch=0,
            grid=(m_steps, nj),
            in_specs=[
                pl.BlockSpec((tm, K), lambda m, j: (m, 0)),   # feats (bf16)
                pl.BlockSpec((K, F), lambda m, j: (0, 0)),    # fc_w (bf16)
                pl.BlockSpec((1, F), lambda m, j: (0, 0)),    # fc_b
                pl.BlockSpec((F, nb), lambda m, j: (0, j)),   # merged head weights (bf16)
                pl.BlockSpec((1, nb), lambda m, j: (0, j)),   # merged head bias
            ],
            out_specs=pl.BlockSpec((tm, nb), lambda m, j: (m, j)),
        ),
        compiler_params=pltpu.CompilerParams(
            dimension_semantics=("parallel", "parallel"),
            vmem_limit_bytes=32 * 1024 * 1024,
        ),
    )(feats, fc_w, fc_b, head_w, head_b)


# ----------------------------------------------------------------------------
# Wrapper-side glue: conv1 im2col with only 4 strided slices (the 8x8/stride-4
# window decomposes into 2x2 blocks of 4x4 tiles), emitted in bf16 and in the
# space-to-depth row order the kernel expects.  Pure layout; all FLOPs stay in
# the Pallas kernels.
# ----------------------------------------------------------------------------
def _conv1_patches(x_nchw_f32):
    x = jnp.transpose(x_nchw_f32, (0, 2, 3, 1))           # NCHW -> NHWC (B,84,84,4)
    B = x.shape[0]
    blk = x.reshape(B, 21, 4, 21, 4, STATE_LEN)           # 4x4 tiles
    rows = []
    for di in range(2):
        cols = []
        for dj in range(2):
            part = blk[:, di:di + 20, :, dj:dj + 20, :, :]         # (B,oh,r,ow,s,c)
            cols.append(jnp.transpose(part, (0, 1, 3, 2, 4, 5)))   # (B,oh,ow,r,s,c)
        rows.append(jnp.stack(cols, axis=4))                       # (B,oh,ow,r,dj,s,c)
    p = jnp.stack(rows, axis=3)                                    # (B,oh,ow,di,r,dj,s,c)
    p = p.reshape(B, 20, 20, 256)                                  # patch = (kh,kw,cin)
    # space-to-depth on conv1's OUTPUT grid: row = ((h%2)*2+(w%2))*100 + (h//2)*10 + (w//2)
    p = p.reshape(B, 10, 2, 10, 2, 256)
    p = jnp.transpose(p, (0, 2, 4, 1, 3, 5))                       # (B,2,2,10,10,256)
    return p.reshape(B, 400, 256).astype(jnp.bfloat16)


# ----------------------------------------------------------------------------
# Parameter init (xavier-normal convs, kaiming-normal linears, zero biases) and
# one-time packing into kernel-ready layouts (/255 fold, head merge+pad, bf16).
# ----------------------------------------------------------------------------
def init_params(key):
    ks = jax.random.split(key, 6)

    def xavier(k, shape, fan_in, fan_out):
        std = (2.0 / (fan_in + fan_out)) ** 0.5
        return std * jax.random.normal(k, shape, jnp.float32)

    def kaiming(k, fin, fout):
        std = (2.0 / fin) ** 0.5
        return std * jax.random.normal(k, (fin, fout), jnp.float32)

    return {
        "c1_w": xavier(ks[0], (8 * 8 * STATE_LEN, 32), STATE_LEN * 64, 32 * 64),
        "c1_b": jnp.zeros((32,), jnp.float32),
        "c2_w": xavier(ks[1], (4 * 4 * 32, 64), 32 * 16, 64 * 16),
        "c2_b": jnp.zeros((64,), jnp.float32),
        "c3_w": xavier(ks[2], (3 * 3 * 64, 64), 64 * 9, 64 * 9),
        "c3_b": jnp.zeros((64,), jnp.float32),
        "fc_w": kaiming(ks[3], 7 * 7 * 64, 512),
        "fc_b": jnp.zeros((512,), jnp.float32),
        "fq_w": kaiming(ks[4], 512, N_ACTIONS * N_QUANT),
        "fq_b": jnp.zeros((N_ACTIONS * N_QUANT,), jnp.float32),
        "fo_w": kaiming(ks[5], 512, N_OPTIONS),
        "fo_b": jnp.zeros((N_OPTIONS,), jnp.float32),
    }


def pack_params(p):
    nq = N_ACTIONS * N_QUANT
    n_heads = nq + N_OPTIONS
    n_pad = (-n_heads) % 256                               # lane-dense, splittable into 2x
    # Merge + pad heads in f32, THEN cast once to bf16 (quantize exactly once).
    head_w = jnp.concatenate(
        [p["fq_w"], p["fo_w"], jnp.zeros((512, n_pad), jnp.float32)], axis=1)
    head_b = jnp.concatenate(
        [p["fq_b"], p["fo_b"], jnp.zeros((n_pad,), jnp.float32)])
    return {
        "w1": (p["c1_w"] / 255.0).astype(jnp.bfloat16),    # fold x/255 into conv1
        "b1": p["c1_b"].reshape(1, 32),
        "w2": p["c2_w"].astype(jnp.bfloat16),              # (512, 64)
        "b2": p["c2_b"].reshape(1, 64),
        "w3": p["c3_w"].astype(jnp.bfloat16),              # (576, 64)
        "b3": p["c3_b"].reshape(1, 64),
        "fc_w": p["fc_w"].astype(jnp.bfloat16),
        "fc_b": p["fc_b"].reshape(1, 512),
        "head_w": head_w.astype(jnp.bfloat16),
        "head_b": head_b.reshape(1, n_heads + n_pad),
    }


# ----------------------------------------------------------------------------
# Forward pass (mirrors ConvNet.forward).
# ----------------------------------------------------------------------------
@jax.jit
def convnet_forward(kp, x_nchw):
    B = x_nchw.shape[0]
    x = x_nchw.astype(jnp.float32)                         # /255 folded into w1
    p1 = _conv1_patches(x)                                 # (B, 400, 256) bf16
    feats = conv_stack(p1, kp["w1"], kp["b1"], kp["w2"], kp["b2"],
                       kp["w3"], kp["b3"])                 # (B, 49, 64) bf16
    feats = feats.reshape(B, 7 * 7 * 64)                   # (h, w, c) flatten order
    out = fc_heads(feats, kp["fc_w"], kp["fc_b"], kp["head_w"], kp["head_b"])
    nq = N_ACTIONS * N_QUANT
    quantiles = out[:, :nq].reshape(B, N_ACTIONS, N_QUANT)
    options = out[:, nq:nq + N_OPTIONS]
    return quantiles, options


# TODO(synk): ConvNet.save/load (torch.save/torch.load checkpoint I/O) has no
# Pallas equivalent and is omitted.

if __name__ == "__main__":
    key = jax.random.PRNGKey(0)
    k_params, k_x = jax.random.split(key)

    params = init_params(k_params)
    kparams = pack_params(params)

    # Spatial size 84 is forced by the fc layer expecting 7*7*64 features.
    x = jax.random.uniform(k_x, (2, STATE_LEN, 84, 84), jnp.float32,
                           minval=0.0, maxval=255.0)

    quantiles, options = convnet_forward(kparams, x)
    jax.block_until_ready((quantiles, options))

    assert quantiles.shape == (2, N_ACTIONS, N_QUANT)
    assert options.shape == (2, N_OPTIONS)
    assert bool(jnp.isfinite(quantiles).all())
    assert bool(jnp.isfinite(options).all())
    print("KERNEL_OK")
</pallas_src>

<mosaic_0001>
module attributes {stable_mosaic.version = 11 : i64} {
  func.func @_conv_stack_kernel(%arg0: i32, %arg1: memref<1x400x256xbf16, #tpu.memory_space<vmem>>, %arg2: memref<256x32xbf16, #tpu.memory_space<vmem>>, %arg3: memref<1x32xf32, #tpu.memory_space<vmem>>, %arg4: memref<512x64xbf16, #tpu.memory_space<vmem>>, %arg5: memref<1x64xf32, #tpu.memory_space<vmem>>, %arg6: memref<576x64xbf16, #tpu.memory_space<vmem>>, %arg7: memref<1x64xf32, #tpu.memory_space<vmem>>, %arg8: memref<1x49x64xbf16, #tpu.memory_space<vmem>>, %arg9: memref<1x408x32xf32, #tpu.memory_space<vmem>>, %arg10: memref<90x512xf32, #tpu.memory_space<vmem>>, %arg11: memref<1x96x64xf32, #tpu.memory_space<vmem>>, %arg12: memref<70x576xf32, #tpu.memory_space<vmem>>) attributes {dimension_semantics = [#tpu.dimension_semantics<parallel>], iteration_bounds = array<i64: 2>, scalar_prefetch = 0 : i64, scratch_operands = 4 : i64, tpu.core_type = #tpu.core_type<tc>, window_params = [{transform_indices = @transform_0, window_bounds = array<i64: 1, 400, 256>}, {pipeline_mode = #tpu.pipeline_mode<synchronous>, transform_indices = @transform_1, window_bounds = array<i64: 256, 32>}, {pipeline_mode = #tpu.pipeline_mode<synchronous>, transform_indices = @transform_2, window_bounds = array<i64: 1, 32>}, {pipeline_mode = #tpu.pipeline_mode<synchronous>, transform_indices = @transform_3, window_bounds = array<i64: 512, 64>}, {pipeline_mode = #tpu.pipeline_mode<synchronous>, transform_indices = @transform_4, window_bounds = array<i64: 1, 64>}, {pipeline_mode = #tpu.pipeline_mode<synchronous>, transform_indices = @transform_5, window_bounds = array<i64: 576, 64>}, {pipeline_mode = #tpu.pipeline_mode<synchronous>, transform_indices = @transform_6, window_bounds = array<i64: 1, 64>}, {transform_indices = @transform_7, window_bounds = array<i64: 1, 49, 64>}]} {
    %c0 = arith.constant 0 : index
    %c0_0 = arith.constant 0 : index
    %c0_1 = arith.constant 0 : index
    %0 = vector.load %arg1[%c0, %c0_0, %c0_1] : memref<1x400x256xbf16, #tpu.memory_space<vmem>>, vector<1x400x256xbf16>
    %1 = vector.shape_cast %0 : vector<1x400x256xbf16> to vector<400x256xbf16>
    %c0_2 = arith.constant 0 : index
    %c0_3 = arith.constant 0 : index
    %2 = vector.load %arg2[%c0_2, %c0_3] : memref<256x32xbf16, #tpu.memory_space<vmem>>, vector<256x32xbf16>
    %cst = arith.constant dense<0.000000e+00> : vector<400x32xf32>
    %3 = tpu.matmul %1, %2, %cst {dimension_numbers = #tpu.dot_dimension_numbers<[1], [0], [0], [1], [0, 0, 1, 1], [], []>} : vector<400x256xbf16>, vector<256x32xbf16>, vector<400x32xf32> -> vector<400x32xf32>
    %c0_4 = arith.constant 0 : index
    %c0_5 = arith.constant 0 : index
    %4 = vector.load %arg3[%c0_4, %c0_5] : memref<1x32xf32, #tpu.memory_space<vmem>>, vector<1x32xf32>
    %5 = vector.broadcast %4 : vector<1x32xf32> to vector<400x32xf32>
    %6 = arith.addf %3, %5 : vector<400x32xf32>
    %cst_6 = arith.constant 0.000000e+00 : f32
    %7 = vector.broadcast %cst_6 : f32 to vector<400x32xf32>
    %8 = arith.maximumf %6, %7 : vector<400x32xf32>
    %9 = vector.shape_cast %8 : vector<400x32xf32> to vector<1x400x32xf32>
    %c0_7 = arith.constant 0 : index
    %c0_8 = arith.constant 0 : index
    %c0_9 = arith.constant 0 : index
    %10 = vector.load %arg9[%c0_7, %c0_8, %c0_9] : memref<1x408x32xf32, #tpu.memory_space<vmem>>, vector<1x400x32xf32>
    tpu.vector_store %arg9[%c0_7, %c0_8, %c0_9], %9 {strides = array<i32>} : memref<1x408x32xf32, #tpu.memory_space<vmem>>, vector<1x400x32xf32>,
    %cst_10 = arith.constant 0.000000e+00 : f32
    %11 = vector.broadcast %cst_10 : f32 to vector<1x8x32xf32>
    %c0_11 = arith.constant 0 : index
    %c400 = arith.constant 400 : index
    %c0_12 = arith.constant 0 : index
    %12 = vector.load %arg9[%c0_11, %c400, %c0_12] : memref<1x408x32xf32, #tpu.memory_space<vmem>>, vector<1x8x32xf32>
    tpu.vector_store %arg9[%c0_11, %c400, %c0_12], %11 {strides = array<i32>} : memref<1x408x32xf32, #tpu.memory_space<vmem>>, vector<1x8x32xf32>,
    %c0_13 = arith.constant 0 : index
    %c0_14 = arith.constant 0 : index
    %c0_15 = arith.constant 0 : index
    %13 = vector.load %arg9[%c0_13, %c0_14, %c0_15] : memref<1x408x32xf32, #tpu.memory_space<vmem>>, vector<1x90x32xf32>
    %14 = vector.shape_cast %13 : vector<1x90x32xf32> to vector<90x32xf32>
    %c0_16 = arith.constant 0 : index
    %c0_17 = arith.constant 0 : index
    %15 = vector.load %arg10[%c0_16, %c0_17] : memref<90x512xf32, #tpu.memory_space<vmem>>, vector<90x32xf32>
    tpu.vector_store %arg10[%c0_16, %c0_17], %14 {strides = array<i32>} : memref<90x512xf32, #tpu.memory_space<vmem>>, vector<90x32xf32>,
    %c0_18 = arith.constant 0 : index
    %c100 = arith.constant 100 : index
    %c0_19 = arith.constant 0 : index
    %16 = vector.load %arg9[%c0_18, %c100, %c0_19] : memref<1x408x32xf32, #tpu.memory_space<vmem>>, vector<1x90x32xf32>
    %17 = vector.shape_cast %16 : vector<1x90x32xf32> to vector<90x32xf32>
    %c0_20 = arith.constant 0 : index
    %c32 = arith.constant 32 : index
    %18 = vector.load %arg10[%c0_20, %c32] : memref<90x512xf32, #tpu.memory_space<vmem>>, vector<90x32xf32>
    tpu.vector_store %arg10[%c0_20, %c32], %17 {strides = array<i32>} : memref<90x512xf32, #tpu.memory_space<vmem>>, vector<90x32xf32>,
    %c0_21 = arith.constant 0 : index
    %c1 = arith.constant 1 : index
    %c0_22 = arith.constant 0 : index
    %19 = vector.load %arg9[%c0_21, %c1, %c0_22] : memref<1x408x32xf32, #tpu.memory_space<vmem>>, vector<1x90x32xf32>
    %20 = vector.shape_cast %19 : vector<1x90x32xf32> to vector<90x32xf32>
    %c0_23 = arith.constant 0 : index
    %c64 = arith.constant 64 : index
    %21 = vector.load %arg10[%c0_23, %c64] : memref<90x512xf32, #tpu.memory_space<vmem>>, vector<90x32xf32>
    tpu.vector_store %arg10[%c0_23, %c64], %20 {strides = array<i32>} : memref<90x512xf32, #tpu.memory_space<vmem>>, vector<90x32xf32>,
    %c0_24 = arith.constant 0 : index
    %c101 = arith.constant 101 : index
    %c0_25 = arith.constant 0 : index
    %22 = vector.load %arg9[%c0_24, %c101, %c0_25] : memref<1x408x32xf32, #tpu.memory_space<vmem>>, vector<1x90x32xf32>
    %23 = vector.shape_cast %22 : vector<1x90x32xf32> to vector<90x32xf32>
    %c0_26 = arith.constant 0 : index
    %c96 = arith.constant 96 : index
    %24 = vector.load %arg10[%c0_26, %c96] : memref<90x512xf32, #tpu.memory_space<vmem>>, vector<90x32xf32>
    tpu.vector_store %arg10[%c0_26, %c96], %23 {strides = array<i32>} : memref<90x512xf32, #tpu.memory_space<vmem>>, vector<90x32xf32>,
    %c0_27 = arith.constant 0 : index
    %c200 = arith.constant 200 : index
    %c0_28 = arith.constant 0 : index
    %25 = vector.load %arg9[%c0_27, %c200, %c0_28] : memref<1x408x32xf32, #tpu.memory_space<vmem>>, vector<1x90x32xf32>
    %26 = vector.shape_cast %25 : vector<1x90x32xf32> to vector<90x32xf32>
    %c0_29 = arith.constant 0 : index
    %c128 = arith.constant 128 : index
    %27 = vector.load %arg10[%c0_29, %c128] : memref<90x512xf32, #tpu.memory_space<vmem>>, vector<90x32xf32>
    tpu.vector_store %arg10[%c0_29, %c128], %26 {strides = array<i32>} : memref<90x512xf32, #tpu.memory_space<vmem>>, vector<90x32xf32>,
    %c0_30 = arith.constant 0 : index
    %c300 = arith.constant 300 : index
    %c0_31 = arith.constant 0 : index
    %28 = vector.load %arg9[%c0_30, %c300, %c0_31] : memref<1x408x32xf32, #tpu.memory_space<vmem>>, vector<1x90x32xf32>
    %29 = vector.shape_cast %28 : vector<1x90x32xf32> to vector<90x32xf32>
    %c0_32 = arith.constant 0 : index
    %c160 = arith.constant 160 : index
    %30 = vector.load %arg10[%c0_32, %c160] : memref<90x512xf32, #tpu.memory_space<vmem>>, vector<90x32xf32>
    tpu.vector_store %arg10[%c0_32, %c160], %29 {strides = array<i32>} : memref<90x512xf32, #tpu.memory_space<vmem>>, vector<90x32xf32>,
    %c0_33 = arith.constant 0 : index
    %c201 = arith.constant 201 : index
    %c0_34 = arith.constant 0 : index
    %31 = vector.load %arg9[%c0_33, %c201, %c0_34] : memref<1x408x32xf32, #tpu.memory_space<vmem>>, vector<1x90x32xf32>
    %32 = vector.shape_cast %31 : vector<1x90x32xf32> to vector<90x32xf32>
    %c0_35 = arith.constant 0 : index
    %c192 = arith.constant 192 : index
    %33 = vector.load %arg10[%c0_35, %c192] : memref<90x512xf32, #tpu.memory_space<vmem>>, vector<90x32xf32>
    tpu.vector_store %arg10[%c0_35, %c192], %32 {strides = array<i32>} : memref<90x512xf32, #tpu.memory_space<vmem>>, vector<90x32xf32>,
    %c0_36 = arith.constant 0 : index
    %c301 = arith.constant 301 : index
    %c0_37 = arith.constant 0 : index
    %34 = vector.load %arg9[%c0_36, %c301, %c0_37] : memref<1x408x32xf32, #tpu.memory_space<vmem>>, vector<1x90x32xf32>
    %35 = vector.shape_cast %34 : vector<1x90x32xf32> to vector<90x32xf32>
    %c0_38 = arith.constant 0 : index
    %c224 = arith.constant 224 : index
    %36 = vector.load %arg10[%c0_38, %c224] : memref<90x512xf32, #tpu.memory_space<vmem>>, vector<90x32xf32>
    tpu.vector_store %arg10[%c0_38, %c224], %35 {strides = array<i32>} : memref<90x512xf32, #tpu.memory_space<vmem>>, vector<90x32xf32>,
    %c0_39 = arith.constant 0 : index
    %c10 = arith.constant 10 : index
    %c0_40 = arith.constant 0 : index
    %37 = vector.load %arg9[%c0_39, %c10, %c0_40] : memref<1x408x32xf32, #tpu.memory_space<vmem>>, vector<1x90x32xf32>
    %38 = vector.shape_cast %37 : vector<1x90x32xf32> to vector<90x32xf32>
    %c0_41 = arith.constant 0 : index
    %c256 = arith.constant 256 : index
    %39 = vector.load %arg10[%c0_41, %c256] : memref<90x512xf32, #tpu.memory_space<vmem>>, vector<90x32xf32>
    tpu.vector_store %arg10[%c0_41, %c256], %38 {strides = array<i32>} : memref<90x512xf32, #tpu.memory_space<vmem>>, vector<90x32xf32>,
    %c0_42 = arith.constant 0 : index
    %c110 = arith.constant 110 : index
    %c0_43 = arith.constant 0 : index
    %40 = vector.load %arg9[%c0_42, %c110, %c0_43] : memref<1x408x32xf32, #tpu.memory_space<vmem>>, vector<1x90x32xf32>
    %41 = vector.shape_cast %40 : vector<1x90x32xf32> to vector<90x32xf32>
    %c0_44 = arith.constant 0 : index
    %c288 = arith.constant 288 : index
    %42 = vector.load %arg10[%c0_44, %c288] : memref<90x512xf32, #tpu.memory_space<vmem>>, vector<90x32xf32>
    tpu.vector_store %arg10[%c0_44, %c288], %41 {strides = array<i32>} : memref<90x512xf32, #tpu.memory_space<vmem>>, vector<90x32xf32>,
    %c0_45 = arith.constant 0 : index
    %c11 = arith.constant 11 : index
    %c0_46 = arith.constant 0 : index
    %43 = vector.load %arg9[%c0_45, %c11, %c0_46] : memref<1x408x32xf32, #tpu.memory_space<vmem>>, vector<1x90x32xf32>
    %44 = vector.shape_cast %43 : vector<1x90x32xf32> to vector<90x32xf32>
    %c0_47 = arith.constant 0 : index
    %c320 = arith.constant 320 : index
    %45 = vector.load %arg10[%c0_47, %c320] : memref<90x512xf32, #tpu.memory_space<vmem>>, vector<90x32xf32>
    tpu.vector_store %arg10[%c0_47, %c320], %44 {strides = array<i32>} : memref<90x512xf32, #tpu.memory_space<vmem>>, vector<90x32xf32>,
    %c0_48 = arith.constant 0 : index
    %c111 = arith.constant 111 : index
    %c0_49 = arith.constant 0 : index
    %46 = vector.load %arg9[%c0_48, %c111, %c0_49] : memref<1x408x32xf32, #tpu.memory_space<vmem>>, vector<1x90x32xf32>
    %47 = vector.shape_cast %46 : vector<1x90x32xf32> to vector<90x32xf32>
    %c0_50 = arith.constant 0 : index
    %c352 = arith.constant 352 : index
    %48 = vector.load %arg10[%c0_50, %c352] : memref<90x512xf32, #tpu.memory_space<vmem>>, vector<90x32xf32>
    tpu.vector_store %arg10[%c0_50, %c352], %47 {strides = array<i32>} : memref<90x512xf32, #tpu.memory_space<vmem>>, vector<90x32xf32>,
    %c0_51 = arith.constant 0 : index
    %c210 = arith.constant 210 : index
    %c0_52 = arith.constant 0 : index
    %49 = vector.load %arg9[%c0_51, %c210, %c0_52] : memref<1x408x32xf32, #tpu.memory_space<vmem>>, vector<1x90x32xf32>
    %50 = vector.shape_cast %49 : vector<1x90x32xf32> to vector<90x32xf32>
    %c0_53 = arith.constant 0 : index
    %c384 = arith.constant 384 : index
    %51 = vector.load %arg10[%c0_53, %c384] : memref<90x512xf32, #tpu.memory_space<vmem>>, vector<90x32xf32>
    tpu.vector_store %arg10[%c0_53, %c384], %50 {strides = array<i32>} : memref<90x512xf32, #tpu.memory_space<vmem>>, vector<90x32xf32>,
    %c0_54 = arith.constant 0 : index
    %c310 = arith.constant 310 : index
    %c0_55 = arith.constant 0 : index
    %52 = vector.load %arg9[%c0_54, %c310, %c0_55] : memref<1x408x32xf32, #tpu.memory_space<vmem>>, vector<1x90x32xf32>
    %53 = vector.shape_cast %52 : vector<1x90x32xf32> to vector<90x32xf32>
    %c0_56 = arith.constant 0 : index
    %c416 = arith.constant 416 : index
    %54 = vector.load %arg10[%c0_56, %c416] : memref<90x512xf32, #tpu.memory_space<vmem>>, vector<90x32xf32>
    tpu.vector_store %arg10[%c0_56, %c416], %53 {strides = array<i32>} : memref<90x512xf32, #tpu.memory_space<vmem>>, vector<90x32xf32>,
    %c0_57 = arith.constant 0 : index
    %c211 = arith.constant 211 : index
    %c0_58 = arith.constant 0 : index
    %55 = vector.load %arg9[%c0_57, %c211, %c0_58] : memref<1x408x32xf32, #tpu.memory_space<vmem>>, vector<1x90x32xf32>
    %56 = vector.shape_cast %55 : vector<1x90x32xf32> to vector<90x32xf32>
    %c0_59 = arith.constant 0 : index
    %c448 = arith.constant 448 : index
    %57 = vector.load %arg10[%c0_59, %c448] : memref<90x512xf32, #tpu.memory_space<vmem>>, vector<90x32xf32>
    tpu.vector_store %arg10[%c0_59, %c448], %56 {strides = array<i32>} : memref<90x512xf32, #tpu.memory_space<vmem>>, vector<90x32xf32>,
    %c0_60 = arith.constant 0 : index
    %c311 = arith.constant 311 : index
    %c0_61 = arith.constant 0 : index
    %58 = vector.load %arg9[%c0_60, %c311, %c0_61] : memref<1x408x32xf32, #tpu.memory_space<vmem>>, vector<1x90x32xf32>
    %59 = vector.shape_cast %58 : vector<1x90x32xf32> to vector<90x32xf32>
    %c0_62 = arith.constant 0 : index
    %c480 = arith.constant 480 : index
    %60 = vector.load %arg10[%c0_62, %c480] : memref<90x512xf32, #tpu.memory_space<vmem>>, vector<90x32xf32>
    tpu.vector_store %arg10[%c0_62, %c480], %59 {strides = array<i32>} : memref<90x512xf32, #tpu.memory_space<vmem>>, vector<90x32xf32>,
    %c0_63 = arith.constant 0 : index
    %c0_64 = arith.constant 0 : index
    %61 = vector.load %arg10[%c0_63, %c0_64] : memref<90x512xf32, #tpu.memory_space<vmem>>, vector<90x512xf32>
    %62 = arith.truncf %61 : vector<90x512xf32> to vector<90x512xbf16>
    %c0_65 = arith.constant 0 : index
    %c0_66 = arith.constant 0 : index
    %63 = vector.load %arg4[%c0_65, %c0_66] : memref<512x64xbf16, #tpu.memory_space<vmem>>, vector<512x64xbf16>
    %cst_67 = arith.constant dense<0.000000e+00> : vector<90x64xf32>
    %64 = tpu.matmul %62, %63, %cst_67 {dimension_numbers = #tpu.dot_dimension_numbers<[1], [0], [0], [1], [0, 0, 1, 1], [], []>} : vector<90x512xbf16>, vector<512x64xbf16>, vector<90x64xf32> -> vector<90x64xf32>
    %c0_68 = arith.constant 0 : index
    %c0_69 = arith.constant 0 : index
    %65 = vector.load %arg5[%c0_68, %c0_69] : memref<1x64xf32, #tpu.memory_space<vmem>>, vector<1x64xf32>
    %66 = vector.broadcast %65 : vector<1x64xf32> to vector<90x64xf32>
    %67 = arith.addf %64, %66 : vector<90x64xf32>
    %cst_70 = arith.constant 0.000000e+00 : f32
    %68 = vector.broadcast %cst_70 : f32 to vector<90x64xf32>
    %69 = arith.maximumf %67, %68 : vector<90x64xf32>
    %70 = vector.shape_cast %69 : vector<90x64xf32> to vector<1x90x64xf32>
    %c0_71 = arith.constant 0 : index
    %c0_72 = arith.constant 0 : index
    %c0_73 = arith.constant 0 : index
    %71 = vector.load %arg11[%c0_71, %c0_72, %c0_73] : memref<1x96x64xf32, #tpu.memory_space<vmem>>, vector<1x90x64xf32>
    tpu.vector_store %arg11[%c0_71, %c0_72, %c0_73], %70 {strides = array<i32>} : memref<1x96x64xf32, #tpu.memory_space<vmem>>, vector<1x90x64xf32>,
    %cst_74 = arith.constant 0.000000e+00 : f32
    %72 = vector.broadcast %cst_74 : f32 to vector<1x6x64xf32>
    %c0_75 = arith.constant 0 : index
    %c90 = arith.constant 90 : index
    %c0_76 = arith.constant 0 : index
    %73 = vector.load %arg11[%c0_75, %c90, %c0_76] : memref<1x96x64xf32, #tpu.memory_space<vmem>>, vector<1x6x64xf32>
    tpu.vector_store %arg11[%c0_75, %c90, %c0_76], %72 {strides = array<i32>} : memref<1x96x64xf32, #tpu.memory_space<vmem>>, vector<1x6x64xf32>,
    %c0_77 = arith.constant 0 : index
    %c0_78 = arith.constant 0 : index
    %c0_79 = arith.constant 0 : index
    %74 = vector.load %arg11[%c0_77, %c0_78, %c0_79] : memref<1x96x64xf32, #tpu.memory_space<vmem>>, vector<1x70x64xf32>
    %75 = vector.shape_cast %74 : vector<1x70x64xf32> to vector<70x64xf32>
    %c0_80 = arith.constant 0 : index
    %c0_81 = arith.constant 0 : index
    %76 = vector.load %arg12[%c0_80, %c0_81] : memref<70x576xf32, #tpu.memory_space<vmem>>, vector<70x64xf32>
    tpu.vector_store %arg12[%c0_80, %c0_81], %75 {strides = array<i32>} : memref<70x576xf32, #tpu.memory_space<vmem>>, vector<70x64xf32>,
    %c0_82 = arith.constant 0 : index
    %c1_83 = arith.constant 1 : index
    %c0_84 = arith.constant 0 : index
    %77 = vector.load %arg11[%c0_82, %c1_83, %c0_84] : memref<1x96x64xf32, #tpu.memory_space<vmem>>, vector<1x70x64xf32>
    %78 = vector.shape_cast %77 : vector<1x70x64xf32> to vector<70x64xf32>
    %c0_85 = arith.constant 0 : index
    %c64_86 = arith.constant 64 : index
    %79 = vector.load %arg12[%c0_85, %c64_86] : memref<70x576xf32, #tpu.memory_space<vmem>>, vector<70x64xf32>
    tpu.vector_store %arg12[%c0_85, %c64_86], %78 {strides = array<i32>} : memref<70x576xf32, #tpu.memory_space<vmem>>, vector<70x64xf32>,
    %c0_87 = arith.constant 0 : index
    %c2 = arith.constant 2 : index
    %c0_88 = arith.constant 0 : index
    %80 = vector.load %arg11[%c0_87, %c2, %c0_88] : memref<1x96x64xf32, #tpu.memory_space<vmem>>, vector<1x70x64xf32>
    %81 = vector.shape_cast %80 : vector<1x70x64xf32> to vector<70x64xf32>
    %c0_89 = arith.constant 0 : index
    %c128_90 = arith.constant 128 : index
    %82 = vector.load %arg12[%c0_89, %c128_90] : memref<70x576xf32, #tpu.memory_space<vmem>>, vector<70x64xf32>
    tpu.vector_store %arg12[%c0_89, %c128_90], %81 {strides = array<i32>} : memref<70x576xf32, #tpu.memory_space<vmem>>, vector<70x64xf32>,
    %c0_91 = arith.constant 0 : index
    %c10_92 = arith.constant 10 : index
    %c0_93 = arith.constant 0 : index
    %83 = vector.load %arg11[%c0_91, %c10_92, %c0_93] : memref<1x96x64xf32, #tpu.memory_space<vmem>>, vector<1x70x64xf32>
    %84 = vector.shape_cast %83 : vector<1x70x64xf32> to vector<70x64xf32>
    %c0_94 = arith.constant 0 : index
    %c192_95 = arith.constant 192 : index
    %85 = vector.load %arg12[%c0_94, %c192_95] : memref<70x576xf32, #tpu.memory_space<vmem>>, vector<70x64xf32>
    tpu.vector_store %arg12[%c0_94, %c192_95], %84 {strides = array<i32>} : memref<70x576xf32, #tpu.memory_space<vmem>>, vector<70x64xf32>,
    %c0_96 = arith.constant 0 : index
    %c11_97 = arith.constant 11 : index
    %c0_98 = arith.constant 0 : index
    %86 = vector.load %arg11[%c0_96, %c11_97, %c0_98] : memref<1x96x64xf32, #tpu.memory_space<vmem>>, vector<1x70x64xf32>
    %87 = vector.shape_cast %86 : vector<1x70x64xf32> to vector<70x64xf32>
    %c0_99 = arith.constant 0 : index
    %c256_100 = arith.constant 256 : index
    %88 = vector.load %arg12[%c0_99, %c256_100] : memref<70x576xf32, #tpu.memory_space<vmem>>, vector<70x64xf32>
    tpu.vector_store %arg12[%c0_99, %c256_100], %87 {strides = array<i32>} : memref<70x576xf32, #tpu.memory_space<vmem>>, vector<70x64xf32>,
    %c0_101 = arith.constant 0 : index
    %c12 = arith.constant 12 : index
    %c0_102 = arith.constant 0 : index
    %89 = vector.load %arg11[%c0_101, %c12, %c0_102] : memref<1x96x64xf32, #tpu.memory_space<vmem>>, vector<1x70x64xf32>
    %90 = vector.shape_cast %89 : vector<1x70x64xf32> to vector<70x64xf32>
    %c0_103 = arith.constant 0 : index
    %c320_104 = arith.constant 320 : index
    %91 = vector.load %arg12[%c0_103, %c320_104] : memref<70x576xf32, #tpu.memory_space<vmem>>, vector<70x64xf32>
    tpu.vector_store %arg12[%c0_103, %c320_104], %90 {strides = array<i32>} : memref<70x576xf32, #tpu.memory_space<vmem>>, vector<70x64xf32>,
    %c0_105 = arith.constant 0 : index
    %c20 = arith.constant 20 : index
    %c0_106 = arith.constant 0 : index
    %92 = vector.load %arg11[%c0_105, %c20, %c0_106] : memref<1x96x64xf32, #tpu.memory_space<vmem>>, vector<1x70x64xf32>
    %93 = vector.shape_cast %92 : vector<1x70x64xf32> to vector<70x64xf32>
    %c0_107 = arith.constant 0 : index
    %c384_108 = arith.constant 384 : index
    %94 = vector.load %arg12[%c0_107, %c384_108] : memref<70x576xf32, #tpu.memory_space<vmem>>, vector<70x64xf32>
    tpu.vector_store %arg12[%c0_107, %c384_108], %93 {strides = array<i32>} : memref<70x576xf32, #tpu.memory_space<vmem>>, vector<70x64xf32>,
    %c0_109 = arith.constant 0 : index
    %c21 = arith.constant 21 : index
    %c0_110 = arith.constant 0 : index
    %95 = vector.load %arg11[%c0_109, %c21, %c0_110] : memref<1x96x64xf32, #tpu.memory_space<vmem>>, vector<1x70x64xf32>
    %96 = vector.shape_cast %95 : vector<1x70x64xf32> to vector<70x64xf32>
    %c0_111 = arith.constant 0 : index
    %c448_112 = arith.constant 448 : index
    %97 = vector.load %arg12[%c0_111, %c448_112] : memref<70x576xf32, #tpu.memory_space<vmem>>, vector<70x64xf32>
    tpu.vector_store %arg12[%c0_111, %c448_112], %96 {strides = array<i32>} : memref<70x576xf32, #tpu.memory_space<vmem>>, vector<70x64xf32>,
    %c0_113 = arith.constant 0 : index
    %c22 = arith.constant 22 : index
    %c0_114 = arith.constant 0 : index
    %98 = vector.load %arg11[%c0_113, %c22, %c0_114] : memref<1x96x64xf32, #tpu.memory_space<vmem>>, vector<1x70x64xf32>
    %99 = vector.shape_cast %98 : vector<1x70x64xf32> to vector<70x64xf32>
    %c0_115 = arith.constant 0 : index
    %c512 = arith.constant 512 : index
    %100 = vector.load %arg12[%c0_115, %c512] : memref<70x576xf32, #tpu.memory_space<vmem>>, vector<70x64xf32>
    tpu.vector_store %arg12[%c0_115, %c512], %99 {strides = array<i32>} : memref<70x576xf32, #tpu.memory_space<vmem>>, vector<70x64xf32>,
    %c0_116 = arith.constant 0 : index
    %c0_117 = arith.constant 0 : index
    %101 = vector.load %arg12[%c0_116, %c0_117] : memref<70x576xf32, #tpu.memory_space<vmem>>, vector<70x576xf32>
    %102 = arith.truncf %101 : vector<70x576xf32> to vector<70x576xbf16>
    %c0_118 = arith.constant 0 : index
    %c0_119 = arith.constant 0 : index
    %103 = vector.load %arg6[%c0_118, %c0_119] : memref<576x64xbf16, #tpu.memory_space<vmem>>, vector<576x64xbf16>
    %cst_120 = arith.constant dense<0.000000e+00> : vector<70x64xf32>
    %104 = tpu.matmul %102, %103, %cst_120 {dimension_numbers = #tpu.dot_dimension_numbers<[1], [0], [0], [1], [0, 0, 1, 1], [], []>} : vector<70x576xbf16>, vector<576x64xbf16>, vector<70x64xf32> -> vector<70x64xf32>
    %c0_121 = arith.constant 0 : index
    %c0_122 = arith.constant 0 : index
    %105 = vector.load %arg7[%c0_121, %c0_122] : memref<1x64xf32, #tpu.memory_space<vmem>>, vector<1x64xf32>
    %106 = vector.broadcast %105 : vector<1x64xf32> to vector<70x64xf32>
    %107 = arith.addf %104, %106 : vector<70x64xf32>
    %cst_123 = arith.constant 0.000000e+00 : f32
    %108 = vector.broadcast %cst_123 : f32 to vector<70x64xf32>
    %109 = arith.maximumf %107, %108 : vector<70x64xf32>
    %110 = vector.shape_cast %109 : vector<70x64xf32> to vector<1x70x64xf32>
    %111 = vector.extract_strided_slice %110 {offsets = [0, 0, 0], sizes = [1, 7, 64], strides = [1, 1, 1]} : vector<1x70x64xf32> to vector<1x7x64xf32>
    %112 = arith.truncf %111 : vector<1x7x64xf32> to vector<1x7x64xbf16>
    %c0_124 = arith.constant 0 : index
    %c0_125 = arith.constant 0 : index
    %c0_126 = arith.constant 0 : index
    %113 = vector.load %arg8[%c0_124, %c0_125, %c0_126] : memref<1x49x64xbf16, #tpu.memory_space<vmem>>, vector<1x7x64xbf16>
    tpu.vector_store %arg8[%c0_124, %c0_125, %c0_126], %112 {strides = array<i32>} : memref<1x49x64xbf16, #tpu.memory_space<vmem>>, vector<1x7x64xbf16>,
    %114 = vector.extract_strided_slice %110 {offsets = [0, 10, 0], sizes = [1, 7, 64], strides = [1, 1, 1]} : vector<1x70x64xf32> to vector<1x7x64xf32>
    %115 = arith.truncf %114 : vector<1x7x64xf32> to vector<1x7x64xbf16>
    %c0_127 = arith.constant 0 : index
    %c7 = arith.constant 7 : index
    %c0_128 = arith.constant 0 : index
    %116 = vector.load %arg8[%c0_127, %c7, %c0_128] : memref<1x49x64xbf16, #tpu.memory_space<vmem>>, vector<1x7x64xbf16>
    tpu.vector_store %arg8[%c0_127, %c7, %c0_128], %115 {strides = array<i32>} : memref<1x49x64xbf16, #tpu.memory_space<vmem>>, vector<1x7x64xbf16>,
    %117 = vector.extract_strided_slice %110 {offsets = [0, 20, 0], sizes = [1, 7, 64], strides = [1, 1, 1]} : vector<1x70x64xf32> to vector<1x7x64xf32>
    %118 = arith.truncf %117 : vector<1x7x64xf32> to vector<1x7x64xbf16>
    %c0_129 = arith.constant 0 : index
    %c14 = arith.constant 14 : index
    %c0_130 = arith.constant 0 : index
    %119 = vector.load %arg8[%c0_129, %c14, %c0_130] : memref<1x49x64xbf16, #tpu.memory_space<vmem>>, vector<1x7x64xbf16>
    tpu.vector_store %arg8[%c0_129, %c14, %c0_130], %118 {strides = array<i32>} : memref<1x49x64xbf16, #tpu.memory_space<vmem>>, vector<1x7x64xbf16>,
    %120 = vector.extract_strided_slice %110 {offsets = [0, 30, 0], sizes = [1, 7, 64], strides = [1, 1, 1]} : vector<1x70x64xf32> to vector<1x7x64xf32>
    %121 = arith.truncf %120 : vector<1x7x64xf32> to vector<1x7x64xbf16>
    %c0_131 = arith.constant 0 : index
    %c21_132 = arith.constant 21 : index
    %c0_133 = arith.constant 0 : index
    %122 = vector.load %arg8[%c0_131, %c21_132, %c0_133] : memref<1x49x64xbf16, #tpu.memory_space<vmem>>, vector<1x7x64xbf16>
    tpu.vector_store %arg8[%c0_131, %c21_132, %c0_133], %121 {strides = array<i32>} : memref<1x49x64xbf16, #tpu.memory_space<vmem>>, vector<1x7x64xbf16>,
    %123 = vector.extract_strided_slice %110 {offsets = [0, 40, 0], sizes = [1, 7, 64], strides = [1, 1, 1]} : vector<1x70x64xf32> to vector<1x7x64xf32>
    %124 = arith.truncf %123 : vector<1x7x64xf32> to vector<1x7x64xbf16>
    %c0_134 = arith.constant 0 : index
    %c28 = arith.constant 28 : index
    %c0_135 = arith.constant 0 : index
    %125 = vector.load %arg8[%c0_134, %c28, %c0_135] : memref<1x49x64xbf16, #tpu.memory_space<vmem>>, vector<1x7x64xbf16>
    tpu.vector_store %arg8[%c0_134, %c28, %c0_135], %124 {strides = array<i32>} : memref<1x49x64xbf16, #tpu.memory_space<vmem>>, vector<1x7x64xbf16>,
    %126 = vector.extract_strided_slice %110 {offsets = [0, 50, 0], sizes = [1, 7, 64], strides = [1, 1, 1]} : vector<1x70x64xf32> to vector<1x7x64xf32>
    %127 = arith.truncf %126 : vector<1x7x64xf32> to vector<1x7x64xbf16>
    %c0_136 = arith.constant 0 : index
    %c35 = arith.constant 35 : index
    %c0_137 = arith.constant 0 : index
    %128 = vector.load %arg8[%c0_136, %c35, %c0_137] : memref<1x49x64xbf16, #tpu.memory_space<vmem>>, vector<1x7x64xbf16>
    tpu.vector_store %arg8[%c0_136, %c35, %c0_137], %127 {strides = array<i32>} : memref<1x49x64xbf16, #tpu.memory_space<vmem>>, vector<1x7x64xbf16>,
    %129 = vector.extract_strided_slice %110 {offsets = [0, 60, 0], sizes = [1, 7, 64], strides = [1, 1, 1]} : vector<1x70x64xf32> to vector<1x7x64xf32>
    %130 = arith.truncf %129 : vector<1x7x64xf32> to vector<1x7x64xbf16>
    %c0_138 = arith.constant 0 : index
    %c42 = arith.constant 42 : index
    %c0_139 = arith.constant 0 : index
    %131 = vector.load %arg8[%c0_138, %c42, %c0_139] : memref<1x49x64xbf16, #tpu.memory_space<vmem>>, vector<1x7x64xbf16>
    tpu.vector_store %arg8[%c0_138, %c42, %c0_139], %130 {strides = array<i32>} : memref<1x49x64xbf16, #tpu.memory_space<vmem>>, vector<1x7x64xbf16>,
    return
  }
  func.func @transform_0(%arg0: i32) -> (i32, i32, i32) {
    %c0_i32 = arith.constant 0 : i32
    %c0_i32_0 = arith.constant 0 : i32
    %c0_i32_1 = arith.constant 0 : i32
    return %arg0, %c0_i32, %c0_i32_0 : i32, i32, i32
  }
  func.func @transform_1(%arg0: i32) -> (i32, i32) {
    %c0_i32 = arith.constant 0 : i32
    %c0_i32_0 = arith.constant 0 : i32
    %c0_i32_1 = arith.constant 0 : i32
    return %c0_i32, %c0_i32_0 : i32, i32
  }
  func.func @transform_2(%arg0: i32) -> (i32, i32) {
    %c0_i32 = arith.constant 0 : i32
    %c0_i32_0 = arith.constant 0 : i32
    %c0_i32_1 = arith.constant 0 : i32
    return %c0_i32, %c0_i32_0 : i32, i32
  }
  func.func @transform_3(%arg0: i32) -> (i32, i32) {
    %c0_i32 = arith.constant 0 : i32
    %c0_i32_0 = arith.constant 0 : i32
    %c0_i32_1 = arith.constant 0 : i32
    return %c0_i32, %c0_i32_0 : i32, i32
  }
  func.func @transform_4(%arg0: i32) -> (i32, i32) {
    %c0_i32 = arith.constant 0 : i32
    %c0_i32_0 = arith.constant 0 : i32
    %c0_i32_1 = arith.constant 0 : i32
    return %c0_i32, %c0_i32_0 : i32, i32
  }
  func.func @transform_5(%arg0: i32) -> (i32, i32) {
    %c0_i32 = arith.constant 0 : i32
    %c0_i32_0 = arith.constant 0 : i32
    %c0_i32_1 = arith.constant 0 : i32
    return %c0_i32, %c0_i32_0 : i32, i32
  }
  func.func @transform_6(%arg0: i32) -> (i32, i32) {
    %c0_i32 = arith.constant 0 : i32
    %c0_i32_0 = arith.constant 0 : i32
    %c0_i32_1 = arith.constant 0 : i32
    return %c0_i32, %c0_i32_0 : i32, i32
  }
  func.func @transform_7(%arg0: i32) -> (i32, i32, i32) {
    %c0_i32 = arith.constant 0 : i32
    %c0_i32_0 = arith.constant 0 : i32
    %c0_i32_1 = arith.constant 0 : i32
    return %arg0, %c0_i32, %c0_i32_0 : i32, i32, i32
  }
}

module attributes {stable_mosaic.version = 11 : i64} {
  func.func @_fc_head_kernel(%arg0: i32, %arg1: i32, %arg2: memref<16x3136xbf16, #tpu.memory_space<vmem>>, %arg3: memref<3136x512xbf16, #tpu.memory_space<vmem>>, %arg4: memref<1x512xf32, #tpu.memory_space<vmem>>, %arg5: memref<512x640xbf16, #tpu.memory_space<vmem>>, %arg6: memref<1x640xf32, #tpu.memory_space<vmem>>, %arg7: memref<16x640xf32, #tpu.memory_space<vmem>>) attributes {dimension_semantics = [#tpu.dimension_semantics<parallel>, #tpu.dimension_semantics<parallel>], iteration_bounds = array<i64: 1, 2>, scalar_prefetch = 0 : i64, scratch_operands = 0 : i64, tpu.core_type = #tpu.core_type<tc>, window_params = [{transform_indices = @transform_0, window_bounds = array<i64: 16, 3136>}, {pipeline_mode = #tpu.pipeline_mode<synchronous>, transform_indices = @transform_1, window_bounds = array<i64: 3136, 512>}, {pipeline_mode = #tpu.pipeline_mode<synchronous>, transform_indices = @transform_2, window_bounds = array<i64: 1, 512>}, {transform_indices = @transform_3, window_bounds = array<i64: 512, 640>}, {transform_indices = @transform_4, window_bounds = array<i64: 1, 640>}, {transform_indices = @transform_5, window_bounds = array<i64: 16, 640>}]} {
    %c0 = arith.constant 0 : index
    %c0_0 = arith.constant 0 : index
    %0 = vector.load %arg2[%c0, %c0_0] : memref<16x3136xbf16, #tpu.memory_space<vmem>>, vector<16x3136xbf16>
    %c0_1 = arith.constant 0 : index
    %c0_2 = arith.constant 0 : index
    %1 = vector.load %arg3[%c0_1, %c0_2] : memref<3136x512xbf16, #tpu.memory_space<vmem>>, vector<3136x512xbf16>
    %cst = arith.constant dense<0.000000e+00> : vector<16x512xf32>
    %2 = tpu.matmul %0, %1, %cst {dimension_numbers = #tpu.dot_dimension_numbers<[1], [0], [0], [1], [0, 0, 1, 1], [], []>} : vector<16x3136xbf16>, vector<3136x512xbf16>, vector<16x512xf32> -> vector<16x512xf32>
    %c0_3 = arith.constant 0 : index
    %c0_4 = arith.constant 0 : index
    %3 = vector.load %arg4[%c0_3, %c0_4] : memref<1x512xf32, #tpu.memory_space<vmem>>, vector<1x512xf32>
    %4 = vector.broadcast %3 : vector<1x512xf32> to vector<16x512xf32>
    %5 = arith.addf %2, %4 : vector<16x512xf32>
    %cst_5 = arith.constant 0.000000e+00 : f32
    %6 = vector.broadcast %cst_5 : f32 to vector<16x512xf32>
    %7 = arith.maximumf %5, %6 : vector<16x512xf32>
    %8 = arith.truncf %7 : vector<16x512xf32> to vector<16x512xbf16>
    %c0_6 = arith.constant 0 : index
    %c0_7 = arith.constant 0 : index
    %9 = vector.load %arg5[%c0_6, %c0_7] : memref<512x640xbf16, #tpu.memory_space<vmem>>, vector<512x640xbf16>
    %cst_8 = arith.constant dense<0.000000e+00> : vector<16x640xf32>
    %10 = tpu.matmul %8, %9, %cst_8 {dimension_numbers = #tpu.dot_dimension_numbers<[1], [0], [0], [1], [0, 0, 1, 1], [], []>} : vector<16x512xbf16>, vector<512x640xbf16>, vector<16x640xf32> -> vector<16x640xf32>
    %c0_9 = arith.constant 0 : index
    %c0_10 = arith.constant 0 : index
    %11 = vector.load %arg6[%c0_9, %c0_10] : memref<1x640xf32, #tpu.memory_space<vmem>>, vector<1x640xf32>
    %12 = vector.broadcast %11 : vector<1x640xf32> to vector<16x640xf32>
    %13 = arith.addf %10, %12 : vector<16x640xf32>
    %c0_11 = arith.constant 0 : index
    %c0_12 = arith.constant 0 : index
    %14 = vector.load %arg7[%c0_11, %c0_12] : memref<16x640xf32, #tpu.memory_space<vmem>>, vector<16x640xf32>
    tpu.vector_store %arg7[%c0_11, %c0_12], %13 {strides = array<i32>} : memref<16x640xf32, #tpu.memory_space<vmem>>, vector<16x640xf32>,
    return
  }
  func.func @transform_0(%arg0: i32, %arg1: i32) -> (i32, i32) {
    %c0_i32 = arith.constant 0 : i32
    %c0_i32_0 = arith.constant 0 : i32
    return %arg0, %c0_i32 : i32, i32
  }
  func.func @transform_1(%arg0: i32, %arg1: i32) -> (i32, i32) {
    %c0_i32 = arith.constant 0 : i32
    %c0_i32_0 = arith.constant 0 : i32
    %c0_i32_1 = arith.constant 0 : i32
    return %c0_i32, %c0_i32_0 : i32, i32
  }
  func.func @transform_2(%arg0: i32, %arg1: i32) -> (i32, i32) {
    %c0_i32 = arith.constant 0 : i32
    %c0_i32_0 = arith.constant 0 : i32
    %c0_i32_1 = arith.constant 0 : i32
    return %c0_i32, %c0_i32_0 : i32, i32
  }
  func.func @transform_3(%arg0: i32, %arg1: i32) -> (i32, i32) {
    %c0_i32 = arith.constant 0 : i32
    %c0_i32_0 = arith.constant 0 : i32
    return %c0_i32, %arg1 : i32, i32
  }
  func.func @transform_4(%arg0: i32, %arg1: i32) -> (i32, i32) {
    %c0_i32 = arith.constant 0 : i32
    %c0_i32_0 = arith.constant 0 : i32
    return %c0_i32, %arg1 : i32, i32
  }
  func.func @transform_5(%arg0: i32, %arg1: i32) -> (i32, i32) {
    %c0_i32 = arith.constant 0 : i32
    return %arg0, %arg1 : i32, i32
  }
}

</mosaic_0001>

<llo_original>
// kernel: convnet_forward.2
$region0: #{convnet_forward.2}
  #allocation0 [shape = 'u32[]', space=smem, size = 0x4, offset = 0x4, fixed_abs, tag = 'smem constant byte address 0x4 - core index']
  #allocation1 [shape = 'u32[144,128]{1,0:T(1,128)}', space=vmem, size = 0x12000, scoped, tag = 'internal scratch']
  #allocation2 [shape = 'f32[1,408,32]{2,1,0:T(8,128)}', space=vmem, size = 0x33000, scoped, tag = 'scratch operand']
  #allocation3 [shape = 'f32[90,512]{1,0:T(8,128)}', space=vmem, size = 0x30000, scoped, tag = 'scratch operand']
  #allocation4 [shape = 'f32[1,96,64]{2,1,0:T(8,128)}', space=vmem, size = 0xc000, scoped, tag = 'scratch operand']
  #allocation5 [shape = 'f32[70,576]{1,0:T(8,128)}', space=vmem, size = 0x2d000, scoped, tag = 'scratch operand']
  %s0 = inlined_call_operand.vmem [shape: bf16[2,400,256], index: 0, kind: input, shape index: {}]
  %s1 = inlined_call_operand.vmem [shape: bf16[256,32], index: 1, kind: input, shape index: {}]
  %s2 = inlined_call_operand.vmem [shape: f32[1,32], index: 2, kind: input, shape index: {}]
  %s3 = inlined_call_operand.vmem [shape: bf16[512,64], index: 3, kind: input, shape index: {}]
  %s4 = inlined_call_operand.vmem [shape: f32[1,64], index: 4, kind: input, shape index: {}]
  %s5 = inlined_call_operand.vmem [shape: bf16[576,64], index: 5, kind: input, shape index: {}]
  %s6 = inlined_call_operand.vmem [shape: f32[1,64], index: 6, kind: input, shape index: {}]
  %s7 = inlined_call_operand.vmem [shape: bf16[2,49,64], index: 7, kind: output, shape index: {}]
  %s8 = sld [smem:[#allocation0]]
  $region61: #{convnet_forward.2} parent=0
    _
  %s10 = ssub.s32 1, %s8
  %s11 = scalar_select 0, %s10, %s8
  loop: start=0, step=1, limit=4
  $region2: #{convnet_forward.2} parent=0 // loop_pre_header
    _
  $region3: #{convnet_forward.2} parent=0 // loop_header
    %s13 = sphi 0, %s17
    %p14 = scmp.ge.s32.totalorder %s13, 4
    %s23 = sphi 0, %s25
    %s26 = sphi 0, %s23
    %s27 = sphi 0, %s26
    %s43 = sphi 0, %s27
    %s47 = sphi 0, %s47
    %s49 = sphi 0, %s47
    %s50 = sphi 0, %s49
    %s64 = sphi 0, %s50
    %s68 = sphi 0, %s68
    %s70 = sphi 0, %s68
    %s71 = sphi 0, %s70
    %s85 = sphi 0, %s71
    %s89 = sphi 0, %s89
    %s91 = sphi 0, %s89
    %s92 = sphi 0, %s91
    %s106 = sphi 0, %s92
    %s110 = sphi 0, %s110
    %s112 = sphi 0, %s110
    %s113 = sphi 0, %s112
    %s127 = sphi 0, %s113
    %s131 = sphi 0, %s131
    %s133 = sphi 0, %s131
    %s134 = sphi 0, %s133
    %s148 = sphi 0, %s134
    %s152 = sphi 0, %s152
    %s154 = sphi 0, %s152
    %s155 = sphi 0, %s154
    %s169 = sphi 0, %s155
    %s175 = sphi 0, %s177
    %s178 = sphi 0, %s175
    %s179 = sphi 0, %s178
    %s195 = sphi 0, %s179
  $region4: #{convnet_forward.2} parent=0 // loop_header_branch
    %16 = sbr.rel (%p14) target = $region8
  $region5: #{convnet_forward.2} parent=0 // loop_body
    %s18 = ssub.s32 %s13, 1
    %s19 = ssub.s32 %s13, 2
    %s20 = sadd.s32 %s13, 1
    %s21 = ssub.s32 %s13, %s20
    %p22 = scmp.eq.s32.totalorder %s21, 0
    %s24 = sadd.s32 %s23, 1
    %s25 = scalar_select %p22, %s23, %s24
    %p28 = pneg %p22
    %p29 = scmp.eq.s32.totalorder %s13, 1
    %p30 = por %p28, %p29
    %p31 = scmp.ne.s32.totalorder %s23, %s26
    %p32 = scmp.eq.s32.totalorder %s13, 0
    %p33 = por %p31, %p32
    %p34 = scmp.ne.s32.totalorder %s23, %s26
    %p35 = scmp.eq.s32.totalorder %s18, 1
    %p36 = por %p34, %p35
    %p37 = scmp.ne.s32.totalorder %s26, %s27
    %p38 = scmp.eq.s32.totalorder %s18, 0
    %p39 = por %p37, %p38
    %p40 = scmp.ne.s32.totalorder %s26, %s27
    %p41 = scmp.eq.s32.totalorder %s19, 1
    %p42 = por %p40, %p41
    %p44 = scmp.ne.s32.totalorder %s27, %s43
    %p45 = scmp.eq.s32.totalorder %s19, 0
    %p46 = por %p44, %p45
    %s48 = sadd.s32 %s47, 1
    %p51 = scmp.eq.s32.totalorder %s13, 1
    %p52 = scmp.ne.s32.totalorder %s47, %s49
    %p53 = scmp.eq.s32.totalorder %s13, 0
    %p54 = por %p52, %p53
    %p55 = scmp.ne.s32.totalorder %s47, %s49
    %p56 = scmp.eq.s32.totalorder %s18, 1
    %p57 = por %p55, %p56
    %p58 = scmp.ne.s32.totalorder %s49, %s50
    %p59 = scmp.eq.s32.totalorder %s18, 0
    %p60 = por %p58, %p59
    %p61 = scmp.ne.s32.totalorder %s49, %s50
    %p62 = scmp.eq.s32.totalorder %s19, 1
    %p63 = por %p61, %p62
    %p65 = scmp.ne.s32.totalorder %s50, %s64
    %p66 = scmp.eq.s32.totalorder %s19, 0
    %p67 = por %p65, %p66
    %s69 = sadd.s32 %s68, 1
    %p72 = scmp.eq.s32.totalorder %s13, 1
    %p73 = scmp.ne.s32.totalorder %s68, %s70
    %p74 = scmp.eq.s32.totalorder %s13, 0
    %p75 = por %p73, %p74
    %p76 = scmp.ne.s32.totalorder %s68, %s70
    %p77 = scmp.eq.s32.totalorder %s18, 1
    %p78 = por %p76, %p77
    %p79 = scmp.ne.s32.totalorder %s70, %s71
    %p80 = scmp.eq.s32.totalorder %s18, 0
    %p81 = por %p79, %p80
    %p82 = scmp.ne.s32.totalorder %s70, %s71
    %p83 = scmp.eq.s32.totalorder %s19, 1
    %p84 = por %p82, %p83
    %p86 = scmp.ne.s32.totalorder %s71, %s85
    %p87 = scmp.eq.s32.totalorder %s19, 0
    %p88 = por %p86, %p87
    %s90 = sadd.s32 %s89, 1
    %p93 = scmp.eq.s32.totalorder %s13, 1
    %p94 = scmp.ne.s32.totalorder %s89, %s91
    %p95 = scmp.eq.s32.totalorder %s13, 0
    %p96 = por %p94, %p95
    %p97 = scmp.ne.s32.totalorder %s89, %s91
    %p98 = scmp.eq.s32.totalorder %s18, 1
    %p99 = por %p97, %p98
    %p100 = scmp.ne.s32.totalorder %s91, %s92
    %p101 = scmp.eq.s32.totalorder %s18, 0
    %p102 = por %p100, %p101
    %p103 = scmp.ne.s32.totalorder %s91, %s92
    %p104 = scmp.eq.s32.totalorder %s19, 1
    %p105 = por %p103, %p104
    %p107 = scmp.ne.s32.totalorder %s92, %s106
    %p108 = scmp.eq.s32.totalorder %s19, 0
    %p109 = por %p107, %p108
    %s111 = sadd.s32 %s110, 1
    %p114 = scmp.eq.s32.totalorder %s13, 1
    %p115 = scmp.ne.s32.totalorder %s110, %s112
    %p116 = scmp.eq.s32.totalorder %s13, 0
    %p117 = por %p115, %p116
    %p118 = scmp.ne.s32.totalorder %s110, %s112
    %p119 = scmp.eq.s32.totalorder %s18, 1
    %p120 = por %p118, %p119
    %p121 = scmp.ne.s32.totalorder %s112, %s113
    %p122 = scmp.eq.s32.totalorder %s18, 0
    %p123 = por %p121, %p122
    %p124 = scmp.ne.s32.totalorder %s112, %s113
    %p125 = scmp.eq.s32.totalorder %s19, 1
    %p126 = por %p124, %p125
    %p128 = scmp.ne.s32.totalorder %s113, %s127
    %p129 = scmp.eq.s32.totalorder %s19, 0
    %p130 = por %p128, %p129
    %s132 = sadd.s32 %s131, 1
    %p135 = scmp.eq.s32.totalorder %s13, 1
    %p136 = scmp.ne.s32.totalorder %s131, %s133
    %p137 = scmp.eq.s32.totalorder %s13, 0
    %p138 = por %p136, %p137
    %p139 = scmp.ne.s32.totalorder %s131, %s133
    %p140 = scmp.eq.s32.totalorder %s18, 1
    %p141 = por %p139, %p140
    %p142 = scmp.ne.s32.totalorder %s133, %s134
    %p143 = scmp.eq.s32.totalorder %s18, 0
    %p144 = por %p142, %p143
    %p145 = scmp.ne.s32.totalorder %s133, %s134
    %p146 = scmp.eq.s32.totalorder %s19, 1
    %p147 = por %p145, %p146
    %p149 = scmp.ne.s32.totalorder %s134, %s148
    %p150 = scmp.eq.s32.totalorder %s19, 0
    %p151 = por %p149, %p150
    %s153 = sadd.s32 %s152, 1
    %p156 = scmp.eq.s32.totalorder %s13, 1
    %p157 = scmp.ne.s32.totalorder %s152, %s154
    %p158 = scmp.eq.s32.totalorder %s13, 0
    %p159 = por %p157, %p158
    %p160 = scmp.ne.s32.totalorder %s152, %s154
    %p161 = scmp.eq.s32.totalorder %s18, 1
    %p162 = por %p160, %p161
    %p163 = scmp.ne.s32.totalorder %s154, %s155
    %p164 = scmp.eq.s32.totalorder %s18, 0
    %p165 = por %p163, %p164
    %p166 = scmp.ne.s32.totalorder %s154, %s155
    %p167 = scmp.eq.s32.totalorder %s19, 1
    %p168 = por %p166, %p167
    %p170 = scmp.ne.s32.totalorder %s155, %s169
    %p171 = scmp.eq.s32.totalorder %s19, 0
    %p172 = por %p170, %p171
    %s173 = ssub.s32 %s13, %s20
    %p174 = scmp.eq.s32.totalorder %s173, 0
    %s176 = sadd.s32 %s175, 1
    %s177 = scalar_select %p174, %s175, %s176
    %p180 = pneg %p174
    %p181 = scmp.eq.s32.totalorder %s13, 1
    %p182 = por %p180, %p181
    %p183 = scmp.ne.s32.totalorder %s175, %s178
    %p184 = scmp.eq.s32.totalorder %s13, 0
    %p185 = por %p183, %p184
    %p186 = scmp.ne.s32.totalorder %s175, %s178
    %p187 = scmp.eq.s32.totalorder %s18, 1
    %p188 = por %p186, %p187
    %p189 = scmp.ne.s32.totalorder %s178, %s179
    %p190 = scmp.eq.s32.totalorder %s18, 0
    %p191 = por %p189, %p190
    %p192 = scmp.ne.s32.totalorder %s178, %s179
    %p193 = scmp.eq.s32.totalorder %s19, 1
    %p194 = por %p192, %p193
    %p196 = scmp.ne.s32.totalorder %s179, %s195
    %p197 = scmp.eq.s32.totalorder %s19, 0
    %p198 = por %p196, %p197
    %p199 = scmp.le.s32.totalorder 1, %s13
    %p200 = scmp.lt.s32.totalorder %s13, 3
    %p201 = pnand %p199, %p200
    %p202 = pneg %p201
    // Predicated region
    $region9: #{convnet_forward.2} parent=5 // pred_check
      _
    $region10: #{convnet_forward.2} parent=5 // pred_check_branch
      %204 = sbr.rel (%p201) target = $region12
    $region11: #{convnet_forward.2} parent=5 // pred_region
      %s205 = ssub.s32 %s13, 1
      // Predicated region
      $region13: #{convnet_forward.2} parent=11 // pred_check
        %p206 = pneg %p60
      $region14: #{convnet_forward.2} parent=11 // pred_check_branch
        %208 = sbr.rel (%p206) target = $region16
      $region15: #{convnet_forward.2} parent=11 // pred_region
        _
      $region16: #{convnet_forward.2} parent=11 // pred_fallthru
        _
      // Predicated region
      $region17: #{convnet_forward.2} parent=11 // pred_check
        %p209 = pneg %p81
      $region18: #{convnet_forward.2} parent=11 // pred_check_branch
        %211 = sbr.rel (%p209) target = $region20
      $region19: #{convnet_forward.2} parent=11 // pred_region
        _
      $region20: #{convnet_forward.2} parent=11 // pred_fallthru
        _
      // Predicated region
      $region21: #{convnet_forward.2} parent=11 // pred_check
        %p212 = pneg %p102
      $region22: #{convnet_forward.2} parent=11 // pred_check_branch
        %214 = sbr.rel (%p212) target = $region24
      $region23: #{convnet_forward.2} parent=11 // pred_region
        _
      $region24: #{convnet_forward.2} parent=11 // pred_fallthru
        _
      // Predicated region
      $region25: #{convnet_forward.2} parent=11 // pred_check
        %p215 = pneg %p123
      $region26: #{convnet_forward.2} parent=11 // pred_check_branch
        %217 = sbr.rel (%p215) target = $region28
      $region27: #{convnet_forward.2} parent=11 // pred_region
        _
      $region28: #{convnet_forward.2} parent=11 // pred_fallthru
        _
      // Predicated region
      $region29: #{convnet_forward.2} parent=11 // pred_check
        %p218 = pneg %p144
      $region30: #{convnet_forward.2} parent=11 // pred_check_branch
        %220 = sbr.rel (%p218) target = $region32
      $region31: #{convnet_forward.2} parent=11 // pred_region
        _
      $region32: #{convnet_forward.2} parent=11 // pred_fallthru
        _
      // Predicated region
      $region33: #{convnet_forward.2} parent=11 // pred_check
        %p221 = pneg %p165
      $region34: #{convnet_forward.2} parent=11 // pred_check_branch
        %223 = sbr.rel (%p221) target = $region36
      $region35: #{convnet_forward.2} parent=11 // pred_region
        _
      $region36: #{convnet_forward.2} parent=11 // pred_fallthru
        _
    $region12: #{convnet_forward.2} parent=5 // pred_fallthru
      _
    %p224 = scmp.lt.s32.totalorder %s13, 2
    // Predicated region
    $region37: #{convnet_forward.2} parent=5 // pred_check
      %p225 = pneg %p224
    $region38: #{convnet_forward.2} parent=5 // pred_check_branch
      %227 = sbr.rel (%p225) target = $region40
    $region39: #{convnet_forward.2} parent=5 // pred_region
      // Predicated region
      $region41: #{convnet_forward.2} parent=39 // pred_check
        %p228 = pneg %p33
      $region42: #{convnet_forward.2} parent=39 // pred_check_branch
        %230 = sbr.rel (%p228) target = $region44
      $region43: #{convnet_forward.2} parent=39 // pred_region
        %p231 = scmp.lt.s32.totalorder %s13, 1
        %s232 = scalar_select %p231, %s13, 1
        %s233 = smul.addr %s232, 100
        %s234 = smul.addr %s233, 4
        %s235 = scalar_lea.vmem %s0, %s234
      $region44: #{convnet_forward.2} parent=39 // pred_fallthru
        _
    $region40: #{convnet_forward.2} parent=5 // pred_fallthru
      _
    %p236 = scmp.le.s32.totalorder 1, %s13
    %p237 = scmp.lt.s32.totalorder %s13, 3
    %p238 = pnand %p236, %p237
    %p239 = pneg %p238
    // Predicated region
    $region45: #{convnet_forward.2} parent=5 // pred_check
      _
    $region46: #{convnet_forward.2} parent=5 // pred_check_branch
      %241 = sbr.rel (%p238) target = $region48
    $region47: #{convnet_forward.2} parent=5 // pred_region
      %s242 = ssub.s32 %s13, 1
      %p243 = scmp.lt.s32.totalorder %s18, 1
      %s244 = scalar_select %p243, %s18, 1
      %s245 = smul.addr %s244, 100
      %s246 = smul.addr %s245, 4
      %s247 = scalar_lea.vmem %s0, %s246
      %p248 = pneg %p39
      %p249 = pneg %p36
      %p250 = pneg %p60
      %p251 = pneg %p57
      %p252 = pneg %p81
      %p253 = pneg %p78
      %p254 = pneg %p102
      %p255 = pneg %p99
      %p256 = pneg %p123
      %p257 = pneg %p120
      %p258 = pneg %p144
      %p259 = pneg %p141
      %p260 = pneg %p165
      %p261 = pneg %p162
      %p262 = pneg %p191
      %p263 = pneg %p188
      %p264 = scmp.lt.s32.totalorder %s18, 1
      %s265 = scalar_select %p264, %s18, 1
      %s266 = smul.addr %s265, 7
      %s267 = smul.addr %s266, 4
      %s268 = scalar_lea.vmem %s7, %s267
      %p269 = scmp.lt.s32.totalorder %s18, 1
      %s270 = scalar_select %p269, %s18, 1
      %s271 = smul.addr %s270, 100
      %s272 = smul.addr %s271, 4
      %s273 = scalar_lea.vmem %s0, %s272
      %p274 = scmp.lt.s32.totalorder %s18, 1
      %s275 = scalar_select %p274, %s18, 1
      %s276 = smul.addr %s275, 7
      %s277 = smul.addr %s276, 4
      %s278 = scalar_lea.vmem %s7, %s277
      %v280 = vld [vmem:[%s273] sm:$0xff]
      %v281 = vld [vmem:[%s273 + $0x8] sm:$0xff]
      %v282 = vld [vmem:[%s273 + $0x10] sm:$0xff]
      %v283 = vld [vmem:[%s273 + $0x18] sm:$0xff]
      %v284 = vld [vmem:[%s273 + $0x20] sm:$0xff]
      %v285 = vld [vmem:[%s273 + $0x28] sm:$0xff]
      %v286 = vld [vmem:[%s273 + $0x30] sm:$0xff]
      %v287 = vld [vmem:[%s273 + $0x38] sm:$0xff]
      %v288 = vld [vmem:[%s273 + $0x40] sm:$0xff]
      %v289 = vld [vmem:[%s273 + $0x48] sm:$0xff]
      %v290 = vld [vmem:[%s273 + $0x50] sm:$0xff]
      %v291 = vld [vmem:[%s273 + $0x58] sm:$0xff]
      %v292 = vld [vmem:[%s273 + $0x60] sm:$0xff]
      %v293 = vld [vmem:[%s273 + $0x68] sm:$0xff]
      %v294 = vld [vmem:[%s273 + $0x70] sm:$0xff]
      %v295 = vld [vmem:[%s273 + $0x78] sm:$0xff]
      %v296 = vld [vmem:[%s273 + $0x80] sm:$0xff]
      %v297 = vld [vmem:[%s273 + $0x88] sm:$0xff]
      %v298 = vld [vmem:[%s273 + $0x90] sm:$0xff]
      %v299 = vld [vmem:[%s273 + $0x98] sm:$0xff]
      %v300 = vld [vmem:[%s273 + $0xa0] sm:$0xff]
      %v301 = vld [vmem:[%s273 + $0xa8] sm:$0xff]
      %v302 = vld [vmem:[%s273 + $0xb0] sm:$0xff]
      %v303 = vld [vmem:[%s273 + $0xb8] sm:$0xff]
      %v304 = vld [vmem:[%s273 + $0xc0] sm:$0xff]
      %v305 = vld [vmem:[%s273 + $0xc8] sm:$0xff]
      %v306 = vld [vmem:[%s273 + $0xd0] sm:$0xff]
      %v307 = vld [vmem:[%s273 + $0xd8] sm:$0xff]
      %v308 = vld [vmem:[%s273 + $0xe0] sm:$0xff]
      %v309 = vld [vmem:[%s273 + $0xe8] sm:$0xff]
      %v310 = vld [vmem:[%s273 + $0xf0] sm:$0xff]
      %v311 = vld [vmem:[%s273 + $0xf8] sm:$0xff]
      %v312 = vld [vmem:[%s273 + $0x100] sm:$0xff]
      %v313 = vld [vmem:[%s273 + $0x108] sm:$0xff]
      %v314 = vld [vmem:[%s273 + $0x110] sm:$0xff]
      %v315 = vld [vmem:[%s273 + $0x118] sm:$0xff]
      %v316 = vld [vmem:[%s273 + $0x120] sm:$0xff]
      %v317 = vld [vmem:[%s273 + $0x128] sm:$0xff]
      %v318 = vld [vmem:[%s273 + $0x130] sm:$0xff]
      %v319 = vld [vmem:[%s273 + $0x138] sm:$0xff]
      %v320 = vld [vmem:[%s273 + $0x140] sm:$0xff]
      %v321 = vld [vmem:[%s273 + $0x148] sm:$0xff]
      %v322 = vld [vmem:[%s273 + $0x150] sm:$0xff]
      %v323 = vld [vmem:[%s273 + $0x158] sm:$0xff]
      %v324 = vld [vmem:[%s273 + $0x160] sm:$0xff]
      %v325 = vld [vmem:[%s273 + $0x168] sm:$0xff]
      %v326 = vld [vmem:[%s273 + $0x170] sm:$0xff]
      %v327 = vld [vmem:[%s273 + $0x178] sm:$0xff]
      %v328 = vld [vmem:[%s273 + $0x180] sm:$0xff]
      %v329 = vld [vmem:[%s273 + $0x188] sm:$0xff]
      %v330 = vld [vmem:[%s1] sm:$0xf]
      %v331 = vld [vmem:[%s1 + $0x4] sm:$0xf]
      %v332 = vld [vmem:[%s1 + $0x8] sm:$0xf]
      %v333 = vld [vmem:[%s1 + $0xc] sm:$0xf]
      %v334 = vld [vmem:[%s1 + $0x10] sm:$0xf]
      %v335 = vld [vmem:[%s1 + $0x14] sm:$0xf]
      %v336 = vld [vmem:[%s1 + $0x18] sm:$0xf]
      %v337 = vld [vmem:[%s1 + $0x1c] sm:$0xf]
      %v338 = vld [vmem:[%s1 + $0x20] sm:$0xf]
      %v339 = vld [vmem:[%s1 + $0x24] sm:$0xf]
      %v340 = vld [vmem:[%s1 + $0x28] sm:$0xf]
      %v341 = vld [vmem:[%s1 + $0x2c] sm:$0xf]
      %v342 = vld [vmem:[%s1 + $0x30] sm:$0xf]
      %v343 = vld [vmem:[%s1 + $0x34] sm:$0xf]
      %v344 = vld [vmem:[%s1 + $0x38] sm:$0xf]
      %v345 = vld [vmem:[%s1 + $0x3c] sm:$0xf]
      %v346 = vld [vmem:[%s1 + $0x40] sm:$0xf]
      %v347 = vld [vmem:[%s1 + $0x44] sm:$0xf]
      %v348 = vld [vmem:[%s1 + $0x48] sm:$0xf]
      %v349 = vld [vmem:[%s1 + $0x4c] sm:$0xf]
      %v350 = vld [vmem:[%s1 + $0x50] sm:$0xf]
      %v351 = vld [vmem:[%s1 + $0x54] sm:$0xf]
      %v352 = vld [vmem:[%s1 + $0x58] sm:$0xf]
      %v353 = vld [vmem:[%s1 + $0x5c] sm:$0xf]
      %v354 = vld [vmem:[%s1 + $0x60] sm:$0xf]
      %v355 = vld [vmem:[%s1 + $0x64] sm:$0xf]
      %v356 = vld [vmem:[%s1 + $0x68] sm:$0xf]
      %v357 = vld [vmem:[%s1 + $0x6c] sm:$0xf]
      %v358 = vld [vmem:[%s1 + $0x70] sm:$0xf]
      %v359 = vld [vmem:[%s1 + $0x74] sm:$0xf]
      %v360 = vld [vmem:[%s1 + $0x78] sm:$0xf]
      %v361 = vld [vmem:[%s1 + $0x7c] sm:$0xf]
      %v362 = vld [vmem:[%s2] sm:$0x1]
      %v364 = vlaneseq
      %v365 = vshrl.u32 %v364, 7
      %v366 = vsub.s32 0, %v365
      %v367 = vrot.slane %v362, %v366
      %v419 = vunpack.c.l.b16 %v280
      %v420 = vunpack.c.h.b16 %v280
      %v421 = vunpack.c.l.b16 %v281
      %v422 = vunpack.c.h.b16 %v281
      %v423 = vunpack.c.l.b16 %v282
      %v424 = vunpack.c.h.b16 %v282
      %v425 = vunpack.c.l.b16 %v283
      %v426 = vunpack.c.h.b16 %v283
      %v427 = vunpack.c.l.b16 %v284
      %v428 = vunpack.c.h.b16 %v284
      %v429 = vunpack.c.l.b16 %v285
      %v430 = vunpack.c.h.b16 %v285
      %v431 = vunpack.c.l.b16 %v286
      %v432 = vunpack.c.h.b16 %v286
      %v433 = vunpack.c.l.b16 %v287
      %v434 = vunpack.c.h.b16 %v287
      %v435 = vunpack.c.l.b16 %v288
      %v436 = vunpack.c.h.b16 %v288
      %v437 = vunpack.c.l.b16 %v289
      %v438 = vunpack.c.h.b16 %v289
      %v439 = vunpack.c.l.b16 %v290
      %v440 = vunpack.c.h.b16 %v290
      %v441 = vunpack.c.l.b16 %v291
      %v442 = vunpack.c.h.b16 %v291
      %v443 = vunpack.c.l.b16 %v292
      %v444 = vunpack.c.h.b16 %v292
      %v445 = vunpack.c.l.b16 %v293
      %v446 = vunpack.c.h.b16 %v293
      %v447 = vunpack.c.l.b16 %v294
      %v448 = vunpack.c.h.b16 %v294
      %v449 = vunpack.c.l.b16 %v295
      %v450 = vunpack.c.h.b16 %v295
      %v451 = vunpack.c.l.b16 %v296
      %v452 = vunpack.c.h.b16 %v296
      %v453 = vunpack.c.l.b16 %v297
      %v454 = vunpack.c.h.b16 %v297
      %v455 = vunpack.c.l.b16 %v298
      %v456 = vunpack.c.h.b16 %v298
      %v457 = vunpack.c.l.b16 %v299
      %v458 = vunpack.c.h.b16 %v299
      %v459 = vunpack.c.l.b16 %v300
      %v460 = vunpack.c.h.b16 %v300
      %v461 = vunpack.c.l.b16 %v301
      %v462 = vunpack.c.h.b16 %v301
      %v463 = vunpack.c.l.b16 %v302
      %v464 = vunpack.c.h.b16 %v302
      %v465 = vunpack.c.l.b16 %v303
      %v466 = vunpack.c.h.b16 %v303
      %v467 = vunpack.c.l.b16 %v304
      %v468 = vunpack.c.h.b16 %v304
      %v469 = vunpack.c.l.b16 %v305
      %v470 = vunpack.c.h.b16 %v305
      %v471 = vunpack.c.l.b16 %v306
      %v472 = vunpack.c.h.b16 %v306
      %v473 = vunpack.c.l.b16 %v307
      %v474 = vunpack.c.h.b16 %v307
      %v475 = vunpack.c.l.b16 %v308
      %v476 = vunpack.c.h.b16 %v308
      %v477 = vunpack.c.l.b16 %v309
      %v478 = vunpack.c.h.b16 %v309
      %v479 = vunpack.c.l.b16 %v310
      %v480 = vunpack.c.h.b16 %v310
      %v481 = vunpack.c.l.b16 %v311
      %v482 = vunpack.c.h.b16 %v311
      %v483 = vunpack.c.l.b16 %v312
      %v484 = vunpack.c.h.b16 %v312
      %v485 = vunpack.c.l.b16 %v313
      %v486 = vunpack.c.h.b16 %v313
      %v487 = vunpack.c.l.b16 %v314
      %v488 = vunpack.c.h.b16 %v314
      %v489 = vunpack.c.l.b16 %v315
      %v490 = vunpack.c.h.b16 %v315
      %v491 = vunpack.c.l.b16 %v316
      %v492 = vunpack.c.h.b16 %v316
      %v493 = vunpack.c.l.b16 %v317
      %v494 = vunpack.c.h.b16 %v317
      %v495 = vunpack.c.l.b16 %v318
      %v496 = vunpack.c.h.b16 %v318
      %v497 = vunpack.c.l.b16 %v319
      %v498 = vunpack.c.h.b16 %v319
      %v499 = vunpack.c.l.b16 %v320
      %v500 = vunpack.c.h.b16 %v320
      %v501 = vunpack.c.l.b16 %v321
      %v502 = vunpack.c.h.b16 %v321
      %v503 = vunpack.c.l.b16 %v322
      %v504 = vunpack.c.h.b16 %v322
      %v505 = vunpack.c.l.b16 %v323
      %v506 = vunpack.c.h.b16 %v323
      %v507 = vunpack.c.l.b16 %v324
      %v508 = vunpack.c.h.b16 %v324
      %v509 = vunpack.c.l.b16 %v325
      %v510 = vunpack.c.h.b16 %v325
      %v511 = vunpack.c.l.b16 %v326
      %v512 = vunpack.c.h.b16 %v326
      %v513 = vunpack.c.l.b16 %v327
      %v514 = vunpack.c.h.b16 %v327
      %v515 = vunpack.c.l.b16 %v328
      %v516 = vunpack.c.h.b16 %v328
      %v517 = vunpack.c.l.b16 %v329
      %v518 = vunpack.c.h.b16 %v329
      %v519 = vpack.c.b16 %v421, %v419
      %v520 = vpack.c.b16 %v422, %v420
      %v521 = vpack.c.b16 %v425, %v423
      %v522 = vpack.c.b16 %v426, %v424
      %v523 = vpack.c.b16 %v429, %v427
      %v524 = vpack.c.b16 %v430, %v428
      %v525 = vpack.c.b16 %v433, %v431
      %v526 = vpack.c.b16 %v434, %v432
      %v527 = vpack.c.b16 %v437, %v435
      %v528 = vpack.c.b16 %v438, %v436
      %v529 = vpack.c.b16 %v441, %v439
      %v530 = vpack.c.b16 %v442, %v440
      %v531 = vpack.c.b16 %v445, %v443
      %v532 = vpack.c.b16 %v446, %v444
      %v533 = vpack.c.b16 %v449, %v447
      %v534 = vpack.c.b16 %v450, %v448
      %v535 = vpack.c.b16 %v453, %v451
      %v536 = vpack.c.b16 %v454, %v452
      %v537 = vpack.c.b16 %v457, %v455
      %v538 = vpack.c.b16 %v458, %v456
      %v539 = vpack.c.b16 %v461, %v459
      %v540 = vpack.c.b16 %v462, %v460
      %v541 = vpack.c.b16 %v465, %v463
      %v542 = vpack.c.b16 %v466, %v464
      %v543 = vpack.c.b16 %v469, %v467
      %v544 = vpack.c.b16 %v470, %v468
      %v545 = vpack.c.b16 %v473, %v471
      %v546 = vpack.c.b16 %v474, %v472
      %v547 = vpack.c.b16 %v477, %v475
      %v548 = vpack.c.b16 %v478, %v476
      %v549 = vpack.c.b16 %v481, %v479
      %v550 = vpack.c.b16 %v482, %v480
      %v551 = vpack.c.b16 %v485, %v483
      %v552 = vpack.c.b16 %v486, %v484
      %v553 = vpack.c.b16 %v489, %v487
      %v554 = vpack.c.b16 %v490, %v488
      %v555 = vpack.c.b16 %v493, %v491
      %v556 = vpack.c.b16 %v494, %v492
      %v557 = vpack.c.b16 %v497, %v495
      %v558 = vpack.c.b16 %v498, %v496
      %v559 = vpack.c.b16 %v501, %v499
      %v560 = vpack.c.b16 %v502, %v500
      %v561 = vpack.c.b16 %v505, %v503
      %v562 = vpack.c.b16 %v506, %v504
      %v563 = vpack.c.b16 %v509, %v507
      %v564 = vpack.c.b16 %v510, %v508
      %v565 = vpack.c.b16 %v513, %v511
      %v566 = vpack.c.b16 %v514, %v512
      %v567 = vpack.c.b16 %v517, %v515
      %v568 = vpack.c.b16 %v518, %v516
      %v651 = vunpack.c.l.b16 %v330
      %v652 = vunpack.c.l.b16 %v331
      %v653 = vunpack.c.l.b16 %v332
      %v654 = vunpack.c.l.b16 %v333
      %v655 = vunpack.c.l.b16 %v334
      %v656 = vunpack.c.l.b16 %v335
      %v657 = vunpack.c.l.b16 %v336
      %v658 = vunpack.c.l.b16 %v337
      %v659 = vunpack.c.l.b16 %v338
      %v660 = vunpack.c.l.b16 %v339
      %v661 = vunpack.c.l.b16 %v340
      %v662 = vunpack.c.l.b16 %v341
      %v663 = vunpack.c.l.b16 %v342
      %v664 = vunpack.c.l.b16 %v343
      %v665 = vunpack.c.l.b16 %v344
      %v666 = vunpack.c.l.b16 %v345
      %v667 = vunpack.c.l.b16 %v346
      %v668 = vunpack.c.l.b16 %v347
      %v669 = vunpack.c.l.b16 %v348
      %v670 = vunpack.c.l.b16 %v349
      %v671 = vunpack.c.l.b16 %v350
      %v672 = vunpack.c.l.b16 %v351
      %v673 = vunpack.c.l.b16 %v352
      %v674 = vunpack.c.l.b16 %v353
      %v675 = vunpack.c.l.b16 %v354
      %v676 = vunpack.c.l.b16 %v355
      %v677 = vunpack.c.l.b16 %v356
      %v678 = vunpack.c.l.b16 %v357
      %v679 = vunpack.c.l.b16 %v358
      %v680 = vunpack.c.l.b16 %v359
      %v681 = vunpack.c.l.b16 %v360
      %v682 = vunpack.c.l.b16 %v361
      %v683 = vpack.c.b16 %v652, %v651
      %v684 = vpack.c.b16 %v654, %v653
      %v685 = vpack.c.b16 %v656, %v655
      %v686 = vpack.c.b16 %v658, %v657
      %v687 = vpack.c.b16 %v660, %v659
      %v688 = vpack.c.b16 %v662, %v661
      %v689 = vpack.c.b16 %v664, %v663
      %v690 = vpack.c.b16 %v666, %v665
      %v691 = vpack.c.b16 %v668, %v667
      %v692 = vpack.c.b16 %v670, %v669
      %v693 = vpack.c.b16 %v672, %v671
      %v694 = vpack.c.b16 %v674, %v673
      %v695 = vpack.c.b16 %v676, %v675
      %v696 = vpack.c.b16 %v678, %v677
      %v697 = vpack.c.b16 %v680, %v679
      %v698 = vpack.c.b16 %v682, %v681
      %715 = vmatprep.subr.bf16.mxu0 0
      %716 = vmatpush1.bf16.msra.mxu0 %v690
      %717 = vmatprep.subr.bf16.mxu0 0
      %718 = vmatpush1.bf16.msra.mxu0 %v689
      %719 = vmatprep.subr.bf16.mxu0 0
      %720 = vmatpush1.bf16.msra.mxu0 %v688
      %721 = vmatprep.subr.bf16.mxu0 0
      %722 = vmatpush1.bf16.msra.mxu0 %v687
      %723 = vmatprep.subr.bf16.mxu0 0
      %724 = vmatpush1.bf16.msra.mxu0 %v686
      %725 = vmatprep.subr.bf16.mxu0 0
      %726 = vmatpush1.bf16.msra.mxu0 %v685
      %727 = vmatprep.subr.bf16.mxu0 0
      %728 = vmatpush1.bf16.msra.mxu0 %v684
      %729 = vmatprep.subr.bf16.mxu0 0
      %730 = vmatpush1.bf16.msra.mxu0 %v683
      %731 = vmatprep.subr.bf16.mxu0 0
      %732 = vmatpush2.bf16.msra.mxu0 %v698
      %733 = vmatprep.subr.bf16.mxu0 0
      %734 = vmatpush2.bf16.msra.mxu0 %v697
      %735 = vmatprep.subr.bf16.mxu0 0
      %736 = vmatpush2.bf16.msra.mxu0 %v696
      %737 = vmatprep.subr.bf16.mxu0 0
      %738 = vmatpush2.bf16.msra.mxu0 %v695
      %739 = vmatprep.subr.bf16.mxu0 0
      %740 = vmatpush2.bf16.msra.mxu0 %v694
      %741 = vmatprep.subr.bf16.mxu0 0
      %742 = vmatpush2.bf16.msra.mxu0 %v693
      %743 = vmatprep.subr.bf16.mxu0 0
      %744 = vmatpush2.bf16.msra.mxu0 %v692
      %745 = vmatprep.subr.bf16.mxu0 0
      %746 = vmatpush2.bf16.msra.mxu0 %v691
      %747 = vmatprep.mubr.bf16.mxu0 %v520
      %748 = vmatmul.mubr.bf16.gmra.mxu0 %v519
      %v749 = vpop.f32.mrf.mxu0
      %v750 = vadd.f32 %v367, %v749
      %v751 = vpop.f32.mrf.mxu0
      %v752 = vpop.f32.mrf.mxu0
      %v753 = vadd.f32 %v367, %v752
      %v754 = vpop.f32.mrf.mxu0
      %755 = vmatprep.mubr.bf16.mxu0 %v522
      %756 = vmatmul.mubr.bf16.gmra.mxu0 %v521
      %v757 = vpop.f32.mrf.mxu0
      %v758 = vadd.f32 %v367, %v757
      %v759 = vpop.f32.mrf.mxu0
      %v760 = vpop.f32.mrf.mxu0
      %v761 = vadd.f32 %v367, %v760
      %v762 = vpop.f32.mrf.mxu0
      %763 = vmatprep.mubr.bf16.mxu0 %v524
      %764 = vmatmul.mubr.bf16.gmra.mxu0 %v523
      %v765 = vpop.f32.mrf.mxu0
      %v766 = vadd.f32 %v367, %v765
      %v767 = vpop.f32.mrf.mxu0
      %v768 = vpop.f32.mrf.mxu0
      %v769 = vadd.f32 %v367, %v768
      %v770 = vpop.f32.mrf.mxu0
      %771 = vmatprep.mubr.bf16.mxu0 %v526
      %772 = vmatmul.mubr.bf16.gmra.mxu0 %v525
      %v773 = vpop.f32.mrf.mxu0
      %v774 = vadd.f32 %v367, %v773
      %v775 = vpop.f32.mrf.mxu0
      %v776 = vpop.f32.mrf.mxu0
      %v777 = vadd.f32 %v367, %v776
      %v778 = vpop.f32.mrf.mxu0
      %779 = vmatprep.mubr.bf16.mxu0 %v528
      %780 = vmatmul.mubr.bf16.gmra.mxu0 %v527
      %v781 = vpop.f32.mrf.mxu0
      %v782 = vadd.f32 %v367, %v781
      %v783 = vpop.f32.mrf.mxu0
      %v784 = vpop.f32.mrf.mxu0
      %v785 = vadd.f32 %v367, %v784
      %v786 = vpop.f32.mrf.mxu0
      %787 = vmatprep.mubr.bf16.mxu0 %v530
      %788 = vmatmul.mubr.bf16.gmra.mxu0 %v529
      %v789 = vpop.f32.mrf.mxu0
      %v790 = vadd.f32 %v367, %v789
      %v791 = vpop.f32.mrf.mxu0
      %v792 = vpop.f32.mrf.mxu0
      %v793 = vadd.f32 %v367, %v792
      %v794 = vpop.f32.mrf.mxu0
      %795 = vmatprep.mubr.bf16.mxu0 %v532
      %796 = vmatmul.mubr.bf16.gmra.mxu0 %v531
      %v797 = vpop.f32.mrf.mxu0
      %v798 = vadd.f32 %v367, %v797
      %v799 = vpop.f32.mrf.mxu0
      %v800 = vpop.f32.mrf.mxu0
      %v801 = vadd.f32 %v367, %v800
      %v802 = vpop.f32.mrf.mxu0
      %803 = vmatprep.mubr.bf16.mxu0 %v534
      %804 = vmatmul.mubr.bf16.gmra.mxu0 %v533
      %v805 = vpop.f32.mrf.mxu0
      %v806 = vadd.f32 %v367, %v805
      %v807 = vpop.f32.mrf.mxu0
      %v808 = vpop.f32.mrf.mxu0
      %v809 = vadd.f32 %v367, %v808
      %v810 = vpop.f32.mrf.mxu0
      %811 = vmatprep.mubr.bf16.mxu0 %v536
      %812 = vmatmul.mubr.bf16.gmra.mxu0 %v535
      %v813 = vpop.f32.mrf.mxu0
      %v814 = vadd.f32 %v367, %v813
      %v815 = vpop.f32.mrf.mxu0
      %v816 = vpop.f32.mrf.mxu0
      %v817 = vadd.f32 %v367, %v816
      %v818 = vpop.f32.mrf.mxu0
      %819 = vmatprep.mubr.bf16.mxu0 %v538
      %820 = vmatmul.mubr.bf16.gmra.mxu0 %v537
      %v821 = vpop.f32.mrf.mxu0
      %v822 = vadd.f32 %v367, %v821
      %v823 = vpop.f32.mrf.mxu0
      %v824 = vpop.f32.mrf.mxu0
      %v825 = vadd.f32 %v367, %v824
      %v826 = vpop.f32.mrf.mxu0
      %827 = vmatprep.mubr.bf16.mxu0 %v540
      %828 = vmatmul.mubr.bf16.gmra.mxu0 %v539
      %v829 = vpop.f32.mrf.mxu0
      %v830 = vadd.f32 %v367, %v829
      %v831 = vpop.f32.mrf.mxu0
      %v832 = vpop.f32.mrf.mxu0
      %v833 = vadd.f32 %v367, %v832
      %v834 = vpop.f32.mrf.mxu0
      %835 = vmatprep.mubr.bf16.mxu0 %v542
      %836 = vmatmul.mubr.bf16.gmra.mxu0 %v541
      %v837 = vpop.f32.mrf.mxu0
      %v838 = vadd.f32 %v367, %v837
      %v839 = vpop.f32.mrf.mxu0
      %v840 = vpop.f32.mrf.mxu0
      %v841 = vadd.f32 %v367, %v840
      %v842 = vpop.f32.mrf.mxu0
      %843 = vmatprep.mubr.bf16.mxu0 %v544
      %844 = vmatmul.mubr.bf16.gmra.mxu0 %v543
      %v845 = vpop.f32.mrf.mxu0
      %v846 = vadd.f32 %v367, %v845
      %v847 = vpop.f32.mrf.mxu0
      %v848 = vpop.f32.mrf.mxu0
      %v849 = vadd.f32 %v367, %v848
      %v850 = vpop.f32.mrf.mxu0
      %851 = vmatprep.mubr.bf16.mxu0 %v546
      %852 = vmatmul.mubr.bf16.gmra.mxu0 %v545
      %v853 = vpop.f32.mrf.mxu0
      %v854 = vadd.f32 %v367, %v853
      %v855 = vpop.f32.mrf.mxu0
      %v856 = vpop.f32.mrf.mxu0
      %v857 = vadd.f32 %v367, %v856
      %v858 = vpop.f32.mrf.mxu0
      %859 = vmatprep.mubr.bf16.mxu0 %v548
      %860 = vmatmul.mubr.bf16.gmra.mxu0 %v547
      %v861 = vpop.f32.mrf.mxu0
      %v862 = vadd.f32 %v367, %v861
      %v863 = vpop.f32.mrf.mxu0
      %v864 = vpop.f32.mrf.mxu0
      %v865 = vadd.f32 %v367, %v864
      %v866 = vpop.f32.mrf.mxu0
      %867 = vmatprep.mubr.bf16.mxu0 %v550
      %868 = vmatmul.mubr.bf16.gmra.mxu0 %v549
      %v869 = vpop.f32.mrf.mxu0
      %v870 = vadd.f32 %v367, %v869
      %v871 = vpop.f32.mrf.mxu0
      %v872 = vpop.f32.mrf.mxu0
      %v873 = vadd.f32 %v367, %v872
      %v874 = vpop.f32.mrf.mxu0
      %875 = vmatprep.mubr.bf16.mxu0 %v552
      %876 = vmatmul.mubr.bf16.gmra.mxu0 %v551
      %v877 = vpop.f32.mrf.mxu0
      %v878 = vadd.f32 %v367, %v877
      %v879 = vpop.f32.mrf.mxu0
      %v880 = vpop.f32.mrf.mxu0
      %v881 = vadd.f32 %v367, %v880
      %v882 = vpop.f32.mrf.mxu0
      %883 = vmatprep.mubr.bf16.mxu0 %v554
      %884 = vmatmul.mubr.bf16.gmra.mxu0 %v553
      %v885 = vpop.f32.mrf.mxu0
      %v886 = vadd.f32 %v367, %v885
      %v887 = vpop.f32.mrf.mxu0
      %v888 = vpop.f32.mrf.mxu0
      %v889 = vadd.f32 %v367, %v888
      %v890 = vpop.f32.mrf.mxu0
      %891 = vmatprep.mubr.bf16.mxu0 %v556
      %892 = vmatmul.mubr.bf16.gmra.mxu0 %v555
      %v893 = vpop.f32.mrf.mxu0
      %v894 = vadd.f32 %v367, %v893
      %v895 = vpop.f32.mrf.mxu0
      %v896 = vpop.f32.mrf.mxu0
      %v897 = vadd.f32 %v367, %v896
      %v898 = vpop.f32.mrf.mxu0
      %899 = vmatprep.mubr.bf16.mxu0 %v558
      %900 = vmatmul.mubr.bf16.gmra.mxu0 %v557
      %v901 = vpop.f32.mrf.mxu0
      %v902 = vadd.f32 %v367, %v901
      %v903 = vpop.f32.mrf.mxu0
      %v904 = vpop.f32.mrf.mxu0
      %v905 = vadd.f32 %v367, %v904
      %v906 = vpop.f32.mrf.mxu0
      %907 = vmatprep.mubr.bf16.mxu0 %v560
      %908 = vmatmul.mubr.bf16.gmra.mxu0 %v559
      %v909 = vpop.f32.mrf.mxu0
      %v910 = vadd.f32 %v367, %v909
      %v911 = vpop.f32.mrf.mxu0
      %v912 = vpop.f32.mrf.mxu0
      %v913 = vadd.f32 %v367, %v912
      %v914 = vpop.f32.mrf.mxu0
      %915 = vmatprep.mubr.bf16.mxu0 %v562
      %916 = vmatmul.mubr.bf16.gmra.mxu0 %v561
      %v917 = vpop.f32.mrf.mxu0
      %v918 = vadd.f32 %v367, %v917
      %v919 = vpop.f32.mrf.mxu0
      %v920 = vpop.f32.mrf.mxu0
      %v921 = vadd.f32 %v367, %v920
      %v922 = vpop.f32.mrf.mxu0
      %923 = vmatprep.mubr.bf16.mxu0 %v564
      %924 = vmatmul.mubr.bf16.gmra.mxu0 %v563
      %v925 = vpop.f32.mrf.mxu0
      %v926 = vadd.f32 %v367, %v925
      %v927 = vpop.f32.mrf.mxu0
      %v928 = vpop.f32.mrf.mxu0
      %v929 = vadd.f32 %v367, %v928
      %v930 = vpop.f32.mrf.mxu0
      %931 = vmatprep.mubr.bf16.mxu0 %v566
      %932 = vmatmul.mubr.bf16.gmra.mxu0 %v565
      %v933 = vpop.f32.mrf.mxu0
      %v934 = vadd.f32 %v367, %v933
      %v935 = vpop.f32.mrf.mxu0
      %v936 = vpop.f32.mrf.mxu0
      %v937 = vadd.f32 %v367, %v936
      %v938 = vpop.f32.mrf.mxu0
      %939 = vmatprep.mubr.bf16.mxu0 %v568
      %940 = vmatmul.mubr.bf16.gmra.mxu0 %v567
      %v941 = vpop.f32.mrf.mxu0
      %v942 = vadd.f32 %v367, %v941
      %v943 = vpop.f32.mrf.mxu0
      %v944 = vpop.f32.mrf.mxu0
      %v945 = vadd.f32 %v367, %v944
      %v946 = vpop.f32.mrf.mxu0
      %947 = vdwg.mxu0
      %v948 = vmax.f32 %v750, 0.0
      %v949 = vmax.f32 %v753, 0.0
      %v950 = vmax.f32 %v758, 0.0
      %v951 = vmax.f32 %v761, 0.0
      %v952 = vmax.f32 %v766, 0.0
      %v953 = vmax.f32 %v769, 0.0
      %v954 = vmax.f32 %v774, 0.0
      %v955 = vmax.f32 %v777, 0.0
      %v956 = vmax.f32 %v782, 0.0
      %v957 = vmax.f32 %v785, 0.0
      %v958 = vmax.f32 %v790, 0.0
      %v959 = vmax.f32 %v793, 0.0
      %v960 = vmax.f32 %v798, 0.0
      %v961 = vmax.f32 %v801, 0.0
      %v962 = vmax.f32 %v806, 0.0
      %v963 = vmax.f32 %v809, 0.0
      %v964 = vmax.f32 %v814, 0.0
      %v965 = vmax.f32 %v817, 0.0
      %v966 = vmax.f32 %v822, 0.0
      %v967 = vmax.f32 %v825, 0.0
      %v968 = vmax.f32 %v830, 0.0
      %v969 = vmax.f32 %v833, 0.0
      %v970 = vmax.f32 %v838, 0.0
      %v971 = vmax.f32 %v841, 0.0
      %v972 = vmax.f32 %v846, 0.0
      %v973 = vmax.f32 %v849, 0.0
      %v974 = vmax.f32 %v854, 0.0
      %v975 = vmax.f32 %v857, 0.0
      %v976 = vmax.f32 %v862, 0.0
      %v977 = vmax.f32 %v865, 0.0
      %v978 = vmax.f32 %v870, 0.0
      %v979 = vmax.f32 %v873, 0.0
      %v980 = vmax.f32 %v878, 0.0
      %v981 = vmax.f32 %v881, 0.0
      %v982 = vmax.f32 %v886, 0.0
      %v983 = vmax.f32 %v889, 0.0
      %v984 = vmax.f32 %v894, 0.0
      %v985 = vmax.f32 %v897, 0.0
      %v986 = vmax.f32 %v902, 0.0
      %v987 = vmax.f32 %v905, 0.0
      %v988 = vmax.f32 %v910, 0.0
      %v989 = vmax.f32 %v913, 0.0
      %v990 = vmax.f32 %v918, 0.0
      %v991 = vmax.f32 %v921, 0.0
      %v992 = vmax.f32 %v926, 0.0
      %v993 = vmax.f32 %v929, 0.0
      %v994 = vmax.f32 %v934, 0.0
      %v995 = vmax.f32 %v937, 0.0
      %v996 = vmax.f32 %v942, 0.0
      %v997 = vmax.f32 %v945, 0.0
      %vm998 = vcmask 261120
      %999 = vst.msk [vmem:[#allocation2] sm:$0xff] %vm998, %v948
      %1000 = vst.msk [vmem:[#allocation2 + $0x8] sm:$0xff] %vm998, %v949
      %1001 = vst.msk [vmem:[#allocation2 + $0x10] sm:$0xff] %vm998, %v950
      %1002 = vst.msk [vmem:[#allocation2 + $0x18] sm:$0xff] %vm998, %v951
      %1003 = vst.msk [vmem:[#allocation2 + $0x20] sm:$0xff] %vm998, %v952
      %1004 = vst.msk [vmem:[#allocation2 + $0x28] sm:$0xff] %vm998, %v953
      %1005 = vst.msk [vmem:[#allocation2 + $0x30] sm:$0xff] %vm998, %v954
      %1006 = vst.msk [vmem:[#allocation2 + $0x38] sm:$0xff] %vm998, %v955
      %1007 = vst.msk [vmem:[#allocation2 + $0x40] sm:$0xff] %vm998, %v956
      %1008 = vst.msk [vmem:[#allocation2 + $0x48] sm:$0xff] %vm998, %v957
      %1009 = vst.msk [vmem:[#allocation2 + $0x50] sm:$0xff] %vm998, %v958
      %1010 = vst.msk [vmem:[#allocation2 + $0x58] sm:$0xff] %vm998, %v959
      %1011 = vst.msk [vmem:[#allocation2 + $0x60] sm:$0xff] %vm998, %v960
      %1012 = vst.msk [vmem:[#allocation2 + $0x68] sm:$0xff] %vm998, %v961
      %1013 = vst.msk [vmem:[#allocation2 + $0x70] sm:$0xff] %vm998, %v962
      %1014 = vst.msk [vmem:[#allocation2 + $0x78] sm:$0xff] %vm998, %v963
      %1015 = vst.msk [vmem:[#allocation2 + $0x80] sm:$0xff] %vm998, %v964
      %1016 = vst.msk [vmem:[#allocation2 + $0x88] sm:$0xff] %vm998, %v965
      %1017 = vst.msk [vmem:[#allocation2 + $0x90] sm:$0xff] %vm998, %v966
      %1018 = vst.msk [vmem:[#allocation2 + $0x98] sm:$0xff] %vm998, %v967
      %1019 = vst.msk [vmem:[#allocation2 + $0xa0] sm:$0xff] %vm998, %v968
      %1020 = vst.msk [vmem:[#allocation2 + $0xa8] sm:$0xff] %vm998, %v969
      %1021 = vst.msk [vmem:[#allocation2 + $0xb0] sm:$0xff] %vm998, %v970
      %1022 = vst.msk [vmem:[#allocation2 + $0xb8] sm:$0xff] %vm998, %v971
      %1023 = vst.msk [vmem:[#allocation2 + $0xc0] sm:$0xff] %vm998, %v972
      %1024 = vst.msk [vmem:[#allocation2 + $0xc8] sm:$0xff] %vm998, %v973
      %1025 = vst.msk [vmem:[#allocation2 + $0xd0] sm:$0xff] %vm998, %v974
      %1026 = vst.msk [vmem:[#allocation2 + $0xd8] sm:$0xff] %vm998, %v975
      %1027 = vst.msk [vmem:[#allocation2 + $0xe0] sm:$0xff] %vm998, %v976
      %1028 = vst.msk [vmem:[#allocation2 + $0xe8] sm:$0xff] %vm998, %v977
      %1029 = vst.msk [vmem:[#allocation2 + $0xf0] sm:$0xff] %vm998, %v978
      %1030 = vst.msk [vmem:[#allocation2 + $0xf8] sm:$0xff] %vm998, %v979
      %1031 = vst.msk [vmem:[#allocation2 + $0x100] sm:$0xff] %vm998, %v980
      %1032 = vst.msk [vmem:[#allocation2 + $0x108] sm:$0xff] %vm998, %v981
      %1033 = vst.msk [vmem:[#allocation2 + $0x110] sm:$0xff] %vm998, %v982
      %1034 = vst.msk [vmem:[#allocation2 + $0x118] sm:$0xff] %vm998, %v983
      %1035 = vst.msk [vmem:[#allocation2 + $0x120] sm:$0xff] %vm998, %v984
      %1036 = vst.msk [vmem:[#allocation2 + $0x128] sm:$0xff] %vm998, %v985
      %1037 = vst.msk [vmem:[#allocation2 + $0x130] sm:$0xff] %vm998, %v986
      %1038 = vst.msk [vmem:[#allocation2 + $0x138] sm:$0xff] %vm998, %v987
      %1039 = vst.msk [vmem:[#allocation2 + $0x140] sm:$0xff] %vm998, %v988
      %1040 = vst.msk [vmem:[#allocation2 + $0x148] sm:$0xff] %vm998, %v989
      %1041 = vst.msk [vmem:[#allocation2 + $0x150] sm:$0xff] %vm998, %v990
      %1042 = vst.msk [vmem:[#allocation2 + $0x158] sm:$0xff] %vm998, %v991
      %1043 = vst.msk [vmem:[#allocation2 + $0x160] sm:$0xff] %vm998, %v992
      %1044 = vst.msk [vmem:[#allocation2 + $0x168] sm:$0xff] %vm998, %v993
      %1045 = vst.msk [vmem:[#allocation2 + $0x170] sm:$0xff] %vm998, %v994
      %1046 = vst.msk [vmem:[#allocation2 + $0x178] sm:$0xff] %vm998, %v995
      %1047 = vst.msk [vmem:[#allocation2 + $0x180] sm:$0xff] %vm998, %v996
      %1048 = vst.msk [vmem:[#allocation2 + $0x188] sm:$0xff] %vm998, %v997
      %1049 = vst.msk [vmem:[#allocation2 + $0x190] sm:$0xff] %vm998, 0.0
      %v1050 = vld [vmem:[#allocation2] sm:$0xff]
      %v1051 = vld [vmem:[#allocation2 + $0x8] sm:$0xff]
      %v1052 = vld [vmem:[#allocation2 + $0x10] sm:$0xff]
      %v1053 = vld [vmem:[#allocation2 + $0x18] sm:$0xff]
      %v1054 = vld [vmem:[#allocation2 + $0x20] sm:$0xff]
      %v1055 = vld [vmem:[#allocation2 + $0x28] sm:$0xff]
      %v1056 = vld [vmem:[#allocation2 + $0x30] sm:$0xff]
      %v1057 = vld [vmem:[#allocation2 + $0x38] sm:$0xff]
      %v1058 = vld [vmem:[#allocation2 + $0x40] sm:$0xff]
      %v1059 = vld [vmem:[#allocation2 + $0x48] sm:$0xff]
      %v1060 = vld [vmem:[#allocation2 + $0x50] sm:$0xff]
      %v1061 = vld [vmem:[#allocation2 + $0x58] sm:$0x3]
      %1062 = vst.msk [vmem:[#allocation3] sm:$0xff] %vm998, %v1050
      %1063 = vst.msk [vmem:[#allocation3 + $0x20] sm:$0xff] %vm998, %v1051
      %1064 = vst.msk [vmem:[#allocation3 + $0x40] sm:$0xff] %vm998, %v1052
      %1065 = vst.msk [vmem:[#allocation3 + $0x60] sm:$0xff] %vm998, %v1053
      %1066 = vst.msk [vmem:[#allocation3 + $0x80] sm:$0xff] %vm998, %v1054
      %1067 = vst.msk [vmem:[#allocation3 + $0xa0] sm:$0xff] %vm998, %v1055
      %1068 = vst.msk [vmem:[#allocation3 + $0xc0] sm:$0xff] %vm998, %v1056
      %1069 = vst.msk [vmem:[#allocation3 + $0xe0] sm:$0xff] %vm998, %v1057
      %1070 = vst.msk [vmem:[#allocation3 + $0x100] sm:$0xff] %vm998, %v1058
      %1071 = vst.msk [vmem:[#allocation3 + $0x120] sm:$0xff] %vm998, %v1059
      %1072 = vst.msk [vmem:[#allocation3 + $0x140] sm:$0xff] %vm998, %v1060
      %vm1073 = vcmask 254976
      %1074 = vst.msk [vmem:[#allocation3 + $0x160] sm:$0x3] %vm1073, %v1061
      %v1075 = vld [vmem:[#allocation2 + $0x64] sm:$0xff]
      %v1076 = vld [vmem:[#allocation2 + $0x6c] sm:$0xff]
      %v1077 = vld [vmem:[#allocation2 + $0x74] sm:$0xff]
      %v1078 = vld [vmem:[#allocation2 + $0x7c] sm:$0xff]
      %v1079 = vld [vmem:[#allocation2 + $0x84] sm:$0xff]
      %v1080 = vld [vmem:[#allocation2 + $0x8c] sm:$0xff]
      %v1081 = vld [vmem:[#allocation2 + $0x94] sm:$0xff]
      %v1082 = vld [vmem:[#allocation2 + $0x9c] sm:$0xff]
      %v1083 = vld [vmem:[#allocation2 + $0xa4] sm:$0xff]
      %v1084 = vld [vmem:[#allocation2 + $0xac] sm:$0xff]
      %v1085 = vld [vmem:[#allocation2 + $0xb4] sm:$0xff]
      %v1086 = vld [vmem:[#allocation2 + $0xbc] sm:$0x3]
      %1099 = vrot.lane.b32.xlu0 %v1075, 32
      %v1100 = vpop.permute.xlu0 %1099
      %1101 = vrot.lane.b32.xlu0 %v1076, 32
      %v1102 = vpop.permute.xlu0 %1101
      %1103 = vrot.lane.b32.xlu0 %v1077, 32
      %v1104 = vpop.permute.xlu0 %1103
      %1105 = vrot.lane.b32.xlu0 %v1078, 32
      %v1106 = vpop.permute.xlu0 %1105
      %1107 = vrot.lane.b32.xlu0 %v1079, 32
      %v1108 = vpop.permute.xlu0 %1107
      %1109 = vrot.lane.b32.xlu0 %v1080, 32
      %v1110 = vpop.permute.xlu0 %1109
      %1111 = vrot.lane.b32.xlu0 %v1081, 32
      %v1112 = vpop.permute.xlu0 %1111
      %1113 = vrot.lane.b32.xlu0 %v1082, 32
      %v1114 = vpop.permute.xlu0 %1113
      %1115 = vrot.lane.b32.xlu0 %v1083, 32
      %v1116 = vpop.permute.xlu0 %1115
      %1117 = vrot.lane.b32.xlu0 %v1084, 32
      %v1118 = vpop.permute.xlu0 %1117
      %1119 = vrot.lane.b32.xlu0 %v1085, 32
      %v1120 = vpop.permute.xlu0 %1119
      %1121 = vrot.lane.b32.xlu0 %v1086, 32
      %v1122 = vpop.permute.xlu0 %1121
      %vm1135 = vcmask 523520
      %1136 = vst.msk [vmem:[#allocation3] sm:$0xff] %vm1135, %v1100
      %1137 = vst.msk [vmem:[#allocation3 + $0x20] sm:$0xff] %vm1135, %v1102
      %1138 = vst.msk [vmem:[#allocation3 + $0x40] sm:$0xff] %vm1135, %v1104
      %1139 = vst.msk [vmem:[#allocation3 + $0x60] sm:$0xff] %vm1135, %v1106
      %1140 = vst.msk [vmem:[#allocation3 + $0x80] sm:$0xff] %vm1135, %v1108
      %1141 = vst.msk [vmem:[#allocation3 + $0xa0] sm:$0xff] %vm1135, %v1110
      %1142 = vst.msk [vmem:[#allocation3 + $0xc0] sm:$0xff] %vm1135, %v1112
      %1143 = vst.msk [vmem:[#allocation3 + $0xe0] sm:$0xff] %vm1135, %v1114
      %1144 = vst.msk [vmem:[#allocation3 + $0x100] sm:$0xff] %vm1135, %v1116
      %1145 = vst.msk [vmem:[#allocation3 + $0x120] sm:$0xff] %vm1135, %v1118
      %1146 = vst.msk [vmem:[#allocation3 + $0x140] sm:$0xff] %vm1135, %v1120
      %vm1147 = vcmask 517376
      %1148 = vst.msk [vmem:[#allocation3 + $0x160] sm:$0x3] %vm1147, %v1122
      %v1149 = vld [vmem:[#allocation2 + $0x1] sm:$0xff]
      %v1150 = vld [vmem:[#allocation2 + $0x9] sm:$0xff]
      %v1151 = vld [vmem:[#allocation2 + $0x11] sm:$0xff]
      %v1152 = vld [vmem:[#allocation2 + $0x19] sm:$0xff]
      %v1153 = vld [vmem:[#allocation2 + $0x21] sm:$0xff]
      %v1154 = vld [vmem:[#allocation2 + $0x29] sm:$0xff]
      %v1155 = vld [vmem:[#allocation2 + $0x31] sm:$0xff]
      %v1156 = vld [vmem:[#allocation2 + $0x39] sm:$0xff]
      %v1157 = vld [vmem:[#allocation2 + $0x41] sm:$0xff]
      %v1158 = vld [vmem:[#allocation2 + $0x49] sm:$0xff]
      %v1159 = vld [vmem:[#allocation2 + $0x51] sm:$0xff]
      %v1160 = vld [vmem:[#allocation2 + $0x59] sm:$0x3]
      %1173 = vrot.lane.b32.xlu0 %v1149, 64
      %v1174 = vpop.permute.xlu0 %1173
      %1175 = vrot.lane.b32.xlu0 %v1150, 64
      %v1176 = vpop.permute.xlu0 %1175
      %1177 = vrot.lane.b32.xlu0 %v1151, 64
      %v1178 = vpop.permute.xlu0 %1177
      %1179 = vrot.lane.b32.xlu0 %v1152, 64
      %v1180 = vpop.permute.xlu0 %1179
      %1181 = vrot.lane.b32.xlu0 %v1153, 64
      %v1182 = vpop.permute.xlu0 %1181
      %1183 = vrot.lane.b32.xlu0 %v1154, 64
      %v1184 = vpop.permute.xlu0 %1183
      %1185 = vrot.lane.b32.xlu0 %v1155, 64
      %v1186 = vpop.permute.xlu0 %1185
      %1187 = vrot.lane.b32.xlu0 %v1156, 64
      %v1188 = vpop.permute.xlu0 %1187
      %1189 = vrot.lane.b32.xlu0 %v1157, 64
      %v1190 = vpop.permute.xlu0 %1189
      %1191 = vrot.lane.b32.xlu0 %v1158, 64
      %v1192 = vpop.permute.xlu0 %1191
      %1193 = vrot.lane.b32.xlu0 %v1159, 64
      %v1194 = vpop.permute.xlu0 %1193
      %1195 = vrot.lane.b32.xlu0 %v1160, 64
      %v1196 = vpop.permute.xlu0 %1195
      %vm1209 = vcmask 785920
      %1210 = vst.msk [vmem:[#allocation3] sm:$0xff] %vm1209, %v1174
      %1211 = vst.msk [vmem:[#allocation3 + $0x20] sm:$0xff] %vm1209, %v1176
      %1212 = vst.msk [vmem:[#allocation3 + $0x40] sm:$0xff] %vm1209, %v1178
      %1213 = vst.msk [vmem:[#allocation3 + $0x60] sm:$0xff] %vm1209, %v1180
      %1214 = vst.msk [vmem:[#allocation3 + $0x80] sm:$0xff] %vm1209, %v1182
      %1215 = vst.msk [vmem:[#allocation3 + $0xa0] sm:$0xff] %vm1209, %v1184
      %1216 = vst.msk [vmem:[#allocation3 + $0xc0] sm:$0xff] %vm1209, %v1186
      %1217 = vst.msk [vmem:[#allocation3 + $0xe0] sm:$0xff] %vm1209, %v1188
      %1218 = vst.msk [vmem:[#allocation3 + $0x100] sm:$0xff] %vm1209, %v1190
      %1219 = vst.msk [vmem:[#allocation3 + $0x120] sm:$0xff] %vm1209, %v1192
      %1220 = vst.msk [vmem:[#allocation3 + $0x140] sm:$0xff] %vm1209, %v1194
      %vm1221 = vcmask 779776
      %1222 = vst.msk [vmem:[#allocation3 + $0x160] sm:$0x3] %vm1221, %v1196
      %v1223 = vld [vmem:[#allocation2 + $0x65] sm:$0xff]
      %v1224 = vld [vmem:[#allocation2 + $0x6d] sm:$0xff]
      %v1225 = vld [vmem:[#allocation2 + $0x75] sm:$0xff]
      %v1226 = vld [vmem:[#allocation2 + $0x7d] sm:$0xff]
      %v1227 = vld [vmem:[#allocation2 + $0x85] sm:$0xff]
      %v1228 = vld [vmem:[#allocation2 + $0x8d] sm:$0xff]
      %v1229 = vld [vmem:[#allocation2 + $0x95] sm:$0xff]
      %v1230 = vld [vmem:[#allocation2 + $0x9d] sm:$0xff]
      %v1231 = vld [vmem:[#allocation2 + $0xa5] sm:$0xff]
      %v1232 = vld [vmem:[#allocation2 + $0xad] sm:$0xff]
      %v1233 = vld [vmem:[#allocation2 + $0xb5] sm:$0xff]
      %v1234 = vld [vmem:[#allocation2 + $0xbd] sm:$0x3]
      %1247 = vrot.lane.b32.xlu0 %v1223, 96
      %v1248 = vpop.permute.xlu0 %1247
      %1249 = vrot.lane.b32.xlu0 %v1224, 96
      %v1250 = vpop.permute.xlu0 %1249
      %1251 = vrot.lane.b32.xlu0 %v1225, 96
      %v1252 = vpop.permute.xlu0 %1251
      %1253 = vrot.lane.b32.xlu0 %v1226, 96
      %v1254 = vpop.permute.xlu0 %1253
      %1255 = vrot.lane.b32.xlu0 %v1227, 96
      %v1256 = vpop.permute.xlu0 %1255
      %1257 = vrot.lane.b32.xlu0 %v1228, 96
      %v1258 = vpop.permute.xlu0 %1257
      %1259 = vrot.lane.b32.xlu0 %v1229, 96
      %v1260 = vpop.permute.xlu0 %1259
      %1261 = vrot.lane.b32.xlu0 %v1230, 96
      %v1262 = vpop.permute.xlu0 %1261
      %1263 = vrot.lane.b32.xlu0 %v1231, 96
      %v1264 = vpop.permute.xlu0 %1263
      %1265 = vrot.lane.b32.xlu0 %v1232, 96
      %v1266 = vpop.permute.xlu0 %1265
      %1267 = vrot.lane.b32.xlu0 %v1233, 96
      %v1268 = vpop.permute.xlu0 %1267
      %1269 = vrot.lane.b32.xlu0 %v1234, 96
      %v1270 = vpop.permute.xlu0 %1269
      %vm1283 = vcmask 1048320
      %1284 = vst.msk [vmem:[#allocation3] sm:$0xff] %vm1283, %v1248
      %1285 = vst.msk [vmem:[#allocation3 + $0x20] sm:$0xff] %vm1283, %v1250
      %1286 = vst.msk [vmem:[#allocation3 + $0x40] sm:$0xff] %vm1283, %v1252
      %1287 = vst.msk [vmem:[#allocation3 + $0x60] sm:$0xff] %vm1283, %v1254
      %1288 = vst.msk [vmem:[#allocation3 + $0x80] sm:$0xff] %vm1283, %v1256
      %1289 = vst.msk [vmem:[#allocation3 + $0xa0] sm:$0xff] %vm1283, %v1258
      %1290 = vst.msk [vmem:[#allocation3 + $0xc0] sm:$0xff] %vm1283, %v1260
      %1291 = vst.msk [vmem:[#allocation3 + $0xe0] sm:$0xff] %vm1283, %v1262
      %1292 = vst.msk [vmem:[#allocation3 + $0x100] sm:$0xff] %vm1283, %v1264
      %1293 = vst.msk [vmem:[#allocation3 + $0x120] sm:$0xff] %vm1283, %v1266
      %1294 = vst.msk [vmem:[#allocation3 + $0x140] sm:$0xff] %vm1283, %v1268
      %vm1295 = vcmask 1042176
      %1296 = vst.msk [vmem:[#allocation3 + $0x160] sm:$0x3] %vm1295, %v1270
      %v1297 = vld [vmem:[#allocation2 + $0xc8] sm:$0xff]
      %v1298 = vld [vmem:[#allocation2 + $0xd0] sm:$0xff]
      %v1299 = vld [vmem:[#allocation2 + $0xd8] sm:$0xff]
      %v1300 = vld [vmem:[#allocation2 + $0xe0] sm:$0xff]
      %v1301 = vld [vmem:[#allocation2 + $0xe8] sm:$0xff]
      %v1302 = vld [vmem:[#allocation2 + $0xf0] sm:$0xff]
      %v1303 = vld [vmem:[#allocation2 + $0xf8] sm:$0xff]
      %v1304 = vld [vmem:[#allocation2 + $0x100] sm:$0xff]
      %v1305 = vld [vmem:[#allocation2 + $0x108] sm:$0xff]
      %v1306 = vld [vmem:[#allocation2 + $0x110] sm:$0xff]
      %v1307 = vld [vmem:[#allocation2 + $0x118] sm:$0xff]
      %v1308 = vld [vmem:[#allocation2 + $0x120] sm:$0x3]
      %1309 = vst.msk [vmem:[#allocation3 + $0x8] sm:$0xff] %vm998, %v1297
      %1310 = vst.msk [vmem:[#allocation3 + $0x28] sm:$0xff] %vm998, %v1298
      %1311 = vst.msk [vmem:[#allocation3 + $0x48] sm:$0xff] %vm998, %v1299
      %1312 = vst.msk [vmem:[#allocation3 + $0x68] sm:$0xff] %vm998, %v1300
      %1313 = vst.msk [vmem:[#allocation3 + $0x88] sm:$0xff] %vm998, %v1301
      %1314 = vst.msk [vmem:[#allocation3 + $0xa8] sm:$0xff] %vm998, %v1302
      %1315 = vst.msk [vmem:[#allocation3 + $0xc8] sm:$0xff] %vm998, %v1303
      %1316 = vst.msk [vmem:[#allocation3 + $0xe8] sm:$0xff] %vm998, %v1304
      %1317 = vst.msk [vmem:[#allocation3 + $0x108] sm:$0xff] %vm998, %v1305
      %1318 = vst.msk [vmem:[#allocation3 + $0x128] sm:$0xff] %vm998, %v1306
      %1319 = vst.msk [vmem:[#allocation3 + $0x148] sm:$0xff] %vm998, %v1307
      %1320 = vst.msk [vmem:[#allocation3 + $0x168] sm:$0x3] %vm1073, %v1308
      %v1321 = vld [vmem:[#allocation2 + $0x12c] sm:$0xff]
      %v1322 = vld [vmem:[#allocation2 + $0x134] sm:$0xff]
      %v1323 = vld [vmem:[#allocation2 + $0x13c] sm:$0xff]
      %v1324 = vld [vmem:[#allocation2 + $0x144] sm:$0xff]
      %v1325 = vld [vmem:[#allocation2 + $0x14c] sm:$0xff]
      %v1326 = vld [vmem:[#allocation2 + $0x154] sm:$0xff]
      %v1327 = vld [vmem:[#allocation2 + $0x15c] sm:$0xff]
      %v1328 = vld [vmem:[#allocation2 + $0x164] sm:$0xff]
      %v1329 = vld [vmem:[#allocation2 + $0x16c] sm:$0xff]
      %v1330 = vld [vmem:[#allocation2 + $0x174] sm:$0xff]
      %v1331 = vld [vmem:[#allocation2 + $0x17c] sm:$0xff]
      %v1332 = vld [vmem:[#allocation2 + $0x184] sm:$0x3]
      %1345 = vrot.lane.b32.xlu0 %v1321, 32
      %v1346 = vpop.permute.xlu0 %1345
      %1347 = vrot.lane.b32.xlu0 %v1322, 32
      %v1348 = vpop.permute.xlu0 %1347
      %1349 = vrot.lane.b32.xlu0 %v1323, 32
      %v1350 = vpop.permute.xlu0 %1349
      %1351 = vrot.lane.b32.xlu0 %v1324, 32
      %v1352 = vpop.permute.xlu0 %1351
      %1353 = vrot.lane.b32.xlu0 %v1325, 32
      %v1354 = vpop.permute.xlu0 %1353
      %1355 = vrot.lane.b32.xlu0 %v1326, 32
      %v1356 = vpop.permute.xlu0 %1355
      %1357 = vrot.lane.b32.xlu0 %v1327, 32
      %v1358 = vpop.permute.xlu0 %1357
      %1359 = vrot.lane.b32.xlu0 %v1328, 32
      %v1360 = vpop.permute.xlu0 %1359
      %1361 = vrot.lane.b32.xlu0 %v1329, 32
      %v1362 = vpop.permute.xlu0 %1361
      %1363 = vrot.lane.b32.xlu0 %v1330, 32
      %v1364 = vpop.permute.xlu0 %1363
      %1365 = vrot.lane.b32.xlu0 %v1331, 32
      %v1366 = vpop.permute.xlu0 %1365
      %1367 = vrot.lane.b32.xlu0 %v1332, 32
      %v1368 = vpop.permute.xlu0 %1367
      %1381 = vst.msk [vmem:[#allocation3 + $0x8] sm:$0xff] %vm1135, %v1346
      %1382 = vst.msk [vmem:[#allocation3 + $0x28] sm:$0xff] %vm1135, %v1348
      %1383 = vst.msk [vmem:[#allocation3 + $0x48] sm:$0xff] %vm1135, %v1350
      %1384 = vst.msk [vmem:[#allocation3 + $0x68] sm:$0xff] %vm1135, %v1352
      %1385 = vst.msk [vmem:[#allocation3 + $0x88] sm:$0xff] %vm1135, %v1354
      %1386 = vst.msk [vmem:[#allocation3 + $0xa8] sm:$0xff] %vm1135, %v1356
      %1387 = vst.msk [vmem:[#allocation3 + $0xc8] sm:$0xff] %vm1135, %v1358
      %1388 = vst.msk [vmem:[#allocation3 + $0xe8] sm:$0xff] %vm1135, %v1360
      %1389 = vst.msk [vmem:[#allocation3 + $0x108] sm:$0xff] %vm1135, %v1362
      %1390 = vst.msk [vmem:[#allocation3 + $0x128] sm:$0xff] %vm1135, %v1364
      %1391 = vst.msk [vmem:[#allocation3 + $0x148] sm:$0xff] %vm1135, %v1366
      %1392 = vst.msk [vmem:[#allocation3 + $0x168] sm:$0x3] %vm1147, %v1368
      %v1393 = vld [vmem:[#allocation2 + $0xc9] sm:$0xff]
      %v1394 = vld [vmem:[#allocation2 + $0xd1] sm:$0xff]
      %v1395 = vld [vmem:[#allocation2 + $0xd9] sm:$0xff]
      %v1396 = vld [vmem:[#allocation2 + $0xe1] sm:$0xff]
      %v1397 = vld [vmem:[#allocation2 + $0xe9] sm:$0xff]
      %v1398 = vld [vmem:[#allocation2 + $0xf1] sm:$0xff]
      %v1399 = vld [vmem:[#allocation2 + $0xf9] sm:$0xff]
      %v1400 = vld [vmem:[#allocation2 + $0x101] sm:$0xff]
      %v1401 = vld [vmem:[#allocation2 + $0x109] sm:$0xff]
      %v1402 = vld [vmem:[#allocation2 + $0x111] sm:$0xff]
      %v1403 = vld [vmem:[#allocation2 + $0x119] sm:$0xff]
      %v1404 = vld [vmem:[#allocation2 + $0x121] sm:$0x3]
      %1417 = vrot.lane.b32.xlu0 %v1393, 64
      %v1418 = vpop.permute.xlu0 %1417
      %1419 = vrot.lane.b32.xlu0 %v1394, 64
      %v1420 = vpop.permute.xlu0 %1419
      %1421 = vrot.lane.b32.xlu0 %v1395, 64
      %v1422 = vpop.permute.xlu0 %1421
      %1423 = vrot.lane.b32.xlu0 %v1396, 64
      %v1424 = vpop.permute.xlu0 %1423
      %1425 = vrot.lane.b32.xlu0 %v1397, 64
      %v1426 = vpop.permute.xlu0 %1425
      %1427 = vrot.lane.b32.xlu0 %v1398, 64
      %v1428 = vpop.permute.xlu0 %1427
      %1429 = vrot.lane.b32.xlu0 %v1399, 64
      %v1430 = vpop.permute.xlu0 %1429
      %1431 = vrot.lane.b32.xlu0 %v1400, 64
      %v1432 = vpop.permute.xlu0 %1431
      %1433 = vrot.lane.b32.xlu0 %v1401, 64
      %v1434 = vpop.permute.xlu0 %1433
      %1435 = vrot.lane.b32.xlu0 %v1402, 64
      %v1436 = vpop.permute.xlu0 %1435
      %1437 = vrot.lane.b32.xlu0 %v1403, 64
      %v1438 = vpop.permute.xlu0 %1437
      %1439 = vrot.lane.b32.xlu0 %v1404, 64
      %v1440 = vpop.permute.xlu0 %1439
      %1453 = vst.msk [vmem:[#allocation3 + $0x8] sm:$0xff] %vm1209, %v1418
      %1454 = vst.msk [vmem:[#allocation3 + $0x28] sm:$0xff] %vm1209, %v1420
      %1455 = vst.msk [vmem:[#allocation3 + $0x48] sm:$0xff] %vm1209, %v1422
      %1456 = vst.msk [vmem:[#allocation3 + $0x68] sm:$0xff] %vm1209, %v1424
      %1457 = vst.msk [vmem:[#allocation3 + $0x88] sm:$0xff] %vm1209, %v1426
      %1458 = vst.msk [vmem:[#allocation3 + $0xa8] sm:$0xff] %vm1209, %v1428
      %1459 = vst.msk [vmem:[#allocation3 + $0xc8] sm:$0xff] %vm1209, %v1430
      %1460 = vst.msk [vmem:[#allocation3 + $0xe8] sm:$0xff] %vm1209, %v1432
      %1461 = vst.msk [vmem:[#allocation3 + $0x108] sm:$0xff] %vm1209, %v1434
      %1462 = vst.msk [vmem:[#allocation3 + $0x128] sm:$0xff] %vm1209, %v1436
      %1463 = vst.msk [vmem:[#allocation3 + $0x148] sm:$0xff] %vm1209, %v1438
      %1464 = vst.msk [vmem:[#allocation3 + $0x168] sm:$0x3] %vm1221, %v1440
      %v1465 = vld [vmem:[#allocation2 + $0x12d] sm:$0xff]
      %v1466 = vld [vmem:[#allocation2 + $0x135] sm:$0xff]
      %v1467 = vld [vmem:[#allocation2 + $0x13d] sm:$0xff]
      %v1468 = vld [vmem:[#allocation2 + $0x145] sm:$0xff]
      %v1469 = vld [vmem:[#allocation2 + $0x14d] sm:$0xff]
      %v1470 = vld [vmem:[#allocation2 + $0x155] sm:$0xff]
      %v1471 = vld [vmem:[#allocation2 + $0x15d] sm:$0xff]
      %v1472 = vld [vmem:[#allocation2 + $0x165] sm:$0xff]
      %v1473 = vld [vmem:[#allocation2 + $0x16d] sm:$0xff]
      %v1474 = vld [vmem:[#allocation2 + $0x175] sm:$0xff]
      %v1475 = vld [vmem:[#allocation2 + $0x17d] sm:$0xff]
      %v1476 = vld [vmem:[#allocation2 + $0x185] sm:$0x3]
      %1489 = vrot.lane.b32.xlu0 %v1465, 96
      %v1490 = vpop.permute.xlu0 %1489
      %1491 = vrot.lane.b32.xlu0 %v1466, 96
      %v1492 = vpop.permute.xlu0 %1491
      %1493 = vrot.lane.b32.xlu0 %v1467, 96
      %v1494 = vpop.permute.xlu0 %1493
      %1495 = vrot.lane.b32.xlu0 %v1468, 96
      %v1496 = vpop.permute.xlu0 %1495
      %1497 = vrot.lane.b32.xlu0 %v1469, 96
      %v1498 = vpop.permute.xlu0 %1497
      %1499 = vrot.lane.b32.xlu0 %v1470, 96
      %v1500 = vpop.permute.xlu0 %1499
      %1501 = vrot.lane.b32.xlu0 %v1471, 96
      %v1502 = vpop.permute.xlu0 %1501
      %1503 = vrot.lane.b32.xlu0 %v1472, 96
      %v1504 = vpop.permute.xlu0 %1503
      %1505 = vrot.lane.b32.xlu0 %v1473, 96
      %v1506 = vpop.permute.xlu0 %1505
      %1507 = vrot.lane.b32.xlu0 %v1474, 96
      %v1508 = vpop.permute.xlu0 %1507
      %1509 = vrot.lane.b32.xlu0 %v1475, 96
      %v1510 = vpop.permute.xlu0 %1509
      %1511 = vrot.lane.b32.xlu0 %v1476, 96
      %v1512 = vpop.permute.xlu0 %1511
      %1525 = vst.msk [vmem:[#allocation3 + $0x8] sm:$0xff] %vm1283, %v1490
      %1526 = vst.msk [vmem:[#allocation3 + $0x28] sm:$0xff] %vm1283, %v1492
      %1527 = vst.msk [vmem:[#allocation3 + $0x48] sm:$0xff] %vm1283, %v1494
      %1528 = vst.msk [vmem:[#allocation3 + $0x68] sm:$0xff] %vm1283, %v1496
      %1529 = vst.msk [vmem:[#allocation3 + $0x88] sm:$0xff] %vm1283, %v1498
      %1530 = vst.msk [vmem:[#allocation3 + $0xa8] sm:$0xff] %vm1283, %v1500
      %1531 = vst.msk [vmem:[#allocation3 + $0xc8] sm:$0xff] %vm1283, %v1502
      %1532 = vst.msk [vmem:[#allocation3 + $0xe8] sm:$0xff] %vm1283, %v1504
      %1533 = vst.msk [vmem:[#allocation3 + $0x108] sm:$0xff] %vm1283, %v1506
      %1534 = vst.msk [vmem:[#allocation3 + $0x128] sm:$0xff] %vm1283, %v1508
      %1535 = vst.msk [vmem:[#allocation3 + $0x148] sm:$0xff] %vm1283, %v1510
      %1536 = vst.msk [vmem:[#allocation3 + $0x168] sm:$0x3] %vm1295, %v1512
      %v1537 = vld [vmem:[#allocation2 + $0xa] sm:$0xff]
      %v1538 = vld [vmem:[#allocation2 + $0x12] sm:$0xff]
      %v1539 = vld [vmem:[#allocation2 + $0x1a] sm:$0xff]
      %v1540 = vld [vmem:[#allocation2 + $0x22] sm:$0xff]
      %v1541 = vld [vmem:[#allocation2 + $0x2a] sm:$0xff]
      %v1542 = vld [vmem:[#allocation2 + $0x32] sm:$0xff]
      %v1543 = vld [vmem:[#allocation2 + $0x3a] sm:$0xff]
      %v1544 = vld [vmem:[#allocation2 + $0x42] sm:$0xff]
      %v1545 = vld [vmem:[#allocation2 + $0x4a] sm:$0xff]
      %v1546 = vld [vmem:[#allocation2 + $0x52] sm:$0xff]
      %v1547 = vld [vmem:[#allocation2 + $0x5a] sm:$0xff]
      %v1548 = vld [vmem:[#allocation2 + $0x62] sm:$0x3]
      %1549 = vst.msk [vmem:[#allocation3 + $0x10] sm:$0xff] %vm998, %v1537
      %1550 = vst.msk [vmem:[#allocation3 + $0x30] sm:$0xff] %vm998, %v1538
      %1551 = vst.msk [vmem:[#allocation3 + $0x50] sm:$0xff] %vm998, %v1539
      %1552 = vst.msk [vmem:[#allocation3 + $0x70] sm:$0xff] %vm998, %v1540
      %1553 = vst.msk [vmem:[#allocation3 + $0x90] sm:$0xff] %vm998, %v1541
      %1554 = vst.msk [vmem:[#allocation3 + $0xb0] sm:$0xff] %vm998, %v1542
      %1555 = vst.msk [vmem:[#allocation3 + $0xd0] sm:$0xff] %vm998, %v1543
      %1556 = vst.msk [vmem:[#allocation3 + $0xf0] sm:$0xff] %vm998, %v1544
      %1557 = vst.msk [vmem:[#allocation3 + $0x110] sm:$0xff] %vm998, %v1545
      %1558 = vst.msk [vmem:[#allocation3 + $0x130] sm:$0xff] %vm998, %v1546
      %1559 = vst.msk [vmem:[#allocation3 + $0x150] sm:$0xff] %vm998, %v1547
      %1560 = vst.msk [vmem:[#allocation3 + $0x170] sm:$0x3] %vm1073, %v1548
      %v1561 = vld [vmem:[#allocation2 + $0x6e] sm:$0xff]
      %v1562 = vld [vmem:[#allocation2 + $0x76] sm:$0xff]
      %v1563 = vld [vmem:[#allocation2 + $0x7e] sm:$0xff]
      %v1564 = vld [vmem:[#allocation2 + $0x86] sm:$0xff]
      %v1565 = vld [vmem:[#allocation2 + $0x8e] sm:$0xff]
      %v1566 = vld [vmem:[#allocation2 + $0x96] sm:$0xff]
      %v1567 = vld [vmem:[#allocation2 + $0x9e] sm:$0xff]
      %v1568 = vld [vmem:[#allocation2 + $0xa6] sm:$0xff]
      %v1569 = vld [vmem:[#allocation2 + $0xae] sm:$0xff]
      %v1570 = vld [vmem:[#allocation2 + $0xb6] sm:$0xff]
      %v1571 = vld [vmem:[#allocation2 + $0xbe] sm:$0xff]
      %v1572 = vld [vmem:[#allocation2 + $0xc6] sm:$0x3]
      %1585 = vrot.lane.b32.xlu0 %v1561, 32
      %v1586 = vpop.permute.xlu0 %1585
      %1587 = vrot.lane.b32.xlu0 %v1562, 32
      %v1588 = vpop.permute.xlu0 %1587
      %1589 = vrot.lane.b32.xlu0 %v1563, 32
      %v1590 = vpop.permute.xlu0 %1589
      %1591 = vrot.lane.b32.xlu0 %v1564, 32
      %v1592 = vpop.permute.xlu0 %1591
      %1593 = vrot.lane.b32.xlu0 %v1565, 32
      %v1594 = vpop.permute.xlu0 %1593
      %1595 = vrot.lane.b32.xlu0 %v1566, 32
      %v1596 = vpop.permute.xlu0 %1595
      %1597 = vrot.lane.b32.xlu0 %v1567, 32
      %v1598 = vpop.permute.xlu0 %1597
      %1599 = vrot.lane.b32.xlu0 %v1568, 32
      %v1600 = vpop.permute.xlu0 %1599
      %1601 = vrot.lane.b32.xlu0 %v1569, 32
      %v1602 = vpop.permute.xlu0 %1601
      %1603 = vrot.lane.b32.xlu0 %v1570, 32
      %v1604 = vpop.permute.xlu0 %1603
      %1605 = vrot.lane.b32.xlu0 %v1571, 32
      %v1606 = vpop.permute.xlu0 %1605
      %1607 = vrot.lane.b32.xlu0 %v1572, 32
      %v1608 = vpop.permute.xlu0 %1607
      %1621 = vst.msk [vmem:[#allocation3 + $0x10] sm:$0xff] %vm1135, %v1586
      %1622 = vst.msk [vmem:[#allocation3 + $0x30] sm:$0xff] %vm1135, %v1588
      %1623 = vst.msk [vmem:[#allocation3 + $0x50] sm:$0xff] %vm1135, %v1590
      %1624 = vst.msk [vmem:[#allocation3 + $0x70] sm:$0xff] %vm1135, %v1592
      %1625 = vst.msk [vmem:[#allocation3 + $0x90] sm:$0xff] %vm1135, %v1594
      %1626 = vst.msk [vmem:[#allocation3 + $0xb0] sm:$0xff] %vm1135, %v1596
      %1627 = vst.msk [vmem:[#allocation3 + $0xd0] sm:$0xff] %vm1135, %v1598
      %1628 = vst.msk [vmem:[#allocation3 + $0xf0] sm:$0xff] %vm1135, %v1600
      %1629 = vst.msk [vmem:[#allocation3 + $0x110] sm:$0xff] %vm1135, %v1602
      %1630 = vst.msk [vmem:[#allocation3 + $0x130] sm:$0xff] %vm1135, %v1604
      %1631 = vst.msk [vmem:[#allocation3 + $0x150] sm:$0xff] %vm1135, %v1606
      %1632 = vst.msk [vmem:[#allocation3 + $0x170] sm:$0x3] %vm1147, %v1608
      %v1633 = vld [vmem:[#allocation2 + $0xb] sm:$0xff]
      %v1634 = vld [vmem:[#allocation2 + $0x13] sm:$0xff]
      %v1635 = vld [vmem:[#allocation2 + $0x1b] sm:$0xff]
      %v1636 = vld [vmem:[#allocation2 + $0x23] sm:$0xff]
      %v1637 = vld [vmem:[#allocation2 + $0x2b] sm:$0xff]
      %v1638 = vld [vmem:[#allocation2 + $0x33] sm:$0xff]
      %v1639 = vld [vmem:[#allocation2 + $0x3b] sm:$0xff]
      %v1640 = vld [vmem:[#allocation2 + $0x43] sm:$0xff]
      %v1641 = vld [vmem:[#allocation2 + $0x4b] sm:$0xff]
      %v1642 = vld [vmem:[#allocation2 + $0x53] sm:$0xff]
      %v1643 = vld [vmem:[#allocation2 + $0x5b] sm:$0xff]
      %v1644 = vld [vmem:[#allocation2 + $0x63] sm:$0x3]
      %1657 = vrot.lane.b32.xlu0 %v1633, 64
      %v1658 = vpop.permute.xlu0 %1657
      %1659 = vrot.lane.b32.xlu0 %v1634, 64
      %v1660 = vpop.permute.xlu0 %1659
      %1661 = vrot.lane.b32.xlu0 %v1635, 64
      %v1662 = vpop.permute.xlu0 %1661
      %1663 = vrot.lane.b32.xlu0 %v1636, 64
      %v1664 = vpop.permute.xlu0 %1663
      %1665 = vrot.lane.b32.xlu0 %v1637, 64
      %v1666 = vpop.permute.xlu0 %1665
      %1667 = vrot.lane.b32.xlu0 %v1638, 64
      %v1668 = vpop.permute.xlu0 %1667
      %1669 = vrot.lane.b32.xlu0 %v1639, 64
      %v1670 = vpop.permute.xlu0 %1669
      %1671 = vrot.lane.b32.xlu0 %v1640, 64
      %v1672 = vpop.permute.xlu0 %1671
      %1673 = vrot.lane.b32.xlu0 %v1641, 64
      %v1674 = vpop.permute.xlu0 %1673
      %1675 = vrot.lane.b32.xlu0 %v1642, 64
      %v1676 = vpop.permute.xlu0 %1675
      %1677 = vrot.lane.b32.xlu0 %v1643, 64
      %v1678 = vpop.permute.xlu0 %1677
      %1679 = vrot.lane.b32.xlu0 %v1644, 64
      %v1680 = vpop.permute.xlu0 %1679
      %1693 = vst.msk [vmem:[#allocation3 + $0x10] sm:$0xff] %vm1209, %v1658
      %1694 = vst.msk [vmem:[#allocation3 + $0x30] sm:$0xff] %vm1209, %v1660
      %1695 = vst.msk [vmem:[#allocation3 + $0x50] sm:$0xff] %vm1209, %v1662
      %1696 = vst.msk [vmem:[#allocation3 + $0x70] sm:$0xff] %vm1209, %v1664
      %1697 = vst.msk [vmem:[#allocation3 + $0x90] sm:$0xff] %vm1209, %v1666
      %1698 = vst.msk [vmem:[#allocation3 + $0xb0] sm:$0xff] %vm1209, %v1668
      %1699 = vst.msk [vmem:[#allocation3 + $0xd0] sm:$0xff] %vm1209, %v1670
      %1700 = vst.msk [vmem:[#allocation3 + $0xf0] sm:$0xff] %vm1209, %v1672
      %1701 = vst.msk [vmem:[#allocation3 + $0x110] sm:$0xff] %vm1209, %v1674
      %1702 = vst.msk [vmem:[#allocation3 + $0x130] sm:$0xff] %vm1209, %v1676
      %1703 = vst.msk [vmem:[#allocation3 + $0x150] sm:$0xff] %vm1209, %v1678
      %1704 = vst.msk [vmem:[#allocation3 + $0x170] sm:$0x3] %vm1221, %v1680
      %v1705 = vld [vmem:[#allocation2 + $0x6f] sm:$0xff]
      %v1706 = vld [vmem:[#allocation2 + $0x77] sm:$0xff]
      %v1707 = vld [vmem:[#allocation2 + $0x7f] sm:$0xff]
      %v1708 = vld [vmem:[#allocation2 + $0x87] sm:$0xff]
      %v1709 = vld [vmem:[#allocation2 + $0x8f] sm:$0xff]
      %v1710 = vld [vmem:[#allocation2 + $0x97] sm:$0xff]
      %v1711 = vld [vmem:[#allocation2 + $0x9f] sm:$0xff]
      %v1712 = vld [vmem:[#allocation2 + $0xa7] sm:$0xff]
      %v1713 = vld [vmem:[#allocation2 + $0xaf] sm:$0xff]
      %v1714 = vld [vmem:[#allocation2 + $0xb7] sm:$0xff]
      %v1715 = vld [vmem:[#allocation2 + $0xbf] sm:$0xff]
      %v1716 = vld [vmem:[#allocation2 + $0xc7] sm:$0x3]
      %1729 = vrot.lane.b32.xlu0 %v1705, 96
      %v1730 = vpop.permute.xlu0 %1729
      %1731 = vrot.lane.b32.xlu0 %v1706, 96
      %v1732 = vpop.permute.xlu0 %1731
      %1733 = vrot.lane.b32.xlu0 %v1707, 96
      %v1734 = vpop.permute.xlu0 %1733
      %1735 = vrot.lane.b32.xlu0 %v1708, 96
      %v1736 = vpop.permute.xlu0 %1735
      %1737 = vrot.lane.b32.xlu0 %v1709, 96
      %v1738 = vpop.permute.xlu0 %1737
      %1739 = vrot.lane.b32.xlu0 %v1710, 96
      %v1740 = vpop.permute.xlu0 %1739
      %1741 = vrot.lane.b32.xlu0 %v1711, 96
      %v1742 = vpop.permute.xlu0 %1741
      %1743 = vrot.lane.b32.xlu0 %v1712, 96
      %v1744 = vpop.permute.xlu0 %1743
      %1745 = vrot.lane.b32.xlu0 %v1713, 96
      %v1746 = vpop.permute.xlu0 %1745
      %1747 = vrot.lane.b32.xlu0 %v1714, 96
      %v1748 = vpop.permute.xlu0 %1747
      %1749 = vrot.lane.b32.xlu0 %v1715, 96
      %v1750 = vpop.permute.xlu0 %1749
      %1751 = vrot.lane.b32.xlu0 %v1716, 96
      %v1752 = vpop.permute.xlu0 %1751
      %1765 = vst.msk [vmem:[#allocation3 + $0x10] sm:$0xff] %vm1283, %v1730
      %1766 = vst.msk [vmem:[#allocation3 + $0x30] sm:$0xff] %vm1283, %v1732
      %1767 = vst.msk [vmem:[#allocation3 + $0x50] sm:$0xff] %vm1283, %v1734
      %1768 = vst.msk [vmem:[#allocation3 + $0x70] sm:$0xff] %vm1283, %v1736
      %1769 = vst.msk [vmem:[#allocation3 + $0x90] sm:$0xff] %vm1283, %v1738
      %1770 = vst.msk [vmem:[#allocation3 + $0xb0] sm:$0xff] %vm1283, %v1740
      %1771 = vst.msk [vmem:[#allocation3 + $0xd0] sm:$0xff] %vm1283, %v1742
      %1772 = vst.msk [vmem:[#allocation3 + $0xf0] sm:$0xff] %vm1283, %v1744
      %1773 = vst.msk [vmem:[#allocation3 + $0x110] sm:$0xff] %vm1283, %v1746
      %1774 = vst.msk [vmem:[#allocation3 + $0x130] sm:$0xff] %vm1283, %v1748
      %1775 = vst.msk [vmem:[#allocation3 + $0x150] sm:$0xff] %vm1283, %v1750
      %1776 = vst.msk [vmem:[#allocation3 + $0x170] sm:$0x3] %vm1295, %v1752
      %v1777 = vld [vmem:[#allocation2 + $0xd2] sm:$0xff]
      %v1778 = vld [vmem:[#allocation2 + $0xda] sm:$0xff]
      %v1779 = vld [vmem:[#allocation2 + $0xe2] sm:$0xff]
      %v1780 = vld [vmem:[#allocation2 + $0xea] sm:$0xff]
      %v1781 = vld [vmem:[#allocation2 + $0xf2] sm:$0xff]
      %v1782 = vld [vmem:[#allocation2 + $0xfa] sm:$0xff]
      %v1783 = vld [vmem:[#allocation2 + $0x102] sm:$0xff]
      %v1784 = vld [vmem:[#allocation2 + $0x10a] sm:$0xff]
      %v1785 = vld [vmem:[#allocation2 + $0x112] sm:$0xff]
      %v1786 = vld [vmem:[#allocation2 + $0x11a] sm:$0xff]
      %v1787 = vld [vmem:[#allocation2 + $0x122] sm:$0xff]
      %v1788 = vld [vmem:[#allocation2 + $0x12a] sm:$0x3]
      %1789 = vst.msk [vmem:[#allocation3 + $0x18] sm:$0xff] %vm998, %v1777
      %1790 = vst.msk [vmem:[#allocation3 + $0x38] sm:$0xff] %vm998, %v1778
      %1791 = vst.msk [vmem:[#allocation3 + $0x58] sm:$0xff] %vm998, %v1779
      %1792 = vst.msk [vmem:[#allocation3 + $0x78] sm:$0xff] %vm998, %v1780
      %1793 = vst.msk [vmem:[#allocation3 + $0x98] sm:$0xff] %vm998, %v1781
      %1794 = vst.msk [vmem:[#allocation3 + $0xb8] sm:$0xff] %vm998, %v1782
      %1795 = vst.msk [vmem:[#allocation3 + $0xd8] sm:$0xff] %vm998, %v1783
      %1796 = vst.msk [vmem:[#allocation3 + $0xf8] sm:$0xff] %vm998, %v1784
      %1797 = vst.msk [vmem:[#allocation3 + $0x118] sm:$0xff] %vm998, %v1785
      %1798 = vst.msk [vmem:[#allocation3 + $0x138] sm:$0xff] %vm998, %v1786
      %1799 = vst.msk [vmem:[#allocation3 + $0x158] sm:$0xff] %vm998, %v1787
      %1800 = vst.msk [vmem:[#allocation3 + $0x178] sm:$0x3] %vm1073, %v1788
      %v1801 = vld [vmem:[#allocation2 + $0x136] sm:$0xff]
      %v1802 = vld [vmem:[#allocation2 + $0x13e] sm:$0xff]
      %v1803 = vld [vmem:[#allocation2 + $0x146] sm:$0xff]
      %v1804 = vld [vmem:[#allocation2 + $0x14e] sm:$0xff]
      %v1805 = vld [vmem:[#allocation2 + $0x156] sm:$0xff]
      %v1806 = vld [vmem:[#allocation2 + $0x15e] sm:$0xff]
      %v1807 = vld [vmem:[#allocation2 + $0x166] sm:$0xff]
      %v1808 = vld [vmem:[#allocation2 + $0x16e] sm:$0xff]
      %v1809 = vld [vmem:[#allocation2 + $0x176] sm:$0xff]
      %v1810 = vld [vmem:[#allocation2 + $0x17e] sm:$0xff]
      %v1811 = vld [vmem:[#allocation2 + $0x186] sm:$0xff]
      %v1812 = vld [vmem:[#allocation2 + $0x18e] sm:$0x3]
      %1825 = vrot.lane.b32.xlu0 %v1801, 32
      %v1826 = vpop.permute.xlu0 %1825
      %1827 = vrot.lane.b32.xlu0 %v1802, 32
      %v1828 = vpop.permute.xlu0 %1827
      %1829 = vrot.lane.b32.xlu0 %v1803, 32
      %v1830 = vpop.permute.xlu0 %1829
      %1831 = vrot.lane.b32.xlu0 %v1804, 32
      %v1832 = vpop.permute.xlu0 %1831
      %1833 = vrot.lane.b32.xlu0 %v1805, 32
      %v1834 = vpop.permute.xlu0 %1833
      %1835 = vrot.lane.b32.xlu0 %v1806, 32
      %v1836 = vpop.permute.xlu0 %1835
      %1837 = vrot.lane.b32.xlu0 %v1807, 32
      %v1838 = vpop.permute.xlu0 %1837
      %1839 = vrot.lane.b32.xlu0 %v1808, 32
      %v1840 = vpop.permute.xlu0 %1839
      %1841 = vrot.lane.b32.xlu0 %v1809, 32
      %v1842 = vpop.permute.xlu0 %1841
      %1843 = vrot.lane.b32.xlu0 %v1810, 32
      %v1844 = vpop.permute.xlu0 %1843
      %1845 = vrot.lane.b32.xlu0 %v1811, 32
      %v1846 = vpop.permute.xlu0 %1845
      %1847 = vrot.lane.b32.xlu0 %v1812, 32
      %v1848 = vpop.permute.xlu0 %1847
      %1861 = vst.msk [vmem:[#allocation3 + $0x18] sm:$0xff] %vm1135, %v1826
      %1862 = vst.msk [vmem:[#allocation3 + $0x38] sm:$0xff] %vm1135, %v1828
      %1863 = vst.msk [vmem:[#allocation3 + $0x58] sm:$0xff] %vm1135, %v1830
      %1864 = vst.msk [vmem:[#allocation3 + $0x78] sm:$0xff] %vm1135, %v1832
      %1865 = vst.msk [vmem:[#allocation3 + $0x98] sm:$0xff] %vm1135, %v1834
      %1866 = vst.msk [vmem:[#allocation3 + $0xb8] sm:$0xff] %vm1135, %v1836
      %1867 = vst.msk [vmem:[#allocation3 + $0xd8] sm:$0xff] %vm1135, %v1838
      %1868 = vst.msk [vmem:[#allocation3 + $0xf8] sm:$0xff] %vm1135, %v1840
      %1869 = vst.msk [vmem:[#allocation3 + $0x118] sm:$0xff] %vm1135, %v1842
      %1870 = vst.msk [vmem:[#allocation3 + $0x138] sm:$0xff] %vm1135, %v1844
      %1871 = vst.msk [vmem:[#allocation3 + $0x158] sm:$0xff] %vm1135, %v1846
      %1872 = vst.msk [vmem:[#allocation3 + $0x178] sm:$0x3] %vm1147, %v1848
      %v1873 = vld [vmem:[#allocation2 + $0xd3] sm:$0xff]
      %v1874 = vld [vmem:[#allocation2 + $0xdb] sm:$0xff]
      %v1875 = vld [vmem:[#allocation2 + $0xe3] sm:$0xff]
      %v1876 = vld [vmem:[#allocation2 + $0xeb] sm:$0xff]
      %v1877 = vld [vmem:[#allocation2 + $0xf3] sm:$0xff]
      %v1878 = vld [vmem:[#allocation2 + $0xfb] sm:$0xff]
      %v1879 = vld [vmem:[#allocation2 + $0x103] sm:$0xff]
      %v1880 = vld [vmem:[#allocation2 + $0x10b] sm:$0xff]
      %v1881 = vld [vmem:[#allocation2 + $0x113] sm:$0xff]
      %v1882 = vld [vmem:[#allocation2 + $0x11b] sm:$0xff]
      %v1883 = vld [vmem:[#allocation2 + $0x123] sm:$0xff]
      %v1884 = vld [vmem:[#allocation2 + $0x12b] sm:$0x3]
      %1897 = vrot.lane.b32.xlu0 %v1873, 64
      %v1898 = vpop.permute.xlu0 %1897
      %1899 = vrot.lane.b32.xlu0 %v1874, 64
      %v1900 = vpop.permute.xlu0 %1899
      %1901 = vrot.lane.b32.xlu0 %v1875, 64
      %v1902 = vpop.permute.xlu0 %1901
      %1903 = vrot.lane.b32.xlu0 %v1876, 64
      %v1904 = vpop.permute.xlu0 %1903
      %1905 = vrot.lane.b32.xlu0 %v1877, 64
      %v1906 = vpop.permute.xlu0 %1905
      %1907 = vrot.lane.b32.xlu0 %v1878, 64
      %v1908 = vpop.permute.xlu0 %1907
      %1909 = vrot.lane.b32.xlu0 %v1879, 64
      %v1910 = vpop.permute.xlu0 %1909
      %1911 = vrot.lane.b32.xlu0 %v1880, 64
      %v1912 = vpop.permute.xlu0 %1911
      %1913 = vrot.lane.b32.xlu0 %v1881, 64
      %v1914 = vpop.permute.xlu0 %1913
      %1915 = vrot.lane.b32.xlu0 %v1882, 64
      %v1916 = vpop.permute.xlu0 %1915
      %1917 = vrot.lane.b32.xlu0 %v1883, 64
      %v1918 = vpop.permute.xlu0 %1917
      %1919 = vrot.lane.b32.xlu0 %v1884, 64
      %v1920 = vpop.permute.xlu0 %1919
      %1933 = vst.msk [vmem:[#allocation3 + $0x18] sm:$0xff] %vm1209, %v1898
      %1934 = vst.msk [vmem:[#allocation3 + $0x38] sm:$0xff] %vm1209, %v1900
      %1935 = vst.msk [vmem:[#allocation3 + $0x58] sm:$0xff] %vm1209, %v1902
      %1936 = vst.msk [vmem:[#allocation3 + $0x78] sm:$0xff] %vm1209, %v1904
      %1937 = vst.msk [vmem:[#allocation3 + $0x98] sm:$0xff] %vm1209, %v1906
      %1938 = vst.msk [vmem:[#allocation3 + $0xb8] sm:$0xff] %vm1209, %v1908
      %1939 = vst.msk [vmem:[#allocation3 + $0xd8] sm:$0xff] %vm1209, %v1910
      %1940 = vst.msk [vmem:[#allocation3 + $0xf8] sm:$0xff] %vm1209, %v1912
      %1941 = vst.msk [vmem:[#allocation3 + $0x118] sm:$0xff] %vm1209, %v1914
      %1942 = vst.msk [vmem:[#allocation3 + $0x138] sm:$0xff] %vm1209, %v1916
      %1943 = vst.msk [vmem:[#allocation3 + $0x158] sm:$0xff] %vm1209, %v1918
      %1944 = vst.msk [vmem:[#allocation3 + $0x178] sm:$0x3] %vm1221, %v1920
      %v1945 = vld [vmem:[#allocation2 + $0x137] sm:$0xff]
      %v1946 = vld [vmem:[#allocation2 + $0x13f] sm:$0xff]
      %v1947 = vld [vmem:[#allocation2 + $0x147] sm:$0xff]
      %v1948 = vld [vmem:[#allocation2 + $0x14f] sm:$0xff]
      %v1949 = vld [vmem:[#allocation2 + $0x157] sm:$0xff]
      %v1950 = vld [vmem:[#allocation2 + $0x15f] sm:$0xff]
      %v1951 = vld [vmem:[#allocation2 + $0x167] sm:$0xff]
      %v1952 = vld [vmem:[#allocation2 + $0x16f] sm:$0xff]
      %v1953 = vld [vmem:[#allocation2 + $0x177] sm:$0xff]
      %v1954 = vld [vmem:[#allocation2 + $0x17f] sm:$0xff]
      %v1955 = vld [vmem:[#allocation2 + $0x187] sm:$0xff]
      %v1956 = vld [vmem:[#allocation2 + $0x18f] sm:$0x3]
      %1969 = vrot.lane.b32.xlu0 %v1945, 96
      %v1970 = vpop.permute.xlu0 %1969
      %1971 = vrot.lane.b32.xlu0 %v1946, 96
      %v1972 = vpop.permute.xlu0 %1971
      %1973 = vrot.lane.b32.xlu0 %v1947, 96
      %v1974 = vpop.permute.xlu0 %1973
      %1975 = vrot.lane.b32.xlu0 %v1948, 96
      %v1976 = vpop.permute.xlu0 %1975
      %1977 = vrot.lane.b32.xlu0 %v1949, 96
      %v1978 = vpop.permute.xlu0 %1977
      %1979 = vrot.lane.b32.xlu0 %v1950, 96
      %v1980 = vpop.permute.xlu0 %1979
      %1981 = vrot.lane.b32.xlu0 %v1951, 96
      %v1982 = vpop.permute.xlu0 %1981
      %1983 = vrot.lane.b32.xlu0 %v1952, 96
      %v1984 = vpop.permute.xlu0 %1983
      %1985 = vrot.lane.b32.xlu0 %v1953, 96
      %v1986 = vpop.permute.xlu0 %1985
      %1987 = vrot.lane.b32.xlu0 %v1954, 96
      %v1988 = vpop.permute.xlu0 %1987
      %1989 = vrot.lane.b32.xlu0 %v1955, 96
      %v1990 = vpop.permute.xlu0 %1989
      %1991 = vrot.lane.b32.xlu0 %v1956, 96
      %v1992 = vpop.permute.xlu0 %1991
      %2005 = vst.msk [vmem:[#allocation3 + $0x18] sm:$0xff] %vm1283, %v1970
      %2006 = vst.msk [vmem:[#allocation3 + $0x38] sm:$0xff] %vm1283, %v1972
      %2007 = vst.msk [vmem:[#allocation3 + $0x58] sm:$0xff] %vm1283, %v1974
      %2008 = vst.msk [vmem:[#allocation3 + $0x78] sm:$0xff] %vm1283, %v1976
      %2009 = vst.msk [vmem:[#allocation3 + $0x98] sm:$0xff] %vm1283, %v1978
      %2010 = vst.msk [vmem:[#allocation3 + $0xb8] sm:$0xff] %vm1283, %v1980
      %2011 = vst.msk [vmem:[#allocation3 + $0xd8] sm:$0xff] %vm1283, %v1982
      %2012 = vst.msk [vmem:[#allocation3 + $0xf8] sm:$0xff] %vm1283, %v1984
      %2013 = vst.msk [vmem:[#allocation3 + $0x118] sm:$0xff] %vm1283, %v1986
      %2014 = vst.msk [vmem:[#allocation3 + $0x138] sm:$0xff] %vm1283, %v1988
      %2015 = vst.msk [vmem:[#allocation3 + $0x158] sm:$0xff] %vm1283, %v1990
      %2016 = vst.msk [vmem:[#allocation3 + $0x178] sm:$0x3] %vm1295, %v1992
      %v2017 = vld [vmem:[#allocation3] sm:$0xff]
      %v2018 = vld [vmem:[#allocation3 + $0x8] sm:$0xff]
      %v2019 = vld [vmem:[#allocation3 + $0x10] sm:$0xff]
      %v2020 = vld [vmem:[#allocation3 + $0x18] sm:$0xff]
      %v2021 = vld [vmem:[#allocation3 + $0x20] sm:$0xff]
      %v2022 = vld [vmem:[#allocation3 + $0x28] sm:$0xff]
      %v2023 = vld [vmem:[#allocation3 + $0x30] sm:$0xff]
      %v2024 = vld [vmem:[#allocation3 + $0x38] sm:$0xff]
      %v2025 = vld [vmem:[#allocation3 + $0x40] sm:$0xff]
      %v2026 = vld [vmem:[#allocation3 + $0x48] sm:$0xff]
      %v2027 = vld [vmem:[#allocation3 + $0x50] sm:$0xff]
      %v2028 = vld [vmem:[#allocation3 + $0x58] sm:$0xff]
      %v2029 = vld [vmem:[#allocation3 + $0x60] sm:$0xff]
      %v2030 = vld [vmem:[#allocation3 + $0x68] sm:$0xff]
      %v2031 = vld [vmem:[#allocation3 + $0x70] sm:$0xff]
      %v2032 = vld [vmem:[#allocation3 + $0x78] sm:$0xff]
      %v2033 = vld [vmem:[#allocation3 + $0x80] sm:$0xff]
      %v2034 = vld [vmem:[#allocation3 + $0x88] sm:$0xff]
      %v2035 = vld [vmem:[#allocation3 + $0x90] sm:$0xff]
      %v2036 = vld [vmem:[#allocation3 + $0x98] sm:$0xff]
      %v2037 = vld [vmem:[#allocation3 + $0xa0] sm:$0xff]
      %v2038 = vld [vmem:[#allocation3 + $0xa8] sm:$0xff]
      %v2039 = vld [vmem:[#allocation3 + $0xb0] sm:$0xff]
      %v2040 = vld [vmem:[#allocation3 + $0xb8] sm:$0xff]
      %v2041 = vld [vmem:[#allocation3 + $0xc0] sm:$0xff]
      %v2042 = vld [vmem:[#allocation3 + $0xc8] sm:$0xff]
      %v2043 = vld [vmem:[#allocation3 + $0xd0] sm:$0xff]
      %v2044 = vld [vmem:[#allocation3 + $0xd8] sm:$0xff]
      %v2045 = vld [vmem:[#allocation3 + $0xe0] sm:$0xff]
      %v2046 = vld [vmem:[#allocation3 + $0xe8] sm:$0xff]
      %v2047 = vld [vmem:[#allocation3 + $0xf0] sm:$0xff]
      %v2048 = vld [vmem:[#allocation3 + $0xf8] sm:$0xff]
      %v2049 = vld [vmem:[#allocation3 + $0x100] sm:$0xff]
      %v2050 = vld [vmem:[#allocation3 + $0x108] sm:$0xff]
      %v2051 = vld [vmem:[#allocation3 + $0x110] sm:$0xff]
      %v2052 = vld [vmem:[#allocation3 + $0x118] sm:$0xff]
      %v2053 = vld [vmem:[#allocation3 + $0x120] sm:$0xff]
      %v2054 = vld [vmem:[#allocation3 + $0x128] sm:$0xff]
      %v2055 = vld [vmem:[#allocation3 + $0x130] sm:$0xff]
      %v2056 = vld [vmem:[#allocation3 + $0x138] sm:$0xff]
      %v2057 = vld [vmem:[#allocation3 + $0x140] sm:$0xff]
      %v2058 = vld [vmem:[#allocation3 + $0x148] sm:$0xff]
      %v2059 = vld [vmem:[#allocation3 + $0x150] sm:$0xff]
      %v2060 = vld [vmem:[#allocation3 + $0x158] sm:$0xff]
      %v2061 = vld [vmem:[#allocation3 + $0x160] sm:$0x3]
      %v2062 = vld [vmem:[#allocation3 + $0x168] sm:$0x3]
      %v2063 = vld [vmem:[#allocation3 + $0x170] sm:$0x3]
      %v2064 = vld [vmem:[#allocation3 + $0x178] sm:$0x3]
      %v2065 = vpack.c.bf16 %v2021, %v2017
      %v2066 = vpack.c.bf16 %v2022, %v2018
      %v2067 = vpack.c.bf16 %v2023, %v2019
      %v2068 = vpack.c.bf16 %v2024, %v2020
      %v2069 = vpack.c.bf16 %v2029, %v2025
      %v2070 = vpack.c.bf16 %v2030, %v2026
      %v2071 = vpack.c.bf16 %v2031, %v2027
      %v2072 = vpack.c.bf16 %v2032, %v2028
      %v2073 = vpack.c.bf16 %v2037, %v2033
      %v2074 = vpack.c.bf16 %v2038, %v2034
      %v2075 = vpack.c.bf16 %v2039, %v2035
      %v2076 = vpack.c.bf16 %v2040, %v2036
      %v2077 = vpack.c.bf16 %v2045, %v2041
      %v2078 = vpack.c.bf16 %v2046, %v2042
      %v2079 = vpack.c.bf16 %v2047, %v2043
      %v2080 = vpack.c.bf16 %v2048, %v2044
      %v2081 = vpack.c.bf16 %v2053, %v2049
      %v2082 = vpack.c.bf16 %v2054, %v2050
      %v2083 = vpack.c.bf16 %v2055, %v2051
      %v2084 = vpack.c.bf16 %v2056, %v2052
      %v2085 = vpack.c.bf16 %v2061, %v2057
      %v2086 = vpack.c.bf16 %v2062, %v2058
      %v2087 = vpack.c.bf16 %v2063, %v2059
      %v2088 = vpack.c.bf16 %v2064, %v2060
      %v2089 = vld [vmem:[%s3] sm:$0xf]
      %v2090 = vld [vmem:[%s3 + $0x4] sm:$0xf]
      %v2091 = vld [vmem:[%s3 + $0x8] sm:$0xf]
      %v2092 = vld [vmem:[%s3 + $0xc] sm:$0xf]
      %v2093 = vld [vmem:[%s3 + $0x10] sm:$0xf]
      %v2094 = vld [vmem:[%s3 + $0x14] sm:$0xf]
      %v2095 = vld [vmem:[%s3 + $0x18] sm:$0xf]
      %v2096 = vld [vmem:[%s3 + $0x1c] sm:$0xf]
      %v2097 = vld [vmem:[%s3 + $0x20] sm:$0xf]
      %v2098 = vld [vmem:[%s3 + $0x24] sm:$0xf]
      %v2099 = vld [vmem:[%s3 + $0x28] sm:$0xf]
      %v2100 = vld [vmem:[%s3 + $0x2c] sm:$0xf]
      %v2101 = vld [vmem:[%s3 + $0x30] sm:$0xf]
      %v2102 = vld [vmem:[%s3 + $0x34] sm:$0xf]
      %v2103 = vld [vmem:[%s3 + $0x38] sm:$0xf]
      %v2104 = vld [vmem:[%s3 + $0x3c] sm:$0xf]
      %v2105 = vld [vmem:[%s3 + $0x40] sm:$0xf]
      %v2106 = vld [vmem:[%s3 + $0x44] sm:$0xf]
      %v2107 = vld [vmem:[%s3 + $0x48] sm:$0xf]
      %v2108 = vld [vmem:[%s3 + $0x4c] sm:$0xf]
      %v2109 = vld [vmem:[%s3 + $0x50] sm:$0xf]
      %v2110 = vld [vmem:[%s3 + $0x54] sm:$0xf]
      %v2111 = vld [vmem:[%s3 + $0x58] sm:$0xf]
      %v2112 = vld [vmem:[%s3 + $0x5c] sm:$0xf]
      %v2113 = vld [vmem:[%s3 + $0x60] sm:$0xf]
      %v2114 = vld [vmem:[%s3 + $0x64] sm:$0xf]
      %v2115 = vld [vmem:[%s3 + $0x68] sm:$0xf]
      %v2116 = vld [vmem:[%s3 + $0x6c] sm:$0xf]
      %v2117 = vld [vmem:[%s3 + $0x70] sm:$0xf]
      %v2118 = vld [vmem:[%s3 + $0x74] sm:$0xf]
      %v2119 = vld [vmem:[%s3 + $0x78] sm:$0xf]
      %v2120 = vld [vmem:[%s3 + $0x7c] sm:$0xf]
      %v2121 = vld [vmem:[%s3 + $0x80] sm:$0xf]
      %v2122 = vld [vmem:[%s3 + $0x84] sm:$0xf]
      %v2123 = vld [vmem:[%s3 + $0x88] sm:$0xf]
      %v2124 = vld [vmem:[%s3 + $0x8c] sm:$0xf]
      %v2125 = vld [vmem:[%s3 + $0x90] sm:$0xf]
      %v2126 = vld [vmem:[%s3 + $0x94] sm:$0xf]
      %v2127 = vld [vmem:[%s3 + $0x98] sm:$0xf]
      %v2128 = vld [vmem:[%s3 + $0x9c] sm:$0xf]
      %v2129 = vld [vmem:[%s3 + $0xa0] sm:$0xf]
      %v2130 = vld [vmem:[%s3 + $0xa4] sm:$0xf]
      %v2131 = vld [vmem:[%s3 + $0xa8] sm:$0xf]
      %v2132 = vld [vmem:[%s3 + $0xac] sm:$0xf]
      %v2133 = vld [vmem:[%s3 + $0xb0] sm:$0xf]
      %v2134 = vld [vmem:[%s3 + $0xb4] sm:$0xf]
      %v2135 = vld [vmem:[%s3 + $0xb8] sm:$0xf]
      %v2136 = vld [vmem:[%s3 + $0xbc] sm:$0xf]
      %v2137 = vld [vmem:[%s3 + $0xc0] sm:$0xf]
      %v2138 = vld [vmem:[%s3 + $0xc4] sm:$0xf]
      %v2139 = vld [vmem:[%s3 + $0xc8] sm:$0xf]
      %v2140 = vld [vmem:[%s3 + $0xcc] sm:$0xf]
      %v2141 = vld [vmem:[%s3 + $0xd0] sm:$0xf]
      %v2142 = vld [vmem:[%s3 + $0xd4] sm:$0xf]
      %v2143 = vld [vmem:[%s3 + $0xd8] sm:$0xf]
      %v2144 = vld [vmem:[%s3 + $0xdc] sm:$0xf]
      %v2145 = vld [vmem:[%s3 + $0xe0] sm:$0xf]
      %v2146 = vld [vmem:[%s3 + $0xe4] sm:$0xf]
      %v2147 = vld [vmem:[%s3 + $0xe8] sm:$0xf]
      %v2148 = vld [vmem:[%s3 + $0xec] sm:$0xf]
      %v2149 = vld [vmem:[%s3 + $0xf0] sm:$0xf]
      %v2150 = vld [vmem:[%s3 + $0xf4] sm:$0xf]
      %v2151 = vld [vmem:[%s3 + $0xf8] sm:$0xf]
      %v2152 = vld [vmem:[%s3 + $0xfc] sm:$0xf]
      %v2153 = vld [vmem:[%s4] sm:$0x1]
      %v2155 = vlaneseq
      %v2156 = vshrl.u32 %v2155, 7
      %v2157 = vsub.s32 0, %v2156
      %v2158 = vrot.slane %v2153, %v2157
      %v2224 = vunpack.c.l.b16 %v2089
      %v2225 = vunpack.c.l.b16 %v2090
      %v2226 = vunpack.c.l.b16 %v2091
      %v2227 = vunpack.c.l.b16 %v2092
      %v2228 = vunpack.c.l.b16 %v2093
      %v2229 = vunpack.c.l.b16 %v2094
      %v2230 = vunpack.c.l.b16 %v2095
      %v2231 = vunpack.c.l.b16 %v2096
      %v2232 = vunpack.c.l.b16 %v2097
      %v2233 = vunpack.c.l.b16 %v2098
      %v2234 = vunpack.c.l.b16 %v2099
      %v2235 = vunpack.c.l.b16 %v2100
      %v2236 = vunpack.c.l.b16 %v2101
      %v2237 = vunpack.c.l.b16 %v2102
      %v2238 = vunpack.c.l.b16 %v2103
      %v2239 = vunpack.c.l.b16 %v2104
      %v2240 = vunpack.c.l.b16 %v2105
      %v2241 = vunpack.c.l.b16 %v2106
      %v2242 = vunpack.c.l.b16 %v2107
      %v2243 = vunpack.c.l.b16 %v2108
      %v2244 = vunpack.c.l.b16 %v2109
      %v2245 = vunpack.c.l.b16 %v2110
      %v2246 = vunpack.c.l.b16 %v2111
      %v2247 = vunpack.c.l.b16 %v2112
      %v2248 = vunpack.c.l.b16 %v2113
      %v2249 = vunpack.c.l.b16 %v2114
      %v2250 = vunpack.c.l.b16 %v2115
      %v2251 = vunpack.c.l.b16 %v2116
      %v2252 = vunpack.c.l.b16 %v2117
      %v2253 = vunpack.c.l.b16 %v2118
      %v2254 = vunpack.c.l.b16 %v2119
      %v2255 = vunpack.c.l.b16 %v2120
      %v2256 = vunpack.c.l.b16 %v2121
      %v2257 = vunpack.c.l.b16 %v2122
      %v2258 = vunpack.c.l.b16 %v2123
      %v2259 = vunpack.c.l.b16 %v2124
      %v2260 = vunpack.c.l.b16 %v2125
      %v2261 = vunpack.c.l.b16 %v2126
      %v2262 = vunpack.c.l.b16 %v2127
      %v2263 = vunpack.c.l.b16 %v2128
      %v2264 = vunpack.c.l.b16 %v2129
      %v2265 = vunpack.c.l.b16 %v2130
      %v2266 = vunpack.c.l.b16 %v2131
      %v2267 = vunpack.c.l.b16 %v2132
      %v2268 = vunpack.c.l.b16 %v2133
      %v2269 = vunpack.c.l.b16 %v2134
      %v2270 = vunpack.c.l.b16 %v2135
      %v2271 = vunpack.c.l.b16 %v2136
      %v2272 = vunpack.c.l.b16 %v2137
      %v2273 = vunpack.c.l.b16 %v2138
      %v2274 = vunpack.c.l.b16 %v2139
      %v2275 = vunpack.c.l.b16 %v2140
      %v2276 = vunpack.c.l.b16 %v2141
      %v2277 = vunpack.c.l.b16 %v2142
      %v2278 = vunpack.c.l.b16 %v2143
      %v2279 = vunpack.c.l.b16 %v2144
      %v2280 = vunpack.c.l.b16 %v2145
      %v2281 = vunpack.c.l.b16 %v2146
      %v2282 = vunpack.c.l.b16 %v2147
      %v2283 = vunpack.c.l.b16 %v2148
      %v2284 = vunpack.c.l.b16 %v2149
      %v2285 = vunpack.c.l.b16 %v2150
      %v2286 = vunpack.c.l.b16 %v2151
      %v2287 = vunpack.c.l.b16 %v2152
      %v2288 = vpack.c.b16 %v2225, %v2224
      %v2289 = vpack.c.b16 %v2227, %v2226
      %v2290 = vpack.c.b16 %v2229, %v2228
      %v2291 = vpack.c.b16 %v2231, %v2230
      %v2292 = vpack.c.b16 %v2233, %v2232
      %v2293 = vpack.c.b16 %v2235, %v2234
      %v2294 = vpack.c.b16 %v2237, %v2236
      %v2295 = vpack.c.b16 %v2239, %v2238
      %v2296 = vpack.c.b16 %v2241, %v2240
      %v2297 = vpack.c.b16 %v2243, %v2242
      %v2298 = vpack.c.b16 %v2245, %v2244
      %v2299 = vpack.c.b16 %v2247, %v2246
      %v2300 = vpack.c.b16 %v2249, %v2248
      %v2301 = vpack.c.b16 %v2251, %v2250
      %v2302 = vpack.c.b16 %v2253, %v2252
      %v2303 = vpack.c.b16 %v2255, %v2254
      %v2304 = vpack.c.b16 %v2257, %v2256
      %v2305 = vpack.c.b16 %v2259, %v2258
      %v2306 = vpack.c.b16 %v2261, %v2260
      %v2307 = vpack.c.b16 %v2263, %v2262
      %v2308 = vpack.c.b16 %v2265, %v2264
      %v2309 = vpack.c.b16 %v2267, %v2266
      %v2310 = vpack.c.b16 %v2269, %v2268
      %v2311 = vpack.c.b16 %v2271, %v2270
      %v2312 = vpack.c.b16 %v2273, %v2272
      %v2313 = vpack.c.b16 %v2275, %v2274
      %v2314 = vpack.c.b16 %v2277, %v2276
      %v2315 = vpack.c.b16 %v2279, %v2278
      %v2316 = vpack.c.b16 %v2281, %v2280
      %v2317 = vpack.c.b16 %v2283, %v2282
      %v2318 = vpack.c.b16 %v2285, %v2284
      %v2319 = vpack.c.b16 %v2287, %v2286
      %2352 = vmatprep.subr.bf16.mxu0 0
      %2353 = vmatpush1.bf16.msra.mxu0 %v2295
      %2354 = vmatprep.subr.bf16.mxu0 0
      %2355 = vmatpush1.bf16.msra.mxu0 %v2294
      %2356 = vmatprep.subr.bf16.mxu0 0
      %2357 = vmatpush1.bf16.msra.mxu0 %v2293
      %2358 = vmatprep.subr.bf16.mxu0 0
      %2359 = vmatpush1.bf16.msra.mxu0 %v2292
      %2360 = vmatprep.subr.bf16.mxu0 0
      %2361 = vmatpush1.bf16.msra.mxu0 %v2291
      %2362 = vmatprep.subr.bf16.mxu0 0
      %2363 = vmatpush1.bf16.msra.mxu0 %v2290
      %2364 = vmatprep.subr.bf16.mxu0 0
      %2365 = vmatpush1.bf16.msra.mxu0 %v2289
      %2366 = vmatprep.subr.bf16.mxu0 0
      %2367 = vmatpush1.bf16.msra.mxu0 %v2288
      %2368 = vmatprep.subr.bf16.mxu0 0
      %2369 = vmatpush2.bf16.msra.mxu0 %v2303
      %2370 = vmatprep.subr.bf16.mxu0 0
      %2371 = vmatpush2.bf16.msra.mxu0 %v2302
      %2372 = vmatprep.subr.bf16.mxu0 0
      %2373 = vmatpush2.bf16.msra.mxu0 %v2301
      %2374 = vmatprep.subr.bf16.mxu0 0
      %2375 = vmatpush2.bf16.msra.mxu0 %v2300
      %2376 = vmatprep.subr.bf16.mxu0 0
      %2377 = vmatpush2.bf16.msra.mxu0 %v2299
      %2378 = vmatprep.subr.bf16.mxu0 0
      %2379 = vmatpush2.bf16.msra.mxu0 %v2298
      %2380 = vmatprep.subr.bf16.mxu0 0
      %2381 = vmatpush2.bf16.msra.mxu0 %v2297
      %2382 = vmatprep.subr.bf16.mxu0 0
      %2383 = vmatpush2.bf16.msra.mxu0 %v2296
      %2384 = vmatprep.mubr.bf16.mxu0 %v2066
      %2385 = vmatmul.mubr.bf16.gmra.mxu0 %v2065
      %v2386 = vpop.f32.mrf.mxu0
      %v2387 = vadd.f32 %v2158, %v2386
      %v2388 = vpop.f32.mrf.mxu0
      %v2389 = vpop.f32.mrf.mxu0
      %v2390 = vadd.f32 %v2158, %v2389
      %v2391 = vpop.f32.mrf.mxu0
      %2392 = vmatprep.mubr.bf16.mxu0 %v2070
      %2393 = vmatmul.mubr.bf16.gmra.mxu0 %v2069
      %v2394 = vpop.f32.mrf.mxu0
      %v2395 = vadd.f32 %v2158, %v2394
      %v2396 = vpop.f32.mrf.mxu0
      %v2397 = vpop.f32.mrf.mxu0
      %v2398 = vadd.f32 %v2158, %v2397
      %v2399 = vpop.f32.mrf.mxu0
      %2400 = vmatprep.mubr.bf16.mxu0 %v2074
      %2401 = vmatmul.mubr.bf16.gmra.mxu0 %v2073
      %v2402 = vpop.f32.mrf.mxu0
      %v2403 = vadd.f32 %v2158, %v2402
      %v2404 = vpop.f32.mrf.mxu0
      %v2405 = vpop.f32.mrf.mxu0
      %v2406 = vadd.f32 %v2158, %v2405
      %v2407 = vpop.f32.mrf.mxu0
      %2408 = vmatprep.mubr.bf16.mxu0 %v2078
      %2409 = vmatmul.mubr.bf16.gmra.mxu0 %v2077
      %v2410 = vpop.f32.mrf.mxu0
      %v2411 = vadd.f32 %v2158, %v2410
      %v2412 = vpop.f32.mrf.mxu0
      %v2413 = vpop.f32.mrf.mxu0
      %v2414 = vadd.f32 %v2158, %v2413
      %v2415 = vpop.f32.mrf.mxu0
      %2416 = vmatprep.mubr.bf16.mxu0 %v2082
      %2417 = vmatmul.mubr.bf16.gmra.mxu0 %v2081
      %v2418 = vpop.f32.mrf.mxu0
      %v2419 = vadd.f32 %v2158, %v2418
      %v2420 = vpop.f32.mrf.mxu0
      %v2421 = vpop.f32.mrf.mxu0
      %v2422 = vadd.f32 %v2158, %v2421
      %v2423 = vpop.f32.mrf.mxu0
      %2424 = vmatprep.mubr.bf16.mxu0 %v2086
      %2425 = vmatmul.mubr.bf16.gmra.mxu0 %v2085
      %v2426 = vpop.f32.mrf.mxu0
      %v2427 = vadd.f32 %v2158, %v2426
      %v2428 = vpop.f32.mrf.mxu0
      %v2429 = vpop.f32.mrf.mxu0
      %v2430 = vadd.f32 %v2158, %v2429
      %v2431 = vpop.f32.mrf.mxu0
      %2432 = vdwg.mxu0
      %2433 = vmatprep.subr.bf16.mxu0 0
      %2434 = vmatpush1.bf16.msra.mxu0 %v2311
      %2435 = vmatprep.subr.bf16.mxu0 0
      %2436 = vmatpush1.bf16.msra.mxu0 %v2310
      %2437 = vmatprep.subr.bf16.mxu0 0
      %2438 = vmatpush1.bf16.msra.mxu0 %v2309
      %2439 = vmatprep.subr.bf16.mxu0 0
      %2440 = vmatpush1.bf16.msra.mxu0 %v2308
      %2441 = vmatprep.subr.bf16.mxu0 0
      %2442 = vmatpush1.bf16.msra.mxu0 %v2307
      %2443 = vmatprep.subr.bf16.mxu0 0
      %2444 = vmatpush1.bf16.msra.mxu0 %v2306
      %2445 = vmatprep.subr.bf16.mxu0 0
      %2446 = vmatpush1.bf16.msra.mxu0 %v2305
      %2447 = vmatprep.subr.bf16.mxu0 0
      %2448 = vmatpush1.bf16.msra.mxu0 %v2304
      %2449 = vmatprep.subr.bf16.mxu0 0
      %2450 = vmatpush2.bf16.msra.mxu0 %v2319
      %2451 = vmatprep.subr.bf16.mxu0 0
      %2452 = vmatpush2.bf16.msra.mxu0 %v2318
      %2453 = vmatprep.subr.bf16.mxu0 0
      %2454 = vmatpush2.bf16.msra.mxu0 %v2317
      %2455 = vmatprep.subr.bf16.mxu0 0
      %2456 = vmatpush2.bf16.msra.mxu0 %v2316
      %2457 = vmatprep.subr.bf16.mxu0 0
      %2458 = vmatpush2.bf16.msra.mxu0 %v2315
      %2459 = vmatprep.subr.bf16.mxu0 0
      %2460 = vmatpush2.bf16.msra.mxu0 %v2314
      %2461 = vmatprep.subr.bf16.mxu0 0
      %2462 = vmatpush2.bf16.msra.mxu0 %v2313
      %2463 = vmatprep.subr.bf16.mxu0 0
      %2464 = vmatpush2.bf16.msra.mxu0 %v2312
      %2465 = vmatprep.mubr.bf16.mxu0 %v2068
      %2466 = vmatmul.mubr.bf16.gmra.mxu0 %v2067
      %v2467 = vpop.f32.mrf.mxu0
      %v2468 = vadd.f32 %v2387, %v2467
      %v2469 = vpop.f32.mrf.mxu0
      %v2470 = vpop.f32.mrf.mxu0
      %v2471 = vadd.f32 %v2390, %v2470
      %v2472 = vpop.f32.mrf.mxu0
      %2473 = vmatprep.mubr.bf16.mxu0 %v2072
      %2474 = vmatmul.mubr.bf16.gmra.mxu0 %v2071
      %v2475 = vpop.f32.mrf.mxu0
      %v2476 = vadd.f32 %v2395, %v2475
      %v2477 = vpop.f32.mrf.mxu0
      %v2478 = vpop.f32.mrf.mxu0
      %v2479 = vadd.f32 %v2398, %v2478
      %v2480 = vpop.f32.mrf.mxu0
      %2481 = vmatprep.mubr.bf16.mxu0 %v2076
      %2482 = vmatmul.mubr.bf16.gmra.mxu0 %v2075
      %v2483 = vpop.f32.mrf.mxu0
      %v2484 = vadd.f32 %v2403, %v2483
      %v2485 = vpop.f32.mrf.mxu0
      %v2486 = vpop.f32.mrf.mxu0
      %v2487 = vadd.f32 %v2406, %v2486
      %v2488 = vpop.f32.mrf.mxu0
      %2489 = vmatprep.mubr.bf16.mxu0 %v2080
      %2490 = vmatmul.mubr.bf16.gmra.mxu0 %v2079
      %v2491 = vpop.f32.mrf.mxu0
      %v2492 = vadd.f32 %v2411, %v2491
      %v2493 = vpop.f32.mrf.mxu0
      %v2494 = vpop.f32.mrf.mxu0
      %v2495 = vadd.f32 %v2414, %v2494
      %v2496 = vpop.f32.mrf.mxu0
      %2497 = vmatprep.mubr.bf16.mxu0 %v2084
      %2498 = vmatmul.mubr.bf16.gmra.mxu0 %v2083
      %v2499 = vpop.f32.mrf.mxu0
      %v2500 = vadd.f32 %v2419, %v2499
      %v2501 = vpop.f32.mrf.mxu0
      %v2502 = vpop.f32.mrf.mxu0
      %v2503 = vadd.f32 %v2422, %v2502
      %v2504 = vpop.f32.mrf.mxu0
      %2505 = vmatprep.mubr.bf16.mxu0 %v2088
      %2506 = vmatmul.mubr.bf16.gmra.mxu0 %v2087
      %v2507 = vpop.f32.mrf.mxu0
      %v2508 = vadd.f32 %v2427, %v2507
      %v2509 = vpop.f32.mrf.mxu0
      %v2510 = vpop.f32.mrf.mxu0
      %v2511 = vadd.f32 %v2430, %v2510
      %v2512 = vpop.f32.mrf.mxu0
      %2513 = vdwg.mxu0
      %v2514 = vmax.f32 %v2468, 0.0
      %v2515 = vmax.f32 %v2471, 0.0
      %v2516 = vmax.f32 %v2476, 0.0
      %v2517 = vmax.f32 %v2479, 0.0
      %v2518 = vmax.f32 %v2484, 0.0
      %v2519 = vmax.f32 %v2487, 0.0
      %v2520 = vmax.f32 %v2492, 0.0
      %v2521 = vmax.f32 %v2495, 0.0
      %v2522 = vmax.f32 %v2500, 0.0
      %v2523 = vmax.f32 %v2503, 0.0
      %v2524 = vmax.f32 %v2508, 0.0
      %v2525 = vmax.f32 %v2511, 0.0
      %vm2526 = vcmask 523264
      %2527 = vst.msk [vmem:[#allocation4] sm:$0xff] %vm2526, %v2514
      %2528 = vst.msk [vmem:[#allocation4 + $0x8] sm:$0xff] %vm2526, %v2515
      %2529 = vst.msk [vmem:[#allocation4 + $0x10] sm:$0xff] %vm2526, %v2516
      %2530 = vst.msk [vmem:[#allocation4 + $0x18] sm:$0xff] %vm2526, %v2517
      %2531 = vst.msk [vmem:[#allocation4 + $0x20] sm:$0xff] %vm2526, %v2518
      %2532 = vst.msk [vmem:[#allocation4 + $0x28] sm:$0xff] %vm2526, %v2519
      %2533 = vst.msk [vmem:[#allocation4 + $0x30] sm:$0xff] %vm2526, %v2520
      %2534 = vst.msk [vmem:[#allocation4 + $0x38] sm:$0xff] %vm2526, %v2521
      %2535 = vst.msk [vmem:[#allocation4 + $0x40] sm:$0xff] %vm2526, %v2522
      %2536 = vst.msk [vmem:[#allocation4 + $0x48] sm:$0xff] %vm2526, %v2523
      %2537 = vst.msk [vmem:[#allocation4 + $0x50] sm:$0xff] %vm2526, %v2524
      %vm2538 = vcmask 517120
      %2539 = vst.msk [vmem:[#allocation4 + $0x58] sm:$0x3] %vm2538, %v2525
      %vm2540 = vcmask 521216
      %2541 = vst.msk [vmem:[#allocation4 + $0x5a] sm:$0x3f] %vm2540, 0.0
      %v2542 = vld [vmem:[#allocation4] sm:$0xff]
      %v2543 = vld [vmem:[#allocation4 + $0x8] sm:$0xff]
      %v2544 = vld [vmem:[#allocation4 + $0x10] sm:$0xff]
      %v2545 = vld [vmem:[#allocation4 + $0x18] sm:$0xff]
      %v2546 = vld [vmem:[#allocation4 + $0x20] sm:$0xff]
      %v2547 = vld [vmem:[#allocation4 + $0x28] sm:$0xff]
      %v2548 = vld [vmem:[#allocation4 + $0x30] sm:$0xff]
      %v2549 = vld [vmem:[#allocation4 + $0x38] sm:$0xff]
      %v2550 = vld [vmem:[#allocation4 + $0x40] sm:$0x3f]
      %2551 = vst.msk [vmem:[#allocation5] sm:$0xff] %vm2526, %v2542
      %2552 = vst.msk [vmem:[#allocation5 + $0x28] sm:$0xff] %vm2526, %v2543
      %2553 = vst.msk [vmem:[#allocation5 + $0x50] sm:$0xff] %vm2526, %v2544
      %2554 = vst.msk [vmem:[#allocation5 + $0x78] sm:$0xff] %vm2526, %v2545
      %2555 = vst.msk [vmem:[#allocation5 + $0xa0] sm:$0xff] %vm2526, %v2546
      %2556 = vst.msk [vmem:[#allocation5 + $0xc8] sm:$0xff] %vm2526, %v2547
      %2557 = vst.msk [vmem:[#allocation5 + $0xf0] sm:$0xff] %vm2526, %v2548
      %2558 = vst.msk [vmem:[#allocation5 + $0x118] sm:$0xff] %vm2526, %v2549
      %2559 = vst.msk [vmem:[#allocation5 + $0x140] sm:$0x3f] %vm2540, %v2550
      %v2560 = vld [vmem:[#allocation4 + $0x1] sm:$0xff]
      %v2561 = vld [vmem:[#allocation4 + $0x9] sm:$0xff]
      %v2562 = vld [vmem:[#allocation4 + $0x11] sm:$0xff]
      %v2563 = vld [vmem:[#allocation4 + $0x19] sm:$0xff]
      %v2564 = vld [vmem:[#allocation4 + $0x21] sm:$0xff]
      %v2565 = vld [vmem:[#allocation4 + $0x29] sm:$0xff]
      %v2566 = vld [vmem:[#allocation4 + $0x31] sm:$0xff]
      %v2567 = vld [vmem:[#allocation4 + $0x39] sm:$0xff]
      %v2568 = vld [vmem:[#allocation4 + $0x41] sm:$0x3f]
      %2578 = vrot.lane.b32.xlu0 %v2560, 64
      %v2579 = vpop.permute.xlu0 %2578
      %2580 = vrot.lane.b32.xlu0 %v2561, 64
      %v2581 = vpop.permute.xlu0 %2580
      %2582 = vrot.lane.b32.xlu0 %v2562, 64
      %v2583 = vpop.permute.xlu0 %2582
      %2584 = vrot.lane.b32.xlu0 %v2563, 64
      %v2585 = vpop.permute.xlu0 %2584
      %2586 = vrot.lane.b32.xlu0 %v2564, 64
      %v2587 = vpop.permute.xlu0 %2586
      %2588 = vrot.lane.b32.xlu0 %v2565, 64
      %v2589 = vpop.permute.xlu0 %2588
      %2590 = vrot.lane.b32.xlu0 %v2566, 64
      %v2591 = vpop.permute.xlu0 %2590
      %2592 = vrot.lane.b32.xlu0 %v2567, 64
      %v2593 = vpop.permute.xlu0 %2592
      %2594 = vrot.lane.b32.xlu0 %v2568, 64
      %v2595 = vpop.permute.xlu0 %2594
      %vm2605 = vcmask 1048064
      %2606 = vst.msk [vmem:[#allocation5] sm:$0xff] %vm2605, %v2579
      %2607 = vst.msk [vmem:[#allocation5 + $0x28] sm:$0xff] %vm2605, %v2581
      %2608 = vst.msk [vmem:[#allocation5 + $0x50] sm:$0xff] %vm2605, %v2583
      %2609 = vst.msk [vmem:[#allocation5 + $0x78] sm:$0xff] %vm2605, %v2585
      %2610 = vst.msk [vmem:[#allocation5 + $0xa0] sm:$0xff] %vm2605, %v2587
      %2611 = vst.msk [vmem:[#allocation5 + $0xc8] sm:$0xff] %vm2605, %v2589
      %2612 = vst.msk [vmem:[#allocation5 + $0xf0] sm:$0xff] %vm2605, %v2591
      %2613 = vst.msk [vmem:[#allocation5 + $0x118] sm:$0xff] %vm2605, %v2593
      %vm2614 = vcmask 1046016
      %2615 = vst.msk [vmem:[#allocation5 + $0x140] sm:$0x3f] %vm2614, %v2595
      %v2616 = vld [vmem:[#allocation4 + $0x2] sm:$0xff]
      %v2617 = vld [vmem:[#allocation4 + $0xa] sm:$0xff]
      %v2618 = vld [vmem:[#allocation4 + $0x12] sm:$0xff]
      %v2619 = vld [vmem:[#allocation4 + $0x1a] sm:$0xff]
      %v2620 = vld [vmem:[#allocation4 + $0x22] sm:$0xff]
      %v2621 = vld [vmem:[#allocation4 + $0x2a] sm:$0xff]
      %v2622 = vld [vmem:[#allocation4 + $0x32] sm:$0xff]
      %v2623 = vld [vmem:[#allocation4 + $0x3a] sm:$0xff]
      %v2624 = vld [vmem:[#allocation4 + $0x42] sm:$0x3f]
      %2625 = vst.msk [vmem:[#allocation5 + $0x8] sm:$0xff] %vm2526, %v2616
      %2626 = vst.msk [vmem:[#allocation5 + $0x30] sm:$0xff] %vm2526, %v2617
      %2627 = vst.msk [vmem:[#allocation5 + $0x58] sm:$0xff] %vm2526, %v2618
      %2628 = vst.msk [vmem:[#allocation5 + $0x80] sm:$0xff] %vm2526, %v2619
      %2629 = vst.msk [vmem:[#allocation5 + $0xa8] sm:$0xff] %vm2526, %v2620
      %2630 = vst.msk [vmem:[#allocation5 + $0xd0] sm:$0xff] %vm2526, %v2621
      %2631 = vst.msk [vmem:[#allocation5 + $0xf8] sm:$0xff] %vm2526, %v2622
      %2632 = vst.msk [vmem:[#allocation5 + $0x120] sm:$0xff] %vm2526, %v2623
      %2633 = vst.msk [vmem:[#allocation5 + $0x148] sm:$0x3f] %vm2540, %v2624
      %v2634 = vld [vmem:[#allocation4 + $0xa] sm:$0xff]
      %v2635 = vld [vmem:[#allocation4 + $0x12] sm:$0xff]
      %v2636 = vld [vmem:[#allocation4 + $0x1a] sm:$0xff]
      %v2637 = vld [vmem:[#allocation4 + $0x22] sm:$0xff]
      %v2638 = vld [vmem:[#allocation4 + $0x2a] sm:$0xff]
      %v2639 = vld [vmem:[#allocation4 + $0x32] sm:$0xff]
      %v2640 = vld [vmem:[#allocation4 + $0x3a] sm:$0xff]
      %v2641 = vld [vmem:[#allocation4 + $0x42] sm:$0xff]
      %v2642 = vld [vmem:[#allocation4 + $0x4a] sm:$0x3f]
      %2652 = vrot.lane.b32.xlu0 %v2634, 64
      %v2653 = vpop.permute.xlu0 %2652
      %2654 = vrot.lane.b32.xlu0 %v2635, 64
      %v2655 = vpop.permute.xlu0 %2654
      %2656 = vrot.lane.b32.xlu0 %v2636, 64
      %v2657 = vpop.permute.xlu0 %2656
      %2658 = vrot.lane.b32.xlu0 %v2637, 64
      %v2659 = vpop.permute.xlu0 %2658
      %2660 = vrot.lane.b32.xlu0 %v2638, 64
      %v2661 = vpop.permute.xlu0 %2660
      %2662 = vrot.lane.b32.xlu0 %v2639, 64
      %v2663 = vpop.permute.xlu0 %2662
      %2664 = vrot.lane.b32.xlu0 %v2640, 64
      %v2665 = vpop.permute.xlu0 %2664
      %2666 = vrot.lane.b32.xlu0 %v2641, 64
      %v2667 = vpop.permute.xlu0 %2666
      %2668 = vrot.lane.b32.xlu0 %v2642, 64
      %v2669 = vpop.permute.xlu0 %2668
      %2679 = vst.msk [vmem:[#allocation5 + $0x8] sm:$0xff] %vm2605, %v2653
      %2680 = vst.msk [vmem:[#allocation5 + $0x30] sm:$0xff] %vm2605, %v2655
      %2681 = vst.msk [vmem:[#allocation5 + $0x58] sm:$0xff] %vm2605, %v2657
      %2682 = vst.msk [vmem:[#allocation5 + $0x80] sm:$0xff] %vm2605, %v2659
      %2683 = vst.msk [vmem:[#allocation5 + $0xa8] sm:$0xff] %vm2605, %v2661
      %2684 = vst.msk [vmem:[#allocation5 + $0xd0] sm:$0xff] %vm2605, %v2663
      %2685 = vst.msk [vmem:[#allocation5 + $0xf8] sm:$0xff] %vm2605, %v2665
      %2686 = vst.msk [vmem:[#allocation5 + $0x120] sm:$0xff] %vm2605, %v2667
      %2687 = vst.msk [vmem:[#allocation5 + $0x148] sm:$0x3f] %vm2614, %v2669
      %v2688 = vld [vmem:[#allocation4 + $0xb] sm:$0xff]
      %v2689 = vld [vmem:[#allocation4 + $0x13] sm:$0xff]
      %v2690 = vld [vmem:[#allocation4 + $0x1b] sm:$0xff]
      %v2691 = vld [vmem:[#allocation4 + $0x23] sm:$0xff]
      %v2692 = vld [vmem:[#allocation4 + $0x2b] sm:$0xff]
      %v2693 = vld [vmem:[#allocation4 + $0x33] sm:$0xff]
      %v2694 = vld [vmem:[#allocation4 + $0x3b] sm:$0xff]
      %v2695 = vld [vmem:[#allocation4 + $0x43] sm:$0xff]
      %v2696 = vld [vmem:[#allocation4 + $0x4b] sm:$0x3f]
      %2697 = vst.msk [vmem:[#allocation5 + $0x10] sm:$0xff] %vm2526, %v2688
      %2698 = vst.msk [vmem:[#allocation5 + $0x38] sm:$0xff] %vm2526, %v2689
      %2699 = vst.msk [vmem:[#allocation5 + $0x60] sm:$0xff] %vm2526, %v2690
      %2700 = vst.msk [vmem:[#allocation5 + $0x88] sm:$0xff] %vm2526, %v2691
      %2701 = vst.msk [vmem:[#allocation5 + $0xb0] sm:$0xff] %vm2526, %v2692
      %2702 = vst.msk [vmem:[#allocation5 + $0xd8] sm:$0xff] %vm2526, %v2693
      %2703 = vst.msk [vmem:[#allocation5 + $0x100] sm:$0xff] %vm2526, %v2694
      %2704 = vst.msk [vmem:[#allocation5 + $0x128] sm:$0xff] %vm2526, %v2695
      %2705 = vst.msk [vmem:[#allocation5 + $0x150] sm:$0x3f] %vm2540, %v2696
      %v2706 = vld [vmem:[#allocation4 + $0xc] sm:$0xff]
      %v2707 = vld [vmem:[#allocation4 + $0x14] sm:$0xff]
      %v2708 = vld [vmem:[#allocation4 + $0x1c] sm:$0xff]
      %v2709 = vld [vmem:[#allocation4 + $0x24] sm:$0xff]
      %v2710 = vld [vmem:[#allocation4 + $0x2c] sm:$0xff]
      %v2711 = vld [vmem:[#allocation4 + $0x34] sm:$0xff]
      %v2712 = vld [vmem:[#allocation4 + $0x3c] sm:$0xff]
      %v2713 = vld [vmem:[#allocation4 + $0x44] sm:$0xff]
      %v2714 = vld [vmem:[#allocation4 + $0x4c] sm:$0x3f]
      %2724 = vrot.lane.b32.xlu0 %v2706, 64
      %v2725 = vpop.permute.xlu0 %2724
      %2726 = vrot.lane.b32.xlu0 %v2707, 64
      %v2727 = vpop.permute.xlu0 %2726
      %2728 = vrot.lane.b32.xlu0 %v2708, 64
      %v2729 = vpop.permute.xlu0 %2728
      %2730 = vrot.lane.b32.xlu0 %v2709, 64
      %v2731 = vpop.permute.xlu0 %2730
      %2732 = vrot.lane.b32.xlu0 %v2710, 64
      %v2733 = vpop.permute.xlu0 %2732
      %2734 = vrot.lane.b32.xlu0 %v2711, 64
      %v2735 = vpop.permute.xlu0 %2734
      %2736 = vrot.lane.b32.xlu0 %v2712, 64
      %v2737 = vpop.permute.xlu0 %2736
      %2738 = vrot.lane.b32.xlu0 %v2713, 64
      %v2739 = vpop.permute.xlu0 %2738
      %2740 = vrot.lane.b32.xlu0 %v2714, 64
      %v2741 = vpop.permute.xlu0 %2740
      %2751 = vst.msk [vmem:[#allocation5 + $0x10] sm:$0xff] %vm2605, %v2725
      %2752 = vst.msk [vmem:[#allocation5 + $0x38] sm:$0xff] %vm2605, %v2727
      %2753 = vst.msk [vmem:[#allocation5 + $0x60] sm:$0xff] %vm2605, %v2729
      %2754 = vst.msk [vmem:[#allocation5 + $0x88] sm:$0xff] %vm2605, %v2731
      %2755 = vst.msk [vmem:[#allocation5 + $0xb0] sm:$0xff] %vm2605, %v2733
      %2756 = vst.msk [vmem:[#allocation5 + $0xd8] sm:$0xff] %vm2605, %v2735
      %2757 = vst.msk [vmem:[#allocation5 + $0x100] sm:$0xff] %vm2605, %v2737
      %2758 = vst.msk [vmem:[#allocation5 + $0x128] sm:$0xff] %vm2605, %v2739
      %2759 = vst.msk [vmem:[#allocation5 + $0x150] sm:$0x3f] %vm2614, %v2741
      %v2760 = vld [vmem:[#allocation4 + $0x14] sm:$0xff]
      %v2761 = vld [vmem:[#allocation4 + $0x1c] sm:$0xff]
      %v2762 = vld [vmem:[#allocation4 + $0x24] sm:$0xff]
      %v2763 = vld [vmem:[#allocation4 + $0x2c] sm:$0xff]
      %v2764 = vld [vmem:[#allocation4 + $0x34] sm:$0xff]
      %v2765 = vld [vmem:[#allocation4 + $0x3c] sm:$0xff]
      %v2766 = vld [vmem:[#allocation4 + $0x44] sm:$0xff]
      %v2767 = vld [vmem:[#allocation4 + $0x4c] sm:$0xff]
      %v2768 = vld [vmem:[#allocation4 + $0x54] sm:$0x3f]
      %2769 = vst.msk [vmem:[#allocation5 + $0x18] sm:$0xff] %vm2526, %v2760
      %2770 = vst.msk [vmem:[#allocation5 + $0x40] sm:$0xff] %vm2526, %v2761
      %2771 = vst.msk [vmem:[#allocation5 + $0x68] sm:$0xff] %vm2526, %v2762
      %2772 = vst.msk [vmem:[#allocation5 + $0x90] sm:$0xff] %vm2526, %v2763
      %2773 = vst.msk [vmem:[#allocation5 + $0xb8] sm:$0xff] %vm2526, %v2764
      %2774 = vst.msk [vmem:[#allocation5 + $0xe0] sm:$0xff] %vm2526, %v2765
      %2775 = vst.msk [vmem:[#allocation5 + $0x108] sm:$0xff] %vm2526, %v2766
      %2776 = vst.msk [vmem:[#allocation5 + $0x130] sm:$0xff] %vm2526, %v2767
      %2777 = vst.msk [vmem:[#allocation5 + $0x158] sm:$0x3f] %vm2540, %v2768
      %v2778 = vld [vmem:[#allocation4 + $0x15] sm:$0xff]
      %v2779 = vld [vmem:[#allocation4 + $0x1d] sm:$0xff]
      %v2780 = vld [vmem:[#allocation4 + $0x25] sm:$0xff]
      %v2781 = vld [vmem:[#allocation4 + $0x2d] sm:$0xff]
      %v2782 = vld [vmem:[#allocation4 + $0x35] sm:$0xff]
      %v2783 = vld [vmem:[#allocation4 + $0x3d] sm:$0xff]
      %v2784 = vld [vmem:[#allocation4 + $0x45] sm:$0xff]
      %v2785 = vld [vmem:[#allocation4 + $0x4d] sm:$0xff]
      %v2786 = vld [vmem:[#allocation4 + $0x55] sm:$0x3f]
      %2796 = vrot.lane.b32.xlu0 %v2778, 64
      %v2797 = vpop.permute.xlu0 %2796
      %2798 = vrot.lane.b32.xlu0 %v2779, 64
      %v2799 = vpop.permute.xlu0 %2798
      %2800 = vrot.lane.b32.xlu0 %v2780, 64
      %v2801 = vpop.permute.xlu0 %2800
      %2802 = vrot.lane.b32.xlu0 %v2781, 64
      %v2803 = vpop.permute.xlu0 %2802
      %2804 = vrot.lane.b32.xlu0 %v2782, 64
      %v2805 = vpop.permute.xlu0 %2804
      %2806 = vrot.lane.b32.xlu0 %v2783, 64
      %v2807 = vpop.permute.xlu0 %2806
      %2808 = vrot.lane.b32.xlu0 %v2784, 64
      %v2809 = vpop.permute.xlu0 %2808
      %2810 = vrot.lane.b32.xlu0 %v2785, 64
      %v2811 = vpop.permute.xlu0 %2810
      %2812 = vrot.lane.b32.xlu0 %v2786, 64
      %v2813 = vpop.permute.xlu0 %2812
      %2823 = vst.msk [vmem:[#allocation5 + $0x18] sm:$0xff] %vm2605, %v2797
      %2824 = vst.msk [vmem:[#allocation5 + $0x40] sm:$0xff] %vm2605, %v2799
      %2825 = vst.msk [vmem:[#allocation5 + $0x68] sm:$0xff] %vm2605, %v2801
      %2826 = vst.msk [vmem:[#allocation5 + $0x90] sm:$0xff] %vm2605, %v2803
      %2827 = vst.msk [vmem:[#allocation5 + $0xb8] sm:$0xff] %vm2605, %v2805
      %2828 = vst.msk [vmem:[#allocation5 + $0xe0] sm:$0xff] %vm2605, %v2807
      %2829 = vst.msk [vmem:[#allocation5 + $0x108] sm:$0xff] %vm2605, %v2809
      %2830 = vst.msk [vmem:[#allocation5 + $0x130] sm:$0xff] %vm2605, %v2811
      %2831 = vst.msk [vmem:[#allocation5 + $0x158] sm:$0x3f] %vm2614, %v2813
      %v2832 = vld [vmem:[#allocation4 + $0x16] sm:$0xff]
      %v2833 = vld [vmem:[#allocation4 + $0x1e] sm:$0xff]
      %v2834 = vld [vmem:[#allocation4 + $0x26] sm:$0xff]
      %v2835 = vld [vmem:[#allocation4 + $0x2e] sm:$0xff]
      %v2836 = vld [vmem:[#allocation4 + $0x36] sm:$0xff]
      %v2837 = vld [vmem:[#allocation4 + $0x3e] sm:$0xff]
      %v2838 = vld [vmem:[#allocation4 + $0x46] sm:$0xff]
      %v2839 = vld [vmem:[#allocation4 + $0x4e] sm:$0xff]
      %v2840 = vld [vmem:[#allocation4 + $0x56] sm:$0x3f]
      %2841 = vst.msk [vmem:[#allocation5 + $0x20] sm:$0xff] %vm2526, %v2832
      %2842 = vst.msk [vmem:[#allocation5 + $0x48] sm:$0xff] %vm2526, %v2833
      %2843 = vst.msk [vmem:[#allocation5 + $0x70] sm:$0xff] %vm2526, %v2834
      %2844 = vst.msk [vmem:[#allocation5 + $0x98] sm:$0xff] %vm2526, %v2835
      %2845 = vst.msk [vmem:[#allocation5 + $0xc0] sm:$0xff] %vm2526, %v2836
      %2846 = vst.msk [vmem:[#allocation5 + $0xe8] sm:$0xff] %vm2526, %v2837
      %2847 = vst.msk [vmem:[#allocation5 + $0x110] sm:$0xff] %vm2526, %v2838
      %2848 = vst.msk [vmem:[#allocation5 + $0x138] sm:$0xff] %vm2526, %v2839
      %2849 = vst.msk [vmem:[#allocation5 + $0x160] sm:$0x3f] %vm2540, %v2840
      %v2850 = vld [vmem:[#allocation5] sm:$0xff]
      %v2851 = vld [vmem:[#allocation5 + $0x8] sm:$0xff]
      %v2852 = vld [vmem:[#allocation5 + $0x10] sm:$0xff]
      %v2853 = vld [vmem:[#allocation5 + $0x18] sm:$0xff]
      %v2854 = vld [vmem:[#allocation5 + $0x20] sm:$0xff]
      %v2855 = vld [vmem:[#allocation5 + $0x28] sm:$0xff]
      %v2856 = vld [vmem:[#allocation5 + $0x30] sm:$0xff]
      %v2857 = vld [vmem:[#allocation5 + $0x38] sm:$0xff]
      %v2858 = vld [vmem:[#allocation5 + $0x40] sm:$0xff]
      %v2859 = vld [vmem:[#allocation5 + $0x48] sm:$0xff]
      %v2860 = vld [vmem:[#allocation5 + $0x50] sm:$0xff]
      %v2861 = vld [vmem:[#allocation5 + $0x58] sm:$0xff]
      %v2862 = vld [vmem:[#allocation5 + $0x60] sm:$0xff]
      %v2863 = vld [vmem:[#allocation5 + $0x68] sm:$0xff]
      %v2864 = vld [vmem:[#allocation5 + $0x70] sm:$0xff]
      %v2865 = vld [vmem:[#allocation5 + $0x78] sm:$0xff]
      %v2866 = vld [vmem:[#allocation5 + $0x80] sm:$0xff]
      %v2867 = vld [vmem:[#allocation5 + $0x88] sm:$0xff]
      %v2868 = vld [vmem:[#allocation5 + $0x90] sm:$0xff]
      %v2869 = vld [vmem:[#allocation5 + $0x98] sm:$0xff]
      %v2870 = vld [vmem:[#allocation5 + $0xa0] sm:$0xff]
      %v2871 = vld [vmem:[#allocation5 + $0xa8] sm:$0xff]
      %v2872 = vld [vmem:[#allocation5 + $0xb0] sm:$0xff]
      %v2873 = vld [vmem:[#allocation5 + $0xb8] sm:$0xff]
      %v2874 = vld [vmem:[#allocation5 + $0xc0] sm:$0xff]
      %v2875 = vld [vmem:[#allocation5 + $0xc8] sm:$0xff]
      %v2876 = vld [vmem:[#allocation5 + $0xd0] sm:$0xff]
      %v2877 = vld [vmem:[#allocation5 + $0xd8] sm:$0xff]
      %v2878 = vld [vmem:[#allocation5 + $0xe0] sm:$0xff]
      %v2879 = vld [vmem:[#allocation5 + $0xe8] sm:$0xff]
      %v2880 = vld [vmem:[#allocation5 + $0xf0] sm:$0xff]
      %v2881 = vld [vmem:[#allocation5 + $0xf8] sm:$0xff]
      %v2882 = vld [vmem:[#allocation5 + $0x100] sm:$0xff]
      %v2883 = vld [vmem:[#allocation5 + $0x108] sm:$0xff]
      %v2884 = vld [vmem:[#allocation5 + $0x110] sm:$0xff]
      %v2885 = vld [vmem:[#allocation5 + $0x118] sm:$0xff]
      %v2886 = vld [vmem:[#allocation5 + $0x120] sm:$0xff]
      %v2887 = vld [vmem:[#allocation5 + $0x128] sm:$0xff]
      %v2888 = vld [vmem:[#allocation5 + $0x130] sm:$0xff]
      %v2889 = vld [vmem:[#allocation5 + $0x138] sm:$0xff]
      %v2890 = vld [vmem:[#allocation5 + $0x140] sm:$0x3f]
      %v2891 = vld [vmem:[#allocation5 + $0x148] sm:$0x3f]
      %v2892 = vld [vmem:[#allocation5 + $0x150] sm:$0x3f]
      %v2893 = vld [vmem:[#allocation5 + $0x158] sm:$0x3f]
      %v2894 = vld [vmem:[#allocation5 + $0x160] sm:$0x3f]
      %v2895 = vpack.c.bf16 %v2855, %v2850
      %v2896 = vpack.c.bf16 %v2856, %v2851
      %v2897 = vpack.c.bf16 %v2857, %v2852
      %v2898 = vpack.c.bf16 %v2858, %v2853
      %v2899 = vpack.c.bf16 %v2859, %v2854
      %v2900 = vpack.c.bf16 %v2865, %v2860
      %v2901 = vpack.c.bf16 %v2866, %v2861
      %v2902 = vpack.c.bf16 %v2867, %v2862
      %v2903 = vpack.c.bf16 %v2868, %v2863
      %v2904 = vpack.c.bf16 %v2869, %v2864
      %v2905 = vpack.c.bf16 %v2875, %v2870
      %v2906 = vpack.c.bf16 %v2876, %v2871
      %v2907 = vpack.c.bf16 %v2877, %v2872
      %v2908 = vpack.c.bf16 %v2878, %v2873
      %v2909 = vpack.c.bf16 %v2879, %v2874
      %v2910 = vpack.c.bf16 %v2885, %v2880
      %v2911 = vpack.c.bf16 %v2886, %v2881
      %v2912 = vpack.c.bf16 %v2887, %v2882
      %v2913 = vpack.c.bf16 %v2888, %v2883
      %v2914 = vpack.c.bf16 %v2889, %v2884
      %v2915 = vpack.c.bf16 %v2890, %v2890
      %v2916 = vpack.c.bf16 %v2891, %v2891
      %v2917 = vpack.c.bf16 %v2892, %v2892
      %v2918 = vpack.c.bf16 %v2893, %v2893
      %v2919 = vpack.c.bf16 %v2894, %v2894
      %v2920 = vld [vmem:[%s5] sm:$0xf]
      %v2921 = vld [vmem:[%s5 + $0x4] sm:$0xf]
      %v2922 = vld [vmem:[%s5 + $0x8] sm:$0xf]
      %v2923 = vld [vmem:[%s5 + $0xc] sm:$0xf]
      %v2924 = vld [vmem:[%s5 + $0x10] sm:$0xf]
      %v2925 = vld [vmem:[%s5 + $0x14] sm:$0xf]
      %v2926 = vld [vmem:[%s5 + $0x18] sm:$0xf]
      %v2927 = vld [vmem:[%s5 + $0x1c] sm:$0xf]
      %v2928 = vld [vmem:[%s5 + $0x20] sm:$0xf]
      %v2929 = vld [vmem:[%s5 + $0x24] sm:$0xf]
      %v2930 = vld [vmem:[%s5 + $0x28] sm:$0xf]
      %v2931 = vld [vmem:[%s5 + $0x2c] sm:$0xf]
      %v2932 = vld [vmem:[%s5 + $0x30] sm:$0xf]
      %v2933 = vld [vmem:[%s5 + $0x34] sm:$0xf]
      %v2934 = vld [vmem:[%s5 + $0x38] sm:$0xf]
      %v2935 = vld [vmem:[%s5 + $0x3c] sm:$0xf]
      %v2936 = vld [vmem:[%s5 + $0x40] sm:$0xf]
      %v2937 = vld [vmem:[%s5 + $0x44] sm:$0xf]
      %v2938 = vld [vmem:[%s5 + $0x48] sm:$0xf]
      %v2939 = vld [vmem:[%s5 + $0x4c] sm:$0xf]
      %v2940 = vld [vmem:[%s5 + $0x50] sm:$0xf]
      %v2941 = vld [vmem:[%s5 + $0x54] sm:$0xf]
      %v2942 = vld [vmem:[%s5 + $0x58] sm:$0xf]
      %v2943 = vld [vmem:[%s5 + $0x5c] sm:$0xf]
      %v2944 = vld [vmem:[%s5 + $0x60] sm:$0xf]
      %v2945 = vld [vmem:[%s5 + $0x64] sm:$0xf]
      %v2946 = vld [vmem:[%s5 + $0x68] sm:$0xf]
      %v2947 = vld [vmem:[%s5 + $0x6c] sm:$0xf]
      %v2948 = vld [vmem:[%s5 + $0x70] sm:$0xf]
      %v2949 = vld [vmem:[%s5 + $0x74] sm:$0xf]
      %v2950 = vld [vmem:[%s5 + $0x78] sm:$0xf]
      %v2951 = vld [vmem:[%s5 + $0x7c] sm:$0xf]
      %v2952 = vld [vmem:[%s5 + $0x80] sm:$0xf]
      %v2953 = vld [vmem:[%s5 + $0x84] sm:$0xf]
      %v2954 = vld [vmem:[%s5 + $0x88] sm:$0xf]
      %v2955 = vld [vmem:[%s5 + $0x8c] sm:$0xf]
      %v2956 = vld [vmem:[%s5 + $0x90] sm:$0xf]
      %v2957 = vld [vmem:[%s5 + $0x94] sm:$0xf]
      %v2958 = vld [vmem:[%s5 + $0x98] sm:$0xf]
      %v2959 = vld [vmem:[%s5 + $0x9c] sm:$0xf]
      %v2960 = vld [vmem:[%s5 + $0xa0] sm:$0xf]
      %v2961 = vld [vmem:[%s5 + $0xa4] sm:$0xf]
      %v2962 = vld [vmem:[%s5 + $0xa8] sm:$0xf]
      %v2963 = vld [vmem:[%s5 + $0xac] sm:$0xf]
      %v2964 = vld [vmem:[%s5 + $0xb0] sm:$0xf]
      %v2965 = vld [vmem:[%s5 + $0xb4] sm:$0xf]
      %v2966 = vld [vmem:[%s5 + $0xb8] sm:$0xf]
      %v2967 = vld [vmem:[%s5 + $0xbc] sm:$0xf]
      %v2968 = vld [vmem:[%s5 + $0xc0] sm:$0xf]
      %v2969 = vld [vmem:[%s5 + $0xc4] sm:$0xf]
      %v2970 = vld [vmem:[%s5 + $0xc8] sm:$0xf]
      %v2971 = vld [vmem:[%s5 + $0xcc] sm:$0xf]
      %v2972 = vld [vmem:[%s5 + $0xd0] sm:$0xf]
      %v2973 = vld [vmem:[%s5 + $0xd4] sm:$0xf]
      %v2974 = vld [vmem:[%s5 + $0xd8] sm:$0xf]
      %v2975 = vld [vmem:[%s5 + $0xdc] sm:$0xf]
      %v2976 = vld [vmem:[%s5 + $0xe0] sm:$0xf]
      %v2977 = vld [vmem:[%s5 + $0xe4] sm:$0xf]
      %v2978 = vld [vmem:[%s5 + $0xe8] sm:$0xf]
      %v2979 = vld [vmem:[%s5 + $0xec] sm:$0xf]
      %v2980 = vld [vmem:[%s5 + $0xf0] sm:$0xf]
      %v2981 = vld [vmem:[%s5 + $0xf4] sm:$0xf]
      %v2982 = vld [vmem:[%s5 + $0xf8] sm:$0xf]
      %v2983 = vld [vmem:[%s5 + $0xfc] sm:$0xf]
      %v2984 = vld [vmem:[%s5 + $0x100] sm:$0xf]
      %v2985 = vld [vmem:[%s5 + $0x104] sm:$0xf]
      %v2986 = vld [vmem:[%s5 + $0x108] sm:$0xf]
      %v2987 = vld [vmem:[%s5 + $0x10c] sm:$0xf]
      %v2988 = vld [vmem:[%s5 + $0x110] sm:$0xf]
      %v2989 = vld [vmem:[%s5 + $0x114] sm:$0xf]
      %v2990 = vld [vmem:[%s5 + $0x118] sm:$0xf]
      %v2991 = vld [vmem:[%s5 + $0x11c] sm:$0xf]
      %v2992 = vld [vmem:[%s6] sm:$0x1]
      %v2994 = vlaneseq
      %v2995 = vshrl.u32 %v2994, 7
      %v2996 = vsub.s32 0, %v2995
      %v2997 = vrot.slane %v2992, %v2996
      %v3071 = vunpack.c.l.b16 %v2920
      %v3072 = vunpack.c.l.b16 %v2921
      %v3073 = vunpack.c.l.b16 %v2922
      %v3074 = vunpack.c.l.b16 %v2923
      %v3075 = vunpack.c.l.b16 %v2924
      %v3076 = vunpack.c.l.b16 %v2925
      %v3077 = vunpack.c.l.b16 %v2926
      %v3078 = vunpack.c.l.b16 %v2927
      %v3079 = vunpack.c.l.b16 %v2928
      %v3080 = vunpack.c.l.b16 %v2929
      %v3081 = vunpack.c.l.b16 %v2930
      %v3082 = vunpack.c.l.b16 %v2931
      %v3083 = vunpack.c.l.b16 %v2932
      %v3084 = vunpack.c.l.b16 %v2933
      %v3085 = vunpack.c.l.b16 %v2934
      %v3086 = vunpack.c.l.b16 %v2935
      %v3087 = vunpack.c.l.b16 %v2936
      %v3088 = vunpack.c.l.b16 %v2937
      %v3089 = vunpack.c.l.b16 %v2938
      %v3090 = vunpack.c.l.b16 %v2939
      %v3091 = vunpack.c.l.b16 %v2940
      %v3092 = vunpack.c.l.b16 %v2941
      %v3093 = vunpack.c.l.b16 %v2942
      %v3094 = vunpack.c.l.b16 %v2943
      %v3095 = vunpack.c.l.b16 %v2944
      %v3096 = vunpack.c.l.b16 %v2945
      %v3097 = vunpack.c.l.b16 %v2946
      %v3098 = vunpack.c.l.b16 %v2947
      %v3099 = vunpack.c.l.b16 %v2948
      %v3100 = vunpack.c.l.b16 %v2949
      %v3101 = vunpack.c.l.b16 %v2950
      %v3102 = vunpack.c.l.b16 %v2951
      %v3103 = vunpack.c.l.b16 %v2952
      %v3104 = vunpack.c.l.b16 %v2953
      %v3105 = vunpack.c.l.b16 %v2954
      %v3106 = vunpack.c.l.b16 %v2955
      %v3107 = vunpack.c.l.b16 %v2956
      %v3108 = vunpack.c.l.b16 %v2957
      %v3109 = vunpack.c.l.b16 %v2958
      %v3110 = vunpack.c.l.b16 %v2959
      %v3111 = vunpack.c.l.b16 %v2960
      %v3112 = vunpack.c.l.b16 %v2961
      %v3113 = vunpack.c.l.b16 %v2962
      %v3114 = vunpack.c.l.b16 %v2963
      %v3115 = vunpack.c.l.b16 %v2964
      %v3116 = vunpack.c.l.b16 %v2965
      %v3117 = vunpack.c.l.b16 %v2966
      %v3118 = vunpack.c.l.b16 %v2967
      %v3119 = vunpack.c.l.b16 %v2968
      %v3120 = vunpack.c.l.b16 %v2969
      %v3121 = vunpack.c.l.b16 %v2970
      %v3122 = vunpack.c.l.b16 %v2971
      %v3123 = vunpack.c.l.b16 %v2972
      %v3124 = vunpack.c.l.b16 %v2973
      %v3125 = vunpack.c.l.b16 %v2974
      %v3126 = vunpack.c.l.b16 %v2975
      %v3127 = vunpack.c.l.b16 %v2976
      %v3128 = vunpack.c.l.b16 %v2977
      %v3129 = vunpack.c.l.b16 %v2978
      %v3130 = vunpack.c.l.b16 %v2979
      %v3131 = vunpack.c.l.b16 %v2980
      %v3132 = vunpack.c.l.b16 %v2981
      %v3133 = vunpack.c.l.b16 %v2982
      %v3134 = vunpack.c.l.b16 %v2983
      %v3135 = vunpack.c.l.b16 %v2984
      %v3136 = vunpack.c.l.b16 %v2985
      %v3137 = vunpack.c.l.b16 %v2986
      %v3138 = vunpack.c.l.b16 %v2987
      %v3139 = vunpack.c.l.b16 %v2988
      %v3140 = vunpack.c.l.b16 %v2989
      %v3141 = vunpack.c.l.b16 %v2990
      %v3142 = vunpack.c.l.b16 %v2991
      %v3143 = vpack.c.b16 %v3072, %v3071
      %v3144 = vpack.c.b16 %v3074, %v3073
      %v3145 = vpack.c.b16 %v3076, %v3075
      %v3146 = vpack.c.b16 %v3078, %v3077
      %v3147 = vpack.c.b16 %v3080, %v3079
      %v3148 = vpack.c.b16 %v3082, %v3081
      %v3149 = vpack.c.b16 %v3084, %v3083
      %v3150 = vpack.c.b16 %v3086, %v3085
      %v3151 = vpack.c.b16 %v3088, %v3087
      %v3152 = vpack.c.b16 %v3090, %v3089
      %v3153 = vpack.c.b16 %v3092, %v3091
      %v3154 = vpack.c.b16 %v3094, %v3093
      %v3155 = vpack.c.b16 %v3096, %v3095
      %v3156 = vpack.c.b16 %v3098, %v3097
      %v3157 = vpack.c.b16 %v3100, %v3099
      %v3158 = vpack.c.b16 %v3102, %v3101
      %v3159 = vpack.c.b16 %v3104, %v3103
      %v3160 = vpack.c.b16 %v3106, %v3105
      %v3161 = vpack.c.b16 %v3108, %v3107
      %v3162 = vpack.c.b16 %v3110, %v3109
      %v3163 = vpack.c.b16 %v3112, %v3111
      %v3164 = vpack.c.b16 %v3114, %v3113
      %v3165 = vpack.c.b16 %v3116, %v3115
      %v3166 = vpack.c.b16 %v3118, %v3117
      %v3167 = vpack.c.b16 %v3120, %v3119
      %v3168 = vpack.c.b16 %v3122, %v3121
      %v3169 = vpack.c.b16 %v3124, %v3123
      %v3170 = vpack.c.b16 %v3126, %v3125
      %v3171 = vpack.c.b16 %v3128, %v3127
      %v3172 = vpack.c.b16 %v3130, %v3129
      %v3173 = vpack.c.b16 %v3132, %v3131
      %v3174 = vpack.c.b16 %v3134, %v3133
      %v3175 = vpack.c.b16 %v3136, %v3135
      %v3176 = vpack.c.b16 %v3138, %v3137
      %v3177 = vpack.c.b16 %v3140, %v3139
      %v3178 = vpack.c.b16 %v3142, %v3141
      %v3216 = vsel %vm2526, %v2899, 0
      %v3219 = vsel %vm2526, %v2904, 0
      %v3222 = vsel %vm2526, %v2909, 0
      %v3225 = vsel %vm2526, %v2914, 0
      %v3228 = vsel %vm2526, %v2919, 0
      %3230 = vmatprep.subr.bf16.mxu0 0
      %3231 = vmatpush1.bf16.msra.mxu0 %v3150
      %3232 = vmatprep.subr.bf16.mxu0 0
      %3233 = vmatpush1.bf16.msra.mxu0 %v3149
      %3234 = vmatprep.subr.bf16.mxu0 0
      %3235 = vmatpush1.bf16.msra.mxu0 %v3148
      %3236 = vmatprep.subr.bf16.mxu0 0
      %3237 = vmatpush1.bf16.msra.mxu0 %v3147
      %3238 = vmatprep.subr.bf16.mxu0 0
      %3239 = vmatpush1.bf16.msra.mxu0 %v3146
      %3240 = vmatprep.subr.bf16.mxu0 0
      %3241 = vmatpush1.bf16.msra.mxu0 %v3145
      %3242 = vmatprep.subr.bf16.mxu0 0
      %3243 = vmatpush1.bf16.msra.mxu0 %v3144
      %3244 = vmatprep.subr.bf16.mxu0 0
      %3245 = vmatpush1.bf16.msra.mxu0 %v3143
      %3246 = vmatprep.subr.bf16.mxu0 0
      %3247 = vmatpush2.bf16.msra.mxu0 %v3158
      %3248 = vmatprep.subr.bf16.mxu0 0
      %3249 = vmatpush2.bf16.msra.mxu0 %v3157
      %3250 = vmatprep.subr.bf16.mxu0 0
      %3251 = vmatpush2.bf16.msra.mxu0 %v3156
      %3252 = vmatprep.subr.bf16.mxu0 0
      %3253 = vmatpush2.bf16.msra.mxu0 %v3155
      %3254 = vmatprep.subr.bf16.mxu0 0
      %3255 = vmatpush2.bf16.msra.mxu0 %v3154
      %3256 = vmatprep.subr.bf16.mxu0 0
      %3257 = vmatpush2.bf16.msra.mxu0 %v3153
      %3258 = vmatprep.subr.bf16.mxu0 0
      %3259 = vmatpush2.bf16.msra.mxu0 %v3152
      %3260 = vmatprep.subr.bf16.mxu0 0
      %3261 = vmatpush2.bf16.msra.mxu0 %v3151
      %3262 = vmatprep.mubr.bf16.mxu0 %v2896
      %3263 = vmatmul.mubr.bf16.gmra.mxu0 %v2895
      %v3264 = vpop.f32.mrf.mxu0
      %v3265 = vadd.f32 %v2997, %v3264
      %v3266 = vpop.f32.mrf.mxu0
      %v3267 = vpop.f32.mrf.mxu0
      %v3268 = vadd.f32 %v2997, %v3267
      %v3269 = vpop.f32.mrf.mxu0
      %3270 = vmatprep.mubr.bf16.mxu0 %v2901
      %3271 = vmatmul.mubr.bf16.gmra.mxu0 %v2900
      %v3272 = vpop.f32.mrf.mxu0
      %v3273 = vadd.f32 %v2997, %v3272
      %v3274 = vpop.f32.mrf.mxu0
      %v3275 = vpop.f32.mrf.mxu0
      %v3276 = vadd.f32 %v2997, %v3275
      %v3277 = vpop.f32.mrf.mxu0
      %3278 = vmatprep.mubr.bf16.mxu0 %v2906
      %3279 = vmatmul.mubr.bf16.gmra.mxu0 %v2905
      %v3280 = vpop.f32.mrf.mxu0
      %v3281 = vadd.f32 %v2997, %v3280
      %v3282 = vpop.f32.mrf.mxu0
      %v3283 = vpop.f32.mrf.mxu0
      %v3284 = vadd.f32 %v2997, %v3283
      %v3285 = vpop.f32.mrf.mxu0
      %3286 = vmatprep.mubr.bf16.mxu0 %v2911
      %3287 = vmatmul.mubr.bf16.gmra.mxu0 %v2910
      %v3288 = vpop.f32.mrf.mxu0
      %v3289 = vadd.f32 %v2997, %v3288
      %v3290 = vpop.f32.mrf.mxu0
      %v3291 = vpop.f32.mrf.mxu0
      %v3292 = vadd.f32 %v2997, %v3291
      %v3293 = vpop.f32.mrf.mxu0
      %3294 = vmatprep.mubr.bf16.mxu0 %v2916
      %3295 = vmatmul.mubr.bf16.gmra.mxu0 %v2915
      %v3296 = vpop.f32.mrf.mxu0
      %v3297 = vadd.f32 %v2997, %v3296
      %v3298 = vpop.f32.mrf.mxu0
      %v3299 = vpop.f32.mrf.mxu0
      %v3300 = vpop.f32.mrf.mxu0
      %3301 = vdwg.mxu0
      %3302 = vmatprep.subr.bf16.mxu0 0
      %3303 = vmatpush1.bf16.msra.mxu0 %v3166
      %3304 = vmatprep.subr.bf16.mxu0 0
      %3305 = vmatpush1.bf16.msra.mxu0 %v3165
      %3306 = vmatprep.subr.bf16.mxu0 0
      %3307 = vmatpush1.bf16.msra.mxu0 %v3164
      %3308 = vmatprep.subr.bf16.mxu0 0
      %3309 = vmatpush1.bf16.msra.mxu0 %v3163
      %3310 = vmatprep.subr.bf16.mxu0 0
      %3311 = vmatpush1.bf16.msra.mxu0 %v3162
      %3312 = vmatprep.subr.bf16.mxu0 0
      %3313 = vmatpush1.bf16.msra.mxu0 %v3161
      %3314 = vmatprep.subr.bf16.mxu0 0
      %3315 = vmatpush1.bf16.msra.mxu0 %v3160
      %3316 = vmatprep.subr.bf16.mxu0 0
      %3317 = vmatpush1.bf16.msra.mxu0 %v3159
      %3318 = vmatprep.subr.bf16.mxu0 0
      %3319 = vmatpush2.bf16.msra.mxu0 %v3174
      %3320 = vmatprep.subr.bf16.mxu0 0
      %3321 = vmatpush2.bf16.msra.mxu0 %v3173
      %3322 = vmatprep.subr.bf16.mxu0 0
      %3323 = vmatpush2.bf16.msra.mxu0 %v3172
      %3324 = vmatprep.subr.bf16.mxu0 0
      %3325 = vmatpush2.bf16.msra.mxu0 %v3171
      %3326 = vmatprep.subr.bf16.mxu0 0
      %3327 = vmatpush2.bf16.msra.mxu0 %v3170
      %3328 = vmatprep.subr.bf16.mxu0 0
      %3329 = vmatpush2.bf16.msra.mxu0 %v3169
      %3330 = vmatprep.subr.bf16.mxu0 0
      %3331 = vmatpush2.bf16.msra.mxu0 %v3168
      %3332 = vmatprep.subr.bf16.mxu0 0
      %3333 = vmatpush2.bf16.msra.mxu0 %v3167
      %3334 = vmatprep.mubr.bf16.mxu0 %v2898
      %3335 = vmatmul.mubr.bf16.gmra.mxu0 %v2897
      %v3336 = vpop.f32.mrf.mxu0
      %v3337 = vadd.f32 %v3265, %v3336
      %v3338 = vpop.f32.mrf.mxu0
      %v3339 = vpop.f32.mrf.mxu0
      %v3340 = vadd.f32 %v3268, %v3339
      %v3341 = vpop.f32.mrf.mxu0
      %3342 = vmatprep.mubr.bf16.mxu0 %v2903
      %3343 = vmatmul.mubr.bf16.gmra.mxu0 %v2902
      %v3344 = vpop.f32.mrf.mxu0
      %v3345 = vadd.f32 %v3273, %v3344
      %v3346 = vpop.f32.mrf.mxu0
      %v3347 = vpop.f32.mrf.mxu0
      %v3348 = vadd.f32 %v3276, %v3347
      %v3349 = vpop.f32.mrf.mxu0
      %3350 = vmatprep.mubr.bf16.mxu0 %v2908
      %3351 = vmatmul.mubr.bf16.gmra.mxu0 %v2907
      %v3352 = vpop.f32.mrf.mxu0
      %v3353 = vadd.f32 %v3281, %v3352
      %v3354 = vpop.f32.mrf.mxu0
      %v3355 = vpop.f32.mrf.mxu0
      %v3356 = vadd.f32 %v3284, %v3355
      %v3357 = vpop.f32.mrf.mxu0
      %3358 = vmatprep.mubr.bf16.mxu0 %v2913
      %3359 = vmatmul.mubr.bf16.gmra.mxu0 %v2912
      %v3360 = vpop.f32.mrf.mxu0
      %v3361 = vadd.f32 %v3289, %v3360
      %v3362 = vpop.f32.mrf.mxu0
      %v3363 = vpop.f32.mrf.mxu0
      %v3364 = vadd.f32 %v3292, %v3363
      %v3365 = vpop.f32.mrf.mxu0
      %3366 = vmatprep.mubr.bf16.mxu0 %v2918
      %3367 = vmatmul.mubr.bf16.gmra.mxu0 %v2917
      %v3368 = vpop.f32.mrf.mxu0
      %v3369 = vadd.f32 %v3297, %v3368
      %v3370 = vpop.f32.mrf.mxu0
      %v3371 = vpop.f32.mrf.mxu0
      %v3372 = vpop.f32.mrf.mxu0
      %3373 = vdwg.mxu0
      %3374 = vmatprep.subr.bf16.mxu0 0
      %3375 = vmatpush1.bf16.msra.mxu0 0
      %3376 = vmatprep.subr.bf16.mxu0 0
      %3377 = vmatpush1.bf16.msra.mxu0 0
      %3378 = vmatprep.subr.bf16.mxu0 0
      %3379 = vmatpush1.bf16.msra.mxu0 0
      %3380 = vmatprep.subr.bf16.mxu0 0
      %3381 = vmatpush1.bf16.msra.mxu0 0
      %3382 = vmatprep.subr.bf16.mxu0 0
      %3383 = vmatpush1.bf16.msra.mxu0 %v3178
      %3384 = vmatprep.subr.bf16.mxu0 0
      %3385 = vmatpush1.bf16.msra.mxu0 %v3177
      %3386 = vmatprep.subr.bf16.mxu0 0
      %3387 = vmatpush1.bf16.msra.mxu0 %v3176
      %3388 = vmatprep.subr.bf16.mxu0 0
      %3389 = vmatpush1.bf16.msra.mxu0 %v3175
      %3390 = vmatprep.subr.bf16.mxu0 0
      %3391 = vmatpush2.bf16.msra.mxu0 0
      %3392 = vmatprep.subr.bf16.mxu0 0
      %3393 = vmatpush2.bf16.msra.mxu0 0
      %3394 = vmatprep.subr.bf16.mxu0 0
      %3395 = vmatpush2.bf16.msra.mxu0 0
      %3396 = vmatprep.subr.bf16.mxu0 0
      %3397 = vmatpush2.bf16.msra.mxu0 0
      %3398 = vmatprep.subr.bf16.mxu0 0
      %3399 = vmatpush2.bf16.msra.mxu0 0
      %3400 = vmatprep.subr.bf16.mxu0 0
      %3401 = vmatpush2.bf16.msra.mxu0 0
      %3402 = vmatprep.subr.bf16.mxu0 0
      %3403 = vmatpush2.bf16.msra.mxu0 0
      %3404 = vmatprep.subr.bf16.mxu0 0
      %3405 = vmatpush2.bf16.msra.mxu0 0
      %3406 = vmatprep.mubr.bf16.mxu0 0
      %3407 = vmatmul.mubr.bf16.gmra.mxu0 %v3216
      %v3408 = vpop.f32.mrf.mxu0
      %v3409 = vadd.f32 %v3337, %v3408
      %v3410 = vpop.f32.mrf.mxu0
      %v3411 = vpop.f32.mrf.mxu0
      %v3412 = vadd.f32 %v3340, %v3411
      %v3413 = vpop.f32.mrf.mxu0
      %3414 = vmatprep.mubr.bf16.mxu0 0
      %3415 = vmatmul.mubr.bf16.gmra.mxu0 %v3219
      %v3416 = vpop.f32.mrf.mxu0
      %v3417 = vadd.f32 %v3345, %v3416
      %v3418 = vpop.f32.mrf.mxu0
      %v3419 = vpop.f32.mrf.mxu0
      %v3420 = vadd.f32 %v3348, %v3419
      %v3421 = vpop.f32.mrf.mxu0
      %3422 = vmatprep.mubr.bf16.mxu0 0
      %3423 = vmatmul.mubr.bf16.gmra.mxu0 %v3222
      %v3424 = vpop.f32.mrf.mxu0
      %v3425 = vadd.f32 %v3353, %v3424
      %v3426 = vpop.f32.mrf.mxu0
      %v3427 = vpop.f32.mrf.mxu0
      %v3428 = vadd.f32 %v3356, %v3427
      %v3429 = vpop.f32.mrf.mxu0
      %3430 = vmatprep.mubr.bf16.mxu0 0
      %3431 = vmatmul.mubr.bf16.gmra.mxu0 %v3225
      %v3432 = vpop.f32.mrf.mxu0
      %v3433 = vadd.f32 %v3361, %v3432
      %v3434 = vpop.f32.mrf.mxu0
      %v3435 = vpop.f32.mrf.mxu0
      %v3436 = vadd.f32 %v3364, %v3435
      %v3437 = vpop.f32.mrf.mxu0
      %3438 = vmatprep.mubr.bf16.mxu0 0
      %3439 = vmatmul.mubr.bf16.gmra.mxu0 %v3228
      %v3440 = vpop.f32.mrf.mxu0
      %v3441 = vadd.f32 %v3369, %v3440
      %v3442 = vpop.f32.mrf.mxu0
      %v3443 = vpop.f32.mrf.mxu0
      %v3444 = vpop.f32.mrf.mxu0
      %3445 = vdwg.mxu0
      %v3446 = vmax.f32 %v3409, 0.0
      %v3447 = vmax.f32 %v3412, 0.0
      %v3448 = vmax.f32 %v3417, 0.0
      %v3449 = vmax.f32 %v3420, 0.0
      %v3450 = vmax.f32 %v3425, 0.0
      %v3451 = vmax.f32 %v3428, 0.0
      %v3452 = vmax.f32 %v3433, 0.0
      %v3453 = vmax.f32 %v3436, 0.0
      %v3454 = vmax.f32 %v3441, 0.0
      %v3455 = vpack.c.bf16 %v3446, %v3446
      %vm3456 = vcmask 519168
      %vm3457 = vsmask.f32 3328
      %vm3458 = vmand %vm3456, %vm3457
      %v3459 = vld [vmem:[%s278] sm:$0xf]
      %v3460 = vsel %vm3458, %v3455, %v3459
      %3461 = vst [vmem:[%s278] sm:$0xf] %v3460
      %v3462 = vpack.c.bf16 %v3448, %v3447
      %v3464 = vunpack.c.l.b16 %v3462
      %v3465 = vunpack.c.h.b16 %v3462
      %v3466 = vpack.c.b16 %v3464, %v3464
      %v3467 = vpack.c.b16 %v3465, %v3465
      %vm3468 = vsmask.f32 2304
      %vm3469 = vsmask.f32 6416
      %vm3470 = vmor %vm3468, %vm3469
      %v3472 = vshll.u32 %v3466, 16
      %v3474 = vrot.slane %v3472, 6
      %v3475 = vshrl.u32 %v3466, 16
      %v3477 = vrot.slane %v3475, 5
      %v3478 = vor.u32 %v3477, %v3474
      %v3479 = vrot.slane %v3478, 4
      %v3481 = vshll.u32 %v3467, 16
      %v3483 = vrot.slane %v3481, 6
      %v3484 = vsel %vm3470, %v3479, %v3483
      %vm3487 = vcmask 519171
      %vm3488 = vsmask.f32 7950
      %vm3489 = vmand %vm3487, %vm3488
      %v3490 = vld [vmem:[%s278] sm:$0x8]
      %v3491 = vsel %vm3489, %v3474, %v3490
      %3492 = vst [vmem:[%s278] sm:$0x8] %v3491
      %vm3493 = vcmask 518144
      %3494 = vst.msk [vmem:[%s278 + $0x4] sm:$0x7] %vm3493, %v3484
      %v3495 = vpack.c.bf16 %v3449, %v3448
      %v3497 = vunpack.c.l.b16 %v3495
      %v3498 = vunpack.c.h.b16 %v3495
      %v3499 = vpack.c.b16 %v3497, %v3497
      %v3500 = vpack.c.b16 %v3498, %v3498
      %vm3501 = vcmask 1040384
      %vm3502 = vcmask 1044484
      %vm3503 = vmor %vm3501, %vm3502
      %v3504 = vrot.slane %v3499, 7
      %v3505 = vrot.slane %v3504, 4
      %v3506 = vrot.slane %v3500, 7
      %v3507 = vsel %vm3503, %v3505, %v3506
      %vm3510 = vcmask 519171
      %3511 = vst.msk [vmem:[%s278 + $0x4] sm:$0x8] %vm3510, %v3504
      %vm3512 = vcmask 518144
      %vm3513 = vmand %vm3512, %vm3468
      %v3514 = vld [vmem:[%s278 + $0x8] sm:$0x7]
      %v3515 = vsel %vm3513, %v3507, %v3514
      %3516 = vst [vmem:[%s278 + $0x8] sm:$0x7] %v3515
      %v3517 = vpack.c.bf16 %v3450, %v3449
      %v3519 = vunpack.c.l.b16 %v3517
      %v3520 = vunpack.c.h.b16 %v3517
      %v3521 = vpack.c.b16 %v3519, %v3519
      %v3522 = vpack.c.b16 %v3520, %v3520
      %vm3523 = vsmask.f32 7440
      %vm3524 = vmor %vm3457, %vm3523
      %v3526 = vshrl.u32 %v3521, 16
      %v3528 = vrot.slane %v3526, 4
      %v3529 = vshll.u32 %v3521, 16
      %v3531 = vrot.slane %v3529, 5
      %v3532 = vor.u32 %v3528, %v3531
      %v3533 = vrot.slane %v3532, 4
      %v3535 = vshll.u32 %v3522, 16
      %v3537 = vrot.slane %v3535, 5
      %v3538 = vsel %vm3524, %v3533, %v3537
      %v3539 = vshrl.u32 %v3522, 16
      %v3541 = vrot.slane %v3539, 4
      %v3542 = vor.u32 %v3541, %v3537
      %v3543 = vrot.slane %v3542, 4
      %vm3546 = vcmask 519170
      %vm3547 = vsmask.f32 7946
      %vm3548 = vmand %vm3546, %vm3547
      %v3549 = vld [vmem:[%s278 + $0x8] sm:$0xc]
      %v3550 = vsel %vm3548, %v3538, %v3549
      %3551 = vst [vmem:[%s278 + $0x8] sm:$0xc] %v3550
      %3552 = vst.msk [vmem:[%s278 + $0xc] sm:$0x3] %vm2538, %v3543
      %v3553 = vpack.c.bf16 %v3451, %v3451
      %v3555 = vunpack.c.l.b16 %v3553
      %v3556 = vpack.c.b16 %v3555, %v3555
      %v3557 = vrot.slane %v3556, 6
      %v3558 = vrot.slane %v3557, 4
      %vm3561 = vcmask 519170
      %3562 = vst.msk [vmem:[%s278 + $0xc] sm:$0xc] %vm3561, %v3557
      %vm3563 = vcmask 517120
      %vm3564 = vsmask.f32 1280
      %vm3565 = vmand %vm3563, %vm3564
      %v3566 = vld [vmem:[%s278 + $0x10] sm:$0x3]
      %v3567 = vsel %vm3565, %v3558, %v3566
      %3568 = vst [vmem:[%s278 + $0x10] sm:$0x3] %v3567
      %v3569 = vpack.c.bf16 %v3453, %v3452
      %v3571 = vunpack.c.l.b16 %v3569
      %v3572 = vunpack.c.h.b16 %v3569
      %v3573 = vpack.c.b16 %v3571, %v3571
      %v3574 = vpack.c.b16 %v3572, %v3572
      %vm3575 = vsmask.f32 256
      %vm3576 = vsmask.f32 4368
      %vm3577 = vmor %vm3575, %vm3576
      %v3579 = vshrl.u32 %v3573, 16
      %v3581 = vrot.slane %v3579, 7
      %v3582 = vshll.u32 %v3573, 16
      %v3584 = vor.u32 %v3581, %v3582
      %v3585 = vrot.slane %v3581, 4
      %v3587 = vshll.u32 %v3574, 16
      %v3589 = vsel %vm3577, %v3585, %v3587
      %vm3592 = vcmask 519169
      %vm3593 = vsmask.f32 7942
      %vm3594 = vmand %vm3592, %vm3593
      %v3595 = vld [vmem:[%s278 + $0x10] sm:$0xe]
      %v3596 = vsel %vm3594, %v3584, %v3595
      %3597 = vst [vmem:[%s278 + $0x10] sm:$0xe] %v3596
      %vm3598 = vcmask 516096
      %3599 = vst.msk [vmem:[%s278 + $0x14] sm:$0x1] %vm3598, %v3589
      %v3600 = vpack.c.bf16 %v3454, %v3453
      %v3602 = vunpack.c.l.b16 %v3600
      %v3603 = vunpack.c.h.b16 %v3600
      %v3604 = vpack.c.b16 %v3602, %v3602
      %v3605 = vpack.c.b16 %v3603, %v3603
      %vm3606 = vcmask 1042432
      %vm3607 = vcmask 1046532
      %vm3608 = vmor %vm3606, %vm3607
      %v3609 = vrot.slane %v3604, 5
      %v3610 = vrot.slane %v3609, 4
      %v3611 = vrot.slane %v3605, 5
      %v3612 = vsel %vm3608, %v3610, %v3611
      %v3613 = vrot.slane %v3611, 4
      %vm3616 = vcmask 519169
      %3617 = vst.msk [vmem:[%s278 + $0x14] sm:$0xe] %vm3616, %v3612
      %vm3618 = vcmask 516096
      %vm3619 = vmand %vm3618, %vm3575
      %v3620 = vld [vmem:[%s278 + $0x18] sm:$0x1]
      %v3621 = vsel %vm3619, %v3613, %v3620
      %3622 = vst [vmem:[%s278 + $0x18] sm:$0x1] %v3621
      %p3623 = scmp.lt.s32.totalorder %s18, 1
      %s3624 = scalar_select %p3623, %s18, 1
      %s3625 = smul.addr %s3624, 7
      %s3626 = smul.addr %s3625, 4
      %s3627 = scalar_lea.vmem %s7, %s3626
      // Predicated region
      $region49: #{convnet_forward.2} parent=47 // pred_check
        %p3628 = pneg %p188
      $region50: #{convnet_forward.2} parent=47 // pred_check_branch
        %3630 = sbr.rel (%p3628) target = $region52
      $region51: #{convnet_forward.2} parent=47 // pred_region
        _
      $region52: #{convnet_forward.2} parent=47 // pred_fallthru
        _
    $region48: #{convnet_forward.2} parent=5 // pred_fallthru
      _
    %p3631 = scmp.le.s32.totalorder 2, %s13
    // Predicated region
    $region53: #{convnet_forward.2} parent=5 // pred_check
      %p3632 = pneg %p3631
    $region54: #{convnet_forward.2} parent=5 // pred_check_branch
      %3634 = sbr.rel (%p3632) target = $region56
    $region55: #{convnet_forward.2} parent=5 // pred_region
      %s3635 = ssub.s32 %s13, 2
      // Predicated region
      $region57: #{convnet_forward.2} parent=55 // pred_check
        %p3636 = pneg %p194
      $region58: #{convnet_forward.2} parent=55 // pred_check_branch
        %3638 = sbr.rel (%p3636) target = $region60
      $region59: #{convnet_forward.2} parent=55 // pred_region
        %p3639 = scmp.lt.s32.totalorder %s19, 1
        %s3640 = scalar_select %p3639, %s19, 1
        %s3641 = smul.addr %s3640, 7
        %s3642 = smul.addr %s3641, 4
        %s3643 = scalar_lea.vmem %s7, %s3642
      $region60: #{convnet_forward.2} parent=55 // pred_fallthru
        _
    $region56: #{convnet_forward.2} parent=5 // pred_fallthru
      _
  $region6: #{convnet_forward.2} parent=0 // loop_footer
    %s17 = sadd.s32 1, %s13
  $region7: #{convnet_forward.2} parent=0 // loop_footer_branch
    %12 = sbr.rel target = $region3
  $region8: #{convnet_forward.2} parent=0 // loop_exit
    _

// kernel: convnet_forward.3
$region0: #{convnet_forward.3}
  #allocation0 [shape = 'u32[]', space=smem, size = 0x4, offset = 0x4, fixed_abs, tag = 'smem constant byte address 0x4 - core index']
  #allocation1 [shape = 'u32[144,128]{1,0:T(1,128)}', space=vmem, size = 0x12000, scoped, tag = 'internal scratch']
  %s0 = inlined_call_operand.vmem [shape: bf16[2,3136], index: 0, kind: input, shape index: {}]
  %s1 = inlined_call_operand.vmem [shape: bf16[3136,512], index: 1, kind: input, shape index: {}]
  %s2 = inlined_call_operand.vmem [shape: f32[1,512], index: 2, kind: input, shape index: {}]
  %s3 = inlined_call_operand.vmem [shape: bf16[512,1280], index: 3, kind: input, shape index: {}]
  %s4 = inlined_call_operand.vmem [shape: f32[1,1280], index: 4, kind: input, shape index: {}]
  %s5 = inlined_call_operand.vmem [shape: f32[2,1280], index: 5, kind: output, shape index: {}]
  %s6 = sld [smem:[#allocation0]]
  $region101: #{convnet_forward.3} parent=0
    _
  %s8 = ssub.s32 1, %s6
  %s9 = scalar_select 0, %s8, %s6
  $region1: #{convnet_forward.3} parent=0
    #allocation2 [shape = 'u8[1310720]{0}', space=vmem, size = 0x140000, scoped, tag = 'input window, operand 3']
    #allocation3 [shape = 'u8[81920]{0}', space=vmem, size = 0x14000, scoped, tag = 'output window, operand 0']
    loop: start=0, step=1, limit=4
    $region2: #{convnet_forward.3} parent=1 // loop_pre_header
      _
    $region3: #{convnet_forward.3} parent=1 // loop_header
      %s11 = sphi 0, %s15
      %p12 = scmp.ge.s32.totalorder %s11, 4
      %s18 = sphi 0, %s30
      %s19 = sphi 0, %s26
      %s20 = sphi 0, %s18
      %s21 = sphi 0, %s19
      %s22 = sphi 0, %s20
      %s23 = sphi 0, %s21
      %s33 = sphi 0, %s35
      %s36 = sphi 0, %s33
      %s37 = sphi 0, %s36
      %s53 = sphi 0, %s37
      %s57 = sphi 0, %s57
      %s59 = sphi 0, %s57
      %s60 = sphi 0, %s59
      %s74 = sphi 0, %s60
      %s78 = sphi 0, %s78
      %s80 = sphi 0, %s78
      %s81 = sphi 0, %s80
      %s95 = sphi 0, %s81
      %s101 = sphi 0, %s103
      %s104 = sphi 0, %s101
      %s105 = sphi 0, %s104
      %s121 = sphi 0, %s105
      %s127 = sphi 0, %s129
      %s130 = sphi 0, %s127
      %s131 = sphi 0, %s130
      %s147 = sphi 0, %s131
      %s155 = sphi 0, %s157
      %s158 = sphi 0, %s155
      %s159 = sphi 0, %s158
      %s175 = sphi 0, %s159
    $region4: #{convnet_forward.3} parent=1 // loop_header_branch
      %14 = sbr.rel (%p12) target = $region8
    $region5: #{convnet_forward.3} parent=1 // loop_body
      %s16 = ssub.s32 %s11, 1
      %s17 = ssub.s32 %s11, 2
      %s24 = sadd.s32 1, %s19
      %p25 = scmp.ge.s32.totalorder %s24, 2
      %s26 = scalar_select %p25, 0, %s24
      %s27 = sadd.s32 1, %s18
      %s28 = scalar_select %p25, %s27, %s18
      %p29 = scmp.ge.s32.totalorder %s28, 1
      %s30 = scalar_select %p29, 0, %s28
      %s31 = ssub.s32 %s18, %s30
      %p32 = scmp.eq.s32.totalorder %s31, 0
      %s34 = sadd.s32 %s33, 1
      %s35 = scalar_select %p32, %s33, %s34
      %p38 = pneg %p32
      %p39 = scmp.eq.s32.totalorder %s11, 1
      %p40 = por %p38, %p39
      %p41 = scmp.ne.s32.totalorder %s33, %s36
      %p42 = scmp.eq.s32.totalorder %s11, 0
      %p43 = por %p41, %p42
      %p44 = scmp.ne.s32.totalorder %s33, %s36
      %p45 = scmp.eq.s32.totalorder %s16, 1
      %p46 = por %p44, %p45
      %p47 = scmp.ne.s32.totalorder %s36, %s37
      %p48 = scmp.eq.s32.totalorder %s16, 0
      %p49 = por %p47, %p48
      %p50 = scmp.ne.s32.totalorder %s36, %s37
      %p51 = scmp.eq.s32.totalorder %s17, 1
      %p52 = por %p50, %p51
      %p54 = scmp.ne.s32.totalorder %s37, %s53
      %p55 = scmp.eq.s32.totalorder %s17, 0
      %p56 = por %p54, %p55
      %s58 = sadd.s32 %s57, 1
      %p61 = scmp.eq.s32.totalorder %s11, 1
      %p62 = scmp.ne.s32.totalorder %s57, %s59
      %p63 = scmp.eq.s32.totalorder %s11, 0
      %p64 = por %p62, %p63
      %p65 = scmp.ne.s32.totalorder %s57, %s59
      %p66 = scmp.eq.s32.totalorder %s16, 1
      %p67 = por %p65, %p66
      %p68 = scmp.ne.s32.totalorder %s59, %s60
      %p69 = scmp.eq.s32.totalorder %s16, 0
      %p70 = por %p68, %p69
      %p71 = scmp.ne.s32.totalorder %s59, %s60
      %p72 = scmp.eq.s32.totalorder %s17, 1
      %p73 = por %p71, %p72
      %p75 = scmp.ne.s32.totalorder %s60, %s74
      %p76 = scmp.eq.s32.totalorder %s17, 0
      %p77 = por %p75, %p76
      %s79 = sadd.s32 %s78, 1
      %p82 = scmp.eq.s32.totalorder %s11, 1
      %p83 = scmp.ne.s32.totalorder %s78, %s80
      %p84 = scmp.eq.s32.totalorder %s11, 0
      %p85 = por %p83, %p84
      %p86 = scmp.ne.s32.totalorder %s78, %s80
      %p87 = scmp.eq.s32.totalorder %s16, 1
      %p88 = por %p86, %p87
      %p89 = scmp.ne.s32.totalorder %s80, %s81
      %p90 = scmp.eq.s32.totalorder %s16, 0
      %p91 = por %p89, %p90
      %p92 = scmp.ne.s32.totalorder %s80, %s81
      %p93 = scmp.eq.s32.totalorder %s17, 1
      %p94 = por %p92, %p93
      %p96 = scmp.ne.s32.totalorder %s81, %s95
      %p97 = scmp.eq.s32.totalorder %s17, 0
      %p98 = por %p96, %p97
      %s99 = ssub.s32 %s19, %s26
      %p100 = scmp.eq.s32.totalorder %s99, 0
      %s102 = sadd.s32 %s101, 1
      %s103 = scalar_select %p100, %s101, %s102
      %p106 = pneg %p100
      %p107 = scmp.eq.s32.totalorder %s11, 1
      %p108 = por %p106, %p107
      %p109 = scmp.ne.s32.totalorder %s101, %s104
      %p110 = scmp.eq.s32.totalorder %s11, 0
      %p111 = por %p109, %p110
      %p112 = scmp.ne.s32.totalorder %s101, %s104
      %p113 = scmp.eq.s32.totalorder %s16, 1
      %p114 = por %p112, %p113
      %p115 = scmp.ne.s32.totalorder %s104, %s105
      %p116 = scmp.eq.s32.totalorder %s16, 0
      %p117 = por %p115, %p116
      %p118 = scmp.ne.s32.totalorder %s104, %s105
      %p119 = scmp.eq.s32.totalorder %s17, 1
      %p120 = por %p118, %p119
      %p122 = scmp.ne.s32.totalorder %s105, %s121
      %p123 = scmp.eq.s32.totalorder %s17, 0
      %p124 = por %p122, %p123
      %s125 = ssub.s32 %s19, %s26
      %p126 = scmp.eq.s32.totalorder %s125, 0
      %s128 = sadd.s32 %s127, 1
      %s129 = scalar_select %p126, %s127, %s128
      %p132 = pneg %p126
      %p133 = scmp.eq.s32.totalorder %s11, 1
      %p134 = por %p132, %p133
      %p135 = scmp.ne.s32.totalorder %s127, %s130
      %p136 = scmp.eq.s32.totalorder %s11, 0
      %p137 = por %p135, %p136
      %p138 = scmp.ne.s32.totalorder %s127, %s130
      %p139 = scmp.eq.s32.totalorder %s16, 1
      %p140 = por %p138, %p139
      %p141 = scmp.ne.s32.totalorder %s130, %s131
      %p142 = scmp.eq.s32.totalorder %s16, 0
      %p143 = por %p141, %p142
      %p144 = scmp.ne.s32.totalorder %s130, %s131
      %p145 = scmp.eq.s32.totalorder %s17, 1
      %p146 = por %p144, %p145
      %p148 = scmp.ne.s32.totalorder %s131, %s147
      %p149 = scmp.eq.s32.totalorder %s17, 0
      %p150 = por %p148, %p149
      %s151 = ssub.s32 %s18, %s30
      %s152 = ssub.s32 %s19, %s26
      %s153 = sor.u32 %s151, %s152
      %p154 = scmp.eq.s32.totalorder %s153, 0
      %s156 = sadd.s32 %s155, 1
      %s157 = scalar_select %p154, %s155, %s156
      %p160 = pneg %p154
      %p161 = scmp.eq.s32.totalorder %s11, 1
      %p162 = por %p160, %p161
      %p163 = scmp.ne.s32.totalorder %s155, %s158
      %p164 = scmp.eq.s32.totalorder %s11, 0
      %p165 = por %p163, %p164
      %p166 = scmp.ne.s32.totalorder %s155, %s158
      %p167 = scmp.eq.s32.totalorder %s16, 1
      %p168 = por %p166, %p167
      %p169 = scmp.ne.s32.totalorder %s158, %s159
      %p170 = scmp.eq.s32.totalorder %s16, 0
      %p171 = por %p169, %p170
      %p172 = scmp.ne.s32.totalorder %s158, %s159
      %p173 = scmp.eq.s32.totalorder %s17, 1
      %p174 = por %p172, %p173
      %p176 = scmp.ne.s32.totalorder %s159, %s175
      %p177 = scmp.eq.s32.totalorder %s17, 0
      %p178 = por %p176, %p177
      %p179 = scmp.le.s32.totalorder 1, %s11
      %p180 = scmp.lt.s32.totalorder %s11, 3
      %p181 = pnand %p179, %p180
      %p182 = pneg %p181
      // Predicated region
      $region9: #{convnet_forward.3} parent=5 // pred_check
        _
      $region10: #{convnet_forward.3} parent=5 // pred_check_branch
        %184 = sbr.rel (%p181) target = $region12
      $region11: #{convnet_forward.3} parent=5 // pred_region
        %s185 = ssub.s32 %s11, 1
        // Predicated region
        $region13: #{convnet_forward.3} parent=11 // pred_check
          %p186 = pneg %p49
        $region14: #{convnet_forward.3} parent=11 // pred_check_branch
          %188 = sbr.rel (%p186) target = $region16
        $region15: #{convnet_forward.3} parent=11 // pred_region
          %s189 = smul.u32 8, %s20
          %s190 = ssub.s32 1, %s189
          %s191 = smul.u32 16, %s190
          %s192 = smul.u32 %s191, 25
          %p193 = scmp.lt.s32.totalorder %s189, 0
          %s194 = scalar_select %p193, %s189, 0
          %s195 = smul.addr %s194, 25
          %s196 = scalar_lea.vmem %s0, %s195
          %s197 = smul.u32 8, %s20
          %s198 = ssub.s32 1, %s197
          %s199 = smul.u32 16, %s198
          %s200 = smul.u32 %s199, 25
        $region16: #{convnet_forward.3} parent=11 // pred_fallthru
          _
        // Predicated region
        $region17: #{convnet_forward.3} parent=11 // pred_check
          %p201 = pneg %p70
        $region18: #{convnet_forward.3} parent=11 // pred_check_branch
          %203 = sbr.rel (%p201) target = $region20
        $region19: #{convnet_forward.3} parent=11 // pred_region
          _
        $region20: #{convnet_forward.3} parent=11 // pred_fallthru
          _
        // Predicated region
        $region21: #{convnet_forward.3} parent=11 // pred_check
          %p204 = pneg %p91
        $region22: #{convnet_forward.3} parent=11 // pred_check_branch
          %206 = sbr.rel (%p204) target = $region24
        $region23: #{convnet_forward.3} parent=11 // pred_region
          _
        $region24: #{convnet_forward.3} parent=11 // pred_fallthru
          _
      $region12: #{convnet_forward.3} parent=5 // pred_fallthru
        _
      %p207 = scmp.lt.s32.totalorder %s11, 2
      // Predicated region
      $region25: #{convnet_forward.3} parent=5 // pred_check
        %p208 = pneg %p207
      $region26: #{convnet_forward.3} parent=5 // pred_check_branch
        %210 = sbr.rel (%p208) target = $region28
      $region27: #{convnet_forward.3} parent=5 // pred_region
        // Predicated region
        $region29: #{convnet_forward.3} parent=27 // pred_check
          %p211 = pneg %p111
        $region30: #{convnet_forward.3} parent=27 // pred_check_branch
          %213 = sbr.rel (%p211) target = $region32
        $region31: #{convnet_forward.3} parent=27 // pred_region
          %s214 = sand.u32 %s101, 1
          %s215 = sand.u32 %s101, 1
          %s216 = smul.addr %s215, 1280
          %s217 = scalar_lea.vmem [#allocation2], %s216
          %s218 = smul.u32 5, %s19
          %s219 = smul.addr %s218, 4
          %s220 = scalar_lea.vmem %s3, %s219
          // Predicated region
          $region33: #{convnet_forward.3} parent=31 // pred_check
            _
          $region34: #{convnet_forward.3} parent=31 // pred_check_branch
            %222 = sbr.rel (0) target = $region36
          $region35: #{convnet_forward.3} parent=31 // pred_region
            // Predicated region
            $region37: #{convnet_forward.3} parent=35 // pred_check
              _
            $region38: #{convnet_forward.3} parent=35 // pred_check_branch
              %224 = sbr.rel (0) target = $region40
            $region39: #{convnet_forward.3} parent=35 // pred_region
              %s225 = scalar_lea.vmem %s220, 16
              %s226 = scalar_lea.vmem %s217, 16 [#allocation2]
              loop: start=0, step=1, limit=1
              $region41: #{convnet_forward.3} parent=39 // loop_pre_header
                _
              $region42: #{convnet_forward.3} parent=39 // loop_header
                %s228 = sphi 0, %s232
                %p229 = scmp.ge.s32.totalorder %s228, 1
                %s233 = sphi %s220, %s220
                %s234 = sphi %s217, %s217
              $region43: #{convnet_forward.3} parent=39 // loop_header_branch
                %231 = sbr.rel (%p229) target = $region47
              $region44: #{convnet_forward.3} parent=39 // loop_body
                %v235 = vld [vmem:[%s233] sm:$0xff]
                %236 = vst [vmem:[%s234] sm:$0xff] %v235
                %v237 = vld [vmem:[%s233 + $0x8] sm:$0xff]
                %238 = vst [vmem:[%s234 + $0x8] sm:$0xff] %v237
                %v239 = vld [vmem:[%s233 + $0x28] sm:$0xff]
                %240 = vst [vmem:[%s234 + $0x14] sm:$0xff] %v239
                %v241 = vld [vmem:[%s233 + $0x30] sm:$0xff]
                %242 = vst [vmem:[%s234 + $0x1c] sm:$0xff] %v241
                %v243 = vld [vmem:[%s233 + $0x50] sm:$0xff]
                %244 = vst [vmem:[%s234 + $0x28] sm:$0xff] %v243
                %v245 = vld [vmem:[%s233 + $0x58] sm:$0xff]
                %246 = vst [vmem:[%s234 + $0x30] sm:$0xff] %v245
                %v247 = vld [vmem:[%s233 + $0x78] sm:$0xff]
                %248 = vst [vmem:[%s234 + $0x3c] sm:$0xff] %v247
                %v249 = vld [vmem:[%s233 + $0x80] sm:$0xff]
                %250 = vst [vmem:[%s234 + $0x44] sm:$0xff] %v249
                %v251 = vld [vmem:[%s233 + $0xa0] sm:$0xff]
                %252 = vst [vmem:[%s234 + $0x50] sm:$0xff] %v251
                %v253 = vld [vmem:[%s233 + $0xa8] sm:$0xff]
                %254 = vst [vmem:[%s234 + $0x58] sm:$0xff] %v253
                %v255 = vld [vmem:[%s233 + $0xc8] sm:$0xff]
                %256 = vst [vmem:[%s234 + $0x64] sm:$0xff] %v255
                %v257 = vld [vmem:[%s233 + $0xd0] sm:$0xff]
                %258 = vst [vmem:[%s234 + $0x6c] sm:$0xff] %v257
                %v259 = vld [vmem:[%s233 + $0xf0] sm:$0xff]
                %260 = vst [vmem:[%s234 + $0x78] sm:$0xff] %v259
                %v261 = vld [vmem:[%s233 + $0xf8] sm:$0xff]
                %262 = vst [vmem:[%s234 + $0x80] sm:$0xff] %v261
                %v263 = vld [vmem:[%s233 + $0x118] sm:$0xff]
                %264 = vst [vmem:[%s234 + $0x8c] sm:$0xff] %v263
                %v265 = vld [vmem:[%s233 + $0x120] sm:$0xff]
                %266 = vst [vmem:[%s234 + $0x94] sm:$0xff] %v265
                %v267 = vld [vmem:[%s233 + $0x140] sm:$0xff]
                %268 = vst [vmem:[%s234 + $0xa0] sm:$0xff] %v267
                %v269 = vld [vmem:[%s233 + $0x148] sm:$0xff]
                %270 = vst [vmem:[%s234 + $0xa8] sm:$0xff] %v269
                %v271 = vld [vmem:[%s233 + $0x168] sm:$0xff]
                %272 = vst [vmem:[%s234 + $0xb4] sm:$0xff] %v271
                %v273 = vld [vmem:[%s233 + $0x170] sm:$0xff]
                %274 = vst [vmem:[%s234 + $0xbc] sm:$0xff] %v273
                %v275 = vld [vmem:[%s233 + $0x190] sm:$0xff]
                %276 = vst [vmem:[%s234 + $0xc8] sm:$0xff] %v275
                %v277 = vld [vmem:[%s233 + $0x198] sm:$0xff]
                %278 = vst [vmem:[%s234 + $0xd0] sm:$0xff] %v277
                %v279 = vld [vmem:[%s233 + $0x1b8] sm:$0xff]
                %280 = vst [vmem:[%s234 + $0xdc] sm:$0xff] %v279
                %v281 = vld [vmem:[%s233 + $0x1c0] sm:$0xff]
                %282 = vst [vmem:[%s234 + $0xe4] sm:$0xff] %v281
                %v283 = vld [vmem:[%s233 + $0x1e0] sm:$0xff]
                %284 = vst [vmem:[%s234 + $0xf0] sm:$0xff] %v283
                %v285 = vld [vmem:[%s233 + $0x1e8] sm:$0xff]
                %286 = vst [vmem:[%s234 + $0xf8] sm:$0xff] %v285
                %v287 = vld [vmem:[%s233 + $0x208] sm:$0xff]
                %288 = vst [vmem:[%s234 + $0x104] sm:$0xff] %v287
                %v289 = vld [vmem:[%s233 + $0x210] sm:$0xff]
                %290 = vst [vmem:[%s234 + $0x10c] sm:$0xff] %v289
                %v291 = vld [vmem:[%s233 + $0x230] sm:$0xff]
                %292 = vst [vmem:[%s234 + $0x118] sm:$0xff] %v291
                %v293 = vld [vmem:[%s233 + $0x238] sm:$0xff]
                %294 = vst [vmem:[%s234 + $0x120] sm:$0xff] %v293
                %v295 = vld [vmem:[%s233 + $0x258] sm:$0xff]
                %296 = vst [vmem:[%s234 + $0x12c] sm:$0xff] %v295
                %v297 = vld [vmem:[%s233 + $0x260] sm:$0xff]
                %298 = vst [vmem:[%s234 + $0x134] sm:$0xff] %v297
                %v299 = vld [vmem:[%s233 + $0x280] sm:$0xff]
                %300 = vst [vmem:[%s234 + $0x140] sm:$0xff] %v299
                %v301 = vld [vmem:[%s233 + $0x288] sm:$0xff]
                %302 = vst [vmem:[%s234 + $0x148] sm:$0xff] %v301
                %v303 = vld [vmem:[%s233 + $0x2a8] sm:$0xff]
                %304 = vst [vmem:[%s234 + $0x154] sm:$0xff] %v303
                %v305 = vld [vmem:[%s233 + $0x2b0] sm:$0xff]
                %306 = vst [vmem:[%s234 + $0x15c] sm:$0xff] %v305
                %v307 = vld [vmem:[%s233 + $0x2d0] sm:$0xff]
                %308 = vst [vmem:[%s234 + $0x168] sm:$0xff] %v307
                %v309 = vld [vmem:[%s233 + $0x2d8] sm:$0xff]
                %310 = vst [vmem:[%s234 + $0x170] sm:$0xff] %v309
                %v311 = vld [vmem:[%s233 + $0x2f8] sm:$0xff]
                %312 = vst [vmem:[%s234 + $0x17c] sm:$0xff] %v311
                %v313 = vld [vmem:[%s233 + $0x300] sm:$0xff]
                %314 = vst [vmem:[%s234 + $0x184] sm:$0xff] %v313
                %v315 = vld [vmem:[%s233 + $0x320] sm:$0xff]
                %316 = vst [vmem:[%s234 + $0x190] sm:$0xff] %v315
                %v317 = vld [vmem:[%s233 + $0x328] sm:$0xff]
                %318 = vst [vmem:[%s234 + $0x198] sm:$0xff] %v317
                %v319 = vld [vmem:[%s233 + $0x348] sm:$0xff]
                %320 = vst [vmem:[%s234 + $0x1a4] sm:$0xff] %v319
                %v321 = vld [vmem:[%s233 + $0x350] sm:$0xff]
                %322 = vst [vmem:[%s234 + $0x1ac] sm:$0xff] %v321
                %v323 = vld [vmem:[%s233 + $0x370] sm:$0xff]
                %324 = vst [vmem:[%s234 + $0x1b8] sm:$0xff] %v323
                %v325 = vld [vmem:[%s233 + $0x378] sm:$0xff]
                %326 = vst [vmem:[%s234 + $0x1c0] sm:$0xff] %v325
                %v327 = vld [vmem:[%s233 + $0x398] sm:$0xff]
                %328 = vst [vmem:[%s234 + $0x1cc] sm:$0xff] %v327
                %v329 = vld [vmem:[%s233 + $0x3a0] sm:$0xff]
                %330 = vst [vmem:[%s234 + $0x1d4] sm:$0xff] %v329
                %v331 = vld [vmem:[%s233 + $0x3c0] sm:$0xff]
                %332 = vst [vmem:[%s234 + $0x1e0] sm:$0xff] %v331
                %v333 = vld [vmem:[%s233 + $0x3c8] sm:$0xff]
                %334 = vst [vmem:[%s234 + $0x1e8] sm:$0xff] %v333
                %v335 = vld [vmem:[%s233 + $0x3e8] sm:$0xff]
                %336 = vst [vmem:[%s234 + $0x1f4] sm:$0xff] %v335
                %v337 = vld [vmem:[%s233 + $0x3f0] sm:$0xff]
                %338 = vst [vmem:[%s234 + $0x1fc] sm:$0xff] %v337
                %v339 = vld [vmem:[%s233 + $0x410] sm:$0xff]
                %340 = vst [vmem:[%s234 + $0x208] sm:$0xff] %v339
                %v341 = vld [vmem:[%s233 + $0x418] sm:$0xff]
                %342 = vst [vmem:[%s234 + $0x210] sm:$0xff] %v341
                %v343 = vld [vmem:[%s233 + $0x438] sm:$0xff]
                %344 = vst [vmem:[%s234 + $0x21c] sm:$0xff] %v343
                %v345 = vld [vmem:[%s233 + $0x440] sm:$0xff]
                %346 = vst [vmem:[%s234 + $0x224] sm:$0xff] %v345
                %v347 = vld [vmem:[%s233 + $0x460] sm:$0xff]
                %348 = vst [vmem:[%s234 + $0x230] sm:$0xff] %v347
                %v349 = vld [vmem:[%s233 + $0x468] sm:$0xff]
                %350 = vst [vmem:[%s234 + $0x238] sm:$0xff] %v349
                %v351 = vld [vmem:[%s233 + $0x488] sm:$0xff]
                %352 = vst [vmem:[%s234 + $0x244] sm:$0xff] %v351
                %v353 = vld [vmem:[%s233 + $0x490] sm:$0xff]
                %354 = vst [vmem:[%s234 + $0x24c] sm:$0xff] %v353
                %v355 = vld [vmem:[%s233 + $0x4b0] sm:$0xff]
                %356 = vst [vmem:[%s234 + $0x258] sm:$0xff] %v355
                %v357 = vld [vmem:[%s233 + $0x4b8] sm:$0xff]
                %358 = vst [vmem:[%s234 + $0x260] sm:$0xff] %v357
                %v359 = vld [vmem:[%s233 + $0x4d8] sm:$0xff]
                %360 = vst [vmem:[%s234 + $0x26c] sm:$0xff] %v359
                %v361 = vld [vmem:[%s233 + $0x4e0] sm:$0xff]
                %362 = vst [vmem:[%s234 + $0x274] sm:$0xff] %v361
                %v363 = vld [vmem:[%s233 + $0x500] sm:$0xff]
                %364 = vst [vmem:[%s234 + $0x280] sm:$0xff] %v363
                %v365 = vld [vmem:[%s233 + $0x508] sm:$0xff]
                %366 = vst [vmem:[%s234 + $0x288] sm:$0xff] %v365
                %v367 = vld [vmem:[%s233 + $0x528] sm:$0xff]
                %368 = vst [vmem:[%s234 + $0x294] sm:$0xff] %v367
                %v369 = vld [vmem:[%s233 + $0x530] sm:$0xff]
                %370 = vst [vmem:[%s234 + $0x29c] sm:$0xff] %v369
                %v371 = vld [vmem:[%s233 + $0x550] sm:$0xff]
                %372 = vst [vmem:[%s234 + $0x2a8] sm:$0xff] %v371
                %v373 = vld [vmem:[%s233 + $0x558] sm:$0xff]
                %374 = vst [vmem:[%s234 + $0x2b0] sm:$0xff] %v373
                %v375 = vld [vmem:[%s233 + $0x578] sm:$0xff]
                %376 = vst [vmem:[%s234 + $0x2bc] sm:$0xff] %v375
                %v377 = vld [vmem:[%s233 + $0x580] sm:$0xff]
                %378 = vst [vmem:[%s234 + $0x2c4] sm:$0xff] %v377
                %v379 = vld [vmem:[%s233 + $0x5a0] sm:$0xff]
                %380 = vst [vmem:[%s234 + $0x2d0] sm:$0xff] %v379
                %v381 = vld [vmem:[%s233 + $0x5a8] sm:$0xff]
                %382 = vst [vmem:[%s234 + $0x2d8] sm:$0xff] %v381
                %v383 = vld [vmem:[%s233 + $0x5c8] sm:$0xff]
                %384 = vst [vmem:[%s234 + $0x2e4] sm:$0xff] %v383
                %v385 = vld [vmem:[%s233 + $0x5d0] sm:$0xff]
                %386 = vst [vmem:[%s234 + $0x2ec] sm:$0xff] %v385
                %v387 = vld [vmem:[%s233 + $0x5f0] sm:$0xff]
                %388 = vst [vmem:[%s234 + $0x2f8] sm:$0xff] %v387
                %v389 = vld [vmem:[%s233 + $0x5f8] sm:$0xff]
                %390 = vst [vmem:[%s234 + $0x300] sm:$0xff] %v389
                %v391 = vld [vmem:[%s233 + $0x618] sm:$0xff]
                %392 = vst [vmem:[%s234 + $0x30c] sm:$0xff] %v391
                %v393 = vld [vmem:[%s233 + $0x620] sm:$0xff]
                %394 = vst [vmem:[%s234 + $0x314] sm:$0xff] %v393
                %v395 = vld [vmem:[%s233 + $0x640] sm:$0xff]
                %396 = vst [vmem:[%s234 + $0x320] sm:$0xff] %v395
                %v397 = vld [vmem:[%s233 + $0x648] sm:$0xff]
                %398 = vst [vmem:[%s234 + $0x328] sm:$0xff] %v397
                %v399 = vld [vmem:[%s233 + $0x668] sm:$0xff]
                %400 = vst [vmem:[%s234 + $0x334] sm:$0xff] %v399
                %v401 = vld [vmem:[%s233 + $0x670] sm:$0xff]
                %402 = vst [vmem:[%s234 + $0x33c] sm:$0xff] %v401
                %v403 = vld [vmem:[%s233 + $0x690] sm:$0xff]
                %404 = vst [vmem:[%s234 + $0x348] sm:$0xff] %v403
                %v405 = vld [vmem:[%s233 + $0x698] sm:$0xff]
                %406 = vst [vmem:[%s234 + $0x350] sm:$0xff] %v405
                %v407 = vld [vmem:[%s233 + $0x6b8] sm:$0xff]
                %408 = vst [vmem:[%s234 + $0x35c] sm:$0xff] %v407
                %v409 = vld [vmem:[%s233 + $0x6c0] sm:$0xff]
                %410 = vst [vmem:[%s234 + $0x364] sm:$0xff] %v409
                %v411 = vld [vmem:[%s233 + $0x6e0] sm:$0xff]
                %412 = vst [vmem:[%s234 + $0x370] sm:$0xff] %v411
                %v413 = vld [vmem:[%s233 + $0x6e8] sm:$0xff]
                %414 = vst [vmem:[%s234 + $0x378] sm:$0xff] %v413
                %v415 = vld [vmem:[%s233 + $0x708] sm:$0xff]
                %416 = vst [vmem:[%s234 + $0x384] sm:$0xff] %v415
                %v417 = vld [vmem:[%s233 + $0x710] sm:$0xff]
                %418 = vst [vmem:[%s234 + $0x38c] sm:$0xff] %v417
                %v419 = vld [vmem:[%s233 + $0x730] sm:$0xff]
                %420 = vst [vmem:[%s234 + $0x398] sm:$0xff] %v419
                %v421 = vld [vmem:[%s233 + $0x738] sm:$0xff]
                %422 = vst [vmem:[%s234 + $0x3a0] sm:$0xff] %v421
                %v423 = vld [vmem:[%s233 + $0x758] sm:$0xff]
                %424 = vst [vmem:[%s234 + $0x3ac] sm:$0xff] %v423
                %v425 = vld [vmem:[%s233 + $0x760] sm:$0xff]
                %426 = vst [vmem:[%s234 + $0x3b4] sm:$0xff] %v425
                %v427 = vld [vmem:[%s233 + $0x780] sm:$0xff]
                %428 = vst [vmem:[%s234 + $0x3c0] sm:$0xff] %v427
                %v429 = vld [vmem:[%s233 + $0x788] sm:$0xff]
                %430 = vst [vmem:[%s234 + $0x3c8] sm:$0xff] %v429
                %v431 = vld [vmem:[%s233 + $0x7a8] sm:$0xff]
                %432 = vst [vmem:[%s234 + $0x3d4] sm:$0xff] %v431
                %v433 = vld [vmem:[%s233 + $0x7b0] sm:$0xff]
                %434 = vst [vmem:[%s234 + $0x3dc] sm:$0xff] %v433
                %v435 = vld [vmem:[%s233 + $0x7d0] sm:$0xff]
                %436 = vst [vmem:[%s234 + $0x3e8] sm:$0xff] %v435
                %v437 = vld [vmem:[%s233 + $0x7d8] sm:$0xff]
                %438 = vst [vmem:[%s234 + $0x3f0] sm:$0xff] %v437
                %v439 = vld [vmem:[%s233 + $0x7f8] sm:$0xff]
                %440 = vst [vmem:[%s234 + $0x3fc] sm:$0xff] %v439
                %v441 = vld [vmem:[%s233 + $0x800] sm:$0xff]
                %442 = vst [vmem:[%s234 + $0x404] sm:$0xff] %v441
                %v443 = vld [vmem:[%s233 + $0x820] sm:$0xff]
                %444 = vst [vmem:[%s234 + $0x410] sm:$0xff] %v443
                %v445 = vld [vmem:[%s233 + $0x828] sm:$0xff]
                %446 = vst [vmem:[%s234 + $0x418] sm:$0xff] %v445
                %v447 = vld [vmem:[%s233 + $0x848] sm:$0xff]
                %448 = vst [vmem:[%s234 + $0x424] sm:$0xff] %v447
                %v449 = vld [vmem:[%s233 + $0x850] sm:$0xff]
                %450 = vst [vmem:[%s234 + $0x42c] sm:$0xff] %v449
                %v451 = vld [vmem:[%s233 + $0x870] sm:$0xff]
                %452 = vst [vmem:[%s234 + $0x438] sm:$0xff] %v451
                %v453 = vld [vmem:[%s233 + $0x878] sm:$0xff]
                %454 = vst [vmem:[%s234 + $0x440] sm:$0xff] %v453
                %v455 = vld [vmem:[%s233 + $0x898] sm:$0xff]
                %456 = vst [vmem:[%s234 + $0x44c] sm:$0xff] %v455
                %v457 = vld [vmem:[%s233 + $0x8a0] sm:$0xff]
                %458 = vst [vmem:[%s234 + $0x454] sm:$0xff] %v457
                %v459 = vld [vmem:[%s233 + $0x8c0] sm:$0xff]
                %460 = vst [vmem:[%s234 + $0x460] sm:$0xff] %v459
                %v461 = vld [vmem:[%s233 + $0x8c8] sm:$0xff]
                %462 = vst [vmem:[%s234 + $0x468] sm:$0xff] %v461
                %v463 = vld [vmem:[%s233 + $0x8e8] sm:$0xff]
                %464 = vst [vmem:[%s234 + $0x474] sm:$0xff] %v463
                %v465 = vld [vmem:[%s233 + $0x8f0] sm:$0xff]
                %466 = vst [vmem:[%s234 + $0x47c] sm:$0xff] %v465
                %v467 = vld [vmem:[%s233 + $0x910] sm:$0xff]
                %468 = vst [vmem:[%s234 + $0x488] sm:$0xff] %v467
                %v469 = vld [vmem:[%s233 + $0x918] sm:$0xff]
                %470 = vst [vmem:[%s234 + $0x490] sm:$0xff] %v469
                %v471 = vld [vmem:[%s233 + $0x938] sm:$0xff]
                %472 = vst [vmem:[%s234 + $0x49c] sm:$0xff] %v471
                %v473 = vld [vmem:[%s233 + $0x940] sm:$0xff]
                %474 = vst [vmem:[%s234 + $0x4a4] sm:$0xff] %v473
                %v475 = vld [vmem:[%s233 + $0x960] sm:$0xff]
                %476 = vst [vmem:[%s234 + $0x4b0] sm:$0xff] %v475
                %v477 = vld [vmem:[%s233 + $0x968] sm:$0xff]
                %478 = vst [vmem:[%s234 + $0x4b8] sm:$0xff] %v477
                %v479 = vld [vmem:[%s233 + $0x988] sm:$0xff]
                %480 = vst [vmem:[%s234 + $0x4c4] sm:$0xff] %v479
                %v481 = vld [vmem:[%s233 + $0x990] sm:$0xff]
                %482 = vst [vmem:[%s234 + $0x4cc] sm:$0xff] %v481
                %v483 = vld [vmem:[%s233 + $0x9b0] sm:$0xff]
                %484 = vst [vmem:[%s234 + $0x4d8] sm:$0xff] %v483
                %v485 = vld [vmem:[%s233 + $0x9b8] sm:$0xff]
                %486 = vst [vmem:[%s234 + $0x4e0] sm:$0xff] %v485
                %v487 = vld [vmem:[%s233 + $0x9d8] sm:$0xff]
                %488 = vst [vmem:[%s234 + $0x4ec] sm:$0xff] %v487
                %v489 = vld [vmem:[%s233 + $0x9e0] sm:$0xff]
                %490 = vst [vmem:[%s234 + $0x4f4] sm:$0xff] %v489
              $region45: #{convnet_forward.3} parent=39 // loop_footer
                %s232 = sadd.s32 1, %s228
              $region46: #{convnet_forward.3} parent=39 // loop_footer_branch
                %227 = sbr.rel target = $region42
              $region47: #{convnet_forward.3} parent=39 // loop_exit
                _
              %s492 = ssub.s32 16, 1
              loop: start=0, step=1, limit=1
              $region48: #{convnet_forward.3} parent=39 // loop_pre_header
                _
              $region49: #{convnet_forward.3} parent=39 // loop_header
                %s494 = sphi 0, %s498
                %p495 = scmp.ge.s32.totalorder %s494, 1
                %s499 = sphi %s225, %s225
                %s500 = sphi %s226, %s226
              $region50: #{convnet_forward.3} parent=39 // loop_header_branch
                %497 = sbr.rel (%p495) target = $region54
              $region51: #{convnet_forward.3} parent=39 // loop_body
                %v501 = vld [vmem:[%s499] sm:%s492]
                %502 = vst [vmem:[%s500] sm:%s492] %v501
                %v503 = vld [vmem:[%s499 + $0x28] sm:%s492]
                %504 = vst [vmem:[%s500 + $0x14] sm:%s492] %v503
                %v505 = vld [vmem:[%s499 + $0x50] sm:%s492]
                %506 = vst [vmem:[%s500 + $0x28] sm:%s492] %v505
                %v507 = vld [vmem:[%s499 + $0x78] sm:%s492]
                %508 = vst [vmem:[%s500 + $0x3c] sm:%s492] %v507
                %v509 = vld [vmem:[%s499 + $0xa0] sm:%s492]
                %510 = vst [vmem:[%s500 + $0x50] sm:%s492] %v509
                %v511 = vld [vmem:[%s499 + $0xc8] sm:%s492]
                %512 = vst [vmem:[%s500 + $0x64] sm:%s492] %v511
                %v513 = vld [vmem:[%s499 + $0xf0] sm:%s492]
                %514 = vst [vmem:[%s500 + $0x78] sm:%s492] %v513
                %v515 = vld [vmem:[%s499 + $0x118] sm:%s492]
                %516 = vst [vmem:[%s500 + $0x8c] sm:%s492] %v515
                %v517 = vld [vmem:[%s499 + $0x140] sm:%s492]
                %518 = vst [vmem:[%s500 + $0xa0] sm:%s492] %v517
                %v519 = vld [vmem:[%s499 + $0x168] sm:%s492]
                %520 = vst [vmem:[%s500 + $0xb4] sm:%s492] %v519
                %v521 = vld [vmem:[%s499 + $0x190] sm:%s492]
                %522 = vst [vmem:[%s500 + $0xc8] sm:%s492] %v521
                %v523 = vld [vmem:[%s499 + $0x1b8] sm:%s492]
                %524 = vst [vmem:[%s500 + $0xdc] sm:%s492] %v523
                %v525 = vld [vmem:[%s499 + $0x1e0] sm:%s492]
                %526 = vst [vmem:[%s500 + $0xf0] sm:%s492] %v525
                %v527 = vld [vmem:[%s499 + $0x208] sm:%s492]
                %528 = vst [vmem:[%s500 + $0x104] sm:%s492] %v527
                %v529 = vld [vmem:[%s499 + $0x230] sm:%s492]
                %530 = vst [vmem:[%s500 + $0x118] sm:%s492] %v529
                %v531 = vld [vmem:[%s499 + $0x258] sm:%s492]
                %532 = vst [vmem:[%s500 + $0x12c] sm:%s492] %v531
                %v533 = vld [vmem:[%s499 + $0x280] sm:%s492]
                %534 = vst [vmem:[%s500 + $0x140] sm:%s492] %v533
                %v535 = vld [vmem:[%s499 + $0x2a8] sm:%s492]
                %536 = vst [vmem:[%s500 + $0x154] sm:%s492] %v535
                %v537 = vld [vmem:[%s499 + $0x2d0] sm:%s492]
                %538 = vst [vmem:[%s500 + $0x168] sm:%s492] %v537
                %v539 = vld [vmem:[%s499 + $0x2f8] sm:%s492]
                %540 = vst [vmem:[%s500 + $0x17c] sm:%s492] %v539
                %v541 = vld [vmem:[%s499 + $0x320] sm:%s492]
                %542 = vst [vmem:[%s500 + $0x190] sm:%s492] %v541
                %v543 = vld [vmem:[%s499 + $0x348] sm:%s492]
                %544 = vst [vmem:[%s500 + $0x1a4] sm:%s492] %v543
                %v545 = vld [vmem:[%s499 + $0x370] sm:%s492]
                %546 = vst [vmem:[%s500 + $0x1b8] sm:%s492] %v545
                %v547 = vld [vmem:[%s499 + $0x398] sm:%s492]
                %548 = vst [vmem:[%s500 + $0x1cc] sm:%s492] %v547
                %v549 = vld [vmem:[%s499 + $0x3c0] sm:%s492]
                %550 = vst [vmem:[%s500 + $0x1e0] sm:%s492] %v549
                %v551 = vld [vmem:[%s499 + $0x3e8] sm:%s492]
                %552 = vst [vmem:[%s500 + $0x1f4] sm:%s492] %v551
                %v553 = vld [vmem:[%s499 + $0x410] sm:%s492]
                %554 = vst [vmem:[%s500 + $0x208] sm:%s492] %v553
                %v555 = vld [vmem:[%s499 + $0x438] sm:%s492]
                %556 = vst [vmem:[%s500 + $0x21c] sm:%s492] %v555
                %v557 = vld [vmem:[%s499 + $0x460] sm:%s492]
                %558 = vst [vmem:[%s500 + $0x230] sm:%s492] %v557
                %v559 = vld [vmem:[%s499 + $0x488] sm:%s492]
                %560 = vst [vmem:[%s500 + $0x244] sm:%s492] %v559
                %v561 = vld [vmem:[%s499 + $0x4b0] sm:%s492]
                %562 = vst [vmem:[%s500 + $0x258] sm:%s492] %v561
                %v563 = vld [vmem:[%s499 + $0x4d8] sm:%s492]
                %564 = vst [vmem:[%s500 + $0x26c] sm:%s492] %v563
                %v565 = vld [vmem:[%s499 + $0x500] sm:%s492]
                %566 = vst [vmem:[%s500 + $0x280] sm:%s492] %v565
                %v567 = vld [vmem:[%s499 + $0x528] sm:%s492]
                %568 = vst [vmem:[%s500 + $0x294] sm:%s492] %v567
                %v569 = vld [vmem:[%s499 + $0x550] sm:%s492]
                %570 = vst [vmem:[%s500 + $0x2a8] sm:%s492] %v569
                %v571 = vld [vmem:[%s499 + $0x578] sm:%s492]
                %572 = vst [vmem:[%s500 + $0x2bc] sm:%s492] %v571
                %v573 = vld [vmem:[%s499 + $0x5a0] sm:%s492]
                %574 = vst [vmem:[%s500 + $0x2d0] sm:%s492] %v573
                %v575 = vld [vmem:[%s499 + $0x5c8] sm:%s492]
                %576 = vst [vmem:[%s500 + $0x2e4] sm:%s492] %v575
                %v577 = vld [vmem:[%s499 + $0x5f0] sm:%s492]
                %578 = vst [vmem:[%s500 + $0x2f8] sm:%s492] %v577
                %v579 = vld [vmem:[%s499 + $0x618] sm:%s492]
                %580 = vst [vmem:[%s500 + $0x30c] sm:%s492] %v579
                %v581 = vld [vmem:[%s499 + $0x640] sm:%s492]
                %582 = vst [vmem:[%s500 + $0x320] sm:%s492] %v581
                %v583 = vld [vmem:[%s499 + $0x668] sm:%s492]
                %584 = vst [vmem:[%s500 + $0x334] sm:%s492] %v583
                %v585 = vld [vmem:[%s499 + $0x690] sm:%s492]
                %586 = vst [vmem:[%s500 + $0x348] sm:%s492] %v585
                %v587 = vld [vmem:[%s499 + $0x6b8] sm:%s492]
                %588 = vst [vmem:[%s500 + $0x35c] sm:%s492] %v587
                %v589 = vld [vmem:[%s499 + $0x6e0] sm:%s492]
                %590 = vst [vmem:[%s500 + $0x370] sm:%s492] %v589
                %v591 = vld [vmem:[%s499 + $0x708] sm:%s492]
                %592 = vst [vmem:[%s500 + $0x384] sm:%s492] %v591
                %v593 = vld [vmem:[%s499 + $0x730] sm:%s492]
                %594 = vst [vmem:[%s500 + $0x398] sm:%s492] %v593
                %v595 = vld [vmem:[%s499 + $0x758] sm:%s492]
                %596 = vst [vmem:[%s500 + $0x3ac] sm:%s492] %v595
                %v597 = vld [vmem:[%s499 + $0x780] sm:%s492]
                %598 = vst [vmem:[%s500 + $0x3c0] sm:%s492] %v597
                %v599 = vld [vmem:[%s499 + $0x7a8] sm:%s492]
                %600 = vst [vmem:[%s500 + $0x3d4] sm:%s492] %v599
                %v601 = vld [vmem:[%s499 + $0x7d0] sm:%s492]
                %602 = vst [vmem:[%s500 + $0x3e8] sm:%s492] %v601
                %v603 = vld [vmem:[%s499 + $0x7f8] sm:%s492]
                %604 = vst [vmem:[%s500 + $0x3fc] sm:%s492] %v603
                %v605 = vld [vmem:[%s499 + $0x820] sm:%s492]
                %606 = vst [vmem:[%s500 + $0x410] sm:%s492] %v605
                %v607 = vld [vmem:[%s499 + $0x848] sm:%s492]
                %608 = vst [vmem:[%s500 + $0x424] sm:%s492] %v607
                %v609 = vld [vmem:[%s499 + $0x870] sm:%s492]
                %610 = vst [vmem:[%s500 + $0x438] sm:%s492] %v609
                %v611 = vld [vmem:[%s499 + $0x898] sm:%s492]
                %612 = vst [vmem:[%s500 + $0x44c] sm:%s492] %v611
                %v613 = vld [vmem:[%s499 + $0x8c0] sm:%s492]
                %614 = vst [vmem:[%s500 + $0x460] sm:%s492] %v613
                %v615 = vld [vmem:[%s499 + $0x8e8] sm:%s492]
                %616 = vst [vmem:[%s500 + $0x474] sm:%s492] %v615
                %v617 = vld [vmem:[%s499 + $0x910] sm:%s492]
                %618 = vst [vmem:[%s500 + $0x488] sm:%s492] %v617
                %v619 = vld [vmem:[%s499 + $0x938] sm:%s492]
                %620 = vst [vmem:[%s500 + $0x49c] sm:%s492] %v619
                %v621 = vld [vmem:[%s499 + $0x960] sm:%s492]
                %622 = vst [vmem:[%s500 + $0x4b0] sm:%s492] %v621
                %v623 = vld [vmem:[%s499 + $0x988] sm:%s492]
                %624 = vst [vmem:[%s500 + $0x4c4] sm:%s492] %v623
                %v625 = vld [vmem:[%s499 + $0x9b0] sm:%s492]
                %626 = vst [vmem:[%s500 + $0x4d8] sm:%s492] %v625
                %v627 = vld [vmem:[%s499 + $0x9d8] sm:%s492]
                %628 = vst [vmem:[%s500 + $0x4ec] sm:%s492] %v627
              $region52: #{convnet_forward.3} parent=39 // loop_footer
                %s498 = sadd.s32 1, %s494
              $region53: #{convnet_forward.3} parent=39 // loop_footer_branch
                %493 = sbr.rel target = $region49
              $region54: #{convnet_forward.3} parent=39 // loop_exit
                _
            $region40: #{convnet_forward.3} parent=35 // pred_fallthru
              _
          $region36: #{convnet_forward.3} parent=31 // pred_fallthru
            _
          %629 = vnop
        $region32: #{convnet_forward.3} parent=27 // pred_fallthru
          _
        // Predicated region
        $region55: #{convnet_forward.3} parent=27 // pred_check
          %p630 = pneg %p137
        $region56: #{convnet_forward.3} parent=27 // pred_check_branch
          %632 = sbr.rel (%p630) target = $region58
        $region57: #{convnet_forward.3} parent=27 // pred_region
          %s633 = smul.u32 5, %s19
          %p634 = scmp.lt.s32.totalorder %s633, 9
          %s635 = scalar_select %p634, %s633, 9
          %s636 = scalar_lea.vmem %s4, %s635
          %s637 = smul.u32 5, %s19
        $region58: #{convnet_forward.3} parent=27 // pred_fallthru
          _
      $region28: #{convnet_forward.3} parent=5 // pred_fallthru
        _
      %p638 = scmp.le.s32.totalorder 1, %s11
      %p639 = scmp.lt.s32.totalorder %s11, 3
      %p640 = pnand %p638, %p639
      %p641 = pneg %p640
      // Predicated region
      $region59: #{convnet_forward.3} parent=5 // pred_check
        _
      $region60: #{convnet_forward.3} parent=5 // pred_check_branch
        %643 = sbr.rel (%p640) target = $region62
      $region61: #{convnet_forward.3} parent=5 // pred_region
        %s644 = ssub.s32 %s11, 1
        %s645 = sand.u32 %s104, 1
        %s646 = sand.u32 %s104, 1
        %s647 = smul.addr %s646, 1280
        %s648 = scalar_lea.vmem [#allocation2], %s647
        // Predicated region
        $region63: #{convnet_forward.3} parent=61 // pred_check
          %p649 = pneg %p117
        $region64: #{convnet_forward.3} parent=61 // pred_check_branch
          %651 = sbr.rel (%p649) target = $region66
        $region65: #{convnet_forward.3} parent=61 // pred_region
          _
        $region66: #{convnet_forward.3} parent=61 // pred_fallthru
          _
        %s652 = smul.u32 8, %s20
        %s653 = ssub.s32 1, %s652
        %s654 = smul.u32 16, %s653
        %s655 = smul.u32 %s654, 25
        %p656 = scmp.lt.s32.totalorder %s652, 0
        %s657 = scalar_select %p656, %s652, 0
        %s658 = smul.addr %s657, 25
        %s659 = scalar_lea.vmem %s0, %s658
        %p660 = pneg %p49
        %p661 = pneg %p46
        %p662 = pneg %p70
        %p663 = pneg %p67
        %p664 = pneg %p91
        %p665 = pneg %p88
        %s666 = sand.u32 %s104, 1
        %s667 = sand.u32 %s104, 1
        %s668 = smul.addr %s667, 1280
        %s669 = scalar_lea.vmem [#allocation2], %s668
        %p670 = pneg %p117
        %p671 = pneg %p114
        %s672 = smul.u32 5, %s21
        %p673 = scmp.lt.s32.totalorder %s672, 9
        %s674 = scalar_select %p673, %s672, 9
        %s675 = scalar_lea.vmem %s4, %s674
        %p676 = pneg %p143
        %p677 = pneg %p140
        %p678 = pneg %p171
        %p679 = pneg %p168
        %s680 = sand.u32 %s158, 1
        %s681 = sand.u32 %s158, 1
        %s682 = smul.addr %s681, 80
        %s683 = scalar_lea.vmem [#allocation3], %s682
        %s684 = smul.u32 8, %s20
        %s685 = ssub.s32 1, %s684
        %s686 = smul.u32 16, %s685
        %s687 = smul.u32 %s686, 25
        %p688 = scmp.lt.s32.totalorder %s684, 0
        %s689 = scalar_select %p688, %s684, 0
        %s690 = smul.addr %s689, 25
        %s691 = scalar_lea.vmem %s0, %s690
        %s692 = smul.u32 8, %s20
        %s693 = ssub.s32 1, %s692
        %s694 = smul.u32 16, %s693
        %s695 = smul.u32 %s694, 25
        %s696 = smul.u32 5, %s21
        %s697 = smul.u32 5, %s21
        %p698 = scmp.lt.s32.totalorder %s697, 9
        %s699 = scalar_select %p698, %s697, 9
        %s700 = scalar_lea.vmem %s4, %s699
        %s701 = smul.u32 5, %s21
        %s702 = smul.u32 8, %s20
        %s703 = smul.u32 5, %s21
        %s704 = ssub.s32 1, %s702
        %s705 = smul.u32 32, %s704
        %s706 = smul.u32 %s705, 5
        %v708 = vld [vmem:[%s691] sm:$0xff]
        %v709 = vld [vmem:[%s691 + $0x8] sm:$0xff]
        %v710 = vld [vmem:[%s691 + $0x10] sm:$0xff]
        %v711 = vld [vmem:[%s691 + $0x18] sm:$0x1]
        %v712 = vld [vmem:[%s691 + $0x19] sm:$0xff]
        %v713 = vld [vmem:[%s691 + $0x21] sm:$0xff]
        %v714 = vld [vmem:[%s691 + $0x29] sm:$0xff]
        %v715 = vld [vmem:[%s691 + $0x31] sm:$0x1]
        %v716 = vld [vmem:[%s691 + $0x32] sm:$0xff]
        %v717 = vld [vmem:[%s691 + $0x3a] sm:$0xff]
        %v718 = vld [vmem:[%s691 + $0x42] sm:$0xff]
        %v719 = vld [vmem:[%s691 + $0x4a] sm:$0x1]
        %v720 = vld [vmem:[%s691 + $0x4b] sm:$0xff]
        %v721 = vld [vmem:[%s691 + $0x53] sm:$0xff]
        %v722 = vld [vmem:[%s691 + $0x5b] sm:$0xff]
        %v723 = vld [vmem:[%s691 + $0x63] sm:$0x1]
        %v724 = vld [vmem:[%s691 + $0x64] sm:$0xff]
        %v725 = vld [vmem:[%s691 + $0x6c] sm:$0xff]
        %v726 = vld [vmem:[%s691 + $0x74] sm:$0xff]
        %v727 = vld [vmem:[%s691 + $0x7c] sm:$0x1]
        %v728 = vld [vmem:[%s691 + $0x7d] sm:$0xff]
        %v729 = vld [vmem:[%s691 + $0x85] sm:$0xff]
        %v730 = vld [vmem:[%s691 + $0x8d] sm:$0xff]
        %v731 = vld [vmem:[%s691 + $0x95] sm:$0x1]
        %v732 = vld [vmem:[%s691 + $0x96] sm:$0xff]
        %v733 = vld [vmem:[%s691 + $0x9e] sm:$0xff]
        %v734 = vld [vmem:[%s691 + $0xa6] sm:$0xff]
        %v735 = vld [vmem:[%s691 + $0xae] sm:$0x1]
        %v736 = vld [vmem:[%s691 + $0xaf] sm:$0xff]
        %v737 = vld [vmem:[%s691 + $0xb7] sm:$0xff]
        %v738 = vld [vmem:[%s691 + $0xbf] sm:$0xff]
        %v739 = vld [vmem:[%s691 + $0xc7] sm:$0x1]
        %v740 = vld [vmem:[%s1] sm:$0xff]
        %v741 = vld [vmem:[%s1 + $0x8] sm:$0xff]
        %v742 = vld [vmem:[%s1 + $0x10] sm:$0xff]
        %v743 = vld [vmem:[%s1 + $0x18] sm:$0xff]
        %v744 = vld [vmem:[%s1 + $0x20] sm:$0xff]
        %v745 = vld [vmem:[%s1 + $0x28] sm:$0xff]
        %v746 = vld [vmem:[%s1 + $0x30] sm:$0xff]
        %v747 = vld [vmem:[%s1 + $0x38] sm:$0xff]
        %v748 = vld [vmem:[%s1 + $0x40] sm:$0xff]
        %v749 = vld [vmem:[%s1 + $0x48] sm:$0xff]
        %v750 = vld [vmem:[%s1 + $0x50] sm:$0xff]
        %v751 = vld [vmem:[%s1 + $0x58] sm:$0xff]
        %v752 = vld [vmem:[%s1 + $0x60] sm:$0xff]
        %v753 = vld [vmem:[%s1 + $0x68] sm:$0xff]
        %v754 = vld [vmem:[%s1 + $0x70] sm:$0xff]
        %v755 = vld [vmem:[%s1 + $0x78] sm:$0xff]
        %v756 = vld [vmem:[%s1 + $0x80] sm:$0xff]
        %v757 = vld [vmem:[%s1 + $0x88] sm:$0xff]
        %v758 = vld [vmem:[%s1 + $0x90] sm:$0xff]
        %v759 = vld [vmem:[%s1 + $0x98] sm:$0xff]
        %v760 = vld [vmem:[%s1 + $0xa0] sm:$0xff]
        %v761 = vld [vmem:[%s1 + $0xa8] sm:$0xff]
        %v762 = vld [vmem:[%s1 + $0xb0] sm:$0xff]
        %v763 = vld [vmem:[%s1 + $0xb8] sm:$0xff]
        %v764 = vld [vmem:[%s1 + $0xc0] sm:$0xff]
        %v765 = vld [vmem:[%s1 + $0xc8] sm:$0xff]
        %v766 = vld [vmem:[%s1 + $0xd0] sm:$0xff]
        %v767 = vld [vmem:[%s1 + $0xd8] sm:$0xff]
        %v768 = vld [vmem:[%s1 + $0xe0] sm:$0xff]
        %v769 = vld [vmem:[%s1 + $0xe8] sm:$0xff]
        %v770 = vld [vmem:[%s1 + $0xf0] sm:$0xff]
        %v771 = vld [vmem:[%s1 + $0xf8] sm:$0xff]
        %v772 = vld [vmem:[%s1 + $0x100] sm:$0xff]
        %v773 = vld [vmem:[%s1 + $0x108] sm:$0xff]
        %v774 = vld [vmem:[%s1 + $0x110] sm:$0xff]
        %v775 = vld [vmem:[%s1 + $0x118] sm:$0xff]
        %v776 = vld [vmem:[%s1 + $0x120] sm:$0xff]
        %v777 = vld [vmem:[%s1 + $0x128] sm:$0xff]
        %v778 = vld [vmem:[%s1 + $0x130] sm:$0xff]
        %v779 = vld [vmem:[%s1 + $0x138] sm:$0xff]
        %v780 = vld [vmem:[%s1 + $0x140] sm:$0xff]
        %v781 = vld [vmem:[%s1 + $0x148] sm:$0xff]
        %v782 = vld [vmem:[%s1 + $0x150] sm:$0xff]
        %v783 = vld [vmem:[%s1 + $0x158] sm:$0xff]
        %v784 = vld [vmem:[%s1 + $0x160] sm:$0xff]
        %v785 = vld [vmem:[%s1 + $0x168] sm:$0xff]
        %v786 = vld [vmem:[%s1 + $0x170] sm:$0xff]
        %v787 = vld [vmem:[%s1 + $0x178] sm:$0xff]
        %v788 = vld [vmem:[%s1 + $0x180] sm:$0xff]
        %v789 = vld [vmem:[%s1 + $0x188] sm:$0xff]
        %v790 = vld [vmem:[%s1 + $0x190] sm:$0xff]
        %v791 = vld [vmem:[%s1 + $0x198] sm:$0xff]
        %v792 = vld [vmem:[%s1 + $0x1a0] sm:$0xff]
        %v793 = vld [vmem:[%s1 + $0x1a8] sm:$0xff]
        %v794 = vld [vmem:[%s1 + $0x1b0] sm:$0xff]
        %v795 = vld [vmem:[%s1 + $0x1b8] sm:$0xff]
        %v796 = vld [vmem:[%s1 + $0x1c0] sm:$0xff]
        %v797 = vld [vmem:[%s1 + $0x1c8] sm:$0xff]
        %v798 = vld [vmem:[%s1 + $0x1d0] sm:$0xff]
        %v799 = vld [vmem:[%s1 + $0x1d8] sm:$0xff]
        %v800 = vld [vmem:[%s1 + $0x1e0] sm:$0xff]
        %v801 = vld [vmem:[%s1 + $0x1e8] sm:$0xff]
        %v802 = vld [vmem:[%s1 + $0x1f0] sm:$0xff]
        %v803 = vld [vmem:[%s1 + $0x1f8] sm:$0xff]
        %v804 = vld [vmem:[%s1 + $0x200] sm:$0xff]
        %v805 = vld [vmem:[%s1 + $0x208] sm:$0xff]
        %v806 = vld [vmem:[%s1 + $0x210] sm:$0xff]
        %v807 = vld [vmem:[%s1 + $0x218] sm:$0xff]
        %v808 = vld [vmem:[%s1 + $0x220] sm:$0xff]
        %v809 = vld [vmem:[%s1 + $0x228] sm:$0xff]
        %v810 = vld [vmem:[%s1 + $0x230] sm:$0xff]
        %v811 = vld [vmem:[%s1 + $0x238] sm:$0xff]
        %v812 = vld [vmem:[%s1 + $0x240] sm:$0xff]
        %v813 = vld [vmem:[%s1 + $0x248] sm:$0xff]
        %v814 = vld [vmem:[%s1 + $0x250] sm:$0xff]
        %v815 = vld [vmem:[%s1 + $0x258] sm:$0xff]
        %v816 = vld [vmem:[%s1 + $0x260] sm:$0xff]
        %v817 = vld [vmem:[%s1 + $0x268] sm:$0xff]
        %v818 = vld [vmem:[%s1 + $0x270] sm:$0xff]
        %v819 = vld [vmem:[%s1 + $0x278] sm:$0xff]
        %v820 = vld [vmem:[%s1 + $0x280] sm:$0xff]
        %v821 = vld [vmem:[%s1 + $0x288] sm:$0xff]
        %v822 = vld [vmem:[%s1 + $0x290] sm:$0xff]
        %v823 = vld [vmem:[%s1 + $0x298] sm:$0xff]
        %v824 = vld [vmem:[%s1 + $0x2a0] sm:$0xff]
        %v825 = vld [vmem:[%s1 + $0x2a8] sm:$0xff]
        %v826 = vld [vmem:[%s1 + $0x2b0] sm:$0xff]
        %v827 = vld [vmem:[%s1 + $0x2b8] sm:$0xff]
        %v828 = vld [vmem:[%s1 + $0x2c0] sm:$0xff]
        %v829 = vld [vmem:[%s1 + $0x2c8] sm:$0xff]
        %v830 = vld [vmem:[%s1 + $0x2d0] sm:$0xff]
        %v831 = vld [vmem:[%s1 + $0x2d8] sm:$0xff]
        %v832 = vld [vmem:[%s1 + $0x2e0] sm:$0xff]
        %v833 = vld [vmem:[%s1 + $0x2e8] sm:$0xff]
        %v834 = vld [vmem:[%s1 + $0x2f0] sm:$0xff]
        %v835 = vld [vmem:[%s1 + $0x2f8] sm:$0xff]
        %v836 = vld [vmem:[%s1 + $0x300] sm:$0xff]
        %v837 = vld [vmem:[%s1 + $0x308] sm:$0xff]
        %v838 = vld [vmem:[%s1 + $0x310] sm:$0xff]
        %v839 = vld [vmem:[%s1 + $0x318] sm:$0xff]
        %v840 = vld [vmem:[%s1 + $0x320] sm:$0xff]
        %v841 = vld [vmem:[%s1 + $0x328] sm:$0xff]
        %v842 = vld [vmem:[%s1 + $0x330] sm:$0xff]
        %v843 = vld [vmem:[%s1 + $0x338] sm:$0xff]
        %v844 = vld [vmem:[%s1 + $0x340] sm:$0xff]
        %v845 = vld [vmem:[%s1 + $0x348] sm:$0xff]
        %v846 = vld [vmem:[%s1 + $0x350] sm:$0xff]
        %v847 = vld [vmem:[%s1 + $0x358] sm:$0xff]
        %v848 = vld [vmem:[%s1 + $0x360] sm:$0xff]
        %v849 = vld [vmem:[%s1 + $0x368] sm:$0xff]
        %v850 = vld [vmem:[%s1 + $0x370] sm:$0xff]
        %v851 = vld [vmem:[%s1 + $0x378] sm:$0xff]
        %v852 = vld [vmem:[%s1 + $0x380] sm:$0xff]
        %v853 = vld [vmem:[%s1 + $0x388] sm:$0xff]
        %v854 = vld [vmem:[%s1 + $0x390] sm:$0xff]
        %v855 = vld [vmem:[%s1 + $0x398] sm:$0xff]
        %v856 = vld [vmem:[%s1 + $0x3a0] sm:$0xff]
        %v857 = vld [vmem:[%s1 + $0x3a8] sm:$0xff]
        %v858 = vld [vmem:[%s1 + $0x3b0] sm:$0xff]
        %v859 = vld [vmem:[%s1 + $0x3b8] sm:$0xff]
        %v860 = vld [vmem:[%s1 + $0x3c0] sm:$0xff]
        %v861 = vld [vmem:[%s1 + $0x3c8] sm:$0xff]
        %v862 = vld [vmem:[%s1 + $0x3d0] sm:$0xff]
        %v863 = vld [vmem:[%s1 + $0x3d8] sm:$0xff]
        %v864 = vld [vmem:[%s1 + $0x3e0] sm:$0xff]
        %v865 = vld [vmem:[%s1 + $0x3e8] sm:$0xff]
        %v866 = vld [vmem:[%s1 + $0x3f0] sm:$0xff]
        %v867 = vld [vmem:[%s1 + $0x3f8] sm:$0xff]
        %v868 = vld [vmem:[%s1 + $0x400] sm:$0xff]
        %v869 = vld [vmem:[%s1 + $0x408] sm:$0xff]
        %v870 = vld [vmem:[%s1 + $0x410] sm:$0xff]
        %v871 = vld [vmem:[%s1 + $0x418] sm:$0xff]
        %v872 = vld [vmem:[%s1 + $0x420] sm:$0xff]
        %v873 = vld [vmem:[%s1 + $0x428] sm:$0xff]
        %v874 = vld [vmem:[%s1 + $0x430] sm:$0xff]
        %v875 = vld [vmem:[%s1 + $0x438] sm:$0xff]
        %v876 = vld [vmem:[%s1 + $0x440] sm:$0xff]
        %v877 = vld [vmem:[%s1 + $0x448] sm:$0xff]
        %v878 = vld [vmem:[%s1 + $0x450] sm:$0xff]
        %v879 = vld [vmem:[%s1 + $0x458] sm:$0xff]
        %v880 = vld [vmem:[%s1 + $0x460] sm:$0xff]
        %v881 = vld [vmem:[%s1 + $0x468] sm:$0xff]
        %v882 = vld [vmem:[%s1 + $0x470] sm:$0xff]
        %v883 = vld [vmem:[%s1 + $0x478] sm:$0xff]
        %v884 = vld [vmem:[%s1 + $0x480] sm:$0xff]
        %v885 = vld [vmem:[%s1 + $0x488] sm:$0xff]
        %v886 = vld [vmem:[%s1 + $0x490] sm:$0xff]
        %v887 = vld [vmem:[%s1 + $0x498] sm:$0xff]
        %v888 = vld [vmem:[%s1 + $0x4a0] sm:$0xff]
        %v889 = vld [vmem:[%s1 + $0x4a8] sm:$0xff]
        %v890 = vld [vmem:[%s1 + $0x4b0] sm:$0xff]
        %v891 = vld [vmem:[%s1 + $0x4b8] sm:$0xff]
        %v892 = vld [vmem:[%s1 + $0x4c0] sm:$0xff]
        %v893 = vld [vmem:[%s1 + $0x4c8] sm:$0xff]
        %v894 = vld [vmem:[%s1 + $0x4d0] sm:$0xff]
        %v895 = vld [vmem:[%s1 + $0x4d8] sm:$0xff]
        %v896 = vld [vmem:[%s1 + $0x4e0] sm:$0xff]
        %v897 = vld [vmem:[%s1 + $0x4e8] sm:$0xff]
        %v898 = vld [vmem:[%s1 + $0x4f0] sm:$0xff]
        %v899 = vld [vmem:[%s1 + $0x4f8] sm:$0xff]
        %v900 = vld [vmem:[%s1 + $0x500] sm:$0xff]
        %v901 = vld [vmem:[%s1 + $0x508] sm:$0xff]
        %v902 = vld [vmem:[%s1 + $0x510] sm:$0xff]
        %v903 = vld [vmem:[%s1 + $0x518] sm:$0xff]
        %v904 = vld [vmem:[%s1 + $0x520] sm:$0xff]
        %v905 = vld [vmem:[%s1 + $0x528] sm:$0xff]
        %v906 = vld [vmem:[%s1 + $0x530] sm:$0xff]
        %v907 = vld [vmem:[%s1 + $0x538] sm:$0xff]
        %v908 = vld [vmem:[%s1 + $0x540] sm:$0xff]
        %v909 = vld [vmem:[%s1 + $0x548] sm:$0xff]
        %v910 = vld [vmem:[%s1 + $0x550] sm:$0xff]
        %v911 = vld [vmem:[%s1 + $0x558] sm:$0xff]
        %v912 = vld [vmem:[%s1 + $0x560] sm:$0xff]
        %v913 = vld [vmem:[%s1 + $0x568] sm:$0xff]
        %v914 = vld [vmem:[%s1 + $0x570] sm:$0xff]
        %v915 = vld [vmem:[%s1 + $0x578] sm:$0xff]
        %v916 = vld [vmem:[%s1 + $0x580] sm:$0xff]
        %v917 = vld [vmem:[%s1 + $0x588] sm:$0xff]
        %v918 = vld [vmem:[%s1 + $0x590] sm:$0xff]
        %v919 = vld [vmem:[%s1 + $0x598] sm:$0xff]
        %v920 = vld [vmem:[%s1 + $0x5a0] sm:$0xff]
        %v921 = vld [vmem:[%s1 + $0x5a8] sm:$0xff]
        %v922 = vld [vmem:[%s1 + $0x5b0] sm:$0xff]
        %v923 = vld [vmem:[%s1 + $0x5b8] sm:$0xff]
        %v924 = vld [vmem:[%s1 + $0x5c0] sm:$0xff]
        %v925 = vld [vmem:[%s1 + $0x5c8] sm:$0xff]
        %v926 = vld [vmem:[%s1 + $0x5d0] sm:$0xff]
        %v927 = vld [vmem:[%s1 + $0x5d8] sm:$0xff]
        %v928 = vld [vmem:[%s1 + $0x5e0] sm:$0xff]
        %v929 = vld [vmem:[%s1 + $0x5e8] sm:$0xff]
        %v930 = vld [vmem:[%s1 + $0x5f0] sm:$0xff]
        %v931 = vld [vmem:[%s1 + $0x5f8] sm:$0xff]
        %v932 = vld [vmem:[%s1 + $0x600] sm:$0xff]
        %v933 = vld [vmem:[%s1 + $0x608] sm:$0xff]
        %v934 = vld [vmem:[%s1 + $0x610] sm:$0xff]
        %v935 = vld [vmem:[%s1 + $0x618] sm:$0xff]
        %v936 = vld [vmem:[%s1 + $0x620] sm:$0xff]
        %v937 = vld [vmem:[%s1 + $0x628] sm:$0xff]
        %v938 = vld [vmem:[%s1 + $0x630] sm:$0xff]
        %v939 = vld [vmem:[%s1 + $0x638] sm:$0xff]
        %v940 = vld [vmem:[%s1 + $0x640] sm:$0xff]
        %v941 = vld [vmem:[%s1 + $0x648] sm:$0xff]
        %v942 = vld [vmem:[%s1 + $0x650] sm:$0xff]
        %v943 = vld [vmem:[%s1 + $0x658] sm:$0xff]
        %v944 = vld [vmem:[%s1 + $0x660] sm:$0xff]
        %v945 = vld [vmem:[%s1 + $0x668] sm:$0xff]
        %v946 = vld [vmem:[%s1 + $0x670] sm:$0xff]
        %v947 = vld [vmem:[%s1 + $0x678] sm:$0xff]
        %v948 = vld [vmem:[%s1 + $0x680] sm:$0xff]
        %v949 = vld [vmem:[%s1 + $0x688] sm:$0xff]
        %v950 = vld [vmem:[%s1 + $0x690] sm:$0xff]
        %v951 = vld [vmem:[%s1 + $0x698] sm:$0xff]
        %v952 = vld [vmem:[%s1 + $0x6a0] sm:$0xff]
        %v953 = vld [vmem:[%s1 + $0x6a8] sm:$0xff]
        %v954 = vld [vmem:[%s1 + $0x6b0] sm:$0xff]
        %v955 = vld [vmem:[%s1 + $0x6b8] sm:$0xff]
        %v956 = vld [vmem:[%s1 + $0x6c0] sm:$0xff]
        %v957 = vld [vmem:[%s1 + $0x6c8] sm:$0xff]
        %v958 = vld [vmem:[%s1 + $0x6d0] sm:$0xff]
        %v959 = vld [vmem:[%s1 + $0x6d8] sm:$0xff]
        %v960 = vld [vmem:[%s1 + $0x6e0] sm:$0xff]
        %v961 = vld [vmem:[%s1 + $0x6e8] sm:$0xff]
        %v962 = vld [vmem:[%s1 + $0x6f0] sm:$0xff]
        %v963 = vld [vmem:[%s1 + $0x6f8] sm:$0xff]
        %v964 = vld [vmem:[%s1 + $0x700] sm:$0xff]
        %v965 = vld [vmem:[%s1 + $0x708] sm:$0xff]
        %v966 = vld [vmem:[%s1 + $0x710] sm:$0xff]
        %v967 = vld [vmem:[%s1 + $0x718] sm:$0xff]
        %v968 = vld [vmem:[%s1 + $0x720] sm:$0xff]
        %v969 = vld [vmem:[%s1 + $0x728] sm:$0xff]
        %v970 = vld [vmem:[%s1 + $0x730] sm:$0xff]
        %v971 = vld [vmem:[%s1 + $0x738] sm:$0xff]
        %v972 = vld [vmem:[%s1 + $0x740] sm:$0xff]
        %v973 = vld [vmem:[%s1 + $0x748] sm:$0xff]
        %v974 = vld [vmem:[%s1 + $0x750] sm:$0xff]
        %v975 = vld [vmem:[%s1 + $0x758] sm:$0xff]
        %v976 = vld [vmem:[%s1 + $0x760] sm:$0xff]
        %v977 = vld [vmem:[%s1 + $0x768] sm:$0xff]
        %v978 = vld [vmem:[%s1 + $0x770] sm:$0xff]
        %v979 = vld [vmem:[%s1 + $0x778] sm:$0xff]
        %v980 = vld [vmem:[%s1 + $0x780] sm:$0xff]
        %v981 = vld [vmem:[%s1 + $0x788] sm:$0xff]
        %v982 = vld [vmem:[%s1 + $0x790] sm:$0xff]
        %v983 = vld [vmem:[%s1 + $0x798] sm:$0xff]
        %v984 = vld [vmem:[%s1 + $0x7a0] sm:$0xff]
        %v985 = vld [vmem:[%s1 + $0x7a8] sm:$0xff]
        %v986 = vld [vmem:[%s1 + $0x7b0] sm:$0xff]
        %v987 = vld [vmem:[%s1 + $0x7b8] sm:$0xff]
        %v988 = vld [vmem:[%s1 + $0x7c0] sm:$0xff]
        %v989 = vld [vmem:[%s1 + $0x7c8] sm:$0xff]
        %v990 = vld [vmem:[%s1 + $0x7d0] sm:$0xff]
        %v991 = vld [vmem:[%s1 + $0x7d8] sm:$0xff]
        %v992 = vld [vmem:[%s1 + $0x7e0] sm:$0xff]
        %v993 = vld [vmem:[%s1 + $0x7e8] sm:$0xff]
        %v994 = vld [vmem:[%s1 + $0x7f0] sm:$0xff]
        %v995 = vld [vmem:[%s1 + $0x7f8] sm:$0xff]
        %v996 = vld [vmem:[%s1 + $0x800] sm:$0xff]
        %v997 = vld [vmem:[%s1 + $0x808] sm:$0xff]
        %v998 = vld [vmem:[%s1 + $0x810] sm:$0xff]
        %v999 = vld [vmem:[%s1 + $0x818] sm:$0xff]
        %v1000 = vld [vmem:[%s1 + $0x820] sm:$0xff]
        %v1001 = vld [vmem:[%s1 + $0x828] sm:$0xff]
        %v1002 = vld [vmem:[%s1 + $0x830] sm:$0xff]
        %v1003 = vld [vmem:[%s1 + $0x838] sm:$0xff]
        %v1004 = vld [vmem:[%s1 + $0x840] sm:$0xff]
        %v1005 = vld [vmem:[%s1 + $0x848] sm:$0xff]
        %v1006 = vld [vmem:[%s1 + $0x850] sm:$0xff]
        %v1007 = vld [vmem:[%s1 + $0x858] sm:$0xff]
        %v1008 = vld [vmem:[%s1 + $0x860] sm:$0xff]
        %v1009 = vld [vmem:[%s1 + $0x868] sm:$0xff]
        %v1010 = vld [vmem:[%s1 + $0x870] sm:$0xff]
        %v1011 = vld [vmem:[%s1 + $0x878] sm:$0xff]
        %v1012 = vld [vmem:[%s1 + $0x880] sm:$0xff]
        %v1013 = vld [vmem:[%s1 + $0x888] sm:$0xff]
        %v1014 = vld [vmem:[%s1 + $0x890] sm:$0xff]
        %v1015 = vld [vmem:[%s1 + $0x898] sm:$0xff]
        %v1016 = vld [vmem:[%s1 + $0x8a0] sm:$0xff]
        %v1017 = vld [vmem:[%s1 + $0x8a8] sm:$0xff]
        %v1018 = vld [vmem:[%s1 + $0x8b0] sm:$0xff]
        %v1019 = vld [vmem:[%s1 + $0x8b8] sm:$0xff]
        %v1020 = vld [vmem:[%s1 + $0x8c0] sm:$0xff]
        %v1021 = vld [vmem:[%s1 + $0x8c8] sm:$0xff]
        %v1022 = vld [vmem:[%s1 + $0x8d0] sm:$0xff]
        %v1023 = vld [vmem:[%s1 + $0x8d8] sm:$0xff]
        %v1024 = vld [vmem:[%s1 + $0x8e0] sm:$0xff]
        %v1025 = vld [vmem:[%s1 + $0x8e8] sm:$0xff]
        %v1026 = vld [vmem:[%s1 + $0x8f0] sm:$0xff]
        %v1027 = vld [vmem:[%s1 + $0x8f8] sm:$0xff]
        %v1028 = vld [vmem:[%s1 + $0x900] sm:$0xff]
        %v1029 = vld [vmem:[%s1 + $0x908] sm:$0xff]
        %v1030 = vld [vmem:[%s1 + $0x910] sm:$0xff]
        %v1031 = vld [vmem:[%s1 + $0x918] sm:$0xff]
        %v1032 = vld [vmem:[%s1 + $0x920] sm:$0xff]
        %v1033 = vld [vmem:[%s1 + $0x928] sm:$0xff]
        %v1034 = vld [vmem:[%s1 + $0x930] sm:$0xff]
        %v1035 = vld [vmem:[%s1 + $0x938] sm:$0xff]
        %v1036 = vld [vmem:[%s1 + $0x940] sm:$0xff]
        %v1037 = vld [vmem:[%s1 + $0x948] sm:$0xff]
        %v1038 = vld [vmem:[%s1 + $0x950] sm:$0xff]
        %v1039 = vld [vmem:[%s1 + $0x958] sm:$0xff]
        %v1040 = vld [vmem:[%s1 + $0x960] sm:$0xff]
        %v1041 = vld [vmem:[%s1 + $0x968] sm:$0xff]
        %v1042 = vld [vmem:[%s1 + $0x970] sm:$0xff]
        %v1043 = vld [vmem:[%s1 + $0x978] sm:$0xff]
        %v1044 = vld [vmem:[%s1 + $0x980] sm:$0xff]
        %v1045 = vld [vmem:[%s1 + $0x988] sm:$0xff]
        %v1046 = vld [vmem:[%s1 + $0x990] sm:$0xff]
        %v1047 = vld [vmem:[%s1 + $0x998] sm:$0xff]
        %v1048 = vld [vmem:[%s1 + $0x9a0] sm:$0xff]
        %v1049 = vld [vmem:[%s1 + $0x9a8] sm:$0xff]
        %v1050 = vld [vmem:[%s1 + $0x9b0] sm:$0xff]
        %v1051 = vld [vmem:[%s1 + $0x9b8] sm:$0xff]
        %v1052 = vld [vmem:[%s1 + $0x9c0] sm:$0xff]
        %v1053 = vld [vmem:[%s1 + $0x9c8] sm:$0xff]
        %v1054 = vld [vmem:[%s1 + $0x9d0] sm:$0xff]
        %v1055 = vld [vmem:[%s1 + $0x9d8] sm:$0xff]
        %v1056 = vld [vmem:[%s1 + $0x9e0] sm:$0xff]
        %v1057 = vld [vmem:[%s1 + $0x9e8] sm:$0xff]
        %v1058 = vld [vmem:[%s1 + $0x9f0] sm:$0xff]
        %v1059 = vld [vmem:[%s1 + $0x9f8] sm:$0xff]
        %v1060 = vld [vmem:[%s1 + $0xa00] sm:$0xff]
        %v1061 = vld [vmem:[%s1 + $0xa08] sm:$0xff]
        %v1062 = vld [vmem:[%s1 + $0xa10] sm:$0xff]
        %v1063 = vld [vmem:[%s1 + $0xa18] sm:$0xff]
        %v1064 = vld [vmem:[%s1 + $0xa20] sm:$0xff]
        %v1065 = vld [vmem:[%s1 + $0xa28] sm:$0xff]
        %v1066 = vld [vmem:[%s1 + $0xa30] sm:$0xff]
        %v1067 = vld [vmem:[%s1 + $0xa38] sm:$0xff]
        %v1068 = vld [vmem:[%s1 + $0xa40] sm:$0xff]
        %v1069 = vld [vmem:[%s1 + $0xa48] sm:$0xff]
        %v1070 = vld [vmem:[%s1 + $0xa50] sm:$0xff]
        %v1071 = vld [vmem:[%s1 + $0xa58] sm:$0xff]
        %v1072 = vld [vmem:[%s1 + $0xa60] sm:$0xff]
        %v1073 = vld [vmem:[%s1 + $0xa68] sm:$0xff]
        %v1074 = vld [vmem:[%s1 + $0xa70] sm:$0xff]
        %v1075 = vld [vmem:[%s1 + $0xa78] sm:$0xff]
        %v1076 = vld [vmem:[%s1 + $0xa80] sm:$0xff]
        %v1077 = vld [vmem:[%s1 + $0xa88] sm:$0xff]
        %v1078 = vld [vmem:[%s1 + $0xa90] sm:$0xff]
        %v1079 = vld [vmem:[%s1 + $0xa98] sm:$0xff]
        %v1080 = vld [vmem:[%s1 + $0xaa0] sm:$0xff]
        %v1081 = vld [vmem:[%s1 + $0xaa8] sm:$0xff]
        %v1082 = vld [vmem:[%s1 + $0xab0] sm:$0xff]
        %v1083 = vld [vmem:[%s1 + $0xab8] sm:$0xff]
        %v1084 = vld [vmem:[%s1 + $0xac0] sm:$0xff]
        %v1085 = vld [vmem:[%s1 + $0xac8] sm:$0xff]
        %v1086 = vld [vmem:[%s1 + $0xad0] sm:$0xff]
        %v1087 = vld [vmem:[%s1 + $0xad8] sm:$0xff]
        %v1088 = vld [vmem:[%s1 + $0xae0] sm:$0xff]
        %v1089 = vld [vmem:[%s1 + $0xae8] sm:$0xff]
        %v1090 = vld [vmem:[%s1 + $0xaf0] sm:$0xff]
        %v1091 = vld [vmem:[%s1 + $0xaf8] sm:$0xff]
        %v1092 = vld [vmem:[%s1 + $0xb00] sm:$0xff]
        %v1093 = vld [vmem:[%s1 + $0xb08] sm:$0xff]
        %v1094 = vld [vmem:[%s1 + $0xb10] sm:$0xff]
        %v1095 = vld [vmem:[%s1 + $0xb18] sm:$0xff]
        %v1096 = vld [vmem:[%s1 + $0xb20] sm:$0xff]
        %v1097 = vld [vmem:[%s1 + $0xb28] sm:$0xff]
        %v1098 = vld [vmem:[%s1 + $0xb30] sm:$0xff]
        %v1099 = vld [vmem:[%s1 + $0xb38] sm:$0xff]
        %v1100 = vld [vmem:[%s1 + $0xb40] sm:$0xff]
        %v1101 = vld [vmem:[%s1 + $0xb48] sm:$0xff]
        %v1102 = vld [vmem:[%s1 + $0xb50] sm:$0xff]
        %v1103 = vld [vmem:[%s1 + $0xb58] sm:$0xff]
        %v1104 = vld [vmem:[%s1 + $0xb60] sm:$0xff]
        %v1105 = vld [vmem:[%s1 + $0xb68] sm:$0xff]
        %v1106 = vld [vmem:[%s1 + $0xb70] sm:$0xff]
        %v1107 = vld [vmem:[%s1 + $0xb78] sm:$0xff]
        %v1108 = vld [vmem:[%s1 + $0xb80] sm:$0xff]
        %v1109 = vld [vmem:[%s1 + $0xb88] sm:$0xff]
        %v1110 = vld [vmem:[%s1 + $0xb90] sm:$0xff]
        %v1111 = vld [vmem:[%s1 + $0xb98] sm:$0xff]
        %v1112 = vld [vmem:[%s1 + $0xba0] sm:$0xff]
        %v1113 = vld [vmem:[%s1 + $0xba8] sm:$0xff]
        %v1114 = vld [vmem:[%s1 + $0xbb0] sm:$0xff]
        %v1115 = vld [vmem:[%s1 + $0xbb8] sm:$0xff]
        %v1116 = vld [vmem:[%s1 + $0xbc0] sm:$0xff]
        %v1117 = vld [vmem:[%s1 + $0xbc8] sm:$0xff]
        %v1118 = vld [vmem:[%s1 + $0xbd0] sm:$0xff]
        %v1119 = vld [vmem:[%s1 + $0xbd8] sm:$0xff]
        %v1120 = vld [vmem:[%s1 + $0xbe0] sm:$0xff]
        %v1121 = vld [vmem:[%s1 + $0xbe8] sm:$0xff]
        %v1122 = vld [vmem:[%s1 + $0xbf0] sm:$0xff]
        %v1123 = vld [vmem:[%s1 + $0xbf8] sm:$0xff]
        %v1124 = vld [vmem:[%s1 + $0xc00] sm:$0xff]
        %v1125 = vld [vmem:[%s1 + $0xc08] sm:$0xff]
        %v1126 = vld [vmem:[%s1 + $0xc10] sm:$0xff]
        %v1127 = vld [vmem:[%s1 + $0xc18] sm:$0xff]
        %v1128 = vld [vmem:[%s1 + $0xc20] sm:$0xff]
        %v1129 = vld [vmem:[%s1 + $0xc28] sm:$0xff]
        %v1130 = vld [vmem:[%s1 + $0xc30] sm:$0xff]
        %v1131 = vld [vmem:[%s1 + $0xc38] sm:$0xff]
        %v1132 = vld [vmem:[%s1 + $0xc40] sm:$0xff]
        %v1133 = vld [vmem:[%s1 + $0xc48] sm:$0xff]
        %v1134 = vld [vmem:[%s1 + $0xc50] sm:$0xff]
        %v1135 = vld [vmem:[%s1 + $0xc58] sm:$0xff]
        %v1136 = vld [vmem:[%s1 + $0xc60] sm:$0xff]
        %v1137 = vld [vmem:[%s1 + $0xc68] sm:$0xff]
        %v1138 = vld [vmem:[%s1 + $0xc70] sm:$0xff]
        %v1139 = vld [vmem:[%s1 + $0xc78] sm:$0xff]
        %v1140 = vld [vmem:[%s1 + $0xc80] sm:$0xff]
        %v1141 = vld [vmem:[%s1 + $0xc88] sm:$0xff]
        %v1142 = vld [vmem:[%s1 + $0xc90] sm:$0xff]
        %v1143 = vld [vmem:[%s1 + $0xc98] sm:$0xff]
        %v1144 = vld [vmem:[%s1 + $0xca0] sm:$0xff]
        %v1145 = vld [vmem:[%s1 + $0xca8] sm:$0xff]
        %v1146 = vld [vmem:[%s1 + $0xcb0] sm:$0xff]
        %v1147 = vld [vmem:[%s1 + $0xcb8] sm:$0xff]
        %v1148 = vld [vmem:[%s1 + $0xcc0] sm:$0xff]
        %v1149 = vld [vmem:[%s1 + $0xcc8] sm:$0xff]
        %v1150 = vld [vmem:[%s1 + $0xcd0] sm:$0xff]
        %v1151 = vld [vmem:[%s1 + $0xcd8] sm:$0xff]
        %v1152 = vld [vmem:[%s1 + $0xce0] sm:$0xff]
        %v1153 = vld [vmem:[%s1 + $0xce8] sm:$0xff]
        %v1154 = vld [vmem:[%s1 + $0xcf0] sm:$0xff]
        %v1155 = vld [vmem:[%s1 + $0xcf8] sm:$0xff]
        %v1156 = vld [vmem:[%s1 + $0xd00] sm:$0xff]
        %v1157 = vld [vmem:[%s1 + $0xd08] sm:$0xff]
        %v1158 = vld [vmem:[%s1 + $0xd10] sm:$0xff]
        %v1159 = vld [vmem:[%s1 + $0xd18] sm:$0xff]
        %v1160 = vld [vmem:[%s1 + $0xd20] sm:$0xff]
        %v1161 = vld [vmem:[%s1 + $0xd28] sm:$0xff]
        %v1162 = vld [vmem:[%s1 + $0xd30] sm:$0xff]
        %v1163 = vld [vmem:[%s1 + $0xd38] sm:$0xff]
        %v1164 = vld [vmem:[%s1 + $0xd40] sm:$0xff]
        %v1165 = vld [vmem:[%s1 + $0xd48] sm:$0xff]
        %v1166 = vld [vmem:[%s1 + $0xd50] sm:$0xff]
        %v1167 = vld [vmem:[%s1 + $0xd58] sm:$0xff]
        %v1168 = vld [vmem:[%s1 + $0xd60] sm:$0xff]
        %v1169 = vld [vmem:[%s1 + $0xd68] sm:$0xff]
        %v1170 = vld [vmem:[%s1 + $0xd70] sm:$0xff]
        %v1171 = vld [vmem:[%s1 + $0xd78] sm:$0xff]
        %v1172 = vld [vmem:[%s1 + $0xd80] sm:$0xff]
        %v1173 = vld [vmem:[%s1 + $0xd88] sm:$0xff]
        %v1174 = vld [vmem:[%s1 + $0xd90] sm:$0xff]
        %v1175 = vld [vmem:[%s1 + $0xd98] sm:$0xff]
        %v1176 = vld [vmem:[%s1 + $0xda0] sm:$0xff]
        %v1177 = vld [vmem:[%s1 + $0xda8] sm:$0xff]
        %v1178 = vld [vmem:[%s1 + $0xdb0] sm:$0xff]
        %v1179 = vld [vmem:[%s1 + $0xdb8] sm:$0xff]
        %v1180 = vld [vmem:[%s1 + $0xdc0] sm:$0xff]
        %v1181 = vld [vmem:[%s1 + $0xdc8] sm:$0xff]
        %v1182 = vld [vmem:[%s1 + $0xdd0] sm:$0xff]
        %v1183 = vld [vmem:[%s1 + $0xdd8] sm:$0xff]
        %v1184 = vld [vmem:[%s1 + $0xde0] sm:$0xff]
        %v1185 = vld [vmem:[%s1 + $0xde8] sm:$0xff]
        %v1186 = vld [vmem:[%s1 + $0xdf0] sm:$0xff]
        %v1187 = vld [vmem:[%s1 + $0xdf8] sm:$0xff]
        %v1188 = vld [vmem:[%s1 + $0xe00] sm:$0xff]
        %v1189 = vld [vmem:[%s1 + $0xe08] sm:$0xff]
        %v1190 = vld [vmem:[%s1 + $0xe10] sm:$0xff]
        %v1191 = vld [vmem:[%s1 + $0xe18] sm:$0xff]
        %v1192 = vld [vmem:[%s1 + $0xe20] sm:$0xff]
        %v1193 = vld [vmem:[%s1 + $0xe28] sm:$0xff]
        %v1194 = vld [vmem:[%s1 + $0xe30] sm:$0xff]
        %v1195 = vld [vmem:[%s1 + $0xe38] sm:$0xff]
        %v1196 = vld [vmem:[%s1 + $0xe40] sm:$0xff]
        %v1197 = vld [vmem:[%s1 + $0xe48] sm:$0xff]
        %v1198 = vld [vmem:[%s1 + $0xe50] sm:$0xff]
        %v1199 = vld [vmem:[%s1 + $0xe58] sm:$0xff]
        %v1200 = vld [vmem:[%s1 + $0xe60] sm:$0xff]
        %v1201 = vld [vmem:[%s1 + $0xe68] sm:$0xff]
        %v1202 = vld [vmem:[%s1 + $0xe70] sm:$0xff]
        %v1203 = vld [vmem:[%s1 + $0xe78] sm:$0xff]
        %v1204 = vld [vmem:[%s1 + $0xe80] sm:$0xff]
        %v1205 = vld [vmem:[%s1 + $0xe88] sm:$0xff]
        %v1206 = vld [vmem:[%s1 + $0xe90] sm:$0xff]
        %v1207 = vld [vmem:[%s1 + $0xe98] sm:$0xff]
        %v1208 = vld [vmem:[%s1 + $0xea0] sm:$0xff]
        %v1209 = vld [vmem:[%s1 + $0xea8] sm:$0xff]
        %v1210 = vld [vmem:[%s1 + $0xeb0] sm:$0xff]
        %v1211 = vld [vmem:[%s1 + $0xeb8] sm:$0xff]
        %v1212 = vld [vmem:[%s1 + $0xec0] sm:$0xff]
        %v1213 = vld [vmem:[%s1 + $0xec8] sm:$0xff]
        %v1214 = vld [vmem:[%s1 + $0xed0] sm:$0xff]
        %v1215 = vld [vmem:[%s1 + $0xed8] sm:$0xff]
        %v1216 = vld [vmem:[%s1 + $0xee0] sm:$0xff]
        %v1217 = vld [vmem:[%s1 + $0xee8] sm:$0xff]
        %v1218 = vld [vmem:[%s1 + $0xef0] sm:$0xff]
        %v1219 = vld [vmem:[%s1 + $0xef8] sm:$0xff]
        %v1220 = vld [vmem:[%s1 + $0xf00] sm:$0xff]
        %v1221 = vld [vmem:[%s1 + $0xf08] sm:$0xff]
        %v1222 = vld [vmem:[%s1 + $0xf10] sm:$0xff]
        %v1223 = vld [vmem:[%s1 + $0xf18] sm:$0xff]
        %v1224 = vld [vmem:[%s1 + $0xf20] sm:$0xff]
        %v1225 = vld [vmem:[%s1 + $0xf28] sm:$0xff]
        %v1226 = vld [vmem:[%s1 + $0xf30] sm:$0xff]
        %v1227 = vld [vmem:[%s1 + $0xf38] sm:$0xff]
        %v1228 = vld [vmem:[%s1 + $0xf40] sm:$0xff]
        %v1229 = vld [vmem:[%s1 + $0xf48] sm:$0xff]
        %v1230 = vld [vmem:[%s1 + $0xf50] sm:$0xff]
        %v1231 = vld [vmem:[%s1 + $0xf58] sm:$0xff]
        %v1232 = vld [vmem:[%s1 + $0xf60] sm:$0xff]
        %v1233 = vld [vmem:[%s1 + $0xf68] sm:$0xff]
        %v1234 = vld [vmem:[%s1 + $0xf70] sm:$0xff]
        %v1235 = vld [vmem:[%s1 + $0xf78] sm:$0xff]
        %v1236 = vld [vmem:[%s1 + $0xf80] sm:$0xff]
        %v1237 = vld [vmem:[%s1 + $0xf88] sm:$0xff]
        %v1238 = vld [vmem:[%s1 + $0xf90] sm:$0xff]
        %v1239 = vld [vmem:[%s1 + $0xf98] sm:$0xff]
        %v1240 = vld [vmem:[%s1 + $0xfa0] sm:$0xff]
        %v1241 = vld [vmem:[%s1 + $0xfa8] sm:$0xff]
        %v1242 = vld [vmem:[%s1 + $0xfb0] sm:$0xff]
        %v1243 = vld [vmem:[%s1 + $0xfb8] sm:$0xff]
        %v1244 = vld [vmem:[%s1 + $0xfc0] sm:$0xff]
        %v1245 = vld [vmem:[%s1 + $0xfc8] sm:$0xff]
        %v1246 = vld [vmem:[%s1 + $0xfd0] sm:$0xff]
        %v1247 = vld [vmem:[%s1 + $0xfd8] sm:$0xff]
        %v1248 = vld [vmem:[%s1 + $0xfe0] sm:$0xff]
        %v1249 = vld [vmem:[%s1 + $0xfe8] sm:$0xff]
        %v1250 = vld [vmem:[%s1 + $0xff0] sm:$0xff]
        %v1251 = vld [vmem:[%s1 + $0xff8] sm:$0xff]
        %v1252 = vld [vmem:[%s1 + $0x1000] sm:$0xff]
        %v1253 = vld [vmem:[%s1 + $0x1008] sm:$0xff]
        %v1254 = vld [vmem:[%s1 + $0x1010] sm:$0xff]
        %v1255 = vld [vmem:[%s1 + $0x1018] sm:$0xff]
        %v1256 = vld [vmem:[%s1 + $0x1020] sm:$0xff]
        %v1257 = vld [vmem:[%s1 + $0x1028] sm:$0xff]
        %v1258 = vld [vmem:[%s1 + $0x1030] sm:$0xff]
        %v1259 = vld [vmem:[%s1 + $0x1038] sm:$0xff]
        %v1260 = vld [vmem:[%s1 + $0x1040] sm:$0xff]
        %v1261 = vld [vmem:[%s1 + $0x1048] sm:$0xff]
        %v1262 = vld [vmem:[%s1 + $0x1050] sm:$0xff]
        %v1263 = vld [vmem:[%s1 + $0x1058] sm:$0xff]
        %v1264 = vld [vmem:[%s1 + $0x1060] sm:$0xff]
        %v1265 = vld [vmem:[%s1 + $0x1068] sm:$0xff]
        %v1266 = vld [vmem:[%s1 + $0x1070] sm:$0xff]
        %v1267 = vld [vmem:[%s1 + $0x1078] sm:$0xff]
        %v1268 = vld [vmem:[%s1 + $0x1080] sm:$0xff]
        %v1269 = vld [vmem:[%s1 + $0x1088] sm:$0xff]
        %v1270 = vld [vmem:[%s1 + $0x1090] sm:$0xff]
        %v1271 = vld [vmem:[%s1 + $0x1098] sm:$0xff]
        %v1272 = vld [vmem:[%s1 + $0x10a0] sm:$0xff]
        %v1273 = vld [vmem:[%s1 + $0x10a8] sm:$0xff]
        %v1274 = vld [vmem:[%s1 + $0x10b0] sm:$0xff]
        %v1275 = vld [vmem:[%s1 + $0x10b8] sm:$0xff]
        %v1276 = vld [vmem:[%s1 + $0x10c0] sm:$0xff]
        %v1277 = vld [vmem:[%s1 + $0x10c8] sm:$0xff]
        %v1278 = vld [vmem:[%s1 + $0x10d0] sm:$0xff]
        %v1279 = vld [vmem:[%s1 + $0x10d8] sm:$0xff]
        %v1280 = vld [vmem:[%s1 + $0x10e0] sm:$0xff]
        %v1281 = vld [vmem:[%s1 + $0x10e8] sm:$0xff]
        %v1282 = vld [vmem:[%s1 + $0x10f0] sm:$0xff]
        %v1283 = vld [vmem:[%s1 + $0x10f8] sm:$0xff]
        %v1284 = vld [vmem:[%s1 + $0x1100] sm:$0xff]
        %v1285 = vld [vmem:[%s1 + $0x1108] sm:$0xff]
        %v1286 = vld [vmem:[%s1 + $0x1110] sm:$0xff]
        %v1287 = vld [vmem:[%s1 + $0x1118] sm:$0xff]
        %v1288 = vld [vmem:[%s1 + $0x1120] sm:$0xff]
        %v1289 = vld [vmem:[%s1 + $0x1128] sm:$0xff]
        %v1290 = vld [vmem:[%s1 + $0x1130] sm:$0xff]
        %v1291 = vld [vmem:[%s1 + $0x1138] sm:$0xff]
        %v1292 = vld [vmem:[%s1 + $0x1140] sm:$0xff]
        %v1293 = vld [vmem:[%s1 + $0x1148] sm:$0xff]
        %v1294 = vld [vmem:[%s1 + $0x1150] sm:$0xff]
        %v1295 = vld [vmem:[%s1 + $0x1158] sm:$0xff]
        %v1296 = vld [vmem:[%s1 + $0x1160] sm:$0xff]
        %v1297 = vld [vmem:[%s1 + $0x1168] sm:$0xff]
        %v1298 = vld [vmem:[%s1 + $0x1170] sm:$0xff]
        %v1299 = vld [vmem:[%s1 + $0x1178] sm:$0xff]
        %v1300 = vld [vmem:[%s1 + $0x1180] sm:$0xff]
        %v1301 = vld [vmem:[%s1 + $0x1188] sm:$0xff]
        %v1302 = vld [vmem:[%s1 + $0x1190] sm:$0xff]
        %v1303 = vld [vmem:[%s1 + $0x1198] sm:$0xff]
        %v1304 = vld [vmem:[%s1 + $0x11a0] sm:$0xff]
        %v1305 = vld [vmem:[%s1 + $0x11a8] sm:$0xff]
        %v1306 = vld [vmem:[%s1 + $0x11b0] sm:$0xff]
        %v1307 = vld [vmem:[%s1 + $0x11b8] sm:$0xff]
        %v1308 = vld [vmem:[%s1 + $0x11c0] sm:$0xff]
        %v1309 = vld [vmem:[%s1 + $0x11c8] sm:$0xff]
        %v1310 = vld [vmem:[%s1 + $0x11d0] sm:$0xff]
        %v1311 = vld [vmem:[%s1 + $0x11d8] sm:$0xff]
        %v1312 = vld [vmem:[%s1 + $0x11e0] sm:$0xff]
        %v1313 = vld [vmem:[%s1 + $0x11e8] sm:$0xff]
        %v1314 = vld [vmem:[%s1 + $0x11f0] sm:$0xff]
        %v1315 = vld [vmem:[%s1 + $0x11f8] sm:$0xff]
        %v1316 = vld [vmem:[%s1 + $0x1200] sm:$0xff]
        %v1317 = vld [vmem:[%s1 + $0x1208] sm:$0xff]
        %v1318 = vld [vmem:[%s1 + $0x1210] sm:$0xff]
        %v1319 = vld [vmem:[%s1 + $0x1218] sm:$0xff]
        %v1320 = vld [vmem:[%s1 + $0x1220] sm:$0xff]
        %v1321 = vld [vmem:[%s1 + $0x1228] sm:$0xff]
        %v1322 = vld [vmem:[%s1 + $0x1230] sm:$0xff]
        %v1323 = vld [vmem:[%s1 + $0x1238] sm:$0xff]
        %v1324 = vld [vmem:[%s1 + $0x1240] sm:$0xff]
        %v1325 = vld [vmem:[%s1 + $0x1248] sm:$0xff]
        %v1326 = vld [vmem:[%s1 + $0x1250] sm:$0xff]
        %v1327 = vld [vmem:[%s1 + $0x1258] sm:$0xff]
        %v1328 = vld [vmem:[%s1 + $0x1260] sm:$0xff]
        %v1329 = vld [vmem:[%s1 + $0x1268] sm:$0xff]
        %v1330 = vld [vmem:[%s1 + $0x1270] sm:$0xff]
        %v1331 = vld [vmem:[%s1 + $0x1278] sm:$0xff]
        %v1332 = vld [vmem:[%s1 + $0x1280] sm:$0xff]
        %v1333 = vld [vmem:[%s1 + $0x1288] sm:$0xff]
        %v1334 = vld [vmem:[%s1 + $0x1290] sm:$0xff]
        %v1335 = vld [vmem:[%s1 + $0x1298] sm:$0xff]
        %v1336 = vld [vmem:[%s1 + $0x12a0] sm:$0xff]
        %v1337 = vld [vmem:[%s1 + $0x12a8] sm:$0xff]
        %v1338 = vld [vmem:[%s1 + $0x12b0] sm:$0xff]
        %v1339 = vld [vmem:[%s1 + $0x12b8] sm:$0xff]
        %v1340 = vld [vmem:[%s1 + $0x12c0] sm:$0xff]
        %v1341 = vld [vmem:[%s1 + $0x12c8] sm:$0xff]
        %v1342 = vld [vmem:[%s1 + $0x12d0] sm:$0xff]
        %v1343 = vld [vmem:[%s1 + $0x12d8] sm:$0xff]
        %v1344 = vld [vmem:[%s1 + $0x12e0] sm:$0xff]
        %v1345 = vld [vmem:[%s1 + $0x12e8] sm:$0xff]
        %v1346 = vld [vmem:[%s1 + $0x12f0] sm:$0xff]
        %v1347 = vld [vmem:[%s1 + $0x12f8] sm:$0xff]
        %v1348 = vld [vmem:[%s1 + $0x1300] sm:$0xff]
        %v1349 = vld [vmem:[%s1 + $0x1308] sm:$0xff]
        %v1350 = vld [vmem:[%s1 + $0x1310] sm:$0xff]
        %v1351 = vld [vmem:[%s1 + $0x1318] sm:$0xff]
        %v1352 = vld [vmem:[%s1 + $0x1320] sm:$0xff]
        %v1353 = vld [vmem:[%s1 + $0x1328] sm:$0xff]
        %v1354 = vld [vmem:[%s1 + $0x1330] sm:$0xff]
        %v1355 = vld [vmem:[%s1 + $0x1338] sm:$0xff]
        %v1356 = vld [vmem:[%s1 + $0x1340] sm:$0xff]
        %v1357 = vld [vmem:[%s1 + $0x1348] sm:$0xff]
        %v1358 = vld [vmem:[%s1 + $0x1350] sm:$0xff]
        %v1359 = vld [vmem:[%s1 + $0x1358] sm:$0xff]
        %v1360 = vld [vmem:[%s1 + $0x1360] sm:$0xff]
        %v1361 = vld [vmem:[%s1 + $0x1368] sm:$0xff]
        %v1362 = vld [vmem:[%s1 + $0x1370] sm:$0xff]
        %v1363 = vld [vmem:[%s1 + $0x1378] sm:$0xff]
        %v1364 = vld [vmem:[%s1 + $0x1380] sm:$0xff]
        %v1365 = vld [vmem:[%s1 + $0x1388] sm:$0xff]
        %v1366 = vld [vmem:[%s1 + $0x1390] sm:$0xff]
        %v1367 = vld [vmem:[%s1 + $0x1398] sm:$0xff]
        %v1368 = vld [vmem:[%s1 + $0x13a0] sm:$0xff]
        %v1369 = vld [vmem:[%s1 + $0x13a8] sm:$0xff]
        %v1370 = vld [vmem:[%s1 + $0x13b0] sm:$0xff]
        %v1371 = vld [vmem:[%s1 + $0x13b8] sm:$0xff]
        %v1372 = vld [vmem:[%s1 + $0x13c0] sm:$0xff]
        %v1373 = vld [vmem:[%s1 + $0x13c8] sm:$0xff]
        %v1374 = vld [vmem:[%s1 + $0x13d0] sm:$0xff]
        %v1375 = vld [vmem:[%s1 + $0x13d8] sm:$0xff]
        %v1376 = vld [vmem:[%s1 + $0x13e0] sm:$0xff]
        %v1377 = vld [vmem:[%s1 + $0x13e8] sm:$0xff]
        %v1378 = vld [vmem:[%s1 + $0x13f0] sm:$0xff]
        %v1379 = vld [vmem:[%s1 + $0x13f8] sm:$0xff]
        %v1380 = vld [vmem:[%s1 + $0x1400] sm:$0xff]
        %v1381 = vld [vmem:[%s1 + $0x1408] sm:$0xff]
        %v1382 = vld [vmem:[%s1 + $0x1410] sm:$0xff]
        %v1383 = vld [vmem:[%s1 + $0x1418] sm:$0xff]
        %v1384 = vld [vmem:[%s1 + $0x1420] sm:$0xff]
        %v1385 = vld [vmem:[%s1 + $0x1428] sm:$0xff]
        %v1386 = vld [vmem:[%s1 + $0x1430] sm:$0xff]
        %v1387 = vld [vmem:[%s1 + $0x1438] sm:$0xff]
        %v1388 = vld [vmem:[%s1 + $0x1440] sm:$0xff]
        %v1389 = vld [vmem:[%s1 + $0x1448] sm:$0xff]
        %v1390 = vld [vmem:[%s1 + $0x1450] sm:$0xff]
        %v1391 = vld [vmem:[%s1 + $0x1458] sm:$0xff]
        %v1392 = vld [vmem:[%s1 + $0x1460] sm:$0xff]
        %v1393 = vld [vmem:[%s1 + $0x1468] sm:$0xff]
        %v1394 = vld [vmem:[%s1 + $0x1470] sm:$0xff]
        %v1395 = vld [vmem:[%s1 + $0x1478] sm:$0xff]
        %v1396 = vld [vmem:[%s1 + $0x1480] sm:$0xff]
        %v1397 = vld [vmem:[%s1 + $0x1488] sm:$0xff]
        %v1398 = vld [vmem:[%s1 + $0x1490] sm:$0xff]
        %v1399 = vld [vmem:[%s1 + $0x1498] sm:$0xff]
        %v1400 = vld [vmem:[%s1 + $0x14a0] sm:$0xff]
        %v1401 = vld [vmem:[%s1 + $0x14a8] sm:$0xff]
        %v1402 = vld [vmem:[%s1 + $0x14b0] sm:$0xff]
        %v1403 = vld [vmem:[%s1 + $0x14b8] sm:$0xff]
        %v1404 = vld [vmem:[%s1 + $0x14c0] sm:$0xff]
        %v1405 = vld [vmem:[%s1 + $0x14c8] sm:$0xff]
        %v1406 = vld [vmem:[%s1 + $0x14d0] sm:$0xff]
        %v1407 = vld [vmem:[%s1 + $0x14d8] sm:$0xff]
        %v1408 = vld [vmem:[%s1 + $0x14e0] sm:$0xff]
        %v1409 = vld [vmem:[%s1 + $0x14e8] sm:$0xff]
        %v1410 = vld [vmem:[%s1 + $0x14f0] sm:$0xff]
        %v1411 = vld [vmem:[%s1 + $0x14f8] sm:$0xff]
        %v1412 = vld [vmem:[%s1 + $0x1500] sm:$0xff]
        %v1413 = vld [vmem:[%s1 + $0x1508] sm:$0xff]
        %v1414 = vld [vmem:[%s1 + $0x1510] sm:$0xff]
        %v1415 = vld [vmem:[%s1 + $0x1518] sm:$0xff]
        %v1416 = vld [vmem:[%s1 + $0x1520] sm:$0xff]
        %v1417 = vld [vmem:[%s1 + $0x1528] sm:$0xff]
        %v1418 = vld [vmem:[%s1 + $0x1530] sm:$0xff]
        %v1419 = vld [vmem:[%s1 + $0x1538] sm:$0xff]
        %v1420 = vld [vmem:[%s1 + $0x1540] sm:$0xff]
        %v1421 = vld [vmem:[%s1 + $0x1548] sm:$0xff]
        %v1422 = vld [vmem:[%s1 + $0x1550] sm:$0xff]
        %v1423 = vld [vmem:[%s1 + $0x1558] sm:$0xff]
        %v1424 = vld [vmem:[%s1 + $0x1560] sm:$0xff]
        %v1425 = vld [vmem:[%s1 + $0x1568] sm:$0xff]
        %v1426 = vld [vmem:[%s1 + $0x1570] sm:$0xff]
        %v1427 = vld [vmem:[%s1 + $0x1578] sm:$0xff]
        %v1428 = vld [vmem:[%s1 + $0x1580] sm:$0xff]
        %v1429 = vld [vmem:[%s1 + $0x1588] sm:$0xff]
        %v1430 = vld [vmem:[%s1 + $0x1590] sm:$0xff]
        %v1431 = vld [vmem:[%s1 + $0x1598] sm:$0xff]
        %v1432 = vld [vmem:[%s1 + $0x15a0] sm:$0xff]
        %v1433 = vld [vmem:[%s1 + $0x15a8] sm:$0xff]
        %v1434 = vld [vmem:[%s1 + $0x15b0] sm:$0xff]
        %v1435 = vld [vmem:[%s1 + $0x15b8] sm:$0xff]
        %v1436 = vld [vmem:[%s1 + $0x15c0] sm:$0xff]
        %v1437 = vld [vmem:[%s1 + $0x15c8] sm:$0xff]
        %v1438 = vld [vmem:[%s1 + $0x15d0] sm:$0xff]
        %v1439 = vld [vmem:[%s1 + $0x15d8] sm:$0xff]
        %v1440 = vld [vmem:[%s1 + $0x15e0] sm:$0xff]
        %v1441 = vld [vmem:[%s1 + $0x15e8] sm:$0xff]
        %v1442 = vld [vmem:[%s1 + $0x15f0] sm:$0xff]
        %v1443 = vld [vmem:[%s1 + $0x15f8] sm:$0xff]
        %v1444 = vld [vmem:[%s1 + $0x1600] sm:$0xff]
        %v1445 = vld [vmem:[%s1 + $0x1608] sm:$0xff]
        %v1446 = vld [vmem:[%s1 + $0x1610] sm:$0xff]
        %v1447 = vld [vmem:[%s1 + $0x1618] sm:$0xff]
        %v1448 = vld [vmem:[%s1 + $0x1620] sm:$0xff]
        %v1449 = vld [vmem:[%s1 + $0x1628] sm:$0xff]
        %v1450 = vld [vmem:[%s1 + $0x1630] sm:$0xff]
        %v1451 = vld [vmem:[%s1 + $0x1638] sm:$0xff]
        %v1452 = vld [vmem:[%s1 + $0x1640] sm:$0xff]
        %v1453 = vld [vmem:[%s1 + $0x1648] sm:$0xff]
        %v1454 = vld [vmem:[%s1 + $0x1650] sm:$0xff]
        %v1455 = vld [vmem:[%s1 + $0x1658] sm:$0xff]
        %v1456 = vld [vmem:[%s1 + $0x1660] sm:$0xff]
        %v1457 = vld [vmem:[%s1 + $0x1668] sm:$0xff]
        %v1458 = vld [vmem:[%s1 + $0x1670] sm:$0xff]
        %v1459 = vld [vmem:[%s1 + $0x1678] sm:$0xff]
        %v1460 = vld [vmem:[%s1 + $0x1680] sm:$0xff]
        %v1461 = vld [vmem:[%s1 + $0x1688] sm:$0xff]
        %v1462 = vld [vmem:[%s1 + $0x1690] sm:$0xff]
        %v1463 = vld [vmem:[%s1 + $0x1698] sm:$0xff]
        %v1464 = vld [vmem:[%s1 + $0x16a0] sm:$0xff]
        %v1465 = vld [vmem:[%s1 + $0x16a8] sm:$0xff]
        %v1466 = vld [vmem:[%s1 + $0x16b0] sm:$0xff]
        %v1467 = vld [vmem:[%s1 + $0x16b8] sm:$0xff]
        %v1468 = vld [vmem:[%s1 + $0x16c0] sm:$0xff]
        %v1469 = vld [vmem:[%s1 + $0x16c8] sm:$0xff]
        %v1470 = vld [vmem:[%s1 + $0x16d0] sm:$0xff]
        %v1471 = vld [vmem:[%s1 + $0x16d8] sm:$0xff]
        %v1472 = vld [vmem:[%s1 + $0x16e0] sm:$0xff]
        %v1473 = vld [vmem:[%s1 + $0x16e8] sm:$0xff]
        %v1474 = vld [vmem:[%s1 + $0x16f0] sm:$0xff]
        %v1475 = vld [vmem:[%s1 + $0x16f8] sm:$0xff]
        %v1476 = vld [vmem:[%s1 + $0x1700] sm:$0xff]
        %v1477 = vld [vmem:[%s1 + $0x1708] sm:$0xff]
        %v1478 = vld [vmem:[%s1 + $0x1710] sm:$0xff]
        %v1479 = vld [vmem:[%s1 + $0x1718] sm:$0xff]
        %v1480 = vld [vmem:[%s1 + $0x1720] sm:$0xff]
        %v1481 = vld [vmem:[%s1 + $0x1728] sm:$0xff]
        %v1482 = vld [vmem:[%s1 + $0x1730] sm:$0xff]
        %v1483 = vld [vmem:[%s1 + $0x1738] sm:$0xff]
        %v1484 = vld [vmem:[%s1 + $0x1740] sm:$0xff]
        %v1485 = vld [vmem:[%s1 + $0x1748] sm:$0xff]
        %v1486 = vld [vmem:[%s1 + $0x1750] sm:$0xff]
        %v1487 = vld [vmem:[%s1 + $0x1758] sm:$0xff]
        %v1488 = vld [vmem:[%s1 + $0x1760] sm:$0xff]
        %v1489 = vld [vmem:[%s1 + $0x1768] sm:$0xff]
        %v1490 = vld [vmem:[%s1 + $0x1770] sm:$0xff]
        %v1491 = vld [vmem:[%s1 + $0x1778] sm:$0xff]
        %v1492 = vld [vmem:[%s1 + $0x1780] sm:$0xff]
        %v1493 = vld [vmem:[%s1 + $0x1788] sm:$0xff]
        %v1494 = vld [vmem:[%s1 + $0x1790] sm:$0xff]
        %v1495 = vld [vmem:[%s1 + $0x1798] sm:$0xff]
        %v1496 = vld [vmem:[%s1 + $0x17a0] sm:$0xff]
        %v1497 = vld [vmem:[%s1 + $0x17a8] sm:$0xff]
        %v1498 = vld [vmem:[%s1 + $0x17b0] sm:$0xff]
        %v1499 = vld [vmem:[%s1 + $0x17b8] sm:$0xff]
        %v1500 = vld [vmem:[%s1 + $0x17c0] sm:$0xff]
        %v1501 = vld [vmem:[%s1 + $0x17c8] sm:$0xff]
        %v1502 = vld [vmem:[%s1 + $0x17d0] sm:$0xff]
        %v1503 = vld [vmem:[%s1 + $0x17d8] sm:$0xff]
        %v1504 = vld [vmem:[%s1 + $0x17e0] sm:$0xff]
        %v1505 = vld [vmem:[%s1 + $0x17e8] sm:$0xff]
        %v1506 = vld [vmem:[%s1 + $0x17f0] sm:$0xff]
        %v1507 = vld [vmem:[%s1 + $0x17f8] sm:$0xff]
        %v1508 = vld [vmem:[%s1 + $0x1800] sm:$0xff]
        %v1509 = vld [vmem:[%s1 + $0x1808] sm:$0xff]
        %v1510 = vld [vmem:[%s1 + $0x1810] sm:$0xff]
        %v1511 = vld [vmem:[%s1 + $0x1818] sm:$0xff]
        %v1512 = vld [vmem:[%s1 + $0x1820] sm:$0xff]
        %v1513 = vld [vmem:[%s1 + $0x1828] sm:$0xff]
        %v1514 = vld [vmem:[%s1 + $0x1830] sm:$0xff]
        %v1515 = vld [vmem:[%s1 + $0x1838] sm:$0xff]
        %v1516 = vld [vmem:[%s1 + $0x1840] sm:$0xff]
        %v1517 = vld [vmem:[%s1 + $0x1848] sm:$0xff]
        %v1518 = vld [vmem:[%s1 + $0x1850] sm:$0xff]
        %v1519 = vld [vmem:[%s1 + $0x1858] sm:$0xff]
        %v1520 = vld [vmem:[%s1 + $0x1860] sm:$0xff]
        %v1521 = vld [vmem:[%s1 + $0x1868] sm:$0xff]
        %v1522 = vld [vmem:[%s1 + $0x1870] sm:$0xff]
        %v1523 = vld [vmem:[%s1 + $0x1878] sm:$0xff]
        %v1524 = vld [vmem:[%s2] sm:$0xf]
        %v1526 = vlaneseq
        %v1527 = vshrl.u32 %v1526, 7
        %v1528 = vsub.s32 0, %v1527
        %v1529 = vrot.slane %v1524, %v1528
        %v1530 = vlaneseq
        %v1531 = vshrl.u32 %v1530, 7
        %v1532 = vsub.s32 1, %v1531
        %v1533 = vrot.slane %v1524, %v1532
        %v1534 = vlaneseq
        %v1535 = vshrl.u32 %v1534, 7
        %v1536 = vsub.s32 2, %v1535
        %v1537 = vrot.slane %v1524, %v1536
        %v1538 = vlaneseq
        %v1539 = vshrl.u32 %v1538, 7
        %v1540 = vsub.s32 3, %v1539
        %v1541 = vrot.slane %v1524, %v1540
        %v1578 = vcombine.low %v708, %v712
        %v1579 = vcombine.high %v708, %v712
        %v1580 = vcombine.low %v716, %v720
        %v1581 = vcombine.high %v716, %v720
        %v1582 = vcombine.low %v724, %v728
        %v1583 = vcombine.high %v724, %v728
        %v1584 = vcombine.low %v732, %v736
        %v1585 = vcombine.high %v732, %v736
        %v1587 = vunpack.c.l.s4 1966171168
        %v1588 = vunpack.c.0.s8 %v1587
        %v1589 = vlaneseq
        %v1590 = vshrl.u32 %v1589, 7
        %v1591 = vsub.s32 %v1588, %v1590
        %v1592 = vrot.slane %v1578, %v1591
        %v1594 = vunpack.c.l.s4 1966171168
        %v1595 = vunpack.c.0.s8 %v1594
        %v1596 = vlaneseq
        %v1597 = vshrl.u32 %v1596, 7
        %v1598 = vsub.s32 %v1595, %v1597
        %v1599 = vrot.slane %v1579, %v1598
        %v1601 = vunpack.c.l.s4 1966171168
        %v1602 = vunpack.c.0.s8 %v1601
        %v1603 = vlaneseq
        %v1604 = vshrl.u32 %v1603, 7
        %v1605 = vsub.s32 %v1602, %v1604
        %v1606 = vrot.slane %v1580, %v1605
        %v1608 = vunpack.c.l.s4 1966171168
        %v1609 = vunpack.c.0.s8 %v1608
        %v1610 = vlaneseq
        %v1611 = vshrl.u32 %v1610, 7
        %v1612 = vsub.s32 %v1609, %v1611
        %v1613 = vrot.slane %v1581, %v1612
        %v1615 = vunpack.c.l.s4 1966171168
        %v1616 = vunpack.c.0.s8 %v1615
        %v1617 = vlaneseq
        %v1618 = vshrl.u32 %v1617, 7
        %v1619 = vsub.s32 %v1616, %v1618
        %v1620 = vrot.slane %v1582, %v1619
        %v1622 = vunpack.c.l.s4 1966171168
        %v1623 = vunpack.c.0.s8 %v1622
        %v1624 = vlaneseq
        %v1625 = vshrl.u32 %v1624, 7
        %v1626 = vsub.s32 %v1623, %v1625
        %v1627 = vrot.slane %v1583, %v1626
        %v1629 = vunpack.c.l.s4 1966171168
        %v1630 = vunpack.c.0.s8 %v1629
        %v1631 = vlaneseq
        %v1632 = vshrl.u32 %v1631, 7
        %v1633 = vsub.s32 %v1630, %v1632
        %v1634 = vrot.slane %v1584, %v1633
        %v1636 = vunpack.c.l.s4 1966171168
        %v1637 = vunpack.c.0.s8 %v1636
        %v1638 = vlaneseq
        %v1639 = vshrl.u32 %v1638, 7
        %v1640 = vsub.s32 %v1637, %v1639
        %v1641 = vrot.slane %v1585, %v1640
        %v1642 = vcombine.low %v1592, %v1606
        %v1643 = vcombine.high %v1592, %v1606
        %v1644 = vcombine.low %v1599, %v1613
        %v1645 = vcombine.high %v1599, %v1613
        %v1646 = vcombine.low %v1620, %v1634
        %v1647 = vcombine.high %v1620, %v1634
        %v1648 = vcombine.low %v1627, %v1641
        %v1649 = vcombine.high %v1627, %v1641
        %v1651 = vunpack.c.l.s4 1966171168
        %v1652 = vunpack.c.0.s8 %v1651
        %v1653 = vlaneseq
        %v1654 = vshrl.u32 %v1653, 7
        %v1655 = vsub.s32 %v1652, %v1654
        %v1656 = vrot.slane %v1642, %v1655
        %v1658 = vunpack.c.l.s4 1966171168
        %v1659 = vunpack.c.0.s8 %v1658
        %v1660 = vlaneseq
        %v1661 = vshrl.u32 %v1660, 7
        %v1662 = vsub.s32 %v1659, %v1661
        %v1663 = vrot.slane %v1644, %v1662
        %v1665 = vunpack.c.l.s4 1966171168
        %v1666 = vunpack.c.0.s8 %v1665
        %v1667 = vlaneseq
        %v1668 = vshrl.u32 %v1667, 7
        %v1669 = vsub.s32 %v1666, %v1668
        %v1670 = vrot.slane %v1643, %v1669
        %v1672 = vunpack.c.l.s4 1966171168
        %v1673 = vunpack.c.0.s8 %v1672
        %v1674 = vlaneseq
        %v1675 = vshrl.u32 %v1674, 7
        %v1676 = vsub.s32 %v1673, %v1675
        %v1677 = vrot.slane %v1645, %v1676
        %v1679 = vunpack.c.l.s4 1966171168
        %v1680 = vunpack.c.0.s8 %v1679
        %v1681 = vlaneseq
        %v1682 = vshrl.u32 %v1681, 7
        %v1683 = vsub.s32 %v1680, %v1682
        %v1684 = vrot.slane %v1646, %v1683
        %v1686 = vunpack.c.l.s4 1966171168
        %v1687 = vunpack.c.0.s8 %v1686
        %v1688 = vlaneseq
        %v1689 = vshrl.u32 %v1688, 7
        %v1690 = vsub.s32 %v1687, %v1689
        %v1691 = vrot.slane %v1648, %v1690
        %v1693 = vunpack.c.l.s4 1966171168
        %v1694 = vunpack.c.0.s8 %v1693
        %v1695 = vlaneseq
        %v1696 = vshrl.u32 %v1695, 7
        %v1697 = vsub.s32 %v1694, %v1696
        %v1698 = vrot.slane %v1647, %v1697
        %v1700 = vunpack.c.l.s4 1966171168
        %v1701 = vunpack.c.0.s8 %v1700
        %v1702 = vlaneseq
        %v1703 = vshrl.u32 %v1702, 7
        %v1704 = vsub.s32 %v1701, %v1703
        %v1705 = vrot.slane %v1649, %v1704
        %v1706 = vcombine.low %v1656, %v1684
        %v1707 = vcombine.high %v1656, %v1684
        %v1708 = vcombine.low %v1663, %v1691
        %v1709 = vcombine.high %v1663, %v1691
        %v1710 = vcombine.low %v1670, %v1698
        %v1711 = vcombine.high %v1670, %v1698
        %v1712 = vcombine.low %v1677, %v1705
        %v1713 = vcombine.high %v1677, %v1705
        %v1714 = vcombine.low %v709, %v713
        %v1715 = vcombine.high %v709, %v713
        %v1716 = vcombine.low %v717, %v721
        %v1717 = vcombine.high %v717, %v721
        %v1718 = vcombine.low %v725, %v729
        %v1719 = vcombine.high %v725, %v729
        %v1720 = vcombine.low %v733, %v737
        %v1721 = vcombine.high %v733, %v737
        %v1723 = vunpack.c.l.s4 1966171168
        %v1724 = vunpack.c.0.s8 %v1723
        %v1725 = vlaneseq
        %v1726 = vshrl.u32 %v1725, 7
        %v1727 = vsub.s32 %v1724, %v1726
        %v1728 = vrot.slane %v1714, %v1727
        %v1730 = vunpack.c.l.s4 1966171168
        %v1731 = vunpack.c.0.s8 %v1730
        %v1732 = vlaneseq
        %v1733 = vshrl.u32 %v1732, 7
        %v1734 = vsub.s32 %v1731, %v1733
        %v1735 = vrot.slane %v1715, %v1734
        %v1737 = vunpack.c.l.s4 1966171168
        %v1738 = vunpack.c.0.s8 %v1737
        %v1739 = vlaneseq
        %v1740 = vshrl.u32 %v1739, 7
        %v1741 = vsub.s32 %v1738, %v1740
        %v1742 = vrot.slane %v1716, %v1741
        %v1744 = vunpack.c.l.s4 1966171168
        %v1745 = vunpack.c.0.s8 %v1744
        %v1746 = vlaneseq
        %v1747 = vshrl.u32 %v1746, 7
        %v1748 = vsub.s32 %v1745, %v1747
        %v1749 = vrot.slane %v1717, %v1748
        %v1751 = vunpack.c.l.s4 1966171168
        %v1752 = vunpack.c.0.s8 %v1751
        %v1753 = vlaneseq
        %v1754 = vshrl.u32 %v1753, 7
        %v1755 = vsub.s32 %v1752, %v1754
        %v1756 = vrot.slane %v1718, %v1755
        %v1758 = vunpack.c.l.s4 1966171168
        %v1759 = vunpack.c.0.s8 %v1758
        %v1760 = vlaneseq
        %v1761 = vshrl.u32 %v1760, 7
        %v1762 = vsub.s32 %v1759, %v1761
        %v1763 = vrot.slane %v1719, %v1762
        %v1765 = vunpack.c.l.s4 1966171168
        %v1766 = vunpack.c.0.s8 %v1765
        %v1767 = vlaneseq
        %v1768 = vshrl.u32 %v1767, 7
        %v1769 = vsub.s32 %v1766, %v1768
        %v1770 = vrot.slane %v1720, %v1769
        %v1772 = vunpack.c.l.s4 1966171168
        %v1773 = vunpack.c.0.s8 %v1772
        %v1774 = vlaneseq
        %v1775 = vshrl.u32 %v1774, 7
        %v1776 = vsub.s32 %v1773, %v1775
        %v1777 = vrot.slane %v1721, %v1776
        %v1778 = vcombine.low %v1728, %v1742
        %v1779 = vcombine.high %v1728, %v1742
        %v1780 = vcombine.low %v1735, %v1749
        %v1781 = vcombine.high %v1735, %v1749
        %v1782 = vcombine.low %v1756, %v1770
        %v1783 = vcombine.high %v1756, %v1770
        %v1784 = vcombine.low %v1763, %v1777
        %v1785 = vcombine.high %v1763, %v1777
        %v1787 = vunpack.c.l.s4 1966171168
        %v1788 = vunpack.c.0.s8 %v1787
        %v1789 = vlaneseq
        %v1790 = vshrl.u32 %v1789, 7
        %v1791 = vsub.s32 %v1788, %v1790
        %v1792 = vrot.slane %v1778, %v1791
        %v1794 = vunpack.c.l.s4 1966171168
        %v1795 = vunpack.c.0.s8 %v1794
        %v1796 = vlaneseq
        %v1797 = vshrl.u32 %v1796, 7
        %v1798 = vsub.s32 %v1795, %v1797
        %v1799 = vrot.slane %v1780, %v1798
        %v1801 = vunpack.c.l.s4 1966171168
        %v1802 = vunpack.c.0.s8 %v1801
        %v1803 = vlaneseq
        %v1804 = vshrl.u32 %v1803, 7
        %v1805 = vsub.s32 %v1802, %v1804
        %v1806 = vrot.slane %v1779, %v1805
        %v1808 = vunpack.c.l.s4 1966171168
        %v1809 = vunpack.c.0.s8 %v1808
        %v1810 = vlaneseq
        %v1811 = vshrl.u32 %v1810, 7
        %v1812 = vsub.s32 %v1809, %v1811
        %v1813 = vrot.slane %v1781, %v1812
        %v1815 = vunpack.c.l.s4 1966171168
        %v1816 = vunpack.c.0.s8 %v1815
        %v1817 = vlaneseq
        %v1818 = vshrl.u32 %v1817, 7
        %v1819 = vsub.s32 %v1816, %v1818
        %v1820 = vrot.slane %v1782, %v1819
        %v1822 = vunpack.c.l.s4 1966171168
        %v1823 = vunpack.c.0.s8 %v1822
        %v1824 = vlaneseq
        %v1825 = vshrl.u32 %v1824, 7
        %v1826 = vsub.s32 %v1823, %v1825
        %v1827 = vrot.slane %v1784, %v1826
        %v1829 = vunpack.c.l.s4 1966171168
        %v1830 = vunpack.c.0.s8 %v1829
        %v1831 = vlaneseq
        %v1832 = vshrl.u32 %v1831, 7
        %v1833 = vsub.s32 %v1830, %v1832
        %v1834 = vrot.slane %v1783, %v1833
        %v1836 = vunpack.c.l.s4 1966171168
        %v1837 = vunpack.c.0.s8 %v1836
        %v1838 = vlaneseq
        %v1839 = vshrl.u32 %v1838, 7
        %v1840 = vsub.s32 %v1837, %v1839
        %v1841 = vrot.slane %v1785, %v1840
        %v1842 = vcombine.low %v1792, %v1820
        %v1843 = vcombine.high %v1792, %v1820
        %v1844 = vcombine.low %v1799, %v1827
        %v1845 = vcombine.high %v1799, %v1827
        %v1846 = vcombine.low %v1806, %v1834
        %v1847 = vcombine.high %v1806, %v1834
        %v1848 = vcombine.low %v1813, %v1841
        %v1849 = vcombine.high %v1813, %v1841
        %v1850 = vcombine.low %v710, %v714
        %v1851 = vcombine.high %v710, %v714
        %v1852 = vcombine.low %v718, %v722
        %v1853 = vcombine.high %v718, %v722
        %v1854 = vcombine.low %v726, %v730
        %v1855 = vcombine.high %v726, %v730
        %v1856 = vcombine.low %v734, %v738
        %v1857 = vcombine.high %v734, %v738
        %v1859 = vunpack.c.l.s4 1966171168
        %v1860 = vunpack.c.0.s8 %v1859
        %v1861 = vlaneseq
        %v1862 = vshrl.u32 %v1861, 7
        %v1863 = vsub.s32 %v1860, %v1862
        %v1864 = vrot.slane %v1850, %v1863
        %v1866 = vunpack.c.l.s4 1966171168
        %v1867 = vunpack.c.0.s8 %v1866
        %v1868 = vlaneseq
        %v1869 = vshrl.u32 %v1868, 7
        %v1870 = vsub.s32 %v1867, %v1869
        %v1871 = vrot.slane %v1851, %v1870
        %v1873 = vunpack.c.l.s4 1966171168
        %v1874 = vunpack.c.0.s8 %v1873
        %v1875 = vlaneseq
        %v1876 = vshrl.u32 %v1875, 7
        %v1877 = vsub.s32 %v1874, %v1876
        %v1878 = vrot.slane %v1852, %v1877
        %v1880 = vunpack.c.l.s4 1966171168
        %v1881 = vunpack.c.0.s8 %v1880
        %v1882 = vlaneseq
        %v1883 = vshrl.u32 %v1882, 7
        %v1884 = vsub.s32 %v1881, %v1883
        %v1885 = vrot.slane %v1853, %v1884
        %v1887 = vunpack.c.l.s4 1966171168
        %v1888 = vunpack.c.0.s8 %v1887
        %v1889 = vlaneseq
        %v1890 = vshrl.u32 %v1889, 7
        %v1891 = vsub.s32 %v1888, %v1890
        %v1892 = vrot.slane %v1854, %v1891
        %v1894 = vunpack.c.l.s4 1966171168
        %v1895 = vunpack.c.0.s8 %v1894
        %v1896 = vlaneseq
        %v1897 = vshrl.u32 %v1896, 7
        %v1898 = vsub.s32 %v1895, %v1897
        %v1899 = vrot.slane %v1855, %v1898
        %v1901 = vunpack.c.l.s4 1966171168
        %v1902 = vunpack.c.0.s8 %v1901
        %v1903 = vlaneseq
        %v1904 = vshrl.u32 %v1903, 7
        %v1905 = vsub.s32 %v1902, %v1904
        %v1906 = vrot.slane %v1856, %v1905
        %v1908 = vunpack.c.l.s4 1966171168
        %v1909 = vunpack.c.0.s8 %v1908
        %v1910 = vlaneseq
        %v1911 = vshrl.u32 %v1910, 7
        %v1912 = vsub.s32 %v1909, %v1911
        %v1913 = vrot.slane %v1857, %v1912
        %v1914 = vcombine.low %v1864, %v1878
        %v1915 = vcombine.high %v1864, %v1878
        %v1916 = vcombine.low %v1871, %v1885
        %v1917 = vcombine.high %v1871, %v1885
        %v1918 = vcombine.low %v1892, %v1906
        %v1919 = vcombine.high %v1892, %v1906
        %v1920 = vcombine.low %v1899, %v1913
        %v1921 = vcombine.high %v1899, %v1913
        %v1923 = vunpack.c.l.s4 1966171168
        %v1924 = vunpack.c.0.s8 %v1923
        %v1925 = vlaneseq
        %v1926 = vshrl.u32 %v1925, 7
        %v1927 = vsub.s32 %v1924, %v1926
        %v1928 = vrot.slane %v1914, %v1927
        %v1930 = vunpack.c.l.s4 1966171168
        %v1931 = vunpack.c.0.s8 %v1930
        %v1932 = vlaneseq
        %v1933 = vshrl.u32 %v1932, 7
        %v1934 = vsub.s32 %v1931, %v1933
        %v1935 = vrot.slane %v1916, %v1934
        %v1937 = vunpack.c.l.s4 1966171168
        %v1938 = vunpack.c.0.s8 %v1937
        %v1939 = vlaneseq
        %v1940 = vshrl.u32 %v1939, 7
        %v1941 = vsub.s32 %v1938, %v1940
        %v1942 = vrot.slane %v1915, %v1941
        %v1944 = vunpack.c.l.s4 1966171168
        %v1945 = vunpack.c.0.s8 %v1944
        %v1946 = vlaneseq
        %v1947 = vshrl.u32 %v1946, 7
        %v1948 = vsub.s32 %v1945, %v1947
        %v1949 = vrot.slane %v1917, %v1948
        %v1951 = vunpack.c.l.s4 1966171168
        %v1952 = vunpack.c.0.s8 %v1951
        %v1953 = vlaneseq
        %v1954 = vshrl.u32 %v1953, 7
        %v1955 = vsub.s32 %v1952, %v1954
        %v1956 = vrot.slane %v1918, %v1955
        %v1958 = vunpack.c.l.s4 1966171168
        %v1959 = vunpack.c.0.s8 %v1958
        %v1960 = vlaneseq
        %v1961 = vshrl.u32 %v1960, 7
        %v1962 = vsub.s32 %v1959, %v1961
        %v1963 = vrot.slane %v1920, %v1962
        %v1965 = vunpack.c.l.s4 1966171168
        %v1966 = vunpack.c.0.s8 %v1965
        %v1967 = vlaneseq
        %v1968 = vshrl.u32 %v1967, 7
        %v1969 = vsub.s32 %v1966, %v1968
        %v1970 = vrot.slane %v1919, %v1969
        %v1972 = vunpack.c.l.s4 1966171168
        %v1973 = vunpack.c.0.s8 %v1972
        %v1974 = vlaneseq
        %v1975 = vshrl.u32 %v1974, 7
        %v1976 = vsub.s32 %v1973, %v1975
        %v1977 = vrot.slane %v1921, %v1976
        %v1978 = vcombine.low %v1928, %v1956
        %v1979 = vcombine.high %v1928, %v1956
        %v1980 = vcombine.low %v1935, %v1963
        %v1981 = vcombine.high %v1935, %v1963
        %v1982 = vcombine.low %v1942, %v1970
        %v1983 = vcombine.high %v1942, %v1970
        %v1984 = vcombine.low %v1949, %v1977
        %v1985 = vcombine.high %v1949, %v1977
        %v1986 = vcombine.low %v711, %v715
        %v1987 = vcombine.low %v719, %v723
        %v1988 = vcombine.low %v727, %v731
        %v1989 = vcombine.low %v735, %v739
        %v1991 = vunpack.c.l.s4 1966171168
        %v1992 = vunpack.c.0.s8 %v1991
        %v1993 = vlaneseq
        %v1994 = vshrl.u32 %v1993, 7
        %v1995 = vsub.s32 %v1992, %v1994
        %v1996 = vrot.slane %v1986, %v1995
        %v1998 = vunpack.c.l.s4 1966171168
        %v1999 = vunpack.c.0.s8 %v1998
        %v2000 = vlaneseq
        %v2001 = vshrl.u32 %v2000, 7
        %v2002 = vsub.s32 %v1999, %v2001
        %v2003 = vrot.slane %v1987, %v2002
        %v2005 = vunpack.c.l.s4 1966171168
        %v2006 = vunpack.c.0.s8 %v2005
        %v2007 = vlaneseq
        %v2008 = vshrl.u32 %v2007, 7
        %v2009 = vsub.s32 %v2006, %v2008
        %v2010 = vrot.slane %v1988, %v2009
        %v2012 = vunpack.c.l.s4 1966171168
        %v2013 = vunpack.c.0.s8 %v2012
        %v2014 = vlaneseq
        %v2015 = vshrl.u32 %v2014, 7
        %v2016 = vsub.s32 %v2013, %v2015
        %v2017 = vrot.slane %v1989, %v2016
        %v2018 = vcombine.low %v1996, %v2003
        %v2019 = vcombine.low %v2010, %v2017
        %v2021 = vunpack.c.l.s4 1966171168
        %v2022 = vunpack.c.0.s8 %v2021
        %v2023 = vlaneseq
        %v2024 = vshrl.u32 %v2023, 7
        %v2025 = vsub.s32 %v2022, %v2024
        %v2026 = vrot.slane %v2018, %v2025
        %v2028 = vunpack.c.l.s4 1966171168
        %v2029 = vunpack.c.0.s8 %v2028
        %v2030 = vlaneseq
        %v2031 = vshrl.u32 %v2030, 7
        %v2032 = vsub.s32 %v2029, %v2031
        %v2033 = vrot.slane %v2019, %v2032
        %v2034 = vcombine.low %v2026, %v2033
        %v2843 = vunpack.c.l.b16 %v740
        %v2844 = vunpack.c.h.b16 %v740
        %v2845 = vunpack.c.l.b16 %v741
        %v2846 = vunpack.c.h.b16 %v741
        %v2847 = vunpack.c.l.b16 %v742
        %v2848 = vunpack.c.h.b16 %v742
        %v2849 = vunpack.c.l.b16 %v743
        %v2850 = vunpack.c.h.b16 %v743
        %v2851 = vunpack.c.l.b16 %v744
        %v2852 = vunpack.c.h.b16 %v744
        %v2853 = vunpack.c.l.b16 %v745
        %v2854 = vunpack.c.h.b16 %v745
        %v2855 = vunpack.c.l.b16 %v746
        %v2856 = vunpack.c.h.b16 %v746
        %v2857 = vunpack.c.l.b16 %v747
        %v2858 = vunpack.c.h.b16 %v747
        %v2859 = vunpack.c.l.b16 %v748
        %v2860 = vunpack.c.h.b16 %v748
        %v2861 = vunpack.c.l.b16 %v749
        %v2862 = vunpack.c.h.b16 %v749
        %v2863 = vunpack.c.l.b16 %v750
        %v2864 = vunpack.c.h.b16 %v750
        %v2865 = vunpack.c.l.b16 %v751
        %v2866 = vunpack.c.h.b16 %v751
        %v2867 = vunpack.c.l.b16 %v752
        %v2868 = vunpack.c.h.b16 %v752
        %v2869 = vunpack.c.l.b16 %v753
        %v2870 = vunpack.c.h.b16 %v753
        %v2871 = vunpack.c.l.b16 %v754
        %v2872 = vunpack.c.h.b16 %v754
        %v2873 = vunpack.c.l.b16 %v755
        %v2874 = vunpack.c.h.b16 %v755
        %v2875 = vunpack.c.l.b16 %v756
        %v2876 = vunpack.c.h.b16 %v756
        %v2877 = vunpack.c.l.b16 %v757
        %v2878 = vunpack.c.h.b16 %v757
        %v2879 = vunpack.c.l.b16 %v758
        %v2880 = vunpack.c.h.b16 %v758
        %v2881 = vunpack.c.l.b16 %v759
        %v2882 = vunpack.c.h.b16 %v759
        %v2883 = vunpack.c.l.b16 %v760
        %v2884 = vunpack.c.h.b16 %v760
        %v2885 = vunpack.c.l.b16 %v761
        %v2886 = vunpack.c.h.b16 %v761
        %v2887 = vunpack.c.l.b16 %v762
        %v2888 = vunpack.c.h.b16 %v762
        %v2889 = vunpack.c.l.b16 %v763
        %v2890 = vunpack.c.h.b16 %v763
        %v2891 = vunpack.c.l.b16 %v764
        %v2892 = vunpack.c.h.b16 %v764
        %v2893 = vunpack.c.l.b16 %v765
        %v2894 = vunpack.c.h.b16 %v765
        %v2895 = vunpack.c.l.b16 %v766
        %v2896 = vunpack.c.h.b16 %v766
        %v2897 = vunpack.c.l.b16 %v767
        %v2898 = vunpack.c.h.b16 %v767
        %v2899 = vunpack.c.l.b16 %v768
        %v2900 = vunpack.c.h.b16 %v768
        %v2901 = vunpack.c.l.b16 %v769
        %v2902 = vunpack.c.h.b16 %v769
        %v2903 = vunpack.c.l.b16 %v770
        %v2904 = vunpack.c.h.b16 %v770
        %v2905 = vunpack.c.l.b16 %v771
        %v2906 = vunpack.c.h.b16 %v771
        %v2907 = vunpack.c.l.b16 %v772
        %v2908 = vunpack.c.h.b16 %v772
        %v2909 = vunpack.c.l.b16 %v773
        %v2910 = vunpack.c.h.b16 %v773
        %v2911 = vunpack.c.l.b16 %v774
        %v2912 = vunpack.c.h.b16 %v774
        %v2913 = vunpack.c.l.b16 %v775
        %v2914 = vunpack.c.h.b16 %v775
        %v2915 = vunpack.c.l.b16 %v776
        %v2916 = vunpack.c.h.b16 %v776
        %v2917 = vunpack.c.l.b16 %v777
        %v2918 = vunpack.c.h.b16 %v777
        %v2919 = vunpack.c.l.b16 %v778
        %v2920 = vunpack.c.h.b16 %v778
        %v2921 = vunpack.c.l.b16 %v779
        %v2922 = vunpack.c.h.b16 %v779
        %v2923 = vunpack.c.l.b16 %v780
        %v2924 = vunpack.c.h.b16 %v780
        %v2925 = vunpack.c.l.b16 %v781
        %v2926 = vunpack.c.h.b16 %v781
        %v2927 = vunpack.c.l.b16 %v782
        %v2928 = vunpack.c.h.b16 %v782
        %v2929 = vunpack.c.l.b16 %v783
        %v2930 = vunpack.c.h.b16 %v783
        %v2931 = vunpack.c.l.b16 %v784
        %v2932 = vunpack.c.h.b16 %v784
        %v2933 = vunpack.c.l.b16 %v785
        %v2934 = vunpack.c.h.b16 %v785
        %v2935 = vunpack.c.l.b16 %v786
        %v2936 = vunpack.c.h.b16 %v786
        %v2937 = vunpack.c.l.b16 %v787
        %v2938 = vunpack.c.h.b16 %v787
        %v2939 = vunpack.c.l.b16 %v788
        %v2940 = vunpack.c.h.b16 %v788
        %v2941 = vunpack.c.l.b16 %v789
        %v2942 = vunpack.c.h.b16 %v789
        %v2943 = vunpack.c.l.b16 %v790
        %v2944 = vunpack.c.h.b16 %v790
        %v2945 = vunpack.c.l.b16 %v791
        %v2946 = vunpack.c.h.b16 %v791
        %v2947 = vunpack.c.l.b16 %v792
        %v2948 = vunpack.c.h.b16 %v792
        %v2949 = vunpack.c.l.b16 %v793
        %v2950 = vunpack.c.h.b16 %v793
        %v2951 = vunpack.c.l.b16 %v794
        %v2952 = vunpack.c.h.b16 %v794
        %v2953 = vunpack.c.l.b16 %v795
        %v2954 = vunpack.c.h.b16 %v795
        %v2955 = vunpack.c.l.b16 %v796
        %v2956 = vunpack.c.h.b16 %v796
        %v2957 = vunpack.c.l.b16 %v797
        %v2958 = vunpack.c.h.b16 %v797
        %v2959 = vunpack.c.l.b16 %v798
        %v2960 = vunpack.c.h.b16 %v798
        %v2961 = vunpack.c.l.b16 %v799
        %v2962 = vunpack.c.h.b16 %v799
        %v2963 = vunpack.c.l.b16 %v800
        %v2964 = vunpack.c.h.b16 %v800
        %v2965 = vunpack.c.l.b16 %v801
        %v2966 = vunpack.c.h.b16 %v801
        %v2967 = vunpack.c.l.b16 %v802
        %v2968 = vunpack.c.h.b16 %v802
        %v2969 = vunpack.c.l.b16 %v803
        %v2970 = vunpack.c.h.b16 %v803
        %v2971 = vunpack.c.l.b16 %v804
        %v2972 = vunpack.c.h.b16 %v804
        %v2973 = vunpack.c.l.b16 %v805
        %v2974 = vunpack.c.h.b16 %v805
        %v2975 = vunpack.c.l.b16 %v806
        %v2976 = vunpack.c.h.b16 %v806
        %v2977 = vunpack.c.l.b16 %v807
        %v2978 = vunpack.c.h.b16 %v807
        %v2979 = vunpack.c.l.b16 %v808
        %v2980 = vunpack.c.h.b16 %v808
        %v2981 = vunpack.c.l.b16 %v809
        %v2982 = vunpack.c.h.b16 %v809
        %v2983 = vunpack.c.l.b16 %v810
        %v2984 = vunpack.c.h.b16 %v810
        %v2985 = vunpack.c.l.b16 %v811
        %v2986 = vunpack.c.h.b16 %v811
        %v2987 = vunpack.c.l.b16 %v812
        %v2988 = vunpack.c.h.b16 %v812
        %v2989 = vunpack.c.l.b16 %v813
        %v2990 = vunpack.c.h.b16 %v813
        %v2991 = vunpack.c.l.b16 %v814
        %v2992 = vunpack.c.h.b16 %v814
        %v2993 = vunpack.c.l.b16 %v815
        %v2994 = vunpack.c.h.b16 %v815
        %v2995 = vunpack.c.l.b16 %v816
        %v2996 = vunpack.c.h.b16 %v816
        %v2997 = vunpack.c.l.b16 %v817
        %v2998 = vunpack.c.h.b16 %v817
        %v2999 = vunpack.c.l.b16 %v818
        %v3000 = vunpack.c.h.b16 %v818
        %v3001 = vunpack.c.l.b16 %v819
        %v3002 = vunpack.c.h.b16 %v819
        %v3003 = vunpack.c.l.b16 %v820
        %v3004 = vunpack.c.h.b16 %v820
        %v3005 = vunpack.c.l.b16 %v821
        %v3006 = vunpack.c.h.b16 %v821
        %v3007 = vunpack.c.l.b16 %v822
        %v3008 = vunpack.c.h.b16 %v822
        %v3009 = vunpack.c.l.b16 %v823
        %v3010 = vunpack.c.h.b16 %v823
        %v3011 = vunpack.c.l.b16 %v824
        %v3012 = vunpack.c.h.b16 %v824
        %v3013 = vunpack.c.l.b16 %v825
        %v3014 = vunpack.c.h.b16 %v825
        %v3015 = vunpack.c.l.b16 %v826
        %v3016 = vunpack.c.h.b16 %v826
        %v3017 = vunpack.c.l.b16 %v827
        %v3018 = vunpack.c.h.b16 %v827
        %v3019 = vunpack.c.l.b16 %v828
        %v3020 = vunpack.c.h.b16 %v828
        %v3021 = vunpack.c.l.b16 %v829
        %v3022 = vunpack.c.h.b16 %v829
        %v3023 = vunpack.c.l.b16 %v830
        %v3024 = vunpack.c.h.b16 %v830
        %v3025 = vunpack.c.l.b16 %v831
        %v3026 = vunpack.c.h.b16 %v831
        %v3027 = vunpack.c.l.b16 %v832
        %v3028 = vunpack.c.h.b16 %v832
        %v3029 = vunpack.c.l.b16 %v833
        %v3030 = vunpack.c.h.b16 %v833
        %v3031 = vunpack.c.l.b16 %v834
        %v3032 = vunpack.c.h.b16 %v834
        %v3033 = vunpack.c.l.b16 %v835
        %v3034 = vunpack.c.h.b16 %v835
        %v3035 = vunpack.c.l.b16 %v836
        %v3036 = vunpack.c.h.b16 %v836
        %v3037 = vunpack.c.l.b16 %v837
        %v3038 = vunpack.c.h.b16 %v837
        %v3039 = vunpack.c.l.b16 %v838
        %v3040 = vunpack.c.h.b16 %v838
        %v3041 = vunpack.c.l.b16 %v839
        %v3042 = vunpack.c.h.b16 %v839
        %v3043 = vunpack.c.l.b16 %v840
        %v3044 = vunpack.c.h.b16 %v840
        %v3045 = vunpack.c.l.b16 %v841
        %v3046 = vunpack.c.h.b16 %v841
        %v3047 = vunpack.c.l.b16 %v842
        %v3048 = vunpack.c.h.b16 %v842
        %v3049 = vunpack.c.l.b16 %v843
        %v3050 = vunpack.c.h.b16 %v843
        %v3051 = vunpack.c.l.b16 %v844
        %v3052 = vunpack.c.h.b16 %v844
        %v3053 = vunpack.c.l.b16 %v845
        %v3054 = vunpack.c.h.b16 %v845
        %v3055 = vunpack.c.l.b16 %v846
        %v3056 = vunpack.c.h.b16 %v846
        %v3057 = vunpack.c.l.b16 %v847
        %v3058 = vunpack.c.h.b16 %v847
        %v3059 = vunpack.c.l.b16 %v848
        %v3060 = vunpack.c.h.b16 %v848
        %v3061 = vunpack.c.l.b16 %v849
        %v3062 = vunpack.c.h.b16 %v849
        %v3063 = vunpack.c.l.b16 %v850
        %v3064 = vunpack.c.h.b16 %v850
        %v3065 = vunpack.c.l.b16 %v851
        %v3066 = vunpack.c.h.b16 %v851
        %v3067 = vunpack.c.l.b16 %v852
        %v3068 = vunpack.c.h.b16 %v852
        %v3069 = vunpack.c.l.b16 %v853
        %v3070 = vunpack.c.h.b16 %v853
        %v3071 = vunpack.c.l.b16 %v854
        %v3072 = vunpack.c.h.b16 %v854
        %v3073 = vunpack.c.l.b16 %v855
        %v3074 = vunpack.c.h.b16 %v855
        %v3075 = vunpack.c.l.b16 %v856
        %v3076 = vunpack.c.h.b16 %v856
        %v3077 = vunpack.c.l.b16 %v857
        %v3078 = vunpack.c.h.b16 %v857
        %v3079 = vunpack.c.l.b16 %v858
        %v3080 = vunpack.c.h.b16 %v858
        %v3081 = vunpack.c.l.b16 %v859
        %v3082 = vunpack.c.h.b16 %v859
        %v3083 = vunpack.c.l.b16 %v860
        %v3084 = vunpack.c.h.b16 %v860
        %v3085 = vunpack.c.l.b16 %v861
        %v3086 = vunpack.c.h.b16 %v861
        %v3087 = vunpack.c.l.b16 %v862
        %v3088 = vunpack.c.h.b16 %v862
        %v3089 = vunpack.c.l.b16 %v863
        %v3090 = vunpack.c.h.b16 %v863
        %v3091 = vunpack.c.l.b16 %v864
        %v3092 = vunpack.c.h.b16 %v864
        %v3093 = vunpack.c.l.b16 %v865
        %v3094 = vunpack.c.h.b16 %v865
        %v3095 = vunpack.c.l.b16 %v866
        %v3096 = vunpack.c.h.b16 %v866
        %v3097 = vunpack.c.l.b16 %v867
        %v3098 = vunpack.c.h.b16 %v867
        %v3099 = vunpack.c.l.b16 %v868
        %v3100 = vunpack.c.h.b16 %v868
        %v3101 = vunpack.c.l.b16 %v869
        %v3102 = vunpack.c.h.b16 %v869
        %v3103 = vunpack.c.l.b16 %v870
        %v3104 = vunpack.c.h.b16 %v870
        %v3105 = vunpack.c.l.b16 %v871
        %v3106 = vunpack.c.h.b16 %v871
        %v3107 = vunpack.c.l.b16 %v872
        %v3108 = vunpack.c.h.b16 %v872
        %v3109 = vunpack.c.l.b16 %v873
        %v3110 = vunpack.c.h.b16 %v873
        %v3111 = vunpack.c.l.b16 %v874
        %v3112 = vunpack.c.h.b16 %v874
        %v3113 = vunpack.c.l.b16 %v875
        %v3114 = vunpack.c.h.b16 %v875
        %v3115 = vunpack.c.l.b16 %v876
        %v3116 = vunpack.c.h.b16 %v876
        %v3117 = vunpack.c.l.b16 %v877
        %v3118 = vunpack.c.h.b16 %v877
        %v3119 = vunpack.c.l.b16 %v878
        %v3120 = vunpack.c.h.b16 %v878
        %v3121 = vunpack.c.l.b16 %v879
        %v3122 = vunpack.c.h.b16 %v879
        %v3123 = vunpack.c.l.b16 %v880
        %v3124 = vunpack.c.h.b16 %v880
        %v3125 = vunpack.c.l.b16 %v881
        %v3126 = vunpack.c.h.b16 %v881
        %v3127 = vunpack.c.l.b16 %v882
        %v3128 = vunpack.c.h.b16 %v882
        %v3129 = vunpack.c.l.b16 %v883
        %v3130 = vunpack.c.h.b16 %v883
        %v3131 = vunpack.c.l.b16 %v884
        %v3132 = vunpack.c.h.b16 %v884
        %v3133 = vunpack.c.l.b16 %v885
        %v3134 = vunpack.c.h.b16 %v885
        %v3135 = vunpack.c.l.b16 %v886
        %v3136 = vunpack.c.h.b16 %v886
        %v3137 = vunpack.c.l.b16 %v887
        %v3138 = vunpack.c.h.b16 %v887
        %v3139 = vunpack.c.l.b16 %v888
        %v3140 = vunpack.c.h.b16 %v888
        %v3141 = vunpack.c.l.b16 %v889
        %v3142 = vunpack.c.h.b16 %v889
        %v3143 = vunpack.c.l.b16 %v890
        %v3144 = vunpack.c.h.b16 %v890
        %v3145 = vunpack.c.l.b16 %v891
        %v3146 = vunpack.c.h.b16 %v891
        %v3147 = vunpack.c.l.b16 %v892
        %v3148 = vunpack.c.h.b16 %v892
        %v3149 = vunpack.c.l.b16 %v893
        %v3150 = vunpack.c.h.b16 %v893
        %v3151 = vunpack.c.l.b16 %v894
        %v3152 = vunpack.c.h.b16 %v894
        %v3153 = vunpack.c.l.b16 %v895
        %v3154 = vunpack.c.h.b16 %v895
        %v3155 = vunpack.c.l.b16 %v896
        %v3156 = vunpack.c.h.b16 %v896
        %v3157 = vunpack.c.l.b16 %v897
        %v3158 = vunpack.c.h.b16 %v897
        %v3159 = vunpack.c.l.b16 %v898
        %v3160 = vunpack.c.h.b16 %v898
        %v3161 = vunpack.c.l.b16 %v899
        %v3162 = vunpack.c.h.b16 %v899
        %v3163 = vunpack.c.l.b16 %v900
        %v3164 = vunpack.c.h.b16 %v900
        %v3165 = vunpack.c.l.b16 %v901
        %v3166 = vunpack.c.h.b16 %v901
        %v3167 = vunpack.c.l.b16 %v902
        %v3168 = vunpack.c.h.b16 %v902
        %v3169 = vunpack.c.l.b16 %v903
        %v3170 = vunpack.c.h.b16 %v903
        %v3171 = vunpack.c.l.b16 %v904
        %v3172 = vunpack.c.h.b16 %v904
        %v3173 = vunpack.c.l.b16 %v905
        %v3174 = vunpack.c.h.b16 %v905
        %v3175 = vunpack.c.l.b16 %v906
        %v3176 = vunpack.c.h.b16 %v906
        %v3177 = vunpack.c.l.b16 %v907
        %v3178 = vunpack.c.h.b16 %v907
        %v3179 = vunpack.c.l.b16 %v908
        %v3180 = vunpack.c.h.b16 %v908
        %v3181 = vunpack.c.l.b16 %v909
        %v3182 = vunpack.c.h.b16 %v909
        %v3183 = vunpack.c.l.b16 %v910
        %v3184 = vunpack.c.h.b16 %v910
        %v3185 = vunpack.c.l.b16 %v911
        %v3186 = vunpack.c.h.b16 %v911
        %v3187 = vunpack.c.l.b16 %v912
        %v3188 = vunpack.c.h.b16 %v912
        %v3189 = vunpack.c.l.b16 %v913
        %v3190 = vunpack.c.h.b16 %v913
        %v3191 = vunpack.c.l.b16 %v914
        %v3192 = vunpack.c.h.b16 %v914
        %v3193 = vunpack.c.l.b16 %v915
        %v3194 = vunpack.c.h.b16 %v915
        %v3195 = vunpack.c.l.b16 %v916
        %v3196 = vunpack.c.h.b16 %v916
        %v3197 = vunpack.c.l.b16 %v917
        %v3198 = vunpack.c.h.b16 %v917
        %v3199 = vunpack.c.l.b16 %v918
        %v3200 = vunpack.c.h.b16 %v918
        %v3201 = vunpack.c.l.b16 %v919
        %v3202 = vunpack.c.h.b16 %v919
        %v3203 = vunpack.c.l.b16 %v920
        %v3204 = vunpack.c.h.b16 %v920
        %v3205 = vunpack.c.l.b16 %v921
        %v3206 = vunpack.c.h.b16 %v921
        %v3207 = vunpack.c.l.b16 %v922
        %v3208 = vunpack.c.h.b16 %v922
        %v3209 = vunpack.c.l.b16 %v923
        %v3210 = vunpack.c.h.b16 %v923
        %v3211 = vunpack.c.l.b16 %v924
        %v3212 = vunpack.c.h.b16 %v924
        %v3213 = vunpack.c.l.b16 %v925
        %v3214 = vunpack.c.h.b16 %v925
        %v3215 = vunpack.c.l.b16 %v926
        %v3216 = vunpack.c.h.b16 %v926
        %v3217 = vunpack.c.l.b16 %v927
        %v3218 = vunpack.c.h.b16 %v927
        %v3219 = vunpack.c.l.b16 %v928
        %v3220 = vunpack.c.h.b16 %v928
        %v3221 = vunpack.c.l.b16 %v929
        %v3222 = vunpack.c.h.b16 %v929
        %v3223 = vunpack.c.l.b16 %v930
        %v3224 = vunpack.c.h.b16 %v930
        %v3225 = vunpack.c.l.b16 %v931
        %v3226 = vunpack.c.h.b16 %v931
        %v3227 = vunpack.c.l.b16 %v932
        %v3228 = vunpack.c.h.b16 %v932
        %v3229 = vunpack.c.l.b16 %v933
        %v3230 = vunpack.c.h.b16 %v933
        %v3231 = vunpack.c.l.b16 %v934
        %v3232 = vunpack.c.h.b16 %v934
        %v3233 = vunpack.c.l.b16 %v935
        %v3234 = vunpack.c.h.b16 %v935
        %v3235 = vunpack.c.l.b16 %v936
        %v3236 = vunpack.c.h.b16 %v936
        %v3237 = vunpack.c.l.b16 %v937
        %v3238 = vunpack.c.h.b16 %v937
        %v3239 = vunpack.c.l.b16 %v938
        %v3240 = vunpack.c.h.b16 %v938
        %v3241 = vunpack.c.l.b16 %v939
        %v3242 = vunpack.c.h.b16 %v939
        %v3243 = vunpack.c.l.b16 %v940
        %v3244 = vunpack.c.h.b16 %v940
        %v3245 = vunpack.c.l.b16 %v941
        %v3246 = vunpack.c.h.b16 %v941
        %v3247 = vunpack.c.l.b16 %v942
        %v3248 = vunpack.c.h.b16 %v942
        %v3249 = vunpack.c.l.b16 %v943
        %v3250 = vunpack.c.h.b16 %v943
        %v3251 = vunpack.c.l.b16 %v944
        %v3252 = vunpack.c.h.b16 %v944
        %v3253 = vunpack.c.l.b16 %v945
        %v3254 = vunpack.c.h.b16 %v945
        %v3255 = vunpack.c.l.b16 %v946
        %v3256 = vunpack.c.h.b16 %v946
        %v3257 = vunpack.c.l.b16 %v947
        %v3258 = vunpack.c.h.b16 %v947
        %v3259 = vunpack.c.l.b16 %v948
        %v3260 = vunpack.c.h.b16 %v948
        %v3261 = vunpack.c.l.b16 %v949
        %v3262 = vunpack.c.h.b16 %v949
        %v3263 = vunpack.c.l.b16 %v950
        %v3264 = vunpack.c.h.b16 %v950
        %v3265 = vunpack.c.l.b16 %v951
        %v3266 = vunpack.c.h.b16 %v951
        %v3267 = vunpack.c.l.b16 %v952
        %v3268 = vunpack.c.h.b16 %v952
        %v3269 = vunpack.c.l.b16 %v953
        %v3270 = vunpack.c.h.b16 %v953
        %v3271 = vunpack.c.l.b16 %v954
        %v3272 = vunpack.c.h.b16 %v954
        %v3273 = vunpack.c.l.b16 %v955
        %v3274 = vunpack.c.h.b16 %v955
        %v3275 = vunpack.c.l.b16 %v956
        %v3276 = vunpack.c.h.b16 %v956
        %v3277 = vunpack.c.l.b16 %v957
        %v3278 = vunpack.c.h.b16 %v957
        %v3279 = vunpack.c.l.b16 %v958
        %v3280 = vunpack.c.h.b16 %v958
        %v3281 = vunpack.c.l.b16 %v959
        %v3282 = vunpack.c.h.b16 %v959
        %v3283 = vunpack.c.l.b16 %v960
        %v3284 = vunpack.c.h.b16 %v960
        %v3285 = vunpack.c.l.b16 %v961
        %v3286 = vunpack.c.h.b16 %v961
        %v3287 = vunpack.c.l.b16 %v962
        %v3288 = vunpack.c.h.b16 %v962
        %v3289 = vunpack.c.l.b16 %v963
        %v3290 = vunpack.c.h.b16 %v963
        %v3291 = vunpack.c.l.b16 %v964
        %v3292 = vunpack.c.h.b16 %v964
        %v3293 = vunpack.c.l.b16 %v965
        %v3294 = vunpack.c.h.b16 %v965
        %v3295 = vunpack.c.l.b16 %v966
        %v3296 = vunpack.c.h.b16 %v966
        %v3297 = vunpack.c.l.b16 %v967
        %v3298 = vunpack.c.h.b16 %v967
        %v3299 = vunpack.c.l.b16 %v968
        %v3300 = vunpack.c.h.b16 %v968
        %v3301 = vunpack.c.l.b16 %v969
        %v3302 = vunpack.c.h.b16 %v969
        %v3303 = vunpack.c.l.b16 %v970
        %v3304 = vunpack.c.h.b16 %v970
        %v3305 = vunpack.c.l.b16 %v971
        %v3306 = vunpack.c.h.b16 %v971
        %v3307 = vunpack.c.l.b16 %v972
        %v3308 = vunpack.c.h.b16 %v972
        %v3309 = vunpack.c.l.b16 %v973
        %v3310 = vunpack.c.h.b16 %v973
        %v3311 = vunpack.c.l.b16 %v974
        %v3312 = vunpack.c.h.b16 %v974
        %v3313 = vunpack.c.l.b16 %v975
        %v3314 = vunpack.c.h.b16 %v975
        %v3315 = vunpack.c.l.b16 %v976
        %v3316 = vunpack.c.h.b16 %v976
        %v3317 = vunpack.c.l.b16 %v977
        %v3318 = vunpack.c.h.b16 %v977
        %v3319 = vunpack.c.l.b16 %v978
        %v3320 = vunpack.c.h.b16 %v978
        %v3321 = vunpack.c.l.b16 %v979
        %v3322 = vunpack.c.h.b16 %v979
        %v3323 = vunpack.c.l.b16 %v980
        %v3324 = vunpack.c.h.b16 %v980
        %v3325 = vunpack.c.l.b16 %v981
        %v3326 = vunpack.c.h.b16 %v981
        %v3327 = vunpack.c.l.b16 %v982
        %v3328 = vunpack.c.h.b16 %v982
        %v3329 = vunpack.c.l.b16 %v983
        %v3330 = vunpack.c.h.b16 %v983
        %v3331 = vunpack.c.l.b16 %v984
        %v3332 = vunpack.c.h.b16 %v984
        %v3333 = vunpack.c.l.b16 %v985
        %v3334 = vunpack.c.h.b16 %v985
        %v3335 = vunpack.c.l.b16 %v986
        %v3336 = vunpack.c.h.b16 %v986
        %v3337 = vunpack.c.l.b16 %v987
        %v3338 = vunpack.c.h.b16 %v987
        %v3339 = vunpack.c.l.b16 %v988
        %v3340 = vunpack.c.h.b16 %v988
        %v3341 = vunpack.c.l.b16 %v989
        %v3342 = vunpack.c.h.b16 %v989
        %v3343 = vunpack.c.l.b16 %v990
        %v3344 = vunpack.c.h.b16 %v990
        %v3345 = vunpack.c.l.b16 %v991
        %v3346 = vunpack.c.h.b16 %v991
        %v3347 = vunpack.c.l.b16 %v992
        %v3348 = vunpack.c.h.b16 %v992
        %v3349 = vunpack.c.l.b16 %v993
        %v3350 = vunpack.c.h.b16 %v993
        %v3351 = vunpack.c.l.b16 %v994
        %v3352 = vunpack.c.h.b16 %v994
        %v3353 = vunpack.c.l.b16 %v995
        %v3354 = vunpack.c.h.b16 %v995
        %v3355 = vunpack.c.l.b16 %v996
        %v3356 = vunpack.c.h.b16 %v996
        %v3357 = vunpack.c.l.b16 %v997
        %v3358 = vunpack.c.h.b16 %v997
        %v3359 = vunpack.c.l.b16 %v998
        %v3360 = vunpack.c.h.b16 %v998
        %v3361 = vunpack.c.l.b16 %v999
        %v3362 = vunpack.c.h.b16 %v999
        %v3363 = vunpack.c.l.b16 %v1000
        %v3364 = vunpack.c.h.b16 %v1000
        %v3365 = vunpack.c.l.b16 %v1001
        %v3366 = vunpack.c.h.b16 %v1001
        %v3367 = vunpack.c.l.b16 %v1002
        %v3368 = vunpack.c.h.b16 %v1002
        %v3369 = vunpack.c.l.b16 %v1003
        %v3370 = vunpack.c.h.b16 %v1003
        %v3371 = vunpack.c.l.b16 %v1004
        %v3372 = vunpack.c.h.b16 %v1004
        %v3373 = vunpack.c.l.b16 %v1005
        %v3374 = vunpack.c.h.b16 %v1005
        %v3375 = vunpack.c.l.b16 %v1006
        %v3376 = vunpack.c.h.b16 %v1006
        %v3377 = vunpack.c.l.b16 %v1007
        %v3378 = vunpack.c.h.b16 %v1007
        %v3379 = vunpack.c.l.b16 %v1008
        %v3380 = vunpack.c.h.b16 %v1008
        %v3381 = vunpack.c.l.b16 %v1009
        %v3382 = vunpack.c.h.b16 %v1009
        %v3383 = vunpack.c.l.b16 %v1010
        %v3384 = vunpack.c.h.b16 %v1010
        %v3385 = vunpack.c.l.b16 %v1011
        %v3386 = vunpack.c.h.b16 %v1011
        %v3387 = vunpack.c.l.b16 %v1012
        %v3388 = vunpack.c.h.b16 %v1012
        %v3389 = vunpack.c.l.b16 %v1013
        %v3390 = vunpack.c.h.b16 %v1013
        %v3391 = vunpack.c.l.b16 %v1014
        %v3392 = vunpack.c.h.b16 %v1014
        %v3393 = vunpack.c.l.b16 %v1015
        %v3394 = vunpack.c.h.b16 %v1015
        %v3395 = vunpack.c.l.b16 %v1016
        %v3396 = vunpack.c.h.b16 %v1016
        %v3397 = vunpack.c.l.b16 %v1017
        %v3398 = vunpack.c.h.b16 %v1017
        %v3399 = vunpack.c.l.b16 %v1018
        %v3400 = vunpack.c.h.b16 %v1018
        %v3401 = vunpack.c.l.b16 %v1019
        %v3402 = vunpack.c.h.b16 %v1019
        %v3403 = vunpack.c.l.b16 %v1020
        %v3404 = vunpack.c.h.b16 %v1020
        %v3405 = vunpack.c.l.b16 %v1021
        %v3406 = vunpack.c.h.b16 %v1021
        %v3407 = vunpack.c.l.b16 %v1022
        %v3408 = vunpack.c.h.b16 %v1022
        %v3409 = vunpack.c.l.b16 %v1023
        %v3410 = vunpack.c.h.b16 %v1023
        %v3411 = vunpack.c.l.b16 %v1024
        %v3412 = vunpack.c.h.b16 %v1024
        %v3413 = vunpack.c.l.b16 %v1025
        %v3414 = vunpack.c.h.b16 %v1025
        %v3415 = vunpack.c.l.b16 %v1026
        %v3416 = vunpack.c.h.b16 %v1026
        %v3417 = vunpack.c.l.b16 %v1027
        %v3418 = vunpack.c.h.b16 %v1027
        %v3419 = vunpack.c.l.b16 %v1028
        %v3420 = vunpack.c.h.b16 %v1028
        %v3421 = vunpack.c.l.b16 %v1029
        %v3422 = vunpack.c.h.b16 %v1029
        %v3423 = vunpack.c.l.b16 %v1030
        %v3424 = vunpack.c.h.b16 %v1030
        %v3425 = vunpack.c.l.b16 %v1031
        %v3426 = vunpack.c.h.b16 %v1031
        %v3427 = vunpack.c.l.b16 %v1032
        %v3428 = vunpack.c.h.b16 %v1032
        %v3429 = vunpack.c.l.b16 %v1033
        %v3430 = vunpack.c.h.b16 %v1033
        %v3431 = vunpack.c.l.b16 %v1034
        %v3432 = vunpack.c.h.b16 %v1034
        %v3433 = vunpack.c.l.b16 %v1035
        %v3434 = vunpack.c.h.b16 %v1035
        %v3435 = vunpack.c.l.b16 %v1036
        %v3436 = vunpack.c.h.b16 %v1036
        %v3437 = vunpack.c.l.b16 %v1037
        %v3438 = vunpack.c.h.b16 %v1037
        %v3439 = vunpack.c.l.b16 %v1038
        %v3440 = vunpack.c.h.b16 %v1038
        %v3441 = vunpack.c.l.b16 %v1039
        %v3442 = vunpack.c.h.b16 %v1039
        %v3443 = vunpack.c.l.b16 %v1040
        %v3444 = vunpack.c.h.b16 %v1040
        %v3445 = vunpack.c.l.b16 %v1041
        %v3446 = vunpack.c.h.b16 %v1041
        %v3447 = vunpack.c.l.b16 %v1042
        %v3448 = vunpack.c.h.b16 %v1042
        %v3449 = vunpack.c.l.b16 %v1043
        %v3450 = vunpack.c.h.b16 %v1043
        %v3451 = vunpack.c.l.b16 %v1044
        %v3452 = vunpack.c.h.b16 %v1044
        %v3453 = vunpack.c.l.b16 %v1045
        %v3454 = vunpack.c.h.b16 %v1045
        %v3455 = vunpack.c.l.b16 %v1046
        %v3456 = vunpack.c.h.b16 %v1046
        %v3457 = vunpack.c.l.b16 %v1047
        %v3458 = vunpack.c.h.b16 %v1047
        %v3459 = vunpack.c.l.b16 %v1048
        %v3460 = vunpack.c.h.b16 %v1048
        %v3461 = vunpack.c.l.b16 %v1049
        %v3462 = vunpack.c.h.b16 %v1049
        %v3463 = vunpack.c.l.b16 %v1050
        %v3464 = vunpack.c.h.b16 %v1050
        %v3465 = vunpack.c.l.b16 %v1051
        %v3466 = vunpack.c.h.b16 %v1051
        %v3467 = vunpack.c.l.b16 %v1052
        %v3468 = vunpack.c.h.b16 %v1052
        %v3469 = vunpack.c.l.b16 %v1053
        %v3470 = vunpack.c.h.b16 %v1053
        %v3471 = vunpack.c.l.b16 %v1054
        %v3472 = vunpack.c.h.b16 %v1054
        %v3473 = vunpack.c.l.b16 %v1055
        %v3474 = vunpack.c.h.b16 %v1055
        %v3475 = vunpack.c.l.b16 %v1056
        %v3476 = vunpack.c.h.b16 %v1056
        %v3477 = vunpack.c.l.b16 %v1057
        %v3478 = vunpack.c.h.b16 %v1057
        %v3479 = vunpack.c.l.b16 %v1058
        %v3480 = vunpack.c.h.b16 %v1058
        %v3481 = vunpack.c.l.b16 %v1059
        %v3482 = vunpack.c.h.b16 %v1059
        %v3483 = vunpack.c.l.b16 %v1060
        %v3484 = vunpack.c.h.b16 %v1060
        %v3485 = vunpack.c.l.b16 %v1061
        %v3486 = vunpack.c.h.b16 %v1061
        %v3487 = vunpack.c.l.b16 %v1062
        %v3488 = vunpack.c.h.b16 %v1062
        %v3489 = vunpack.c.l.b16 %v1063
        %v3490 = vunpack.c.h.b16 %v1063
        %v3491 = vunpack.c.l.b16 %v1064
        %v3492 = vunpack.c.h.b16 %v1064
        %v3493 = vunpack.c.l.b16 %v1065
        %v3494 = vunpack.c.h.b16 %v1065
        %v3495 = vunpack.c.l.b16 %v1066
        %v3496 = vunpack.c.h.b16 %v1066
        %v3497 = vunpack.c.l.b16 %v1067
        %v3498 = vunpack.c.h.b16 %v1067
        %v3499 = vunpack.c.l.b16 %v1068
        %v3500 = vunpack.c.h.b16 %v1068
        %v3501 = vunpack.c.l.b16 %v1069
        %v3502 = vunpack.c.h.b16 %v1069
        %v3503 = vunpack.c.l.b16 %v1070
        %v3504 = vunpack.c.h.b16 %v1070
        %v3505 = vunpack.c.l.b16 %v1071
        %v3506 = vunpack.c.h.b16 %v1071
        %v3507 = vunpack.c.l.b16 %v1072
        %v3508 = vunpack.c.h.b16 %v1072
        %v3509 = vunpack.c.l.b16 %v1073
        %v3510 = vunpack.c.h.b16 %v1073
        %v3511 = vunpack.c.l.b16 %v1074
        %v3512 = vunpack.c.h.b16 %v1074
        %v3513 = vunpack.c.l.b16 %v1075
        %v3514 = vunpack.c.h.b16 %v1075
        %v3515 = vunpack.c.l.b16 %v1076
        %v3516 = vunpack.c.h.b16 %v1076
        %v3517 = vunpack.c.l.b16 %v1077
        %v3518 = vunpack.c.h.b16 %v1077
        %v3519 = vunpack.c.l.b16 %v1078
        %v3520 = vunpack.c.h.b16 %v1078
        %v3521 = vunpack.c.l.b16 %v1079
        %v3522 = vunpack.c.h.b16 %v1079
        %v3523 = vunpack.c.l.b16 %v1080
        %v3524 = vunpack.c.h.b16 %v1080
        %v3525 = vunpack.c.l.b16 %v1081
        %v3526 = vunpack.c.h.b16 %v1081
        %v3527 = vunpack.c.l.b16 %v1082
        %v3528 = vunpack.c.h.b16 %v1082
        %v3529 = vunpack.c.l.b16 %v1083
        %v3530 = vunpack.c.h.b16 %v1083
        %v3531 = vunpack.c.l.b16 %v1084
        %v3532 = vunpack.c.h.b16 %v1084
        %v3533 = vunpack.c.l.b16 %v1085
        %v3534 = vunpack.c.h.b16 %v1085
        %v3535 = vunpack.c.l.b16 %v1086
        %v3536 = vunpack.c.h.b16 %v1086
        %v3537 = vunpack.c.l.b16 %v1087
        %v3538 = vunpack.c.h.b16 %v1087
        %v3539 = vunpack.c.l.b16 %v1088
        %v3540 = vunpack.c.h.b16 %v1088
        %v3541 = vunpack.c.l.b16 %v1089
        %v3542 = vunpack.c.h.b16 %v1089
        %v3543 = vunpack.c.l.b16 %v1090
        %v3544 = vunpack.c.h.b16 %v1090
        %v3545 = vunpack.c.l.b16 %v1091
        %v3546 = vunpack.c.h.b16 %v1091
        %v3547 = vunpack.c.l.b16 %v1092
        %v3548 = vunpack.c.h.b16 %v1092
        %v3549 = vunpack.c.l.b16 %v1093
        %v3550 = vunpack.c.h.b16 %v1093
        %v3551 = vunpack.c.l.b16 %v1094
        %v3552 = vunpack.c.h.b16 %v1094
        %v3553 = vunpack.c.l.b16 %v1095
        %v3554 = vunpack.c.h.b16 %v1095
        %v3555 = vunpack.c.l.b16 %v1096
        %v3556 = vunpack.c.h.b16 %v1096
        %v3557 = vunpack.c.l.b16 %v1097
        %v3558 = vunpack.c.h.b16 %v1097
        %v3559 = vunpack.c.l.b16 %v1098
        %v3560 = vunpack.c.h.b16 %v1098
        %v3561 = vunpack.c.l.b16 %v1099
        %v3562 = vunpack.c.h.b16 %v1099
        %v3563 = vunpack.c.l.b16 %v1100
        %v3564 = vunpack.c.h.b16 %v1100
        %v3565 = vunpack.c.l.b16 %v1101
        %v3566 = vunpack.c.h.b16 %v1101
        %v3567 = vunpack.c.l.b16 %v1102
        %v3568 = vunpack.c.h.b16 %v1102
        %v3569 = vunpack.c.l.b16 %v1103
        %v3570 = vunpack.c.h.b16 %v1103
        %v3571 = vunpack.c.l.b16 %v1104
        %v3572 = vunpack.c.h.b16 %v1104
        %v3573 = vunpack.c.l.b16 %v1105
        %v3574 = vunpack.c.h.b16 %v1105
        %v3575 = vunpack.c.l.b16 %v1106
        %v3576 = vunpack.c.h.b16 %v1106
        %v3577 = vunpack.c.l.b16 %v1107
        %v3578 = vunpack.c.h.b16 %v1107
        %v3579 = vunpack.c.l.b16 %v1108
        %v3580 = vunpack.c.h.b16 %v1108
        %v3581 = vunpack.c.l.b16 %v1109
        %v3582 = vunpack.c.h.b16 %v1109
        %v3583 = vunpack.c.l.b16 %v1110
        %v3584 = vunpack.c.h.b16 %v1110
        %v3585 = vunpack.c.l.b16 %v1111
        %v3586 = vunpack.c.h.b16 %v1111
        %v3587 = vunpack.c.l.b16 %v1112
        %v3588 = vunpack.c.h.b16 %v1112
        %v3589 = vunpack.c.l.b16 %v1113
        %v3590 = vunpack.c.h.b16 %v1113
        %v3591 = vunpack.c.l.b16 %v1114
        %v3592 = vunpack.c.h.b16 %v1114
        %v3593 = vunpack.c.l.b16 %v1115
        %v3594 = vunpack.c.h.b16 %v1115
        %v3595 = vunpack.c.l.b16 %v1116
        %v3596 = vunpack.c.h.b16 %v1116
        %v3597 = vunpack.c.l.b16 %v1117
        %v3598 = vunpack.c.h.b16 %v1117
        %v3599 = vunpack.c.l.b16 %v1118
        %v3600 = vunpack.c.h.b16 %v1118
        %v3601 = vunpack.c.l.b16 %v1119
        %v3602 = vunpack.c.h.b16 %v1119
        %v3603 = vunpack.c.l.b16 %v1120
        %v3604 = vunpack.c.h.b16 %v1120
        %v3605 = vunpack.c.l.b16 %v1121
        %v3606 = vunpack.c.h.b16 %v1121
        %v3607 = vunpack.c.l.b16 %v1122
        %v3608 = vunpack.c.h.b16 %v1122
        %v3609 = vunpack.c.l.b16 %v1123
        %v3610 = vunpack.c.h.b16 %v1123
        %v3611 = vunpack.c.l.b16 %v1124
        %v3612 = vunpack.c.h.b16 %v1124
        %v3613 = vunpack.c.l.b16 %v1125
        %v3614 = vunpack.c.h.b16 %v1125
        %v3615 = vunpack.c.l.b16 %v1126
        %v3616 = vunpack.c.h.b16 %v1126
        %v3617 = vunpack.c.l.b16 %v1127
        %v3618 = vunpack.c.h.b16 %v1127
        %v3619 = vunpack.c.l.b16 %v1128
        %v3620 = vunpack.c.h.b16 %v1128
        %v3621 = vunpack.c.l.b16 %v1129
        %v3622 = vunpack.c.h.b16 %v1129
        %v3623 = vunpack.c.l.b16 %v1130
        %v3624 = vunpack.c.h.b16 %v1130
        %v3625 = vunpack.c.l.b16 %v1131
        %v3626 = vunpack.c.h.b16 %v1131
        %v3627 = vunpack.c.l.b16 %v1132
        %v3628 = vunpack.c.h.b16 %v1132
        %v3629 = vunpack.c.l.b16 %v1133
        %v3630 = vunpack.c.h.b16 %v1133
        %v3631 = vunpack.c.l.b16 %v1134
        %v3632 = vunpack.c.h.b16 %v1134
        %v3633 = vunpack.c.l.b16 %v1135
        %v3634 = vunpack.c.h.b16 %v1135
        %v3635 = vunpack.c.l.b16 %v1136
        %v3636 = vunpack.c.h.b16 %v1136
        %v3637 = vunpack.c.l.b16 %v1137
        %v3638 = vunpack.c.h.b16 %v1137
        %v3639 = vunpack.c.l.b16 %v1138
        %v3640 = vunpack.c.h.b16 %v1138
        %v3641 = vunpack.c.l.b16 %v1139
        %v3642 = vunpack.c.h.b16 %v1139
        %v3643 = vunpack.c.l.b16 %v1140
        %v3644 = vunpack.c.h.b16 %v1140
        %v3645 = vunpack.c.l.b16 %v1141
        %v3646 = vunpack.c.h.b16 %v1141
        %v3647 = vunpack.c.l.b16 %v1142
        %v3648 = vunpack.c.h.b16 %v1142
        %v3649 = vunpack.c.l.b16 %v1143
        %v3650 = vunpack.c.h.b16 %v1143
        %v3651 = vunpack.c.l.b16 %v1144
        %v3652 = vunpack.c.h.b16 %v1144
        %v3653 = vunpack.c.l.b16 %v1145
        %v3654 = vunpack.c.h.b16 %v1145
        %v3655 = vunpack.c.l.b16 %v1146
        %v3656 = vunpack.c.h.b16 %v1146
        %v3657 = vunpack.c.l.b16 %v1147
        %v3658 = vunpack.c.h.b16 %v1147
        %v3659 = vunpack.c.l.b16 %v1148
        %v3660 = vunpack.c.h.b16 %v1148
        %v3661 = vunpack.c.l.b16 %v1149
        %v3662 = vunpack.c.h.b16 %v1149
        %v3663 = vunpack.c.l.b16 %v1150
        %v3664 = vunpack.c.h.b16 %v1150
        %v3665 = vunpack.c.l.b16 %v1151
        %v3666 = vunpack.c.h.b16 %v1151
        %v3667 = vunpack.c.l.b16 %v1152
        %v3668 = vunpack.c.h.b16 %v1152
        %v3669 = vunpack.c.l.b16 %v1153
        %v3670 = vunpack.c.h.b16 %v1153
        %v3671 = vunpack.c.l.b16 %v1154
        %v3672 = vunpack.c.h.b16 %v1154
        %v3673 = vunpack.c.l.b16 %v1155
        %v3674 = vunpack.c.h.b16 %v1155
        %v3675 = vunpack.c.l.b16 %v1156
        %v3676 = vunpack.c.h.b16 %v1156
        %v3677 = vunpack.c.l.b16 %v1157
        %v3678 = vunpack.c.h.b16 %v1157
        %v3679 = vunpack.c.l.b16 %v1158
        %v3680 = vunpack.c.h.b16 %v1158
        %v3681 = vunpack.c.l.b16 %v1159
        %v3682 = vunpack.c.h.b16 %v1159
        %v3683 = vunpack.c.l.b16 %v1160
        %v3684 = vunpack.c.h.b16 %v1160
        %v3685 = vunpack.c.l.b16 %v1161
        %v3686 = vunpack.c.h.b16 %v1161
        %v3687 = vunpack.c.l.b16 %v1162
        %v3688 = vunpack.c.h.b16 %v1162
        %v3689 = vunpack.c.l.b16 %v1163
        %v3690 = vunpack.c.h.b16 %v1163
        %v3691 = vunpack.c.l.b16 %v1164
        %v3692 = vunpack.c.h.b16 %v1164
        %v3693 = vunpack.c.l.b16 %v1165
        %v3694 = vunpack.c.h.b16 %v1165
        %v3695 = vunpack.c.l.b16 %v1166
        %v3696 = vunpack.c.h.b16 %v1166
        %v3697 = vunpack.c.l.b16 %v1167
        %v3698 = vunpack.c.h.b16 %v1167
        %v3699 = vunpack.c.l.b16 %v1168
        %v3700 = vunpack.c.h.b16 %v1168
        %v3701 = vunpack.c.l.b16 %v1169
        %v3702 = vunpack.c.h.b16 %v1169
        %v3703 = vunpack.c.l.b16 %v1170
        %v3704 = vunpack.c.h.b16 %v1170
        %v3705 = vunpack.c.l.b16 %v1171
        %v3706 = vunpack.c.h.b16 %v1171
        %v3707 = vunpack.c.l.b16 %v1172
        %v3708 = vunpack.c.h.b16 %v1172
        %v3709 = vunpack.c.l.b16 %v1173
        %v3710 = vunpack.c.h.b16 %v1173
        %v3711 = vunpack.c.l.b16 %v1174
        %v3712 = vunpack.c.h.b16 %v1174
        %v3713 = vunpack.c.l.b16 %v1175
        %v3714 = vunpack.c.h.b16 %v1175
        %v3715 = vunpack.c.l.b16 %v1176
        %v3716 = vunpack.c.h.b16 %v1176
        %v3717 = vunpack.c.l.b16 %v1177
        %v3718 = vunpack.c.h.b16 %v1177
        %v3719 = vunpack.c.l.b16 %v1178
        %v3720 = vunpack.c.h.b16 %v1178
        %v3721 = vunpack.c.l.b16 %v1179
        %v3722 = vunpack.c.h.b16 %v1179
        %v3723 = vunpack.c.l.b16 %v1180
        %v3724 = vunpack.c.h.b16 %v1180
        %v3725 = vunpack.c.l.b16 %v1181
        %v3726 = vunpack.c.h.b16 %v1181
        %v3727 = vunpack.c.l.b16 %v1182
        %v3728 = vunpack.c.h.b16 %v1182
        %v3729 = vunpack.c.l.b16 %v1183
        %v3730 = vunpack.c.h.b16 %v1183
        %v3731 = vunpack.c.l.b16 %v1184
        %v3732 = vunpack.c.h.b16 %v1184
        %v3733 = vunpack.c.l.b16 %v1185
        %v3734 = vunpack.c.h.b16 %v1185
        %v3735 = vunpack.c.l.b16 %v1186
        %v3736 = vunpack.c.h.b16 %v1186
        %v3737 = vunpack.c.l.b16 %v1187
        %v3738 = vunpack.c.h.b16 %v1187
        %v3739 = vunpack.c.l.b16 %v1188
        %v3740 = vunpack.c.h.b16 %v1188
        %v3741 = vunpack.c.l.b16 %v1189
        %v3742 = vunpack.c.h.b16 %v1189
        %v3743 = vunpack.c.l.b16 %v1190
        %v3744 = vunpack.c.h.b16 %v1190
        %v3745 = vunpack.c.l.b16 %v1191
        %v3746 = vunpack.c.h.b16 %v1191
        %v3747 = vunpack.c.l.b16 %v1192
        %v3748 = vunpack.c.h.b16 %v1192
        %v3749 = vunpack.c.l.b16 %v1193
        %v3750 = vunpack.c.h.b16 %v1193
        %v3751 = vunpack.c.l.b16 %v1194
        %v3752 = vunpack.c.h.b16 %v1194
        %v3753 = vunpack.c.l.b16 %v1195
        %v3754 = vunpack.c.h.b16 %v1195
        %v3755 = vunpack.c.l.b16 %v1196
        %v3756 = vunpack.c.h.b16 %v1196
        %v3757 = vunpack.c.l.b16 %v1197
        %v3758 = vunpack.c.h.b16 %v1197
        %v3759 = vunpack.c.l.b16 %v1198
        %v3760 = vunpack.c.h.b16 %v1198
        %v3761 = vunpack.c.l.b16 %v1199
        %v3762 = vunpack.c.h.b16 %v1199
        %v3763 = vunpack.c.l.b16 %v1200
        %v3764 = vunpack.c.h.b16 %v1200
        %v3765 = vunpack.c.l.b16 %v1201
        %v3766 = vunpack.c.h.b16 %v1201
        %v3767 = vunpack.c.l.b16 %v1202
        %v3768 = vunpack.c.h.b16 %v1202
        %v3769 = vunpack.c.l.b16 %v1203
        %v3770 = vunpack.c.h.b16 %v1203
        %v3771 = vunpack.c.l.b16 %v1204
        %v3772 = vunpack.c.h.b16 %v1204
        %v3773 = vunpack.c.l.b16 %v1205
        %v3774 = vunpack.c.h.b16 %v1205
        %v3775 = vunpack.c.l.b16 %v1206
        %v3776 = vunpack.c.h.b16 %v1206
        %v3777 = vunpack.c.l.b16 %v1207
        %v3778 = vunpack.c.h.b16 %v1207
        %v3779 = vunpack.c.l.b16 %v1208
        %v3780 = vunpack.c.h.b16 %v1208
        %v3781 = vunpack.c.l.b16 %v1209
        %v3782 = vunpack.c.h.b16 %v1209
        %v3783 = vunpack.c.l.b16 %v1210
        %v3784 = vunpack.c.h.b16 %v1210
        %v3785 = vunpack.c.l.b16 %v1211
        %v3786 = vunpack.c.h.b16 %v1211
        %v3787 = vunpack.c.l.b16 %v1212
        %v3788 = vunpack.c.h.b16 %v1212
        %v3789 = vunpack.c.l.b16 %v1213
        %v3790 = vunpack.c.h.b16 %v1213
        %v3791 = vunpack.c.l.b16 %v1214
        %v3792 = vunpack.c.h.b16 %v1214
        %v3793 = vunpack.c.l.b16 %v1215
        %v3794 = vunpack.c.h.b16 %v1215
        %v3795 = vunpack.c.l.b16 %v1216
        %v3796 = vunpack.c.h.b16 %v1216
        %v3797 = vunpack.c.l.b16 %v1217
        %v3798 = vunpack.c.h.b16 %v1217
        %v3799 = vunpack.c.l.b16 %v1218
        %v3800 = vunpack.c.h.b16 %v1218
        %v3801 = vunpack.c.l.b16 %v1219
        %v3802 = vunpack.c.h.b16 %v1219
        %v3803 = vunpack.c.l.b16 %v1220
        %v3804 = vunpack.c.h.b16 %v1220
        %v3805 = vunpack.c.l.b16 %v1221
        %v3806 = vunpack.c.h.b16 %v1221
        %v3807 = vunpack.c.l.b16 %v1222
        %v3808 = vunpack.c.h.b16 %v1222
        %v3809 = vunpack.c.l.b16 %v1223
        %v3810 = vunpack.c.h.b16 %v1223
        %v3811 = vunpack.c.l.b16 %v1224
        %v3812 = vunpack.c.h.b16 %v1224
        %v3813 = vunpack.c.l.b16 %v1225
        %v3814 = vunpack.c.h.b16 %v1225
        %v3815 = vunpack.c.l.b16 %v1226
        %v3816 = vunpack.c.h.b16 %v1226
        %v3817 = vunpack.c.l.b16 %v1227
        %v3818 = vunpack.c.h.b16 %v1227
        %v3819 = vunpack.c.l.b16 %v1228
        %v3820 = vunpack.c.h.b16 %v1228
        %v3821 = vunpack.c.l.b16 %v1229
        %v3822 = vunpack.c.h.b16 %v1229
        %v3823 = vunpack.c.l.b16 %v1230
        %v3824 = vunpack.c.h.b16 %v1230
        %v3825 = vunpack.c.l.b16 %v1231
        %v3826 = vunpack.c.h.b16 %v1231
        %v3827 = vunpack.c.l.b16 %v1232
        %v3828 = vunpack.c.h.b16 %v1232
        %v3829 = vunpack.c.l.b16 %v1233
        %v3830 = vunpack.c.h.b16 %v1233
        %v3831 = vunpack.c.l.b16 %v1234
        %v3832 = vunpack.c.h.b16 %v1234
        %v3833 = vunpack.c.l.b16 %v1235
        %v3834 = vunpack.c.h.b16 %v1235
        %v3835 = vunpack.c.l.b16 %v1236
        %v3836 = vunpack.c.h.b16 %v1236
        %v3837 = vunpack.c.l.b16 %v1237
        %v3838 = vunpack.c.h.b16 %v1237
        %v3839 = vunpack.c.l.b16 %v1238
        %v3840 = vunpack.c.h.b16 %v1238
        %v3841 = vunpack.c.l.b16 %v1239
        %v3842 = vunpack.c.h.b16 %v1239
        %v3843 = vunpack.c.l.b16 %v1240
        %v3844 = vunpack.c.h.b16 %v1240
        %v3845 = vunpack.c.l.b16 %v1241
        %v3846 = vunpack.c.h.b16 %v1241
        %v3847 = vunpack.c.l.b16 %v1242
        %v3848 = vunpack.c.h.b16 %v1242
        %v3849 = vunpack.c.l.b16 %v1243
        %v3850 = vunpack.c.h.b16 %v1243
        %v3851 = vunpack.c.l.b16 %v1244
        %v3852 = vunpack.c.h.b16 %v1244
        %v3853 = vunpack.c.l.b16 %v1245
        %v3854 = vunpack.c.h.b16 %v1245
        %v3855 = vunpack.c.l.b16 %v1246
        %v3856 = vunpack.c.h.b16 %v1246
        %v3857 = vunpack.c.l.b16 %v1247
        %v3858 = vunpack.c.h.b16 %v1247
        %v3859 = vunpack.c.l.b16 %v1248
        %v3860 = vunpack.c.h.b16 %v1248
        %v3861 = vunpack.c.l.b16 %v1249
        %v3862 = vunpack.c.h.b16 %v1249
        %v3863 = vunpack.c.l.b16 %v1250
        %v3864 = vunpack.c.h.b16 %v1250
        %v3865 = vunpack.c.l.b16 %v1251
        %v3866 = vunpack.c.h.b16 %v1251
        %v3867 = vunpack.c.l.b16 %v1252
        %v3868 = vunpack.c.h.b16 %v1252
        %v3869 = vunpack.c.l.b16 %v1253
        %v3870 = vunpack.c.h.b16 %v1253
        %v3871 = vunpack.c.l.b16 %v1254
        %v3872 = vunpack.c.h.b16 %v1254
        %v3873 = vunpack.c.l.b16 %v1255
        %v3874 = vunpack.c.h.b16 %v1255
        %v3875 = vunpack.c.l.b16 %v1256
        %v3876 = vunpack.c.h.b16 %v1256
        %v3877 = vunpack.c.l.b16 %v1257
        %v3878 = vunpack.c.h.b16 %v1257
        %v3879 = vunpack.c.l.b16 %v1258
        %v3880 = vunpack.c.h.b16 %v1258
        %v3881 = vunpack.c.l.b16 %v1259
        %v3882 = vunpack.c.h.b16 %v1259
        %v3883 = vunpack.c.l.b16 %v1260
        %v3884 = vunpack.c.h.b16 %v1260
        %v3885 = vunpack.c.l.b16 %v1261
        %v3886 = vunpack.c.h.b16 %v1261
        %v3887 = vunpack.c.l.b16 %v1262
        %v3888 = vunpack.c.h.b16 %v1262
        %v3889 = vunpack.c.l.b16 %v1263
        %v3890 = vunpack.c.h.b16 %v1263
        %v3891 = vunpack.c.l.b16 %v1264
        %v3892 = vunpack.c.h.b16 %v1264
        %v3893 = vunpack.c.l.b16 %v1265
        %v3894 = vunpack.c.h.b16 %v1265
        %v3895 = vunpack.c.l.b16 %v1266
        %v3896 = vunpack.c.h.b16 %v1266
        %v3897 = vunpack.c.l.b16 %v1267
        %v3898 = vunpack.c.h.b16 %v1267
        %v3899 = vunpack.c.l.b16 %v1268
        %v3900 = vunpack.c.h.b16 %v1268
        %v3901 = vunpack.c.l.b16 %v1269
        %v3902 = vunpack.c.h.b16 %v1269
        %v3903 = vunpack.c.l.b16 %v1270
        %v3904 = vunpack.c.h.b16 %v1270
        %v3905 = vunpack.c.l.b16 %v1271
        %v3906 = vunpack.c.h.b16 %v1271
        %v3907 = vunpack.c.l.b16 %v1272
        %v3908 = vunpack.c.h.b16 %v1272
        %v3909 = vunpack.c.l.b16 %v1273
        %v3910 = vunpack.c.h.b16 %v1273
        %v3911 = vunpack.c.l.b16 %v1274
        %v3912 = vunpack.c.h.b16 %v1274
        %v3913 = vunpack.c.l.b16 %v1275
        %v3914 = vunpack.c.h.b16 %v1275
        %v3915 = vunpack.c.l.b16 %v1276
        %v3916 = vunpack.c.h.b16 %v1276
        %v3917 = vunpack.c.l.b16 %v1277
        %v3918 = vunpack.c.h.b16 %v1277
        %v3919 = vunpack.c.l.b16 %v1278
        %v3920 = vunpack.c.h.b16 %v1278
        %v3921 = vunpack.c.l.b16 %v1279
        %v3922 = vunpack.c.h.b16 %v1279
        %v3923 = vunpack.c.l.b16 %v1280
        %v3924 = vunpack.c.h.b16 %v1280
        %v3925 = vunpack.c.l.b16 %v1281
        %v3926 = vunpack.c.h.b16 %v1281
        %v3927 = vunpack.c.l.b16 %v1282
        %v3928 = vunpack.c.h.b16 %v1282
        %v3929 = vunpack.c.l.b16 %v1283
        %v3930 = vunpack.c.h.b16 %v1283
        %v3931 = vunpack.c.l.b16 %v1284
        %v3932 = vunpack.c.h.b16 %v1284
        %v3933 = vunpack.c.l.b16 %v1285
        %v3934 = vunpack.c.h.b16 %v1285
        %v3935 = vunpack.c.l.b16 %v1286
        %v3936 = vunpack.c.h.b16 %v1286
        %v3937 = vunpack.c.l.b16 %v1287
        %v3938 = vunpack.c.h.b16 %v1287
        %v3939 = vunpack.c.l.b16 %v1288
        %v3940 = vunpack.c.h.b16 %v1288
        %v3941 = vunpack.c.l.b16 %v1289
        %v3942 = vunpack.c.h.b16 %v1289
        %v3943 = vunpack.c.l.b16 %v1290
        %v3944 = vunpack.c.h.b16 %v1290
        %v3945 = vunpack.c.l.b16 %v1291
        %v3946 = vunpack.c.h.b16 %v1291
        %v3947 = vunpack.c.l.b16 %v1292
        %v3948 = vunpack.c.h.b16 %v1292
        %v3949 = vunpack.c.l.b16 %v1293
        %v3950 = vunpack.c.h.b16 %v1293
        %v3951 = vunpack.c.l.b16 %v1294
        %v3952 = vunpack.c.h.b16 %v1294
        %v3953 = vunpack.c.l.b16 %v1295
        %v3954 = vunpack.c.h.b16 %v1295
        %v3955 = vunpack.c.l.b16 %v1296
        %v3956 = vunpack.c.h.b16 %v1296
        %v3957 = vunpack.c.l.b16 %v1297
        %v3958 = vunpack.c.h.b16 %v1297
        %v3959 = vunpack.c.l.b16 %v1298
        %v3960 = vunpack.c.h.b16 %v1298
        %v3961 = vunpack.c.l.b16 %v1299
        %v3962 = vunpack.c.h.b16 %v1299
        %v3963 = vunpack.c.l.b16 %v1300
        %v3964 = vunpack.c.h.b16 %v1300
        %v3965 = vunpack.c.l.b16 %v1301
        %v3966 = vunpack.c.h.b16 %v1301
        %v3967 = vunpack.c.l.b16 %v1302
        %v3968 = vunpack.c.h.b16 %v1302
        %v3969 = vunpack.c.l.b16 %v1303
        %v3970 = vunpack.c.h.b16 %v1303
        %v3971 = vunpack.c.l.b16 %v1304
        %v3972 = vunpack.c.h.b16 %v1304
        %v3973 = vunpack.c.l.b16 %v1305
        %v3974 = vunpack.c.h.b16 %v1305
        %v3975 = vunpack.c.l.b16 %v1306
        %v3976 = vunpack.c.h.b16 %v1306
        %v3977 = vunpack.c.l.b16 %v1307
        %v3978 = vunpack.c.h.b16 %v1307
        %v3979 = vunpack.c.l.b16 %v1308
        %v3980 = vunpack.c.h.b16 %v1308
        %v3981 = vunpack.c.l.b16 %v1309
        %v3982 = vunpack.c.h.b16 %v1309
        %v3983 = vunpack.c.l.b16 %v1310
        %v3984 = vunpack.c.h.b16 %v1310
        %v3985 = vunpack.c.l.b16 %v1311
        %v3986 = vunpack.c.h.b16 %v1311
        %v3987 = vunpack.c.l.b16 %v1312
        %v3988 = vunpack.c.h.b16 %v1312
        %v3989 = vunpack.c.l.b16 %v1313
        %v3990 = vunpack.c.h.b16 %v1313
        %v3991 = vunpack.c.l.b16 %v1314
        %v3992 = vunpack.c.h.b16 %v1314
        %v3993 = vunpack.c.l.b16 %v1315
        %v3994 = vunpack.c.h.b16 %v1315
        %v3995 = vunpack.c.l.b16 %v1316
        %v3996 = vunpack.c.h.b16 %v1316
        %v3997 = vunpack.c.l.b16 %v1317
        %v3998 = vunpack.c.h.b16 %v1317
        %v3999 = vunpack.c.l.b16 %v1318
        %v4000 = vunpack.c.h.b16 %v1318
        %v4001 = vunpack.c.l.b16 %v1319
        %v4002 = vunpack.c.h.b16 %v1319
        %v4003 = vunpack.c.l.b16 %v1320
        %v4004 = vunpack.c.h.b16 %v1320
        %v4005 = vunpack.c.l.b16 %v1321
        %v4006 = vunpack.c.h.b16 %v1321
        %v4007 = vunpack.c.l.b16 %v1322
        %v4008 = vunpack.c.h.b16 %v1322
        %v4009 = vunpack.c.l.b16 %v1323
        %v4010 = vunpack.c.h.b16 %v1323
        %v4011 = vunpack.c.l.b16 %v1324
        %v4012 = vunpack.c.h.b16 %v1324
        %v4013 = vunpack.c.l.b16 %v1325
        %v4014 = vunpack.c.h.b16 %v1325
        %v4015 = vunpack.c.l.b16 %v1326
        %v4016 = vunpack.c.h.b16 %v1326
        %v4017 = vunpack.c.l.b16 %v1327
        %v4018 = vunpack.c.h.b16 %v1327
        %v4019 = vunpack.c.l.b16 %v1328
        %v4020 = vunpack.c.h.b16 %v1328
        %v4021 = vunpack.c.l.b16 %v1329
        %v4022 = vunpack.c.h.b16 %v1329
        %v4023 = vunpack.c.l.b16 %v1330
        %v4024 = vunpack.c.h.b16 %v1330
        %v4025 = vunpack.c.l.b16 %v1331
        %v4026 = vunpack.c.h.b16 %v1331
        %v4027 = vunpack.c.l.b16 %v1332
        %v4028 = vunpack.c.h.b16 %v1332
        %v4029 = vunpack.c.l.b16 %v1333
        %v4030 = vunpack.c.h.b16 %v1333
        %v4031 = vunpack.c.l.b16 %v1334
        %v4032 = vunpack.c.h.b16 %v1334
        %v4033 = vunpack.c.l.b16 %v1335
        %v4034 = vunpack.c.h.b16 %v1335
        %v4035 = vunpack.c.l.b16 %v1336
        %v4036 = vunpack.c.h.b16 %v1336
        %v4037 = vunpack.c.l.b16 %v1337
        %v4038 = vunpack.c.h.b16 %v1337
        %v4039 = vunpack.c.l.b16 %v1338
        %v4040 = vunpack.c.h.b16 %v1338
        %v4041 = vunpack.c.l.b16 %v1339
        %v4042 = vunpack.c.h.b16 %v1339
        %v4043 = vunpack.c.l.b16 %v1340
        %v4044 = vunpack.c.h.b16 %v1340
        %v4045 = vunpack.c.l.b16 %v1341
        %v4046 = vunpack.c.h.b16 %v1341
        %v4047 = vunpack.c.l.b16 %v1342
        %v4048 = vunpack.c.h.b16 %v1342
        %v4049 = vunpack.c.l.b16 %v1343
        %v4050 = vunpack.c.h.b16 %v1343
        %v4051 = vunpack.c.l.b16 %v1344
        %v4052 = vunpack.c.h.b16 %v1344
        %v4053 = vunpack.c.l.b16 %v1345
        %v4054 = vunpack.c.h.b16 %v1345
        %v4055 = vunpack.c.l.b16 %v1346
        %v4056 = vunpack.c.h.b16 %v1346
        %v4057 = vunpack.c.l.b16 %v1347
        %v4058 = vunpack.c.h.b16 %v1347
        %v4059 = vunpack.c.l.b16 %v1348
        %v4060 = vunpack.c.h.b16 %v1348
        %v4061 = vunpack.c.l.b16 %v1349
        %v4062 = vunpack.c.h.b16 %v1349
        %v4063 = vunpack.c.l.b16 %v1350
        %v4064 = vunpack.c.h.b16 %v1350
        %v4065 = vunpack.c.l.b16 %v1351
        %v4066 = vunpack.c.h.b16 %v1351
        %v4067 = vunpack.c.l.b16 %v1352
        %v4068 = vunpack.c.h.b16 %v1352
        %v4069 = vunpack.c.l.b16 %v1353
        %v4070 = vunpack.c.h.b16 %v1353
        %v4071 = vunpack.c.l.b16 %v1354
        %v4072 = vunpack.c.h.b16 %v1354
        %v4073 = vunpack.c.l.b16 %v1355
        %v4074 = vunpack.c.h.b16 %v1355
        %v4075 = vunpack.c.l.b16 %v1356
        %v4076 = vunpack.c.h.b16 %v1356
        %v4077 = vunpack.c.l.b16 %v1357
        %v4078 = vunpack.c.h.b16 %v1357
        %v4079 = vunpack.c.l.b16 %v1358
        %v4080 = vunpack.c.h.b16 %v1358
        %v4081 = vunpack.c.l.b16 %v1359
        %v4082 = vunpack.c.h.b16 %v1359
        %v4083 = vunpack.c.l.b16 %v1360
        %v4084 = vunpack.c.h.b16 %v1360
        %v4085 = vunpack.c.l.b16 %v1361
        %v4086 = vunpack.c.h.b16 %v1361
        %v4087 = vunpack.c.l.b16 %v1362
        %v4088 = vunpack.c.h.b16 %v1362
        %v4089 = vunpack.c.l.b16 %v1363
        %v4090 = vunpack.c.h.b16 %v1363
        %v4091 = vunpack.c.l.b16 %v1364
        %v4092 = vunpack.c.h.b16 %v1364
        %v4093 = vunpack.c.l.b16 %v1365
        %v4094 = vunpack.c.h.b16 %v1365
        %v4095 = vunpack.c.l.b16 %v1366
        %v4096 = vunpack.c.h.b16 %v1366
        %v4097 = vunpack.c.l.b16 %v1367
        %v4098 = vunpack.c.h.b16 %v1367
        %v4099 = vunpack.c.l.b16 %v1368
        %v4100 = vunpack.c.h.b16 %v1368
        %v4101 = vunpack.c.l.b16 %v1369
        %v4102 = vunpack.c.h.b16 %v1369
        %v4103 = vunpack.c.l.b16 %v1370
        %v4104 = vunpack.c.h.b16 %v1370
        %v4105 = vunpack.c.l.b16 %v1371
        %v4106 = vunpack.c.h.b16 %v1371
        %v4107 = vunpack.c.l.b16 %v1372
        %v4108 = vunpack.c.h.b16 %v1372
        %v4109 = vunpack.c.l.b16 %v1373
        %v4110 = vunpack.c.h.b16 %v1373
        %v4111 = vunpack.c.l.b16 %v1374
        %v4112 = vunpack.c.h.b16 %v1374
        %v4113 = vunpack.c.l.b16 %v1375
        %v4114 = vunpack.c.h.b16 %v1375
        %v4115 = vunpack.c.l.b16 %v1376
        %v4116 = vunpack.c.h.b16 %v1376
        %v4117 = vunpack.c.l.b16 %v1377
        %v4118 = vunpack.c.h.b16 %v1377
        %v4119 = vunpack.c.l.b16 %v1378
        %v4120 = vunpack.c.h.b16 %v1378
        %v4121 = vunpack.c.l.b16 %v1379
        %v4122 = vunpack.c.h.b16 %v1379
        %v4123 = vunpack.c.l.b16 %v1380
        %v4124 = vunpack.c.h.b16 %v1380
        %v4125 = vunpack.c.l.b16 %v1381
        %v4126 = vunpack.c.h.b16 %v1381
        %v4127 = vunpack.c.l.b16 %v1382
        %v4128 = vunpack.c.h.b16 %v1382
        %v4129 = vunpack.c.l.b16 %v1383
        %v4130 = vunpack.c.h.b16 %v1383
        %v4131 = vunpack.c.l.b16 %v1384
        %v4132 = vunpack.c.h.b16 %v1384
        %v4133 = vunpack.c.l.b16 %v1385
        %v4134 = vunpack.c.h.b16 %v1385
        %v4135 = vunpack.c.l.b16 %v1386
        %v4136 = vunpack.c.h.b16 %v1386
        %v4137 = vunpack.c.l.b16 %v1387
        %v4138 = vunpack.c.h.b16 %v1387
        %v4139 = vunpack.c.l.b16 %v1388
        %v4140 = vunpack.c.h.b16 %v1388
        %v4141 = vunpack.c.l.b16 %v1389
        %v4142 = vunpack.c.h.b16 %v1389
        %v4143 = vunpack.c.l.b16 %v1390
        %v4144 = vunpack.c.h.b16 %v1390
        %v4145 = vunpack.c.l.b16 %v1391
        %v4146 = vunpack.c.h.b16 %v1391
        %v4147 = vunpack.c.l.b16 %v1392
        %v4148 = vunpack.c.h.b16 %v1392
        %v4149 = vunpack.c.l.b16 %v1393
        %v4150 = vunpack.c.h.b16 %v1393
        %v4151 = vunpack.c.l.b16 %v1394
        %v4152 = vunpack.c.h.b16 %v1394
        %v4153 = vunpack.c.l.b16 %v1395
        %v4154 = vunpack.c.h.b16 %v1395
        %v4155 = vunpack.c.l.b16 %v1396
        %v4156 = vunpack.c.h.b16 %v1396
        %v4157 = vunpack.c.l.b16 %v1397
        %v4158 = vunpack.c.h.b16 %v1397
        %v4159 = vunpack.c.l.b16 %v1398
        %v4160 = vunpack.c.h.b16 %v1398
        %v4161 = vunpack.c.l.b16 %v1399
        %v4162 = vunpack.c.h.b16 %v1399
        %v4163 = vunpack.c.l.b16 %v1400
        %v4164 = vunpack.c.h.b16 %v1400
        %v4165 = vunpack.c.l.b16 %v1401
        %v4166 = vunpack.c.h.b16 %v1401
        %v4167 = vunpack.c.l.b16 %v1402
        %v4168 = vunpack.c.h.b16 %v1402
        %v4169 = vunpack.c.l.b16 %v1403
        %v4170 = vunpack.c.h.b16 %v1403
        %v4171 = vunpack.c.l.b16 %v1404
        %v4172 = vunpack.c.h.b16 %v1404
        %v4173 = vunpack.c.l.b16 %v1405
        %v4174 = vunpack.c.h.b16 %v1405
        %v4175 = vunpack.c.l.b16 %v1406
        %v4176 = vunpack.c.h.b16 %v1406
        %v4177 = vunpack.c.l.b16 %v1407
        %v4178 = vunpack.c.h.b16 %v1407
        %v4179 = vunpack.c.l.b16 %v1408
        %v4180 = vunpack.c.h.b16 %v1408
        %v4181 = vunpack.c.l.b16 %v1409
        %v4182 = vunpack.c.h.b16 %v1409
        %v4183 = vunpack.c.l.b16 %v1410
        %v4184 = vunpack.c.h.b16 %v1410
        %v4185 = vunpack.c.l.b16 %v1411
        %v4186 = vunpack.c.h.b16 %v1411
        %v4187 = vunpack.c.l.b16 %v1412
        %v4188 = vunpack.c.h.b16 %v1412
        %v4189 = vunpack.c.l.b16 %v1413
        %v4190 = vunpack.c.h.b16 %v1413
        %v4191 = vunpack.c.l.b16 %v1414
        %v4192 = vunpack.c.h.b16 %v1414
        %v4193 = vunpack.c.l.b16 %v1415
        %v4194 = vunpack.c.h.b16 %v1415
        %v4195 = vunpack.c.l.b16 %v1416
        %v4196 = vunpack.c.h.b16 %v1416
        %v4197 = vunpack.c.l.b16 %v1417
        %v4198 = vunpack.c.h.b16 %v1417
        %v4199 = vunpack.c.l.b16 %v1418
        %v4200 = vunpack.c.h.b16 %v1418
        %v4201 = vunpack.c.l.b16 %v1419
        %v4202 = vunpack.c.h.b16 %v1419
        %v4203 = vunpack.c.l.b16 %v1420
        %v4204 = vunpack.c.h.b16 %v1420
        %v4205 = vunpack.c.l.b16 %v1421
        %v4206 = vunpack.c.h.b16 %v1421
        %v4207 = vunpack.c.l.b16 %v1422
        %v4208 = vunpack.c.h.b16 %v1422
        %v4209 = vunpack.c.l.b16 %v1423
        %v4210 = vunpack.c.h.b16 %v1423
        %v4211 = vunpack.c.l.b16 %v1424
        %v4212 = vunpack.c.h.b16 %v1424
        %v4213 = vunpack.c.l.b16 %v1425
        %v4214 = vunpack.c.h.b16 %v1425
        %v4215 = vunpack.c.l.b16 %v1426
        %v4216 = vunpack.c.h.b16 %v1426
        %v4217 = vunpack.c.l.b16 %v1427
        %v4218 = vunpack.c.h.b16 %v1427
        %v4219 = vunpack.c.l.b16 %v1428
        %v4220 = vunpack.c.h.b16 %v1428
        %v4221 = vunpack.c.l.b16 %v1429
        %v4222 = vunpack.c.h.b16 %v1429
        %v4223 = vunpack.c.l.b16 %v1430
        %v4224 = vunpack.c.h.b16 %v1430
        %v4225 = vunpack.c.l.b16 %v1431
        %v4226 = vunpack.c.h.b16 %v1431
        %v4227 = vunpack.c.l.b16 %v1432
        %v4228 = vunpack.c.h.b16 %v1432
        %v4229 = vunpack.c.l.b16 %v1433
        %v4230 = vunpack.c.h.b16 %v1433
        %v4231 = vunpack.c.l.b16 %v1434
        %v4232 = vunpack.c.h.b16 %v1434
        %v4233 = vunpack.c.l.b16 %v1435
        %v4234 = vunpack.c.h.b16 %v1435
        %v4235 = vunpack.c.l.b16 %v1436
        %v4236 = vunpack.c.h.b16 %v1436
        %v4237 = vunpack.c.l.b16 %v1437
        %v4238 = vunpack.c.h.b16 %v1437
        %v4239 = vunpack.c.l.b16 %v1438
        %v4240 = vunpack.c.h.b16 %v1438
        %v4241 = vunpack.c.l.b16 %v1439
        %v4242 = vunpack.c.h.b16 %v1439
        %v4243 = vunpack.c.l.b16 %v1440
        %v4244 = vunpack.c.h.b16 %v1440
        %v4245 = vunpack.c.l.b16 %v1441
        %v4246 = vunpack.c.h.b16 %v1441
        %v4247 = vunpack.c.l.b16 %v1442
        %v4248 = vunpack.c.h.b16 %v1442
        %v4249 = vunpack.c.l.b16 %v1443
        %v4250 = vunpack.c.h.b16 %v1443
        %v4251 = vunpack.c.l.b16 %v1444
        %v4252 = vunpack.c.h.b16 %v1444
        %v4253 = vunpack.c.l.b16 %v1445
        %v4254 = vunpack.c.h.b16 %v1445
        %v4255 = vunpack.c.l.b16 %v1446
        %v4256 = vunpack.c.h.b16 %v1446
        %v4257 = vunpack.c.l.b16 %v1447
        %v4258 = vunpack.c.h.b16 %v1447
        %v4259 = vunpack.c.l.b16 %v1448
        %v4260 = vunpack.c.h.b16 %v1448
        %v4261 = vunpack.c.l.b16 %v1449
        %v4262 = vunpack.c.h.b16 %v1449
        %v4263 = vunpack.c.l.b16 %v1450
        %v4264 = vunpack.c.h.b16 %v1450
        %v4265 = vunpack.c.l.b16 %v1451
        %v4266 = vunpack.c.h.b16 %v1451
        %v4267 = vunpack.c.l.b16 %v1452
        %v4268 = vunpack.c.h.b16 %v1452
        %v4269 = vunpack.c.l.b16 %v1453
        %v4270 = vunpack.c.h.b16 %v1453
        %v4271 = vunpack.c.l.b16 %v1454
        %v4272 = vunpack.c.h.b16 %v1454
        %v4273 = vunpack.c.l.b16 %v1455
        %v4274 = vunpack.c.h.b16 %v1455
        %v4275 = vunpack.c.l.b16 %v1456
        %v4276 = vunpack.c.h.b16 %v1456
        %v4277 = vunpack.c.l.b16 %v1457
        %v4278 = vunpack.c.h.b16 %v1457
        %v4279 = vunpack.c.l.b16 %v1458
        %v4280 = vunpack.c.h.b16 %v1458
        %v4281 = vunpack.c.l.b16 %v1459
        %v4282 = vunpack.c.h.b16 %v1459
        %v4283 = vunpack.c.l.b16 %v1460
        %v4284 = vunpack.c.h.b16 %v1460
        %v4285 = vunpack.c.l.b16 %v1461
        %v4286 = vunpack.c.h.b16 %v1461
        %v4287 = vunpack.c.l.b16 %v1462
        %v4288 = vunpack.c.h.b16 %v1462
        %v4289 = vunpack.c.l.b16 %v1463
        %v4290 = vunpack.c.h.b16 %v1463
        %v4291 = vunpack.c.l.b16 %v1464
        %v4292 = vunpack.c.h.b16 %v1464
        %v4293 = vunpack.c.l.b16 %v1465
        %v4294 = vunpack.c.h.b16 %v1465
        %v4295 = vunpack.c.l.b16 %v1466
        %v4296 = vunpack.c.h.b16 %v1466
        %v4297 = vunpack.c.l.b16 %v1467
        %v4298 = vunpack.c.h.b16 %v1467
        %v4299 = vunpack.c.l.b16 %v1468
        %v4300 = vunpack.c.h.b16 %v1468
        %v4301 = vunpack.c.l.b16 %v1469
        %v4302 = vunpack.c.h.b16 %v1469
        %v4303 = vunpack.c.l.b16 %v1470
        %v4304 = vunpack.c.h.b16 %v1470
        %v4305 = vunpack.c.l.b16 %v1471
        %v4306 = vunpack.c.h.b16 %v1471
        %v4307 = vunpack.c.l.b16 %v1472
        %v4308 = vunpack.c.h.b16 %v1472
        %v4309 = vunpack.c.l.b16 %v1473
        %v4310 = vunpack.c.h.b16 %v1473
        %v4311 = vunpack.c.l.b16 %v1474
        %v4312 = vunpack.c.h.b16 %v1474
        %v4313 = vunpack.c.l.b16 %v1475
        %v4314 = vunpack.c.h.b16 %v1475
        %v4315 = vunpack.c.l.b16 %v1476
        %v4316 = vunpack.c.h.b16 %v1476
        %v4317 = vunpack.c.l.b16 %v1477
        %v4318 = vunpack.c.h.b16 %v1477
        %v4319 = vunpack.c.l.b16 %v1478
        %v4320 = vunpack.c.h.b16 %v1478
        %v4321 = vunpack.c.l.b16 %v1479
        %v4322 = vunpack.c.h.b16 %v1479
        %v4323 = vunpack.c.l.b16 %v1480
        %v4324 = vunpack.c.h.b16 %v1480
        %v4325 = vunpack.c.l.b16 %v1481
        %v4326 = vunpack.c.h.b16 %v1481
        %v4327 = vunpack.c.l.b16 %v1482
        %v4328 = vunpack.c.h.b16 %v1482
        %v4329 = vunpack.c.l.b16 %v1483
        %v4330 = vunpack.c.h.b16 %v1483
        %v4331 = vunpack.c.l.b16 %v1484
        %v4332 = vunpack.c.h.b16 %v1484
        %v4333 = vunpack.c.l.b16 %v1485
        %v4334 = vunpack.c.h.b16 %v1485
        %v4335 = vunpack.c.l.b16 %v1486
        %v4336 = vunpack.c.h.b16 %v1486
        %v4337 = vunpack.c.l.b16 %v1487
        %v4338 = vunpack.c.h.b16 %v1487
        %v4339 = vunpack.c.l.b16 %v1488
        %v4340 = vunpack.c.h.b16 %v1488
        %v4341 = vunpack.c.l.b16 %v1489
        %v4342 = vunpack.c.h.b16 %v1489
        %v4343 = vunpack.c.l.b16 %v1490
        %v4344 = vunpack.c.h.b16 %v1490
        %v4345 = vunpack.c.l.b16 %v1491
        %v4346 = vunpack.c.h.b16 %v1491
        %v4347 = vunpack.c.l.b16 %v1492
        %v4348 = vunpack.c.h.b16 %v1492
        %v4349 = vunpack.c.l.b16 %v1493
        %v4350 = vunpack.c.h.b16 %v1493
        %v4351 = vunpack.c.l.b16 %v1494
        %v4352 = vunpack.c.h.b16 %v1494
        %v4353 = vunpack.c.l.b16 %v1495
        %v4354 = vunpack.c.h.b16 %v1495
        %v4355 = vunpack.c.l.b16 %v1496
        %v4356 = vunpack.c.h.b16 %v1496
        %v4357 = vunpack.c.l.b16 %v1497
        %v4358 = vunpack.c.h.b16 %v1497
        %v4359 = vunpack.c.l.b16 %v1498
        %v4360 = vunpack.c.h.b16 %v1498
        %v4361 = vunpack.c.l.b16 %v1499
        %v4362 = vunpack.c.h.b16 %v1499
        %v4363 = vunpack.c.l.b16 %v1500
        %v4364 = vunpack.c.h.b16 %v1500
        %v4365 = vunpack.c.l.b16 %v1501
        %v4366 = vunpack.c.h.b16 %v1501
        %v4367 = vunpack.c.l.b16 %v1502
        %v4368 = vunpack.c.h.b16 %v1502
        %v4369 = vunpack.c.l.b16 %v1503
        %v4370 = vunpack.c.h.b16 %v1503
        %v4371 = vunpack.c.l.b16 %v1504
        %v4372 = vunpack.c.h.b16 %v1504
        %v4373 = vunpack.c.l.b16 %v1505
        %v4374 = vunpack.c.h.b16 %v1505
        %v4375 = vunpack.c.l.b16 %v1506
        %v4376 = vunpack.c.h.b16 %v1506
        %v4377 = vunpack.c.l.b16 %v1507
        %v4378 = vunpack.c.h.b16 %v1507
        %v4379 = vunpack.c.l.b16 %v1508
        %v4380 = vunpack.c.h.b16 %v1508
        %v4381 = vunpack.c.l.b16 %v1509
        %v4382 = vunpack.c.h.b16 %v1509
        %v4383 = vunpack.c.l.b16 %v1510
        %v4384 = vunpack.c.h.b16 %v1510
        %v4385 = vunpack.c.l.b16 %v1511
        %v4386 = vunpack.c.h.b16 %v1511
        %v4387 = vunpack.c.l.b16 %v1512
        %v4388 = vunpack.c.h.b16 %v1512
        %v4389 = vunpack.c.l.b16 %v1513
        %v4390 = vunpack.c.h.b16 %v1513
        %v4391 = vunpack.c.l.b16 %v1514
        %v4392 = vunpack.c.h.b16 %v1514
        %v4393 = vunpack.c.l.b16 %v1515
        %v4394 = vunpack.c.h.b16 %v1515
        %v4395 = vunpack.c.l.b16 %v1516
        %v4396 = vunpack.c.h.b16 %v1516
        %v4397 = vunpack.c.l.b16 %v1517
        %v4398 = vunpack.c.h.b16 %v1517
        %v4399 = vunpack.c.l.b16 %v1518
        %v4400 = vunpack.c.h.b16 %v1518
        %v4401 = vunpack.c.l.b16 %v1519
        %v4402 = vunpack.c.h.b16 %v1519
        %v4403 = vunpack.c.l.b16 %v1520
        %v4404 = vunpack.c.h.b16 %v1520
        %v4405 = vunpack.c.l.b16 %v1521
        %v4406 = vunpack.c.h.b16 %v1521
        %v4407 = vunpack.c.l.b16 %v1522
        %v4408 = vunpack.c.h.b16 %v1522
        %v4409 = vunpack.c.l.b16 %v1523
        %v4410 = vunpack.c.h.b16 %v1523
        %v4411 = vpack.c.b16 %v2847, %v2843
        %v4412 = vpack.c.b16 %v2848, %v2844
        %v4413 = vpack.c.b16 %v2849, %v2845
        %v4414 = vpack.c.b16 %v2850, %v2846
        %v4415 = vpack.c.b16 %v2855, %v2851
        %v4416 = vpack.c.b16 %v2856, %v2852
        %v4417 = vpack.c.b16 %v2857, %v2853
        %v4418 = vpack.c.b16 %v2858, %v2854
        %v4419 = vpack.c.b16 %v2863, %v2859
        %v4420 = vpack.c.b16 %v2864, %v2860
        %v4421 = vpack.c.b16 %v2865, %v2861
        %v4422 = vpack.c.b16 %v2866, %v2862
        %v4423 = vpack.c.b16 %v2871, %v2867
        %v4424 = vpack.c.b16 %v2872, %v2868
        %v4425 = vpack.c.b16 %v2873, %v2869
        %v4426 = vpack.c.b16 %v2874, %v2870
        %v4427 = vpack.c.b16 %v2879, %v2875
        %v4428 = vpack.c.b16 %v2880, %v2876
        %v4429 = vpack.c.b16 %v2881, %v2877
        %v4430 = vpack.c.b16 %v2882, %v2878
        %v4431 = vpack.c.b16 %v2887, %v2883
        %v4432 = vpack.c.b16 %v2888, %v2884
        %v4433 = vpack.c.b16 %v2889, %v2885
        %v4434 = vpack.c.b16 %v2890, %v2886
        %v4435 = vpack.c.b16 %v2895, %v2891
        %v4436 = vpack.c.b16 %v2896, %v2892
        %v4437 = vpack.c.b16 %v2897, %v2893
        %v4438 = vpack.c.b16 %v2898, %v2894
        %v4439 = vpack.c.b16 %v2903, %v2899
        %v4440 = vpack.c.b16 %v2904, %v2900
        %v4441 = vpack.c.b16 %v2905, %v2901
        %v4442 = vpack.c.b16 %v2906, %v2902
        %v4443 = vpack.c.b16 %v2911, %v2907
        %v4444 = vpack.c.b16 %v2912, %v2908
        %v4445 = vpack.c.b16 %v2913, %v2909
        %v4446 = vpack.c.b16 %v2914, %v2910
        %v4447 = vpack.c.b16 %v2919, %v2915
        %v4448 = vpack.c.b16 %v2920, %v2916
        %v4449 = vpack.c.b16 %v2921, %v2917
        %v4450 = vpack.c.b16 %v2922, %v2918
        %v4451 = vpack.c.b16 %v2927, %v2923
        %v4452 = vpack.c.b16 %v2928, %v2924
        %v4453 = vpack.c.b16 %v2929, %v2925
        %v4454 = vpack.c.b16 %v2930, %v2926
        %v4455 = vpack.c.b16 %v2935, %v2931
        %v4456 = vpack.c.b16 %v2936, %v2932
        %v4457 = vpack.c.b16 %v2937, %v2933
        %v4458 = vpack.c.b16 %v2938, %v2934
        %v4459 = vpack.c.b16 %v2943, %v2939
        %v4460 = vpack.c.b16 %v2944, %v2940
        %v4461 = vpack.c.b16 %v2945, %v2941
        %v4462 = vpack.c.b16 %v2946, %v2942
        %v4463 = vpack.c.b16 %v2951, %v2947
        %v4464 = vpack.c.b16 %v2952, %v2948
        %v4465 = vpack.c.b16 %v2953, %v2949
        %v4466 = vpack.c.b16 %v2954, %v2950
        %v4467 = vpack.c.b16 %v2959, %v2955
        %v4468 = vpack.c.b16 %v2960, %v2956
        %v4469 = vpack.c.b16 %v2961, %v2957
        %v4470 = vpack.c.b16 %v2962, %v2958
        %v4471 = vpack.c.b16 %v2967, %v2963
        %v4472 = vpack.c.b16 %v2968, %v2964
        %v4473 = vpack.c.b16 %v2969, %v2965
        %v4474 = vpack.c.b16 %v2970, %v2966
        %v4475 = vpack.c.b16 %v2975, %v2971
        %v4476 = vpack.c.b16 %v2976, %v2972
        %v4477 = vpack.c.b16 %v2977, %v2973
        %v4478 = vpack.c.b16 %v2978, %v2974
        %v4479 = vpack.c.b16 %v2983, %v2979
        %v4480 = vpack.c.b16 %v2984, %v2980
        %v4481 = vpack.c.b16 %v2985, %v2981
        %v4482 = vpack.c.b16 %v2986, %v2982
        %v4483 = vpack.c.b16 %v2991, %v2987
        %v4484 = vpack.c.b16 %v2992, %v2988
        %v4485 = vpack.c.b16 %v2993, %v2989
        %v4486 = vpack.c.b16 %v2994, %v2990
        %v4487 = vpack.c.b16 %v2999, %v2995
        %v4488 = vpack.c.b16 %v3000, %v2996
        %v4489 = vpack.c.b16 %v3001, %v2997
        %v4490 = vpack.c.b16 %v3002, %v2998
        %v4491 = vpack.c.b16 %v3007, %v3003
        %v4492 = vpack.c.b16 %v3008, %v3004
        %v4493 = vpack.c.b16 %v3009, %v3005
        %v4494 = vpack.c.b16 %v3010, %v3006
        %v4495 = vpack.c.b16 %v3015, %v3011
        %v4496 = vpack.c.b16 %v3016, %v3012
        %v4497 = vpack.c.b16 %v3017, %v3013
        %v4498 = vpack.c.b16 %v3018, %v3014
        %v4499 = vpack.c.b16 %v3023, %v3019
        %v4500 = vpack.c.b16 %v3024, %v3020
        %v4501 = vpack.c.b16 %v3025, %v3021
        %v4502 = vpack.c.b16 %v3026, %v3022
        %v4503 = vpack.c.b16 %v3031, %v3027
        %v4504 = vpack.c.b16 %v3032, %v3028
        %v4505 = vpack.c.b16 %v3033, %v3029
        %v4506 = vpack.c.b16 %v3034, %v3030
        %v4507 = vpack.c.b16 %v3039, %v3035
        %v4508 = vpack.c.b16 %v3040, %v3036
        %v4509 = vpack.c.b16 %v3041, %v3037
        %v4510 = vpack.c.b16 %v3042, %v3038
        %v4511 = vpack.c.b16 %v3047, %v3043
        %v4512 = vpack.c.b16 %v3048, %v3044
        %v4513 = vpack.c.b16 %v3049, %v3045
        %v4514 = vpack.c.b16 %v3050, %v3046
        %v4515 = vpack.c.b16 %v3055, %v3051
        %v4516 = vpack.c.b16 %v3056, %v3052
        %v4517 = vpack.c.b16 %v3057, %v3053
        %v4518 = vpack.c.b16 %v3058, %v3054
        %v4519 = vpack.c.b16 %v3063, %v3059
        %v4520 = vpack.c.b16 %v3064, %v3060
        %v4521 = vpack.c.b16 %v3065, %v3061
        %v4522 = vpack.c.b16 %v3066, %v3062
        %v4523 = vpack.c.b16 %v3071, %v3067
        %v4524 = vpack.c.b16 %v3072, %v3068
        %v4525 = vpack.c.b16 %v3073, %v3069
        %v4526 = vpack.c.b16 %v3074, %v3070
        %v4527 = vpack.c.b16 %v3079, %v3075
        %v4528 = vpack.c.b16 %v3080, %v3076
        %v4529 = vpack.c.b16 %v3081, %v3077
        %v4530 = vpack.c.b16 %v3082, %v3078
        %v4531 = vpack.c.b16 %v3087, %v3083
        %v4532 = vpack.c.b16 %v3088, %v3084
        %v4533 = vpack.c.b16 %v3089, %v3085
        %v4534 = vpack.c.b16 %v3090, %v3086
        %v4535 = vpack.c.b16 %v3095, %v3091
        %v4536 = vpack.c.b16 %v3096, %v3092
        %v4537 = vpack.c.b16 %v3097, %v3093
        %v4538 = vpack.c.b16 %v3098, %v3094
        %v4539 = vpack.c.b16 %v3103, %v3099
        %v4540 = vpack.c.b16 %v3104, %v3100
        %v4541 = vpack.c.b16 %v3105, %v3101
        %v4542 = vpack.c.b16 %v3106, %v3102
        %v4543 = vpack.c.b16 %v3111, %v3107
        %v4544 = vpack.c.b16 %v3112, %v3108
        %v4545 = vpack.c.b16 %v3113, %v3109
        %v4546 = vpack.c.b16 %v3114, %v3110
        %v4547 = vpack.c.b16 %v3119, %v3115
        %v4548 = vpack.c.b16 %v3120, %v3116
        %v4549 = vpack.c.b16 %v3121, %v3117
        %v4550 = vpack.c.b16 %v3122, %v3118
        %v4551 = vpack.c.b16 %v3127, %v3123
        %v4552 = vpack.c.b16 %v3128, %v3124
        %v4553 = vpack.c.b16 %v3129, %v3125
        %v4554 = vpack.c.b16 %v3130, %v3126
        %v4555 = vpack.c.b16 %v3135, %v3131
        %v4556 = vpack.c.b16 %v3136, %v3132
        %v4557 = vpack.c.b16 %v3137, %v3133
        %v4558 = vpack.c.b16 %v3138, %v3134
        %v4559 = vpack.c.b16 %v3143, %v3139
        %v4560 = vpack.c.b16 %v3144, %v3140
        %v4561 = vpack.c.b16 %v3145, %v3141
        %v4562 = vpack.c.b16 %v3146, %v3142
        %v4563 = vpack.c.b16 %v3151, %v3147
        %v4564 = vpack.c.b16 %v3152, %v3148
        %v4565 = vpack.c.b16 %v3153, %v3149
        %v4566 = vpack.c.b16 %v3154, %v3150
        %v4567 = vpack.c.b16 %v3159, %v3155
        %v4568 = vpack.c.b16 %v3160, %v3156
        %v4569 = vpack.c.b16 %v3161, %v3157
        %v4570 = vpack.c.b16 %v3162, %v3158
        %v4571 = vpack.c.b16 %v3167, %v3163
        %v4572 = vpack.c.b16 %v3168, %v3164
        %v4573 = vpack.c.b16 %v3169, %v3165
        %v4574 = vpack.c.b16 %v3170, %v3166
        %v4575 = vpack.c.b16 %v3175, %v3171
        %v4576 = vpack.c.b16 %v3176, %v3172
        %v4577 = vpack.c.b16 %v3177, %v3173
        %v4578 = vpack.c.b16 %v3178, %v3174
        %v4579 = vpack.c.b16 %v3183, %v3179
        %v4580 = vpack.c.b16 %v3184, %v3180
        %v4581 = vpack.c.b16 %v3185, %v3181
        %v4582 = vpack.c.b16 %v3186, %v3182
        %v4583 = vpack.c.b16 %v3191, %v3187
        %v4584 = vpack.c.b16 %v3192, %v3188
        %v4585 = vpack.c.b16 %v3193, %v3189
        %v4586 = vpack.c.b16 %v3194, %v3190
        %v4587 = vpack.c.b16 %v3199, %v3195
        %v4588 = vpack.c.b16 %v3200, %v3196
        %v4589 = vpack.c.b16 %v3201, %v3197
        %v4590 = vpack.c.b16 %v3202, %v3198
        %v4591 = vpack.c.b16 %v3207, %v3203
        %v4592 = vpack.c.b16 %v3208, %v3204
        %v4593 = vpack.c.b16 %v3209, %v3205
        %v4594 = vpack.c.b16 %v3210, %v3206
        %v4595 = vpack.c.b16 %v3215, %v3211
        %v4596 = vpack.c.b16 %v3216, %v3212
        %v4597 = vpack.c.b16 %v3217, %v3213
        %v4598 = vpack.c.b16 %v3218, %v3214
        %v4599 = vpack.c.b16 %v3223, %v3219
        %v4600 = vpack.c.b16 %v3224, %v3220
        %v4601 = vpack.c.b16 %v3225, %v3221
        %v4602 = vpack.c.b16 %v3226, %v3222
        %v4603 = vpack.c.b16 %v3231, %v3227
        %v4604 = vpack.c.b16 %v3232, %v3228
        %v4605 = vpack.c.b16 %v3233, %v3229
        %v4606 = vpack.c.b16 %v3234, %v3230
        %v4607 = vpack.c.b16 %v3239, %v3235
        %v4608 = vpack.c.b16 %v3240, %v3236
        %v4609 = vpack.c.b16 %v3241, %v3237
        %v4610 = vpack.c.b16 %v3242, %v3238
        %v4611 = vpack.c.b16 %v3247, %v3243
        %v4612 = vpack.c.b16 %v3248, %v3244
        %v4613 = vpack.c.b16 %v3249, %v3245
        %v4614 = vpack.c.b16 %v3250, %v3246
        %v4615 = vpack.c.b16 %v3255, %v3251
        %v4616 = vpack.c.b16 %v3256, %v3252
        %v4617 = vpack.c.b16 %v3257, %v3253
        %v4618 = vpack.c.b16 %v3258, %v3254
        %v4619 = vpack.c.b16 %v3263, %v3259
        %v4620 = vpack.c.b16 %v3264, %v3260
        %v4621 = vpack.c.b16 %v3265, %v3261
        %v4622 = vpack.c.b16 %v3266, %v3262
        %v4623 = vpack.c.b16 %v3271, %v3267
        %v4624 = vpack.c.b16 %v3272, %v3268
        %v4625 = vpack.c.b16 %v3273, %v3269
        %v4626 = vpack.c.b16 %v3274, %v3270
        %v4627 = vpack.c.b16 %v3279, %v3275
        %v4628 = vpack.c.b16 %v3280, %v3276
        %v4629 = vpack.c.b16 %v3281, %v3277
        %v4630 = vpack.c.b16 %v3282, %v3278
        %v4631 = vpack.c.b16 %v3287, %v3283
        %v4632 = vpack.c.b16 %v3288, %v3284
        %v4633 = vpack.c.b16 %v3289, %v3285
        %v4634 = vpack.c.b16 %v3290, %v3286
        %v4635 = vpack.c.b16 %v3295, %v3291
        %v4636 = vpack.c.b16 %v3296, %v3292
        %v4637 = vpack.c.b16 %v3297, %v3293
        %v4638 = vpack.c.b16 %v3298, %v3294
        %v4639 = vpack.c.b16 %v3303, %v3299
        %v4640 = vpack.c.b16 %v3304, %v3300
        %v4641 = vpack.c.b16 %v3305, %v3301
        %v4642 = vpack.c.b16 %v3306, %v3302
        %v4643 = vpack.c.b16 %v3311, %v3307
        %v4644 = vpack.c.b16 %v3312, %v3308
        %v4645 = vpack.c.b16 %v3313, %v3309
        %v4646 = vpack.c.b16 %v3314, %v3310
        %v4647 = vpack.c.b16 %v3319, %v3315
        %v4648 = vpack.c.b16 %v3320, %v3316
        %v4649 = vpack.c.b16 %v3321, %v3317
        %v4650 = vpack.c.b16 %v3322, %v3318
        %v4651 = vpack.c.b16 %v3327, %v3323
        %v4652 = vpack.c.b16 %v3328, %v3324
        %v4653 = vpack.c.b16 %v3329, %v3325
        %v4654 = vpack.c.b16 %v3330, %v3326
        %v4655 = vpack.c.b16 %v3335, %v3331
        %v4656 = vpack.c.b16 %v3336, %v3332
        %v4657 = vpack.c.b16 %v3337, %v3333
        %v4658 = vpack.c.b16 %v3338, %v3334
        %v4659 = vpack.c.b16 %v3343, %v3339
        %v4660 = vpack.c.b16 %v3344, %v3340
        %v4661 = vpack.c.b16 %v3345, %v3341
        %v4662 = vpack.c.b16 %v3346, %v3342
        %v4663 = vpack.c.b16 %v3351, %v3347
        %v4664 = vpack.c.b16 %v3352, %v3348
        %v4665 = vpack.c.b16 %v3353, %v3349
        %v4666 = vpack.c.b16 %v3354, %v3350
        %v4667 = vpack.c.b16 %v3359, %v3355
        %v4668 = vpack.c.b16 %v3360, %v3356
        %v4669 = vpack.c.b16 %v3361, %v3357
        %v4670 = vpack.c.b16 %v3362, %v3358
        %v4671 = vpack.c.b16 %v3367, %v3363
        %v4672 = vpack.c.b16 %v3368, %v3364
        %v4673 = vpack.c.b16 %v3369, %v3365
        %v4674 = vpack.c.b16 %v3370, %v3366
        %v4675 = vpack.c.b16 %v3375, %v3371
        %v4676 = vpack.c.b16 %v3376, %v3372
        %v4677 = vpack.c.b16 %v3377, %v3373
        %v4678 = vpack.c.b16 %v3378, %v3374
        %v4679 = vpack.c.b16 %v3383, %v3379
        %v4680 = vpack.c.b16 %v3384, %v3380
        %v4681 = vpack.c.b16 %v3385, %v3381
        %v4682 = vpack.c.b16 %v3386, %v3382
        %v4683 = vpack.c.b16 %v3391, %v3387
        %v4684 = vpack.c.b16 %v3392, %v3388
        %v4685 = vpack.c.b16 %v3393, %v3389
        %v4686 = vpack.c.b16 %v3394, %v3390
        %v4687 = vpack.c.b16 %v3399, %v3395
        %v4688 = vpack.c.b16 %v3400, %v3396
        %v4689 = vpack.c.b16 %v3401, %v3397
        %v4690 = vpack.c.b16 %v3402, %v3398
        %v4691 = vpack.c.b16 %v3407, %v3403
        %v4692 = vpack.c.b16 %v3408, %v3404
        %v4693 = vpack.c.b16 %v3409, %v3405
        %v4694 = vpack.c.b16 %v3410, %v3406
        %v4695 = vpack.c.b16 %v3415, %v3411
        %v4696 = vpack.c.b16 %v3416, %v3412
        %v4697 = vpack.c.b16 %v3417, %v3413
        %v4698 = vpack.c.b16 %v3418, %v3414
        %v4699 = vpack.c.b16 %v3423, %v3419
        %v4700 = vpack.c.b16 %v3424, %v3420
        %v4701 = vpack.c.b16 %v3425, %v3421
        %v4702 = vpack.c.b16 %v3426, %v3422
        %v4703 = vpack.c.b16 %v3431, %v3427
        %v4704 = vpack.c.b16 %v3432, %v3428
        %v4705 = vpack.c.b16 %v3433, %v3429
        %v4706 = vpack.c.b16 %v3434, %v3430
        %v4707 = vpack.c.b16 %v3439, %v3435
        %v4708 = vpack.c.b16 %v3440, %v3436
        %v4709 = vpack.c.b16 %v3441, %v3437
        %v4710 = vpack.c.b16 %v3442, %v3438
        %v4711 = vpack.c.b16 %v3447, %v3443
        %v4712 = vpack.c.b16 %v3448, %v3444
        %v4713 = vpack.c.b16 %v3449, %v3445
        %v4714 = vpack.c.b16 %v3450, %v3446
        %v4715 = vpack.c.b16 %v3455, %v3451
        %v4716 = vpack.c.b16 %v3456, %v3452
        %v4717 = vpack.c.b16 %v3457, %v3453
        %v4718 = vpack.c.b16 %v3458, %v3454
        %v4719 = vpack.c.b16 %v3463, %v3459
        %v4720 = vpack.c.b16 %v3464, %v3460
        %v4721 = vpack.c.b16 %v3465, %v3461
        %v4722 = vpack.c.b16 %v3466, %v3462
        %v4723 = vpack.c.b16 %v3471, %v3467
        %v4724 = vpack.c.b16 %v3472, %v3468
        %v4725 = vpack.c.b16 %v3473, %v3469
        %v4726 = vpack.c.b16 %v3474, %v3470
        %v4727 = vpack.c.b16 %v3479, %v3475
        %v4728 = vpack.c.b16 %v3480, %v3476
        %v4729 = vpack.c.b16 %v3481, %v3477
        %v4730 = vpack.c.b16 %v3482, %v3478
        %v4731 = vpack.c.b16 %v3487, %v3483
        %v4732 = vpack.c.b16 %v3488, %v3484
        %v4733 = vpack.c.b16 %v3489, %v3485
        %v4734 = vpack.c.b16 %v3490, %v3486
        %v4735 = vpack.c.b16 %v3495, %v3491
        %v4736 = vpack.c.b16 %v3496, %v3492
        %v4737 = vpack.c.b16 %v3497, %v3493
        %v4738 = vpack.c.b16 %v3498, %v3494
        %v4739 = vpack.c.b16 %v3503, %v3499
        %v4740 = vpack.c.b16 %v3504, %v3500
        %v4741 = vpack.c.b16 %v3505, %v3501
        %v4742 = vpack.c.b16 %v3506, %v3502
        %v4743 = vpack.c.b16 %v3511, %v3507
        %v4744 = vpack.c.b16 %v3512, %v3508
        %v4745 = vpack.c.b16 %v3513, %v3509
        %v4746 = vpack.c.b16 %v3514, %v3510
        %v4747 = vpack.c.b16 %v3519, %v3515
        %v4748 = vpack.c.b16 %v3520, %v3516
        %v4749 = vpack.c.b16 %v3521, %v3517
        %v4750 = vpack.c.b16 %v3522, %v3518
        %v4751 = vpack.c.b16 %v3527, %v3523
        %v4752 = vpack.c.b16 %v3528, %v3524
        %v4753 = vpack.c.b16 %v3529, %v3525
        %v4754 = vpack.c.b16 %v3530, %v3526
        %v4755 = vpack.c.b16 %v3535, %v3531
        %v4756 = vpack.c.b16 %v3536, %v3532
        %v4757 = vpack.c.b16 %v3537, %v3533
        %v4758 = vpack.c.b16 %v3538, %v3534
        %v4759 = vpack.c.b16 %v3543, %v3539
        %v4760 = vpack.c.b16 %v3544, %v3540
        %v4761 = vpack.c.b16 %v3545, %v3541
        %v4762 = vpack.c.b16 %v3546, %v3542
        %v4763 = vpack.c.b16 %v3551, %v3547
        %v4764 = vpack.c.b16 %v3552, %v3548
        %v4765 = vpack.c.b16 %v3553, %v3549
        %v4766 = vpack.c.b16 %v3554, %v3550
        %v4767 = vpack.c.b16 %v3559, %v3555
        %v4768 = vpack.c.b16 %v3560, %v3556
        %v4769 = vpack.c.b16 %v3561, %v3557
        %v4770 = vpack.c.b16 %v3562, %v3558
        %v4771 = vpack.c.b16 %v3567, %v3563
        %v4772 = vpack.c.b16 %v3568, %v3564
        %v4773 = vpack.c.b16 %v3569, %v3565
        %v4774 = vpack.c.b16 %v3570, %v3566
        %v4775 = vpack.c.b16 %v3575, %v3571
        %v4776 = vpack.c.b16 %v3576, %v3572
        %v4777 = vpack.c.b16 %v3577, %v3573
        %v4778 = vpack.c.b16 %v3578, %v3574
        %v4779 = vpack.c.b16 %v3583, %v3579
        %v4780 = vpack.c.b16 %v3584, %v3580
        %v4781 = vpack.c.b16 %v3585, %v3581
        %v4782 = vpack.c.b16 %v3586, %v3582
        %v4783 = vpack.c.b16 %v3591, %v3587
        %v4784 = vpack.c.b16 %v3592, %v3588
        %v4785 = vpack.c.b16 %v3593, %v3589
        %v4786 = vpack.c.b16 %v3594, %v3590
        %v4787 = vpack.c.b16 %v3599, %v3595
        %v4788 = vpack.c.b16 %v3600, %v3596
        %v4789 = vpack.c.b16 %v3601, %v3597
        %v4790 = vpack.c.b16 %v3602, %v3598
        %v4791 = vpack.c.b16 %v3607, %v3603
        %v4792 = vpack.c.b16 %v3608, %v3604
        %v4793 = vpack.c.b16 %v3609, %v3605
        %v4794 = vpack.c.b16 %v3610, %v3606
        %v4795 = vpack.c.b16 %v3615, %v3611
        %v4796 = vpack.c.b16 %v3616, %v3612
        %v4797 = vpack.c.b16 %v3617, %v3613
        %v4798 = vpack.c.b16 %v3618, %v3614
        %v4799 = vpack.c.b16 %v3623, %v3619
        %v4800 = vpack.c.b16 %v3624, %v3620
        %v4801 = vpack.c.b16 %v3625, %v3621
        %v4802 = vpack.c.b16 %v3626, %v3622
        %v4803 = vpack.c.b16 %v3631, %v3627
        %v4804 = vpack.c.b16 %v3632, %v3628
        %v4805 = vpack.c.b16 %v3633, %v3629
        %v4806 = vpack.c.b16 %v3634, %v3630
        %v4807 = vpack.c.b16 %v3639, %v3635
        %v4808 = vpack.c.b16 %v3640, %v3636
        %v4809 = vpack.c.b16 %v3641, %v3637
        %v4810 = vpack.c.b16 %v3642, %v3638
        %v4811 = vpack.c.b16 %v3647, %v3643
        %v4812 = vpack.c.b16 %v3648, %v3644
        %v4813 = vpack.c.b16 %v3649, %v3645
        %v4814 = vpack.c.b16 %v3650, %v3646
        %v4815 = vpack.c.b16 %v3655, %v3651
        %v4816 = vpack.c.b16 %v3656, %v3652
        %v4817 = vpack.c.b16 %v3657, %v3653
        %v4818 = vpack.c.b16 %v3658, %v3654
        %v4819 = vpack.c.b16 %v3663, %v3659
        %v4820 = vpack.c.b16 %v3664, %v3660
        %v4821 = vpack.c.b16 %v3665, %v3661
        %v4822 = vpack.c.b16 %v3666, %v3662
        %v4823 = vpack.c.b16 %v3671, %v3667
        %v4824 = vpack.c.b16 %v3672, %v3668
        %v4825 = vpack.c.b16 %v3673, %v3669
        %v4826 = vpack.c.b16 %v3674, %v3670
        %v4827 = vpack.c.b16 %v3679, %v3675
        %v4828 = vpack.c.b16 %v3680, %v3676
        %v4829 = vpack.c.b16 %v3681, %v3677
        %v4830 = vpack.c.b16 %v3682, %v3678
        %v4831 = vpack.c.b16 %v3687, %v3683
        %v4832 = vpack.c.b16 %v3688, %v3684
        %v4833 = vpack.c.b16 %v3689, %v3685
        %v4834 = vpack.c.b16 %v3690, %v3686
        %v4835 = vpack.c.b16 %v3695, %v3691
        %v4836 = vpack.c.b16 %v3696, %v3692
        %v4837 = vpack.c.b16 %v3697, %v3693
        %v4838 = vpack.c.b16 %v3698, %v3694
        %v4839 = vpack.c.b16 %v3703, %v3699
        %v4840 = vpack.c.b16 %v3704, %v3700
        %v4841 = vpack.c.b16 %v3705, %v3701
        %v4842 = vpack.c.b16 %v3706, %v3702
        %v4843 = vpack.c.b16 %v3711, %v3707
        %v4844 = vpack.c.b16 %v3712, %v3708
        %v4845 = vpack.c.b16 %v3713, %v3709
        %v4846 = vpack.c.b16 %v3714, %v3710
        %v4847 = vpack.c.b16 %v3719, %v3715
        %v4848 = vpack.c.b16 %v3720, %v3716
        %v4849 = vpack.c.b16 %v3721, %v3717
        %v4850 = vpack.c.b16 %v3722, %v3718
        %v4851 = vpack.c.b16 %v3727, %v3723
        %v4852 = vpack.c.b16 %v3728, %v3724
        %v4853 = vpack.c.b16 %v3729, %v3725
        %v4854 = vpack.c.b16 %v3730, %v3726
        %v4855 = vpack.c.b16 %v3735, %v3731
        %v4856 = vpack.c.b16 %v3736, %v3732
        %v4857 = vpack.c.b16 %v3737, %v3733
        %v4858 = vpack.c.b16 %v3738, %v3734
        %v4859 = vpack.c.b16 %v3743, %v3739
        %v4860 = vpack.c.b16 %v3744, %v3740
        %v4861 = vpack.c.b16 %v3745, %v3741
        %v4862 = vpack.c.b16 %v3746, %v3742
        %v4863 = vpack.c.b16 %v3751, %v3747
        %v4864 = vpack.c.b16 %v3752, %v3748
        %v4865 = vpack.c.b16 %v3753, %v3749
        %v4866 = vpack.c.b16 %v3754, %v3750
        %v4867 = vpack.c.b16 %v3759, %v3755
        %v4868 = vpack.c.b16 %v3760, %v3756
        %v4869 = vpack.c.b16 %v3761, %v3757
        %v4870 = vpack.c.b16 %v3762, %v3758
        %v4871 = vpack.c.b16 %v3767, %v3763
        %v4872 = vpack.c.b16 %v3768, %v3764
        %v4873 = vpack.c.b16 %v3769, %v3765
        %v4874 = vpack.c.b16 %v3770, %v3766
        %v4875 = vpack.c.b16 %v3775, %v3771
        %v4876 = vpack.c.b16 %v3776, %v3772
        %v4877 = vpack.c.b16 %v3777, %v3773
        %v4878 = vpack.c.b16 %v3778, %v3774
        %v4879 = vpack.c.b16 %v3783, %v3779
        %v4880 = vpack.c.b16 %v3784, %v3780
        %v4881 = vpack.c.b16 %v3785, %v3781
        %v4882 = vpack.c.b16 %v3786, %v3782
        %v4883 = vpack.c.b16 %v3791, %v3787
        %v4884 = vpack.c.b16 %v3792, %v3788
        %v4885 = vpack.c.b16 %v3793, %v3789
        %v4886 = vpack.c.b16 %v3794, %v3790
        %v4887 = vpack.c.b16 %v3799, %v3795
        %v4888 = vpack.c.b16 %v3800, %v3796
        %v4889 = vpack.c.b16 %v3801, %v3797
        %v4890 = vpack.c.b16 %v3802, %v3798
        %v4891 = vpack.c.b16 %v3807, %v3803
        %v4892 = vpack.c.b16 %v3808, %v3804
        %v4893 = vpack.c.b16 %v3809, %v3805
        %v4894 = vpack.c.b16 %v3810, %v3806
        %v4895 = vpack.c.b16 %v3815, %v3811
        %v4896 = vpack.c.b16 %v3816, %v3812
        %v4897 = vpack.c.b16 %v3817, %v3813
        %v4898 = vpack.c.b16 %v3818, %v3814
        %v4899 = vpack.c.b16 %v3823, %v3819
        %v4900 = vpack.c.b16 %v3824, %v3820
        %v4901 = vpack.c.b16 %v3825, %v3821
        %v4902 = vpack.c.b16 %v3826, %v3822
        %v4903 = vpack.c.b16 %v3831, %v3827
        %v4904 = vpack.c.b16 %v3832, %v3828
        %v4905 = vpack.c.b16 %v3833, %v3829
        %v4906 = vpack.c.b16 %v3834, %v3830
        %v4907 = vpack.c.b16 %v3839, %v3835
        %v4908 = vpack.c.b16 %v3840, %v3836
        %v4909 = vpack.c.b16 %v3841, %v3837
        %v4910 = vpack.c.b16 %v3842, %v3838
        %v4911 = vpack.c.b16 %v3847, %v3843
        %v4912 = vpack.c.b16 %v3848, %v3844
        %v4913 = vpack.c.b16 %v3849, %v3845
        %v4914 = vpack.c.b16 %v3850, %v3846
        %v4915 = vpack.c.b16 %v3855, %v3851
        %v4916 = vpack.c.b16 %v3856, %v3852
        %v4917 = vpack.c.b16 %v3857, %v3853
        %v4918 = vpack.c.b16 %v3858, %v3854
        %v4919 = vpack.c.b16 %v3863, %v3859
        %v4920 = vpack.c.b16 %v3864, %v3860
        %v4921 = vpack.c.b16 %v3865, %v3861
        %v4922 = vpack.c.b16 %v3866, %v3862
        %v4923 = vpack.c.b16 %v3871, %v3867
        %v4924 = vpack.c.b16 %v3872, %v3868
        %v4925 = vpack.c.b16 %v3873, %v3869
        %v4926 = vpack.c.b16 %v3874, %v3870
        %v4927 = vpack.c.b16 %v3879, %v3875
        %v4928 = vpack.c.b16 %v3880, %v3876
        %v4929 = vpack.c.b16 %v3881, %v3877
        %v4930 = vpack.c.b16 %v3882, %v3878
        %v4931 = vpack.c.b16 %v3887, %v3883
        %v4932 = vpack.c.b16 %v3888, %v3884
        %v4933 = vpack.c.b16 %v3889, %v3885
        %v4934 = vpack.c.b16 %v3890, %v3886
        %v4935 = vpack.c.b16 %v3895, %v3891
        %v4936 = vpack.c.b16 %v3896, %v3892
        %v4937 = vpack.c.b16 %v3897, %v3893
        %v4938 = vpack.c.b16 %v3898, %v3894
        %v4939 = vpack.c.b16 %v3903, %v3899
        %v4940 = vpack.c.b16 %v3904, %v3900
        %v4941 = vpack.c.b16 %v3905, %v3901
        %v4942 = vpack.c.b16 %v3906, %v3902
        %v4943 = vpack.c.b16 %v3911, %v3907
        %v4944 = vpack.c.b16 %v3912, %v3908
        %v4945 = vpack.c.b16 %v3913, %v3909
        %v4946 = vpack.c.b16 %v3914, %v3910
        %v4947 = vpack.c.b16 %v3919, %v3915
        %v4948 = vpack.c.b16 %v3920, %v3916
        %v4949 = vpack.c.b16 %v3921, %v3917
        %v4950 = vpack.c.b16 %v3922, %v3918
        %v4951 = vpack.c.b16 %v3927, %v3923
        %v4952 = vpack.c.b16 %v3928, %v3924
        %v4953 = vpack.c.b16 %v3929, %v3925
        %v4954 = vpack.c.b16 %v3930, %v3926
        %v4955 = vpack.c.b16 %v3935, %v3931
        %v4956 = vpack.c.b16 %v3936, %v3932
        %v4957 = vpack.c.b16 %v3937, %v3933
        %v4958 = vpack.c.b16 %v3938, %v3934
        %v4959 = vpack.c.b16 %v3943, %v3939
        %v4960 = vpack.c.b16 %v3944, %v3940
        %v4961 = vpack.c.b16 %v3945, %v3941
        %v4962 = vpack.c.b16 %v3946, %v3942
        %v4963 = vpack.c.b16 %v3951, %v3947
        %v4964 = vpack.c.b16 %v3952, %v3948
        %v4965 = vpack.c.b16 %v3953, %v3949
        %v4966 = vpack.c.b16 %v3954, %v3950
        %v4967 = vpack.c.b16 %v3959, %v3955
        %v4968 = vpack.c.b16 %v3960, %v3956
        %v4969 = vpack.c.b16 %v3961, %v3957
        %v4970 = vpack.c.b16 %v3962, %v3958
        %v4971 = vpack.c.b16 %v3967, %v3963
        %v4972 = vpack.c.b16 %v3968, %v3964
        %v4973 = vpack.c.b16 %v3969, %v3965
        %v4974 = vpack.c.b16 %v3970, %v3966
        %v4975 = vpack.c.b16 %v3975, %v3971
        %v4976 = vpack.c.b16 %v3976, %v3972
        %v4977 = vpack.c.b16 %v3977, %v3973
        %v4978 = vpack.c.b16 %v3978, %v3974
        %v4979 = vpack.c.b16 %v3983, %v3979
        %v4980 = vpack.c.b16 %v3984, %v3980
        %v4981 = vpack.c.b16 %v3985, %v3981
        %v4982 = vpack.c.b16 %v3986, %v3982
        %v4983 = vpack.c.b16 %v3991, %v3987
        %v4984 = vpack.c.b16 %v3992, %v3988
        %v4985 = vpack.c.b16 %v3993, %v3989
        %v4986 = vpack.c.b16 %v3994, %v3990
        %v4987 = vpack.c.b16 %v3999, %v3995
        %v4988 = vpack.c.b16 %v4000, %v3996
        %v4989 = vpack.c.b16 %v4001, %v3997
        %v4990 = vpack.c.b16 %v4002, %v3998
        %v4991 = vpack.c.b16 %v4007, %v4003
        %v4992 = vpack.c.b16 %v4008, %v4004
        %v4993 = vpack.c.b16 %v4009, %v4005
        %v4994 = vpack.c.b16 %v4010, %v4006
        %v4995 = vpack.c.b16 %v4015, %v4011
        %v4996 = vpack.c.b16 %v4016, %v4012
        %v4997 = vpack.c.b16 %v4017, %v4013
        %v4998 = vpack.c.b16 %v4018, %v4014
        %v4999 = vpack.c.b16 %v4023, %v4019
        %v5000 = vpack.c.b16 %v4024, %v4020
        %v5001 = vpack.c.b16 %v4025, %v4021
        %v5002 = vpack.c.b16 %v4026, %v4022
        %v5003 = vpack.c.b16 %v4031, %v4027
        %v5004 = vpack.c.b16 %v4032, %v4028
        %v5005 = vpack.c.b16 %v4033, %v4029
        %v5006 = vpack.c.b16 %v4034, %v4030
        %v5007 = vpack.c.b16 %v4039, %v4035
        %v5008 = vpack.c.b16 %v4040, %v4036
        %v5009 = vpack.c.b16 %v4041, %v4037
        %v5010 = vpack.c.b16 %v4042, %v4038
        %v5011 = vpack.c.b16 %v4047, %v4043
        %v5012 = vpack.c.b16 %v4048, %v4044
        %v5013 = vpack.c.b16 %v4049, %v4045
        %v5014 = vpack.c.b16 %v4050, %v4046
        %v5015 = vpack.c.b16 %v4055, %v4051
        %v5016 = vpack.c.b16 %v4056, %v4052
        %v5017 = vpack.c.b16 %v4057, %v4053
        %v5018 = vpack.c.b16 %v4058, %v4054
        %v5019 = vpack.c.b16 %v4063, %v4059
        %v5020 = vpack.c.b16 %v4064, %v4060
        %v5021 = vpack.c.b16 %v4065, %v4061
        %v5022 = vpack.c.b16 %v4066, %v4062
        %v5023 = vpack.c.b16 %v4071, %v4067
        %v5024 = vpack.c.b16 %v4072, %v4068
        %v5025 = vpack.c.b16 %v4073, %v4069
        %v5026 = vpack.c.b16 %v4074, %v4070
        %v5027 = vpack.c.b16 %v4079, %v4075
        %v5028 = vpack.c.b16 %v4080, %v4076
        %v5029 = vpack.c.b16 %v4081, %v4077
        %v5030 = vpack.c.b16 %v4082, %v4078
        %v5031 = vpack.c.b16 %v4087, %v4083
        %v5032 = vpack.c.b16 %v4088, %v4084
        %v5033 = vpack.c.b16 %v4089, %v4085
        %v5034 = vpack.c.b16 %v4090, %v4086
        %v5035 = vpack.c.b16 %v4095, %v4091
        %v5036 = vpack.c.b16 %v4096, %v4092
        %v5037 = vpack.c.b16 %v4097, %v4093
        %v5038 = vpack.c.b16 %v4098, %v4094
        %v5039 = vpack.c.b16 %v4103, %v4099
        %v5040 = vpack.c.b16 %v4104, %v4100
        %v5041 = vpack.c.b16 %v4105, %v4101
        %v5042 = vpack.c.b16 %v4106, %v4102
        %v5043 = vpack.c.b16 %v4111, %v4107
        %v5044 = vpack.c.b16 %v4112, %v4108
        %v5045 = vpack.c.b16 %v4113, %v4109
        %v5046 = vpack.c.b16 %v4114, %v4110
        %v5047 = vpack.c.b16 %v4119, %v4115
        %v5048 = vpack.c.b16 %v4120, %v4116
        %v5049 = vpack.c.b16 %v4121, %v4117
        %v5050 = vpack.c.b16 %v4122, %v4118
        %v5051 = vpack.c.b16 %v4127, %v4123
        %v5052 = vpack.c.b16 %v4128, %v4124
        %v5053 = vpack.c.b16 %v4129, %v4125
        %v5054 = vpack.c.b16 %v4130, %v4126
        %v5055 = vpack.c.b16 %v4135, %v4131
        %v5056 = vpack.c.b16 %v4136, %v4132
        %v5057 = vpack.c.b16 %v4137, %v4133
        %v5058 = vpack.c.b16 %v4138, %v4134
        %v5059 = vpack.c.b16 %v4143, %v4139
        %v5060 = vpack.c.b16 %v4144, %v4140
        %v5061 = vpack.c.b16 %v4145, %v4141
        %v5062 = vpack.c.b16 %v4146, %v4142
        %v5063 = vpack.c.b16 %v4151, %v4147
        %v5064 = vpack.c.b16 %v4152, %v4148
        %v5065 = vpack.c.b16 %v4153, %v4149
        %v5066 = vpack.c.b16 %v4154, %v4150
        %v5067 = vpack.c.b16 %v4159, %v4155
        %v5068 = vpack.c.b16 %v4160, %v4156
        %v5069 = vpack.c.b16 %v4161, %v4157
        %v5070 = vpack.c.b16 %v4162, %v4158
        %v5071 = vpack.c.b16 %v4167, %v4163
        %v5072 = vpack.c.b16 %v4168, %v4164
        %v5073 = vpack.c.b16 %v4169, %v4165
        %v5074 = vpack.c.b16 %v4170, %v4166
        %v5075 = vpack.c.b16 %v4175, %v4171
        %v5076 = vpack.c.b16 %v4176, %v4172
        %v5077 = vpack.c.b16 %v4177, %v4173
        %v5078 = vpack.c.b16 %v4178, %v4174
        %v5079 = vpack.c.b16 %v4183, %v4179
        %v5080 = vpack.c.b16 %v4184, %v4180
        %v5081 = vpack.c.b16 %v4185, %v4181
        %v5082 = vpack.c.b16 %v4186, %v4182
        %v5083 = vpack.c.b16 %v4191, %v4187
        %v5084 = vpack.c.b16 %v4192, %v4188
        %v5085 = vpack.c.b16 %v4193, %v4189
        %v5086 = vpack.c.b16 %v4194, %v4190
        %v5087 = vpack.c.b16 %v4199, %v4195
        %v5088 = vpack.c.b16 %v4200, %v4196
        %v5089 = vpack.c.b16 %v4201, %v4197
        %v5090 = vpack.c.b16 %v4202, %v4198
        %v5091 = vpack.c.b16 %v4207, %v4203
        %v5092 = vpack.c.b16 %v4208, %v4204
        %v5093 = vpack.c.b16 %v4209, %v4205
        %v5094 = vpack.c.b16 %v4210, %v4206
        %v5095 = vpack.c.b16 %v4215, %v4211
        %v5096 = vpack.c.b16 %v4216, %v4212
        %v5097 = vpack.c.b16 %v4217, %v4213
        %v5098 = vpack.c.b16 %v4218, %v4214
        %v5099 = vpack.c.b16 %v4223, %v4219
        %v5100 = vpack.c.b16 %v4224, %v4220
        %v5101 = vpack.c.b16 %v4225, %v4221
        %v5102 = vpack.c.b16 %v4226, %v4222
        %v5103 = vpack.c.b16 %v4231, %v4227
        %v5104 = vpack.c.b16 %v4232, %v4228
        %v5105 = vpack.c.b16 %v4233, %v4229
        %v5106 = vpack.c.b16 %v4234, %v4230
        %v5107 = vpack.c.b16 %v4239, %v4235
        %v5108 = vpack.c.b16 %v4240, %v4236
        %v5109 = vpack.c.b16 %v4241, %v4237
        %v5110 = vpack.c.b16 %v4242, %v4238
        %v5111 = vpack.c.b16 %v4247, %v4243
        %v5112 = vpack.c.b16 %v4248, %v4244
        %v5113 = vpack.c.b16 %v4249, %v4245
        %v5114 = vpack.c.b16 %v4250, %v4246
        %v5115 = vpack.c.b16 %v4255, %v4251
        %v5116 = vpack.c.b16 %v4256, %v4252
        %v5117 = vpack.c.b16 %v4257, %v4253
        %v5118 = vpack.c.b16 %v4258, %v4254
        %v5119 = vpack.c.b16 %v4263, %v4259
        %v5120 = vpack.c.b16 %v4264, %v4260
        %v5121 = vpack.c.b16 %v4265, %v4261
        %v5122 = vpack.c.b16 %v4266, %v4262
        %v5123 = vpack.c.b16 %v4271, %v4267
        %v5124 = vpack.c.b16 %v4272, %v4268
        %v5125 = vpack.c.b16 %v4273, %v4269
        %v5126 = vpack.c.b16 %v4274, %v4270
        %v5127 = vpack.c.b16 %v4279, %v4275
        %v5128 = vpack.c.b16 %v4280, %v4276
        %v5129 = vpack.c.b16 %v4281, %v4277
        %v5130 = vpack.c.b16 %v4282, %v4278
        %v5131 = vpack.c.b16 %v4287, %v4283
        %v5132 = vpack.c.b16 %v4288, %v4284
        %v5133 = vpack.c.b16 %v4289, %v4285
        %v5134 = vpack.c.b16 %v4290, %v4286
        %v5135 = vpack.c.b16 %v4295, %v4291
        %v5136 = vpack.c.b16 %v4296, %v4292
        %v5137 = vpack.c.b16 %v4297, %v4293
        %v5138 = vpack.c.b16 %v4298, %v4294
        %v5139 = vpack.c.b16 %v4303, %v4299
        %v5140 = vpack.c.b16 %v4304, %v4300
        %v5141 = vpack.c.b16 %v4305, %v4301
        %v5142 = vpack.c.b16 %v4306, %v4302
        %v5143 = vpack.c.b16 %v4311, %v4307
        %v5144 = vpack.c.b16 %v4312, %v4308
        %v5145 = vpack.c.b16 %v4313, %v4309
        %v5146 = vpack.c.b16 %v4314, %v4310
        %v5147 = vpack.c.b16 %v4319, %v4315
        %v5148 = vpack.c.b16 %v4320, %v4316
        %v5149 = vpack.c.b16 %v4321, %v4317
        %v5150 = vpack.c.b16 %v4322, %v4318
        %v5151 = vpack.c.b16 %v4327, %v4323
        %v5152 = vpack.c.b16 %v4328, %v4324
        %v5153 = vpack.c.b16 %v4329, %v4325
        %v5154 = vpack.c.b16 %v4330, %v4326
        %v5155 = vpack.c.b16 %v4335, %v4331
        %v5156 = vpack.c.b16 %v4336, %v4332
        %v5157 = vpack.c.b16 %v4337, %v4333
        %v5158 = vpack.c.b16 %v4338, %v4334
        %v5159 = vpack.c.b16 %v4343, %v4339
        %v5160 = vpack.c.b16 %v4344, %v4340
        %v5161 = vpack.c.b16 %v4345, %v4341
        %v5162 = vpack.c.b16 %v4346, %v4342
        %v5163 = vpack.c.b16 %v4351, %v4347
        %v5164 = vpack.c.b16 %v4352, %v4348
        %v5165 = vpack.c.b16 %v4353, %v4349
        %v5166 = vpack.c.b16 %v4354, %v4350
        %v5167 = vpack.c.b16 %v4359, %v4355
        %v5168 = vpack.c.b16 %v4360, %v4356
        %v5169 = vpack.c.b16 %v4361, %v4357
        %v5170 = vpack.c.b16 %v4362, %v4358
        %v5171 = vpack.c.b16 %v4367, %v4363
        %v5172 = vpack.c.b16 %v4368, %v4364
        %v5173 = vpack.c.b16 %v4369, %v4365
        %v5174 = vpack.c.b16 %v4370, %v4366
        %v5175 = vpack.c.b16 %v4375, %v4371
        %v5176 = vpack.c.b16 %v4376, %v4372
        %v5177 = vpack.c.b16 %v4377, %v4373
        %v5178 = vpack.c.b16 %v4378, %v4374
        %v5179 = vpack.c.b16 %v4383, %v4379
        %v5180 = vpack.c.b16 %v4384, %v4380
        %v5181 = vpack.c.b16 %v4385, %v4381
        %v5182 = vpack.c.b16 %v4386, %v4382
        %v5183 = vpack.c.b16 %v4391, %v4387
        %v5184 = vpack.c.b16 %v4392, %v4388
        %v5185 = vpack.c.b16 %v4393, %v4389
        %v5186 = vpack.c.b16 %v4394, %v4390
        %v5187 = vpack.c.b16 %v4399, %v4395
        %v5188 = vpack.c.b16 %v4400, %v4396
        %v5189 = vpack.c.b16 %v4401, %v4397
        %v5190 = vpack.c.b16 %v4402, %v4398
        %v5191 = vpack.c.b16 %v4407, %v4403
        %v5192 = vpack.c.b16 %v4408, %v4404
        %v5193 = vpack.c.b16 %v4409, %v4405
        %v5194 = vpack.c.b16 %v4410, %v4406
        %vm5979 = vcmask 523264
        %v5981 = vsel %vm5979, %v2034, 0
        %5983 = vmatprep.subr.bf16.mxu0 %v4440
        %5984 = vmatpush1.bf16.msra.mxu0 %v4439
        %5985 = vmatprep.subr.bf16.mxu0 %v4436
        %5986 = vmatpush1.bf16.msra.mxu0 %v4435
        %5987 = vmatprep.subr.bf16.mxu0 %v4432
        %5988 = vmatpush1.bf16.msra.mxu0 %v4431
        %5989 = vmatprep.subr.bf16.mxu0 %v4428
        %5990 = vmatpush1.bf16.msra.mxu0 %v4427
        %5991 = vmatprep.subr.bf16.mxu0 %v4424
        %5992 = vmatpush1.bf16.msra.mxu0 %v4423
        %5993 = vmatprep.subr.bf16.mxu0 %v4420
        %5994 = vmatpush1.bf16.msra.mxu0 %v4419
        %5995 = vmatprep.subr.bf16.mxu0 %v4416
        %5996 = vmatpush1.bf16.msra.mxu0 %v4415
        %5997 = vmatprep.subr.bf16.mxu0 %v4412
        %5998 = vmatpush1.bf16.msra.mxu0 %v4411
        %5999 = vmatprep.subr.bf16.mxu0 %v4472
        %6000 = vmatpush2.bf16.msra.mxu0 %v4471
        %6001 = vmatprep.subr.bf16.mxu0 %v4468
        %6002 = vmatpush2.bf16.msra.mxu0 %v4467
        %6003 = vmatprep.subr.bf16.mxu0 %v4464
        %6004 = vmatpush2.bf16.msra.mxu0 %v4463
        %6005 = vmatprep.subr.bf16.mxu0 %v4460
        %6006 = vmatpush2.bf16.msra.mxu0 %v4459
        %6007 = vmatprep.subr.bf16.mxu0 %v4456
        %6008 = vmatpush2.bf16.msra.mxu0 %v4455
        %6009 = vmatprep.subr.bf16.mxu0 %v4452
        %6010 = vmatpush2.bf16.msra.mxu0 %v4451
        %6011 = vmatprep.subr.bf16.mxu0 %v4448
        %6012 = vmatpush2.bf16.msra.mxu0 %v4447
        %6013 = vmatprep.subr.bf16.mxu0 %v4444
        %6014 = vmatpush2.bf16.msra.mxu0 %v4443
        %6015 = vmatprep.mubr.bf16.mxu0 %v1710
        %6016 = vmatmul.mubr.bf16.gmra.mxu0 %v1706
        %v6017 = vpop.f32.mrf.mxu0
        %v6018 = vadd.f32 %v1529, %v6017
        %v6019 = vpop.f32.mrf.mxu0
        %v6020 = vadd.f32 %v1533, %v6019
        %v6021 = vpop.f32.mrf.mxu0
        %v6022 = vadd.f32 %v1529, %v6021
        %v6023 = vpop.f32.mrf.mxu0
        %v6024 = vadd.f32 %v1533, %v6023
        %6025 = vdwg.mxu0
        %6026 = vmatprep.subr.bf16.mxu0 %v4504
        %6027 = vmatpush1.bf16.msra.mxu0 %v4503
        %6028 = vmatprep.subr.bf16.mxu0 %v4500
        %6029 = vmatpush1.bf16.msra.mxu0 %v4499
        %6030 = vmatprep.subr.bf16.mxu0 %v4496
        %6031 = vmatpush1.bf16.msra.mxu0 %v4495
        %6032 = vmatprep.subr.bf16.mxu0 %v4492
        %6033 = vmatpush1.bf16.msra.mxu0 %v4491
        %6034 = vmatprep.subr.bf16.mxu0 %v4488
        %6035 = vmatpush1.bf16.msra.mxu0 %v4487
        %6036 = vmatprep.subr.bf16.mxu0 %v4484
        %6037 = vmatpush1.bf16.msra.mxu0 %v4483
        %6038 = vmatprep.subr.bf16.mxu0 %v4480
        %6039 = vmatpush1.bf16.msra.mxu0 %v4479
        %6040 = vmatprep.subr.bf16.mxu0 %v4476
        %6041 = vmatpush1.bf16.msra.mxu0 %v4475
        %6042 = vmatprep.subr.bf16.mxu0 %v4536
        %6043 = vmatpush2.bf16.msra.mxu0 %v4535
        %6044 = vmatprep.subr.bf16.mxu0 %v4532
        %6045 = vmatpush2.bf16.msra.mxu0 %v4531
        %6046 = vmatprep.subr.bf16.mxu0 %v4528
        %6047 = vmatpush2.bf16.msra.mxu0 %v4527
        %6048 = vmatprep.subr.bf16.mxu0 %v4524
        %6049 = vmatpush2.bf16.msra.mxu0 %v4523
        %6050 = vmatprep.subr.bf16.mxu0 %v4520
        %6051 = vmatpush2.bf16.msra.mxu0 %v4519
        %6052 = vmatprep.subr.bf16.mxu0 %v4516
        %6053 = vmatpush2.bf16.msra.mxu0 %v4515
        %6054 = vmatprep.subr.bf16.mxu0 %v4512
        %6055 = vmatpush2.bf16.msra.mxu0 %v4511
        %6056 = vmatprep.subr.bf16.mxu0 %v4508
        %6057 = vmatpush2.bf16.msra.mxu0 %v4507
        %6058 = vmatprep.mubr.bf16.mxu0 %v1711
        %6059 = vmatmul.mubr.bf16.gmra.mxu0 %v1707
        %v6060 = vpop.f32.mrf.mxu0
        %v6061 = vadd.f32 %v6018, %v6060
        %v6062 = vpop.f32.mrf.mxu0
        %v6063 = vadd.f32 %v6020, %v6062
        %v6064 = vpop.f32.mrf.mxu0
        %v6065 = vadd.f32 %v6022, %v6064
        %v6066 = vpop.f32.mrf.mxu0
        %v6067 = vadd.f32 %v6024, %v6066
        %6068 = vdwg.mxu0
        %6069 = vmatprep.subr.bf16.mxu0 %v4568
        %6070 = vmatpush1.bf16.msra.mxu0 %v4567
        %6071 = vmatprep.subr.bf16.mxu0 %v4564
        %6072 = vmatpush1.bf16.msra.mxu0 %v4563
        %6073 = vmatprep.subr.bf16.mxu0 %v4560
        %6074 = vmatpush1.bf16.msra.mxu0 %v4559
        %6075 = vmatprep.subr.bf16.mxu0 %v4556
        %6076 = vmatpush1.bf16.msra.mxu0 %v4555
        %6077 = vmatprep.subr.bf16.mxu0 %v4552
        %6078 = vmatpush1.bf16.msra.mxu0 %v4551
        %6079 = vmatprep.subr.bf16.mxu0 %v4548
        %6080 = vmatpush1.bf16.msra.mxu0 %v4547
        %6081 = vmatprep.subr.bf16.mxu0 %v4544
        %6082 = vmatpush1.bf16.msra.mxu0 %v4543
        %6083 = vmatprep.subr.bf16.mxu0 %v4540
        %6084 = vmatpush1.bf16.msra.mxu0 %v4539
        %6085 = vmatprep.subr.bf16.mxu0 %v4600
        %6086 = vmatpush2.bf16.msra.mxu0 %v4599
        %6087 = vmatprep.subr.bf16.mxu0 %v4596
        %6088 = vmatpush2.bf16.msra.mxu0 %v4595
        %6089 = vmatprep.subr.bf16.mxu0 %v4592
        %6090 = vmatpush2.bf16.msra.mxu0 %v4591
        %6091 = vmatprep.subr.bf16.mxu0 %v4588
        %6092 = vmatpush2.bf16.msra.mxu0 %v4587
        %6093 = vmatprep.subr.bf16.mxu0 %v4584
        %6094 = vmatpush2.bf16.msra.mxu0 %v4583
        %6095 = vmatprep.subr.bf16.mxu0 %v4580
        %6096 = vmatpush2.bf16.msra.mxu0 %v4579
        %6097 = vmatprep.subr.bf16.mxu0 %v4576
        %6098 = vmatpush2.bf16.msra.mxu0 %v4575
        %6099 = vmatprep.subr.bf16.mxu0 %v4572
        %6100 = vmatpush2.bf16.msra.mxu0 %v4571
        %6101 = vmatprep.mubr.bf16.mxu0 %v1712
        %6102 = vmatmul.mubr.bf16.gmra.mxu0 %v1708
        %v6103 = vpop.f32.mrf.mxu0
        %v6104 = vadd.f32 %v6061, %v6103
        %v6105 = vpop.f32.mrf.mxu0
        %v6106 = vadd.f32 %v6063, %v6105
        %v6107 = vpop.f32.mrf.mxu0
        %v6108 = vadd.f32 %v6065, %v6107
        %v6109 = vpop.f32.mrf.mxu0
        %v6110 = vadd.f32 %v6067, %v6109
        %6111 = vdwg.mxu0
        %6112 = vmatprep.subr.bf16.mxu0 %v4632
        %6113 = vmatpush1.bf16.msra.mxu0 %v4631
        %6114 = vmatprep.subr.bf16.mxu0 %v4628
        %6115 = vmatpush1.bf16.msra.mxu0 %v4627
        %6116 = vmatprep.subr.bf16.mxu0 %v4624
        %6117 = vmatpush1.bf16.msra.mxu0 %v4623
        %6118 = vmatprep.subr.bf16.mxu0 %v4620
        %6119 = vmatpush1.bf16.msra.mxu0 %v4619
        %6120 = vmatprep.subr.bf16.mxu0 %v4616
        %6121 = vmatpush1.bf16.msra.mxu0 %v4615
        %6122 = vmatprep.subr.bf16.mxu0 %v4612
        %6123 = vmatpush1.bf16.msra.mxu0 %v4611
        %6124 = vmatprep.subr.bf16.mxu0 %v4608
        %6125 = vmatpush1.bf16.msra.mxu0 %v4607
        %6126 = vmatprep.subr.bf16.mxu0 %v4604
        %6127 = vmatpush1.bf16.msra.mxu0 %v4603
        %6128 = vmatprep.subr.bf16.mxu0 %v4664
        %6129 = vmatpush2.bf16.msra.mxu0 %v4663
        %6130 = vmatprep.subr.bf16.mxu0 %v4660
        %6131 = vmatpush2.bf16.msra.mxu0 %v4659
        %6132 = vmatprep.subr.bf16.mxu0 %v4656
        %6133 = vmatpush2.bf16.msra.mxu0 %v4655
        %6134 = vmatprep.subr.bf16.mxu0 %v4652
        %6135 = vmatpush2.bf16.msra.mxu0 %v4651
        %6136 = vmatprep.subr.bf16.mxu0 %v4648
        %6137 = vmatpush2.bf16.msra.mxu0 %v4647
        %6138 = vmatprep.subr.bf16.mxu0 %v4644
        %6139 = vmatpush2.bf16.msra.mxu0 %v4643
        %6140 = vmatprep.subr.bf16.mxu0 %v4640
        %6141 = vmatpush2.bf16.msra.mxu0 %v4639
        %6142 = vmatprep.subr.bf16.mxu0 %v4636
        %6143 = vmatpush2.bf16.msra.mxu0 %v4635
        %6144 = vmatprep.mubr.bf16.mxu0 %v1713
        %6145 = vmatmul.mubr.bf16.gmra.mxu0 %v1709
        %v6146 = vpop.f32.mrf.mxu0
        %v6147 = vadd.f32 %v6104, %v6146
        %v6148 = vpop.f32.mrf.mxu0
        %v6149 = vadd.f32 %v6106, %v6148
        %v6150 = vpop.f32.mrf.mxu0
        %v6151 = vadd.f32 %v6108, %v6150
        %v6152 = vpop.f32.mrf.mxu0
        %v6153 = vadd.f32 %v6110, %v6152
        %6154 = vdwg.mxu0
        %6155 = vmatprep.subr.bf16.mxu0 %v4696
        %6156 = vmatpush1.bf16.msra.mxu0 %v4695
        %6157 = vmatprep.subr.bf16.mxu0 %v4692
        %6158 = vmatpush1.bf16.msra.mxu0 %v4691
        %6159 = vmatprep.subr.bf16.mxu0 %v4688
        %6160 = vmatpush1.bf16.msra.mxu0 %v4687
        %6161 = vmatprep.subr.bf16.mxu0 %v4684
        %6162 = vmatpush1.bf16.msra.mxu0 %v4683
        %6163 = vmatprep.subr.bf16.mxu0 %v4680
        %6164 = vmatpush1.bf16.msra.mxu0 %v4679
        %6165 = vmatprep.subr.bf16.mxu0 %v4676
        %6166 = vmatpush1.bf16.msra.mxu0 %v4675
        %6167 = vmatprep.subr.bf16.mxu0 %v4672
        %6168 = vmatpush1.bf16.msra.mxu0 %v4671
        %6169 = vmatprep.subr.bf16.mxu0 %v4668
        %6170 = vmatpush1.bf16.msra.mxu0 %v4667
        %6171 = vmatprep.subr.bf16.mxu0 %v4728
        %6172 = vmatpush2.bf16.msra.mxu0 %v4727
        %6173 = vmatprep.subr.bf16.mxu0 %v4724
        %6174 = vmatpush2.bf16.msra.mxu0 %v4723
        %6175 = vmatprep.subr.bf16.mxu0 %v4720
        %6176 = vmatpush2.bf16.msra.mxu0 %v4719
        %6177 = vmatprep.subr.bf16.mxu0 %v4716
        %6178 = vmatpush2.bf16.msra.mxu0 %v4715
        %6179 = vmatprep.subr.bf16.mxu0 %v4712
        %6180 = vmatpush2.bf16.msra.mxu0 %v4711
        %6181 = vmatprep.subr.bf16.mxu0 %v4708
        %6182 = vmatpush2.bf16.msra.mxu0 %v4707
        %6183 = vmatprep.subr.bf16.mxu0 %v4704
        %6184 = vmatpush2.bf16.msra.mxu0 %v4703
        %6185 = vmatprep.subr.bf16.mxu0 %v4700
        %6186 = vmatpush2.bf16.msra.mxu0 %v4699
        %6187 = vmatprep.mubr.bf16.mxu0 %v1846
        %6188 = vmatmul.mubr.bf16.gmra.mxu0 %v1842
        %v6189 = vpop.f32.mrf.mxu0
        %v6190 = vadd.f32 %v6147, %v6189
        %v6191 = vpop.f32.mrf.mxu0
        %v6192 = vadd.f32 %v6149, %v6191
        %v6193 = vpop.f32.mrf.mxu0
        %v6194 = vadd.f32 %v6151, %v6193
        %v6195 = vpop.f32.mrf.mxu0
        %v6196 = vadd.f32 %v6153, %v6195
        %6197 = vdwg.mxu0
        %6198 = vmatprep.subr.bf16.mxu0 %v4760
        %6199 = vmatpush1.bf16.msra.mxu0 %v4759
        %6200 = vmatprep.subr.bf16.mxu0 %v4756
        %6201 = vmatpush1.bf16.msra.mxu0 %v4755
        %6202 = vmatprep.subr.bf16.mxu0 %v4752
        %6203 = vmatpush1.bf16.msra.mxu0 %v4751
        %6204 = vmatprep.subr.bf16.mxu0 %v4748
        %6205 = vmatpush1.bf16.msra.mxu0 %v4747
        %6206 = vmatprep.subr.bf16.mxu0 %v4744
        %6207 = vmatpush1.bf16.msra.mxu0 %v4743
        %6208 = vmatprep.subr.bf16.mxu0 %v4740
        %6209 = vmatpush1.bf16.msra.mxu0 %v4739
        %6210 = vmatprep.subr.bf16.mxu0 %v4736
        %6211 = vmatpush1.bf16.msra.mxu0 %v4735
        %6212 = vmatprep.subr.bf16.mxu0 %v4732
        %6213 = vmatpush1.bf16.msra.mxu0 %v4731
        %6214 = vmatprep.subr.bf16.mxu0 %v4792
        %6215 = vmatpush2.bf16.msra.mxu0 %v4791
        %6216 = vmatprep.subr.bf16.mxu0 %v4788
        %6217 = vmatpush2.bf16.msra.mxu0 %v4787
        %6218 = vmatprep.subr.bf16.mxu0 %v4784
        %6219 = vmatpush2.bf16.msra.mxu0 %v4783
        %6220 = vmatprep.subr.bf16.mxu0 %v4780
        %6221 = vmatpush2.bf16.msra.mxu0 %v4779
        %6222 = vmatprep.subr.bf16.mxu0 %v4776
        %6223 = vmatpush2.bf16.msra.mxu0 %v4775
        %6224 = vmatprep.subr.bf16.mxu0 %v4772
        %6225 = vmatpush2.bf16.msra.mxu0 %v4771
        %6226 = vmatprep.subr.bf16.mxu0 %v4768
        %6227 = vmatpush2.bf16.msra.mxu0 %v4767
        %6228 = vmatprep.subr.bf16.mxu0 %v4764
        %6229 = vmatpush2.bf16.msra.mxu0 %v4763
        %6230 = vmatprep.mubr.bf16.mxu0 %v1847
        %6231 = vmatmul.mubr.bf16.gmra.mxu0 %v1843
        %v6232 = vpop.f32.mrf.mxu0
        %v6233 = vadd.f32 %v6190, %v6232
        %v6234 = vpop.f32.mrf.mxu0
        %v6235 = vadd.f32 %v6192, %v6234
        %v6236 = vpop.f32.mrf.mxu0
        %v6237 = vadd.f32 %v6194, %v6236
        %v6238 = vpop.f32.mrf.mxu0
        %v6239 = vadd.f32 %v6196, %v6238
        %6240 = vdwg.mxu0
        %6241 = vmatprep.subr.bf16.mxu0 %v4824
        %6242 = vmatpush1.bf16.msra.mxu0 %v4823
        %6243 = vmatprep.subr.bf16.mxu0 %v4820
        %6244 = vmatpush1.bf16.msra.mxu0 %v4819
        %6245 = vmatprep.subr.bf16.mxu0 %v4816
        %6246 = vmatpush1.bf16.msra.mxu0 %v4815
        %6247 = vmatprep.subr.bf16.mxu0 %v4812
        %6248 = vmatpush1.bf16.msra.mxu0 %v4811
        %6249 = vmatprep.subr.bf16.mxu0 %v4808
        %6250 = vmatpush1.bf16.msra.mxu0 %v4807
        %6251 = vmatprep.subr.bf16.mxu0 %v4804
        %6252 = vmatpush1.bf16.msra.mxu0 %v4803
        %6253 = vmatprep.subr.bf16.mxu0 %v4800
        %6254 = vmatpush1.bf16.msra.mxu0 %v4799
        %6255 = vmatprep.subr.bf16.mxu0 %v4796
        %6256 = vmatpush1.bf16.msra.mxu0 %v4795
        %6257 = vmatprep.subr.bf16.mxu0 %v4856
        %6258 = vmatpush2.bf16.msra.mxu0 %v4855
        %6259 = vmatprep.subr.bf16.mxu0 %v4852
        %6260 = vmatpush2.bf16.msra.mxu0 %v4851
        %6261 = vmatprep.subr.bf16.mxu0 %v4848
        %6262 = vmatpush2.bf16.msra.mxu0 %v4847
        %6263 = vmatprep.subr.bf16.mxu0 %v4844
        %6264 = vmatpush2.bf16.msra.mxu0 %v4843
        %6265 = vmatprep.subr.bf16.mxu0 %v4840
        %6266 = vmatpush2.bf16.msra.mxu0 %v4839
        %6267 = vmatprep.subr.bf16.mxu0 %v4836
        %6268 = vmatpush2.bf16.msra.mxu0 %v4835
        %6269 = vmatprep.subr.bf16.mxu0 %v4832
        %6270 = vmatpush2.bf16.msra.mxu0 %v4831
        %6271 = vmatprep.subr.bf16.mxu0 %v4828
        %6272 = vmatpush2.bf16.msra.mxu0 %v4827
        %6273 = vmatprep.mubr.bf16.mxu0 %v1848
        %6274 = vmatmul.mubr.bf16.gmra.mxu0 %v1844
        %v6275 = vpop.f32.mrf.mxu0
        %v6276 = vadd.f32 %v6233, %v6275
        %v6277 = vpop.f32.mrf.mxu0
        %v6278 = vadd.f32 %v6235, %v6277
        %v6279 = vpop.f32.mrf.mxu0
        %v6280 = vadd.f32 %v6237, %v6279
        %v6281 = vpop.f32.mrf.mxu0
        %v6282 = vadd.f32 %v6239, %v6281
        %6283 = vdwg.mxu0
        %6284 = vmatprep.subr.bf16.mxu0 %v4888
        %6285 = vmatpush1.bf16.msra.mxu0 %v4887
        %6286 = vmatprep.subr.bf16.mxu0 %v4884
        %6287 = vmatpush1.bf16.msra.mxu0 %v4883
        %6288 = vmatprep.subr.bf16.mxu0 %v4880
        %6289 = vmatpush1.bf16.msra.mxu0 %v4879
        %6290 = vmatprep.subr.bf16.mxu0 %v4876
        %6291 = vmatpush1.bf16.msra.mxu0 %v4875
        %6292 = vmatprep.subr.bf16.mxu0 %v4872
        %6293 = vmatpush1.bf16.msra.mxu0 %v4871
        %6294 = vmatprep.subr.bf16.mxu0 %v4868
        %6295 = vmatpush1.bf16.msra.mxu0 %v4867
        %6296 = vmatprep.subr.bf16.mxu0 %v4864
        %6297 = vmatpush1.bf16.msra.mxu0 %v4863
        %6298 = vmatprep.subr.bf16.mxu0 %v4860
        %6299 = vmatpush1.bf16.msra.mxu0 %v4859
        %6300 = vmatprep.subr.bf16.mxu0 %v4920
        %6301 = vmatpush2.bf16.msra.mxu0 %v4919
        %6302 = vmatprep.subr.bf16.mxu0 %v4916
        %6303 = vmatpush2.bf16.msra.mxu0 %v4915
        %6304 = vmatprep.subr.bf16.mxu0 %v4912
        %6305 = vmatpush2.bf16.msra.mxu0 %v4911
        %6306 = vmatprep.subr.bf16.mxu0 %v4908
        %6307 = vmatpush2.bf16.msra.mxu0 %v4907
        %6308 = vmatprep.subr.bf16.mxu0 %v4904
        %6309 = vmatpush2.bf16.msra.mxu0 %v4903
        %6310 = vmatprep.subr.bf16.mxu0 %v4900
        %6311 = vmatpush2.bf16.msra.mxu0 %v4899
        %6312 = vmatprep.subr.bf16.mxu0 %v4896
        %6313 = vmatpush2.bf16.msra.mxu0 %v4895
        %6314 = vmatprep.subr.bf16.mxu0 %v4892
        %6315 = vmatpush2.bf16.msra.mxu0 %v4891
        %6316 = vmatprep.mubr.bf16.mxu0 %v1849
        %6317 = vmatmul.mubr.bf16.gmra.mxu0 %v1845
        %v6318 = vpop.f32.mrf.mxu0
        %v6319 = vadd.f32 %v6276, %v6318
        %v6320 = vpop.f32.mrf.mxu0
        %v6321 = vadd.f32 %v6278, %v6320
        %v6322 = vpop.f32.mrf.mxu0
        %v6323 = vadd.f32 %v6280, %v6322
        %v6324 = vpop.f32.mrf.mxu0
        %v6325 = vadd.f32 %v6282, %v6324
        %6326 = vdwg.mxu0
        %6327 = vmatprep.subr.bf16.mxu0 %v4952
        %6328 = vmatpush1.bf16.msra.mxu0 %v4951
        %6329 = vmatprep.subr.bf16.mxu0 %v4948
        %6330 = vmatpush1.bf16.msra.mxu0 %v4947
        %6331 = vmatprep.subr.bf16.mxu0 %v4944
        %6332 = vmatpush1.bf16.msra.mxu0 %v4943
        %6333 = vmatprep.subr.bf16.mxu0 %v4940
        %6334 = vmatpush1.bf16.msra.mxu0 %v4939
        %6335 = vmatprep.subr.bf16.mxu0 %v4936
        %6336 = vmatpush1.bf16.msra.mxu0 %v4935
        %6337 = vmatprep.subr.bf16.mxu0 %v4932
        %6338 = vmatpush1.bf16.msra.mxu0 %v4931
        %6339 = vmatprep.subr.bf16.mxu0 %v4928
        %6340 = vmatpush1.bf16.msra.mxu0 %v4927
        %6341 = vmatprep.subr.bf16.mxu0 %v4924
        %6342 = vmatpush1.bf16.msra.mxu0 %v4923
        %6343 = vmatprep.subr.bf16.mxu0 %v4984
        %6344 = vmatpush2.bf16.msra.mxu0 %v4983
        %6345 = vmatprep.subr.bf16.mxu0 %v4980
        %6346 = vmatpush2.bf16.msra.mxu0 %v4979
        %6347 = vmatprep.subr.bf16.mxu0 %v4976
        %6348 = vmatpush2.bf16.msra.mxu0 %v4975
        %6349 = vmatprep.subr.bf16.mxu0 %v4972
        %6350 = vmatpush2.bf16.msra.mxu0 %v4971
        %6351 = vmatprep.subr.bf16.mxu0 %v4968
        %6352 = vmatpush2.bf16.msra.mxu0 %v4967
        %6353 = vmatprep.subr.bf16.mxu0 %v4964
        %6354 = vmatpush2.bf16.msra.mxu0 %v4963
        %6355 = vmatprep.subr.bf16.mxu0 %v4960
        %6356 = vmatpush2.bf16.msra.mxu0 %v4959
        %6357 = vmatprep.subr.bf16.mxu0 %v4956
        %6358 = vmatpush2.bf16.msra.mxu0 %v4955
        %6359 = vmatprep.mubr.bf16.mxu0 %v1982
        %6360 = vmatmul.mubr.bf16.gmra.mxu0 %v1978
        %v6361 = vpop.f32.mrf.mxu0
        %v6362 = vadd.f32 %v6319, %v6361
        %v6363 = vpop.f32.mrf.mxu0
        %v6364 = vadd.f32 %v6321, %v6363
        %v6365 = vpop.f32.mrf.mxu0
        %v6366 = vadd.f32 %v6323, %v6365
        %v6367 = vpop.f32.mrf.mxu0
        %v6368 = vadd.f32 %v6325, %v6367
        %6369 = vdwg.mxu0
        %6370 = vmatprep.subr.bf16.mxu0 %v5016
        %6371 = vmatpush1.bf16.msra.mxu0 %v5015
        %6372 = vmatprep.subr.bf16.mxu0 %v5012
        %6373 = vmatpush1.bf16.msra.mxu0 %v5011
        %6374 = vmatprep.subr.bf16.mxu0 %v5008
        %6375 = vmatpush1.bf16.msra.mxu0 %v5007
        %6376 = vmatprep.subr.bf16.mxu0 %v5004
        %6377 = vmatpush1.bf16.msra.mxu0 %v5003
        %6378 = vmatprep.subr.bf16.mxu0 %v5000
        %6379 = vmatpush1.bf16.msra.mxu0 %v4999
        %6380 = vmatprep.subr.bf16.mxu0 %v4996
        %6381 = vmatpush1.bf16.msra.mxu0 %v4995
        %6382 = vmatprep.subr.bf16.mxu0 %v4992
        %6383 = vmatpush1.bf16.msra.mxu0 %v4991
        %6384 = vmatprep.subr.bf16.mxu0 %v4988
        %6385 = vmatpush1.bf16.msra.mxu0 %v4987
        %6386 = vmatprep.subr.bf16.mxu0 %v5048
        %6387 = vmatpush2.bf16.msra.mxu0 %v5047
        %6388 = vmatprep.subr.bf16.mxu0 %v5044
        %6389 = vmatpush2.bf16.msra.mxu0 %v5043
        %6390 = vmatprep.subr.bf16.mxu0 %v5040
        %6391 = vmatpush2.bf16.msra.mxu0 %v5039
        %6392 = vmatprep.subr.bf16.mxu0 %v5036
        %6393 = vmatpush2.bf16.msra.mxu0 %v5035
        %6394 = vmatprep.subr.bf16.mxu0 %v5032
        %6395 = vmatpush2.bf16.msra.mxu0 %v5031
        %6396 = vmatprep.subr.bf16.mxu0 %v5028
        %6397 = vmatpush2.bf16.msra.mxu0 %v5027
        %6398 = vmatprep.subr.bf16.mxu0 %v5024
        %6399 = vmatpush2.bf16.msra.mxu0 %v5023
        %6400 = vmatprep.subr.bf16.mxu0 %v5020
        %6401 = vmatpush2.bf16.msra.mxu0 %v5019
        %6402 = vmatprep.mubr.bf16.mxu0 %v1983
        %6403 = vmatmul.mubr.bf16.gmra.mxu0 %v1979
        %v6404 = vpop.f32.mrf.mxu0
        %v6405 = vadd.f32 %v6362, %v6404
        %v6406 = vpop.f32.mrf.mxu0
        %v6407 = vadd.f32 %v6364, %v6406
        %v6408 = vpop.f32.mrf.mxu0
        %v6409 = vadd.f32 %v6366, %v6408
        %v6410 = vpop.f32.mrf.mxu0
        %v6411 = vadd.f32 %v6368, %v6410
        %6412 = vdwg.mxu0
        %6413 = vmatprep.subr.bf16.mxu0 %v5080
        %6414 = vmatpush1.bf16.msra.mxu0 %v5079
        %6415 = vmatprep.subr.bf16.mxu0 %v5076
        %6416 = vmatpush1.bf16.msra.mxu0 %v5075
        %6417 = vmatprep.subr.bf16.mxu0 %v5072
        %6418 = vmatpush1.bf16.msra.mxu0 %v5071
        %6419 = vmatprep.subr.bf16.mxu0 %v5068
        %6420 = vmatpush1.bf16.msra.mxu0 %v5067
        %6421 = vmatprep.subr.bf16.mxu0 %v5064
        %6422 = vmatpush1.bf16.msra.mxu0 %v5063
        %6423 = vmatprep.subr.bf16.mxu0 %v5060
        %6424 = vmatpush1.bf16.msra.mxu0 %v5059
        %6425 = vmatprep.subr.bf16.mxu0 %v5056
        %6426 = vmatpush1.bf16.msra.mxu0 %v5055
        %6427 = vmatprep.subr.bf16.mxu0 %v5052
        %6428 = vmatpush1.bf16.msra.mxu0 %v5051
        %6429 = vmatprep.subr.bf16.mxu0 %v5112
        %6430 = vmatpush2.bf16.msra.mxu0 %v5111
        %6431 = vmatprep.subr.bf16.mxu0 %v5108
        %6432 = vmatpush2.bf16.msra.mxu0 %v5107
        %6433 = vmatprep.subr.bf16.mxu0 %v5104
        %6434 = vmatpush2.bf16.msra.mxu0 %v5103
        %6435 = vmatprep.subr.bf16.mxu0 %v5100
        %6436 = vmatpush2.bf16.msra.mxu0 %v5099
        %6437 = vmatprep.subr.bf16.mxu0 %v5096
        %6438 = vmatpush2.bf16.msra.mxu0 %v5095
        %6439 = vmatprep.subr.bf16.mxu0 %v5092
        %6440 = vmatpush2.bf16.msra.mxu0 %v5091
        %6441 = vmatprep.subr.bf16.mxu0 %v5088
        %6442 = vmatpush2.bf16.msra.mxu0 %v5087
        %6443 = vmatprep.subr.bf16.mxu0 %v5084
        %6444 = vmatpush2.bf16.msra.mxu0 %v5083
        %6445 = vmatprep.mubr.bf16.mxu0 %v1984
        %6446 = vmatmul.mubr.bf16.gmra.mxu0 %v1980
        %v6447 = vpop.f32.mrf.mxu0
        %v6448 = vadd.f32 %v6405, %v6447
        %v6449 = vpop.f32.mrf.mxu0
        %v6450 = vadd.f32 %v6407, %v6449
        %v6451 = vpop.f32.mrf.mxu0
        %v6452 = vadd.f32 %v6409, %v6451
        %v6453 = vpop.f32.mrf.mxu0
        %v6454 = vadd.f32 %v6411, %v6453
        %6455 = vdwg.mxu0
        %6456 = vmatprep.subr.bf16.mxu0 %v5144
        %6457 = vmatpush1.bf16.msra.mxu0 %v5143
        %6458 = vmatprep.subr.bf16.mxu0 %v5140
        %6459 = vmatpush1.bf16.msra.mxu0 %v5139
        %6460 = vmatprep.subr.bf16.mxu0 %v5136
        %6461 = vmatpush1.bf16.msra.mxu0 %v5135
        %6462 = vmatprep.subr.bf16.mxu0 %v5132
        %6463 = vmatpush1.bf16.msra.mxu0 %v5131
        %6464 = vmatprep.subr.bf16.mxu0 %v5128
        %6465 = vmatpush1.bf16.msra.mxu0 %v5127
        %6466 = vmatprep.subr.bf16.mxu0 %v5124
        %6467 = vmatpush1.bf16.msra.mxu0 %v5123
        %6468 = vmatprep.subr.bf16.mxu0 %v5120
        %6469 = vmatpush1.bf16.msra.mxu0 %v5119
        %6470 = vmatprep.subr.bf16.mxu0 %v5116
        %6471 = vmatpush1.bf16.msra.mxu0 %v5115
        %6472 = vmatprep.subr.bf16.mxu0 %v5176
        %6473 = vmatpush2.bf16.msra.mxu0 %v5175
        %6474 = vmatprep.subr.bf16.mxu0 %v5172
        %6475 = vmatpush2.bf16.msra.mxu0 %v5171
        %6476 = vmatprep.subr.bf16.mxu0 %v5168
        %6477 = vmatpush2.bf16.msra.mxu0 %v5167
        %6478 = vmatprep.subr.bf16.mxu0 %v5164
        %6479 = vmatpush2.bf16.msra.mxu0 %v5163
        %6480 = vmatprep.subr.bf16.mxu0 %v5160
        %6481 = vmatpush2.bf16.msra.mxu0 %v5159
        %6482 = vmatprep.subr.bf16.mxu0 %v5156
        %6483 = vmatpush2.bf16.msra.mxu0 %v5155
        %6484 = vmatprep.subr.bf16.mxu0 %v5152
        %6485 = vmatpush2.bf16.msra.mxu0 %v5151
        %6486 = vmatprep.subr.bf16.mxu0 %v5148
        %6487 = vmatpush2.bf16.msra.mxu0 %v5147
        %6488 = vmatprep.mubr.bf16.mxu0 %v1985
        %6489 = vmatmul.mubr.bf16.gmra.mxu0 %v1981
        %v6490 = vpop.f32.mrf.mxu0
        %v6491 = vadd.f32 %v6448, %v6490
        %v6492 = vpop.f32.mrf.mxu0
        %v6493 = vadd.f32 %v6450, %v6492
        %v6494 = vpop.f32.mrf.mxu0
        %v6495 = vadd.f32 %v6452, %v6494
        %v6496 = vpop.f32.mrf.mxu0
        %v6497 = vadd.f32 %v6454, %v6496
        %6498 = vdwg.mxu0
        %6499 = vmatprep.subr.bf16.mxu0 0
        %6500 = vmatpush1.bf16.msra.mxu0 0
        %6501 = vmatprep.subr.bf16.mxu0 0
        %6502 = vmatpush1.bf16.msra.mxu0 0
        %6503 = vmatprep.subr.bf16.mxu0 0
        %6504 = vmatpush1.bf16.msra.mxu0 0
        %6505 = vmatprep.subr.bf16.mxu0 0
        %6506 = vmatpush1.bf16.msra.mxu0 0
        %6507 = vmatprep.subr.bf16.mxu0 %v5192
        %6508 = vmatpush1.bf16.msra.mxu0 %v5191
        %6509 = vmatprep.subr.bf16.mxu0 %v5188
        %6510 = vmatpush1.bf16.msra.mxu0 %v5187
        %6511 = vmatprep.subr.bf16.mxu0 %v5184
        %6512 = vmatpush1.bf16.msra.mxu0 %v5183
        %6513 = vmatprep.subr.bf16.mxu0 %v5180
        %6514 = vmatpush1.bf16.msra.mxu0 %v5179
        %6515 = vmatprep.subr.bf16.mxu0 0
        %6516 = vmatpush2.bf16.msra.mxu0 0
        %6517 = vmatprep.subr.bf16.mxu0 0
        %6518 = vmatpush2.bf16.msra.mxu0 0
        %6519 = vmatprep.subr.bf16.mxu0 0
        %6520 = vmatpush2.bf16.msra.mxu0 0
        %6521 = vmatprep.subr.bf16.mxu0 0
        %6522 = vmatpush2.bf16.msra.mxu0 0
        %6523 = vmatprep.subr.bf16.mxu0 0
        %6524 = vmatpush2.bf16.msra.mxu0 0
        %6525 = vmatprep.subr.bf16.mxu0 0
        %6526 = vmatpush2.bf16.msra.mxu0 0
        %6527 = vmatprep.subr.bf16.mxu0 0
        %6528 = vmatpush2.bf16.msra.mxu0 0
        %6529 = vmatprep.subr.bf16.mxu0 0
        %6530 = vmatpush2.bf16.msra.mxu0 0
        %6531 = vmatprep.mubr.bf16.mxu0 0
        %6532 = vmatmul.mubr.bf16.gmra.mxu0 %v5981
        %v6533 = vpop.f32.mrf.mxu0
        %v6534 = vadd.f32 %v6491, %v6533
        %v6535 = vpop.f32.mrf.mxu0
        %v6536 = vadd.f32 %v6493, %v6535
        %v6537 = vpop.f32.mrf.mxu0
        %v6538 = vadd.f32 %v6495, %v6537
        %v6539 = vpop.f32.mrf.mxu0
        %v6540 = vadd.f32 %v6497, %v6539
        %6541 = vdwg.mxu0
        %6542 = vmatprep.subr.bf16.mxu0 %v4442
        %6543 = vmatpush1.bf16.msra.mxu0 %v4441
        %6544 = vmatprep.subr.bf16.mxu0 %v4438
        %6545 = vmatpush1.bf16.msra.mxu0 %v4437
        %6546 = vmatprep.subr.bf16.mxu0 %v4434
        %6547 = vmatpush1.bf16.msra.mxu0 %v4433
        %6548 = vmatprep.subr.bf16.mxu0 %v4430
        %6549 = vmatpush1.bf16.msra.mxu0 %v4429
        %6550 = vmatprep.subr.bf16.mxu0 %v4426
        %6551 = vmatpush1.bf16.msra.mxu0 %v4425
        %6552 = vmatprep.subr.bf16.mxu0 %v4422
        %6553 = vmatpush1.bf16.msra.mxu0 %v4421
        %6554 = vmatprep.subr.bf16.mxu0 %v4418
        %6555 = vmatpush1.bf16.msra.mxu0 %v4417
        %6556 = vmatprep.subr.bf16.mxu0 %v4414
        %6557 = vmatpush1.bf16.msra.mxu0 %v4413
        %6558 = vmatprep.subr.bf16.mxu0 %v4474
        %6559 = vmatpush2.bf16.msra.mxu0 %v4473
        %6560 = vmatprep.subr.bf16.mxu0 %v4470
        %6561 = vmatpush2.bf16.msra.mxu0 %v4469
        %6562 = vmatprep.subr.bf16.mxu0 %v4466
        %6563 = vmatpush2.bf16.msra.mxu0 %v4465
        %6564 = vmatprep.subr.bf16.mxu0 %v4462
        %6565 = vmatpush2.bf16.msra.mxu0 %v4461
        %6566 = vmatprep.subr.bf16.mxu0 %v4458
        %6567 = vmatpush2.bf16.msra.mxu0 %v4457
        %6568 = vmatprep.subr.bf16.mxu0 %v4454
        %6569 = vmatpush2.bf16.msra.mxu0 %v4453
        %6570 = vmatprep.subr.bf16.mxu0 %v4450
        %6571 = vmatpush2.bf16.msra.mxu0 %v4449
        %6572 = vmatprep.subr.bf16.mxu0 %v4446
        %6573 = vmatpush2.bf16.msra.mxu0 %v4445
        %6574 = vmatprep.mubr.bf16.mxu0 %v1710
        %6575 = vmatmul.mubr.bf16.gmra.mxu0 %v1706
        %v6576 = vpop.f32.mrf.mxu0
        %v6577 = vadd.f32 %v1537, %v6576
        %v6578 = vpop.f32.mrf.mxu0
        %v6579 = vadd.f32 %v1541, %v6578
        %v6580 = vpop.f32.mrf.mxu0
        %v6581 = vadd.f32 %v1537, %v6580
        %v6582 = vpop.f32.mrf.mxu0
        %v6583 = vadd.f32 %v1541, %v6582
        %6584 = vdwg.mxu0
        %6585 = vmatprep.subr.bf16.mxu0 %v4506
        %6586 = vmatpush1.bf16.msra.mxu0 %v4505
        %6587 = vmatprep.subr.bf16.mxu0 %v4502
        %6588 = vmatpush1.bf16.msra.mxu0 %v4501
        %6589 = vmatprep.subr.bf16.mxu0 %v4498
        %6590 = vmatpush1.bf16.msra.mxu0 %v4497
        %6591 = vmatprep.subr.bf16.mxu0 %v4494
        %6592 = vmatpush1.bf16.msra.mxu0 %v4493
        %6593 = vmatprep.subr.bf16.mxu0 %v4490
        %6594 = vmatpush1.bf16.msra.mxu0 %v4489
        %6595 = vmatprep.subr.bf16.mxu0 %v4486
        %6596 = vmatpush1.bf16.msra.mxu0 %v4485
        %6597 = vmatprep.subr.bf16.mxu0 %v4482
        %6598 = vmatpush1.bf16.msra.mxu0 %v4481
        %6599 = vmatprep.subr.bf16.mxu0 %v4478
        %6600 = vmatpush1.bf16.msra.mxu0 %v4477
        %6601 = vmatprep.subr.bf16.mxu0 %v4538
        %6602 = vmatpush2.bf16.msra.mxu0 %v4537
        %6603 = vmatprep.subr.bf16.mxu0 %v4534
        %6604 = vmatpush2.bf16.msra.mxu0 %v4533
        %6605 = vmatprep.subr.bf16.mxu0 %v4530
        %6606 = vmatpush2.bf16.msra.mxu0 %v4529
        %6607 = vmatprep.subr.bf16.mxu0 %v4526
        %6608 = vmatpush2.bf16.msra.mxu0 %v4525
        %6609 = vmatprep.subr.bf16.mxu0 %v4522
        %6610 = vmatpush2.bf16.msra.mxu0 %v4521
        %6611 = vmatprep.subr.bf16.mxu0 %v4518
        %6612 = vmatpush2.bf16.msra.mxu0 %v4517
        %6613 = vmatprep.subr.bf16.mxu0 %v4514
        %6614 = vmatpush2.bf16.msra.mxu0 %v4513
        %6615 = vmatprep.subr.bf16.mxu0 %v4510
        %6616 = vmatpush2.bf16.msra.mxu0 %v4509
        %6617 = vmatprep.mubr.bf16.mxu0 %v1711
        %6618 = vmatmul.mubr.bf16.gmra.mxu0 %v1707
        %v6619 = vpop.f32.mrf.mxu0
        %v6620 = vadd.f32 %v6577, %v6619
        %v6621 = vpop.f32.mrf.mxu0
        %v6622 = vadd.f32 %v6579, %v6621
        %v6623 = vpop.f32.mrf.mxu0
        %v6624 = vadd.f32 %v6581, %v6623
        %v6625 = vpop.f32.mrf.mxu0
        %v6626 = vadd.f32 %v6583, %v6625
        %6627 = vdwg.mxu0
        %6628 = vmatprep.subr.bf16.mxu0 %v4570
        %6629 = vmatpush1.bf16.msra.mxu0 %v4569
        %6630 = vmatprep.subr.bf16.mxu0 %v4566
        %6631 = vmatpush1.bf16.msra.mxu0 %v4565
        %6632 = vmatprep.subr.bf16.mxu0 %v4562
        %6633 = vmatpush1.bf16.msra.mxu0 %v4561
        %6634 = vmatprep.subr.bf16.mxu0 %v4558
        %6635 = vmatpush1.bf16.msra.mxu0 %v4557
        %6636 = vmatprep.subr.bf16.mxu0 %v4554
        %6637 = vmatpush1.bf16.msra.mxu0 %v4553
        %6638 = vmatprep.subr.bf16.mxu0 %v4550
        %6639 = vmatpush1.bf16.msra.mxu0 %v4549
        %6640 = vmatprep.subr.bf16.mxu0 %v4546
        %6641 = vmatpush1.bf16.msra.mxu0 %v4545
        %6642 = vmatprep.subr.bf16.mxu0 %v4542
        %6643 = vmatpush1.bf16.msra.mxu0 %v4541
        %6644 = vmatprep.subr.bf16.mxu0 %v4602
        %6645 = vmatpush2.bf16.msra.mxu0 %v4601
        %6646 = vmatprep.subr.bf16.mxu0 %v4598
        %6647 = vmatpush2.bf16.msra.mxu0 %v4597
        %6648 = vmatprep.subr.bf16.mxu0 %v4594
        %6649 = vmatpush2.bf16.msra.mxu0 %v4593
        %6650 = vmatprep.subr.bf16.mxu0 %v4590
        %6651 = vmatpush2.bf16.msra.mxu0 %v4589
        %6652 = vmatprep.subr.bf16.mxu0 %v4586
        %6653 = vmatpush2.bf16.msra.mxu0 %v4585
        %6654 = vmatprep.subr.bf16.mxu0 %v4582
        %6655 = vmatpush2.bf16.msra.mxu0 %v4581
        %6656 = vmatprep.subr.bf16.mxu0 %v4578
        %6657 = vmatpush2.bf16.msra.mxu0 %v4577
        %6658 = vmatprep.subr.bf16.mxu0 %v4574
        %6659 = vmatpush2.bf16.msra.mxu0 %v4573
        %6660 = vmatprep.mubr.bf16.mxu0 %v1712
        %6661 = vmatmul.mubr.bf16.gmra.mxu0 %v1708
        %v6662 = vpop.f32.mrf.mxu0
        %v6663 = vadd.f32 %v6620, %v6662
        %v6664 = vpop.f32.mrf.mxu0
        %v6665 = vadd.f32 %v6622, %v6664
        %v6666 = vpop.f32.mrf.mxu0
        %v6667 = vadd.f32 %v6624, %v6666
        %v6668 = vpop.f32.mrf.mxu0
        %v6669 = vadd.f32 %v6626, %v6668
        %6670 = vdwg.mxu0
        %6671 = vmatprep.subr.bf16.mxu0 %v4634
        %6672 = vmatpush1.bf16.msra.mxu0 %v4633
        %6673 = vmatprep.subr.bf16.mxu0 %v4630
        %6674 = vmatpush1.bf16.msra.mxu0 %v4629
        %6675 = vmatprep.subr.bf16.mxu0 %v4626
        %6676 = vmatpush1.bf16.msra.mxu0 %v4625
        %6677 = vmatprep.subr.bf16.mxu0 %v4622
        %6678 = vmatpush1.bf16.msra.mxu0 %v4621
        %6679 = vmatprep.subr.bf16.mxu0 %v4618
        %6680 = vmatpush1.bf16.msra.mxu0 %v4617
        %6681 = vmatprep.subr.bf16.mxu0 %v4614
        %6682 = vmatpush1.bf16.msra.mxu0 %v4613
        %6683 = vmatprep.subr.bf16.mxu0 %v4610
        %6684 = vmatpush1.bf16.msra.mxu0 %v4609
        %6685 = vmatprep.subr.bf16.mxu0 %v4606
        %6686 = vmatpush1.bf16.msra.mxu0 %v4605
        %6687 = vmatprep.subr.bf16.mxu0 %v4666
        %6688 = vmatpush2.bf16.msra.mxu0 %v4665
        %6689 = vmatprep.subr.bf16.mxu0 %v4662
        %6690 = vmatpush2.bf16.msra.mxu0 %v4661
        %6691 = vmatprep.subr.bf16.mxu0 %v4658
        %6692 = vmatpush2.bf16.msra.mxu0 %v4657
        %6693 = vmatprep.subr.bf16.mxu0 %v4654
        %6694 = vmatpush2.bf16.msra.mxu0 %v4653
        %6695 = vmatprep.subr.bf16.mxu0 %v4650
        %6696 = vmatpush2.bf16.msra.mxu0 %v4649
        %6697 = vmatprep.subr.bf16.mxu0 %v4646
        %6698 = vmatpush2.bf16.msra.mxu0 %v4645
        %6699 = vmatprep.subr.bf16.mxu0 %v4642
        %6700 = vmatpush2.bf16.msra.mxu0 %v4641
        %6701 = vmatprep.subr.bf16.mxu0 %v4638
        %6702 = vmatpush2.bf16.msra.mxu0 %v4637
        %6703 = vmatprep.mubr.bf16.mxu0 %v1713
        %6704 = vmatmul.mubr.bf16.gmra.mxu0 %v1709
        %v6705 = vpop.f32.mrf.mxu0
        %v6706 = vadd.f32 %v6663, %v6705
        %v6707 = vpop.f32.mrf.mxu0
        %v6708 = vadd.f32 %v6665, %v6707
        %v6709 = vpop.f32.mrf.mxu0
        %v6710 = vadd.f32 %v6667, %v6709
        %v6711 = vpop.f32.mrf.mxu0
        %v6712 = vadd.f32 %v6669, %v6711
        %6713 = vdwg.mxu0
        %6714 = vmatprep.subr.bf16.mxu0 %v4698
        %6715 = vmatpush1.bf16.msra.mxu0 %v4697
        %6716 = vmatprep.subr.bf16.mxu0 %v4694
        %6717 = vmatpush1.bf16.msra.mxu0 %v4693
        %6718 = vmatprep.subr.bf16.mxu0 %v4690
        %6719 = vmatpush1.bf16.msra.mxu0 %v4689
        %6720 = vmatprep.subr.bf16.mxu0 %v4686
        %6721 = vmatpush1.bf16.msra.mxu0 %v4685
        %6722 = vmatprep.subr.bf16.mxu0 %v4682
        %6723 = vmatpush1.bf16.msra.mxu0 %v4681
        %6724 = vmatprep.subr.bf16.mxu0 %v4678
        %6725 = vmatpush1.bf16.msra.mxu0 %v4677
        %6726 = vmatprep.subr.bf16.mxu0 %v4674
        %6727 = vmatpush1.bf16.msra.mxu0 %v4673
        %6728 = vmatprep.subr.bf16.mxu0 %v4670
        %6729 = vmatpush1.bf16.msra.mxu0 %v4669
        %6730 = vmatprep.subr.bf16.mxu0 %v4730
        %6731 = vmatpush2.bf16.msra.mxu0 %v4729
        %6732 = vmatprep.subr.bf16.mxu0 %v4726
        %6733 = vmatpush2.bf16.msra.mxu0 %v4725
        %6734 = vmatprep.subr.bf16.mxu0 %v4722
        %6735 = vmatpush2.bf16.msra.mxu0 %v4721
        %6736 = vmatprep.subr.bf16.mxu0 %v4718
        %6737 = vmatpush2.bf16.msra.mxu0 %v4717
        %6738 = vmatprep.subr.bf16.mxu0 %v4714
        %6739 = vmatpush2.bf16.msra.mxu0 %v4713
        %6740 = vmatprep.subr.bf16.mxu0 %v4710
        %6741 = vmatpush2.bf16.msra.mxu0 %v4709
        %6742 = vmatprep.subr.bf16.mxu0 %v4706
        %6743 = vmatpush2.bf16.msra.mxu0 %v4705
        %6744 = vmatprep.subr.bf16.mxu0 %v4702
        %6745 = vmatpush2.bf16.msra.mxu0 %v4701
        %6746 = vmatprep.mubr.bf16.mxu0 %v1846
        %6747 = vmatmul.mubr.bf16.gmra.mxu0 %v1842
        %v6748 = vpop.f32.mrf.mxu0
        %v6749 = vadd.f32 %v6706, %v6748
        %v6750 = vpop.f32.mrf.mxu0
        %v6751 = vadd.f32 %v6708, %v6750
        %v6752 = vpop.f32.mrf.mxu0
        %v6753 = vadd.f32 %v6710, %v6752
        %v6754 = vpop.f32.mrf.mxu0
        %v6755 = vadd.f32 %v6712, %v6754
        %6756 = vdwg.mxu0
        %6757 = vmatprep.subr.bf16.mxu0 %v4762
        %6758 = vmatpush1.bf16.msra.mxu0 %v4761
        %6759 = vmatprep.subr.bf16.mxu0 %v4758
        %6760 = vmatpush1.bf16.msra.mxu0 %v4757
        %6761 = vmatprep.subr.bf16.mxu0 %v4754
        %6762 = vmatpush1.bf16.msra.mxu0 %v4753
        %6763 = vmatprep.subr.bf16.mxu0 %v4750
        %6764 = vmatpush1.bf16.msra.mxu0 %v4749
        %6765 = vmatprep.subr.bf16.mxu0 %v4746
        %6766 = vmatpush1.bf16.msra.mxu0 %v4745
        %6767 = vmatprep.subr.bf16.mxu0 %v4742
        %6768 = vmatpush1.bf16.msra.mxu0 %v4741
        %6769 = vmatprep.subr.bf16.mxu0 %v4738
        %6770 = vmatpush1.bf16.msra.mxu0 %v4737
        %6771 = vmatprep.subr.bf16.mxu0 %v4734
        %6772 = vmatpush1.bf16.msra.mxu0 %v4733
        %6773 = vmatprep.subr.bf16.mxu0 %v4794
        %6774 = vmatpush2.bf16.msra.mxu0 %v4793
        %6775 = vmatprep.subr.bf16.mxu0 %v4790
        %6776 = vmatpush2.bf16.msra.mxu0 %v4789
        %6777 = vmatprep.subr.bf16.mxu0 %v4786
        %6778 = vmatpush2.bf16.msra.mxu0 %v4785
        %6779 = vmatprep.subr.bf16.mxu0 %v4782
        %6780 = vmatpush2.bf16.msra.mxu0 %v4781
        %6781 = vmatprep.subr.bf16.mxu0 %v4778
        %6782 = vmatpush2.bf16.msra.mxu0 %v4777
        %6783 = vmatprep.subr.bf16.mxu0 %v4774
        %6784 = vmatpush2.bf16.msra.mxu0 %v4773
        %6785 = vmatprep.subr.bf16.mxu0 %v4770
        %6786 = vmatpush2.bf16.msra.mxu0 %v4769
        %6787 = vmatprep.subr.bf16.mxu0 %v4766
        %6788 = vmatpush2.bf16.msra.mxu0 %v4765
        %6789 = vmatprep.mubr.bf16.mxu0 %v1847
        %6790 = vmatmul.mubr.bf16.gmra.mxu0 %v1843
        %v6791 = vpop.f32.mrf.mxu0
        %v6792 = vadd.f32 %v6749, %v6791
        %v6793 = vpop.f32.mrf.mxu0
        %v6794 = vadd.f32 %v6751, %v6793
        %v6795 = vpop.f32.mrf.mxu0
        %v6796 = vadd.f32 %v6753, %v6795
        %v6797 = vpop.f32.mrf.mxu0
        %v6798 = vadd.f32 %v6755, %v6797
        %6799 = vdwg.mxu0
        %6800 = vmatprep.subr.bf16.mxu0 %v4826
        %6801 = vmatpush1.bf16.msra.mxu0 %v4825
        %6802 = vmatprep.subr.bf16.mxu0 %v4822
        %6803 = vmatpush1.bf16.msra.mxu0 %v4821
        %6804 = vmatprep.subr.bf16.mxu0 %v4818
        %6805 = vmatpush1.bf16.msra.mxu0 %v4817
        %6806 = vmatprep.subr.bf16.mxu0 %v4814
        %6807 = vmatpush1.bf16.msra.mxu0 %v4813
        %6808 = vmatprep.subr.bf16.mxu0 %v4810
        %6809 = vmatpush1.bf16.msra.mxu0 %v4809
        %6810 = vmatprep.subr.bf16.mxu0 %v4806
        %6811 = vmatpush1.bf16.msra.mxu0 %v4805
        %6812 = vmatprep.subr.bf16.mxu0 %v4802
        %6813 = vmatpush1.bf16.msra.mxu0 %v4801
        %6814 = vmatprep.subr.bf16.mxu0 %v4798
        %6815 = vmatpush1.bf16.msra.mxu0 %v4797
        %6816 = vmatprep.subr.bf16.mxu0 %v4858
        %6817 = vmatpush2.bf16.msra.mxu0 %v4857
        %6818 = vmatprep.subr.bf16.mxu0 %v4854
        %6819 = vmatpush2.bf16.msra.mxu0 %v4853
        %6820 = vmatprep.subr.bf16.mxu0 %v4850
        %6821 = vmatpush2.bf16.msra.mxu0 %v4849
        %6822 = vmatprep.subr.bf16.mxu0 %v4846
        %6823 = vmatpush2.bf16.msra.mxu0 %v4845
        %6824 = vmatprep.subr.bf16.mxu0 %v4842
        %6825 = vmatpush2.bf16.msra.mxu0 %v4841
        %6826 = vmatprep.subr.bf16.mxu0 %v4838
        %6827 = vmatpush2.bf16.msra.mxu0 %v4837
        %6828 = vmatprep.subr.bf16.mxu0 %v4834
        %6829 = vmatpush2.bf16.msra.mxu0 %v4833
        %6830 = vmatprep.subr.bf16.mxu0 %v4830
        %6831 = vmatpush2.bf16.msra.mxu0 %v4829
        %6832 = vmatprep.mubr.bf16.mxu0 %v1848
        %6833 = vmatmul.mubr.bf16.gmra.mxu0 %v1844
        %v6834 = vpop.f32.mrf.mxu0
        %v6835 = vadd.f32 %v6792, %v6834
        %v6836 = vpop.f32.mrf.mxu0
        %v6837 = vadd.f32 %v6794, %v6836
        %v6838 = vpop.f32.mrf.mxu0
        %v6839 = vadd.f32 %v6796, %v6838
        %v6840 = vpop.f32.mrf.mxu0
        %v6841 = vadd.f32 %v6798, %v6840
        %6842 = vdwg.mxu0
        %6843 = vmatprep.subr.bf16.mxu0 %v4890
        %6844 = vmatpush1.bf16.msra.mxu0 %v4889
        %6845 = vmatprep.subr.bf16.mxu0 %v4886
        %6846 = vmatpush1.bf16.msra.mxu0 %v4885
        %6847 = vmatprep.subr.bf16.mxu0 %v4882
        %6848 = vmatpush1.bf16.msra.mxu0 %v4881
        %6849 = vmatprep.subr.bf16.mxu0 %v4878
        %6850 = vmatpush1.bf16.msra.mxu0 %v4877
        %6851 = vmatprep.subr.bf16.mxu0 %v4874
        %6852 = vmatpush1.bf16.msra.mxu0 %v4873
        %6853 = vmatprep.subr.bf16.mxu0 %v4870
        %6854 = vmatpush1.bf16.msra.mxu0 %v4869
        %6855 = vmatprep.subr.bf16.mxu0 %v4866
        %6856 = vmatpush1.bf16.msra.mxu0 %v4865
        %6857 = vmatprep.subr.bf16.mxu0 %v4862
        %6858 = vmatpush1.bf16.msra.mxu0 %v4861
        %6859 = vmatprep.subr.bf16.mxu0 %v4922
        %6860 = vmatpush2.bf16.msra.mxu0 %v4921
        %6861 = vmatprep.subr.bf16.mxu0 %v4918
        %6862 = vmatpush2.bf16.msra.mxu0 %v4917
        %6863 = vmatprep.subr.bf16.mxu0 %v4914
        %6864 = vmatpush2.bf16.msra.mxu0 %v4913
        %6865 = vmatprep.subr.bf16.mxu0 %v4910
        %6866 = vmatpush2.bf16.msra.mxu0 %v4909
        %6867 = vmatprep.subr.bf16.mxu0 %v4906
        %6868 = vmatpush2.bf16.msra.mxu0 %v4905
        %6869 = vmatprep.subr.bf16.mxu0 %v4902
        %6870 = vmatpush2.bf16.msra.mxu0 %v4901
        %6871 = vmatprep.subr.bf16.mxu0 %v4898
        %6872 = vmatpush2.bf16.msra.mxu0 %v4897
        %6873 = vmatprep.subr.bf16.mxu0 %v4894
        %6874 = vmatpush2.bf16.msra.mxu0 %v4893
        %6875 = vmatprep.mubr.bf16.mxu0 %v1849
        %6876 = vmatmul.mubr.bf16.gmra.mxu0 %v1845
        %v6877 = vpop.f32.mrf.mxu0
        %v6878 = vadd.f32 %v6835, %v6877
        %v6879 = vpop.f32.mrf.mxu0
        %v6880 = vadd.f32 %v6837, %v6879
        %v6881 = vpop.f32.mrf.mxu0
        %v6882 = vadd.f32 %v6839, %v6881
        %v6883 = vpop.f32.mrf.mxu0
        %v6884 = vadd.f32 %v6841, %v6883
        %6885 = vdwg.mxu0
        %6886 = vmatprep.subr.bf16.mxu0 %v4954
        %6887 = vmatpush1.bf16.msra.mxu0 %v4953
        %6888 = vmatprep.subr.bf16.mxu0 %v4950
        %6889 = vmatpush1.bf16.msra.mxu0 %v4949
        %6890 = vmatprep.subr.bf16.mxu0 %v4946
        %6891 = vmatpush1.bf16.msra.mxu0 %v4945
        %6892 = vmatprep.subr.bf16.mxu0 %v4942
        %6893 = vmatpush1.bf16.msra.mxu0 %v4941
        %6894 = vmatprep.subr.bf16.mxu0 %v4938
        %6895 = vmatpush1.bf16.msra.mxu0 %v4937
        %6896 = vmatprep.subr.bf16.mxu0 %v4934
        %6897 = vmatpush1.bf16.msra.mxu0 %v4933
        %6898 = vmatprep.subr.bf16.mxu0 %v4930
        %6899 = vmatpush1.bf16.msra.mxu0 %v4929
        %6900 = vmatprep.subr.bf16.mxu0 %v4926
        %6901 = vmatpush1.bf16.msra.mxu0 %v4925
        %6902 = vmatprep.subr.bf16.mxu0 %v4986
        %6903 = vmatpush2.bf16.msra.mxu0 %v4985
        %6904 = vmatprep.subr.bf16.mxu0 %v4982
        %6905 = vmatpush2.bf16.msra.mxu0 %v4981
        %6906 = vmatprep.subr.bf16.mxu0 %v4978
        %6907 = vmatpush2.bf16.msra.mxu0 %v4977
        %6908 = vmatprep.subr.bf16.mxu0 %v4974
        %6909 = vmatpush2.bf16.msra.mxu0 %v4973
        %6910 = vmatprep.subr.bf16.mxu0 %v4970
        %6911 = vmatpush2.bf16.msra.mxu0 %v4969
        %6912 = vmatprep.subr.bf16.mxu0 %v4966
        %6913 = vmatpush2.bf16.msra.mxu0 %v4965
        %6914 = vmatprep.subr.bf16.mxu0 %v4962
        %6915 = vmatpush2.bf16.msra.mxu0 %v4961
        %6916 = vmatprep.subr.bf16.mxu0 %v4958
        %6917 = vmatpush2.bf16.msra.mxu0 %v4957
        %6918 = vmatprep.mubr.bf16.mxu0 %v1982
        %6919 = vmatmul.mubr.bf16.gmra.mxu0 %v1978
        %v6920 = vpop.f32.mrf.mxu0
        %v6921 = vadd.f32 %v6878, %v6920
        %v6922 = vpop.f32.mrf.mxu0
        %v6923 = vadd.f32 %v6880, %v6922
        %v6924 = vpop.f32.mrf.mxu0
        %v6925 = vadd.f32 %v6882, %v6924
        %v6926 = vpop.f32.mrf.mxu0
        %v6927 = vadd.f32 %v6884, %v6926
        %6928 = vdwg.mxu0
        %6929 = vmatprep.subr.bf16.mxu0 %v5018
        %6930 = vmatpush1.bf16.msra.mxu0 %v5017
        %6931 = vmatprep.subr.bf16.mxu0 %v5014
        %6932 = vmatpush1.bf16.msra.mxu0 %v5013
        %6933 = vmatprep.subr.bf16.mxu0 %v5010
        %6934 = vmatpush1.bf16.msra.mxu0 %v5009
        %6935 = vmatprep.subr.bf16.mxu0 %v5006
        %6936 = vmatpush1.bf16.msra.mxu0 %v5005
        %6937 = vmatprep.subr.bf16.mxu0 %v5002
        %6938 = vmatpush1.bf16.msra.mxu0 %v5001
        %6939 = vmatprep.subr.bf16.mxu0 %v4998
        %6940 = vmatpush1.bf16.msra.mxu0 %v4997
        %6941 = vmatprep.subr.bf16.mxu0 %v4994
        %6942 = vmatpush1.bf16.msra.mxu0 %v4993
        %6943 = vmatprep.subr.bf16.mxu0 %v4990
        %6944 = vmatpush1.bf16.msra.mxu0 %v4989
        %6945 = vmatprep.subr.bf16.mxu0 %v5050
        %6946 = vmatpush2.bf16.msra.mxu0 %v5049
        %6947 = vmatprep.subr.bf16.mxu0 %v5046
        %6948 = vmatpush2.bf16.msra.mxu0 %v5045
        %6949 = vmatprep.subr.bf16.mxu0 %v5042
        %6950 = vmatpush2.bf16.msra.mxu0 %v5041
        %6951 = vmatprep.subr.bf16.mxu0 %v5038
        %6952 = vmatpush2.bf16.msra.mxu0 %v5037
        %6953 = vmatprep.subr.bf16.mxu0 %v5034
        %6954 = vmatpush2.bf16.msra.mxu0 %v5033
        %6955 = vmatprep.subr.bf16.mxu0 %v5030
        %6956 = vmatpush2.bf16.msra.mxu0 %v5029
        %6957 = vmatprep.subr.bf16.mxu0 %v5026
        %6958 = vmatpush2.bf16.msra.mxu0 %v5025
        %6959 = vmatprep.subr.bf16.mxu0 %v5022
        %6960 = vmatpush2.bf16.msra.mxu0 %v5021
        %6961 = vmatprep.mubr.bf16.mxu0 %v1983
        %6962 = vmatmul.mubr.bf16.gmra.mxu0 %v1979
        %v6963 = vpop.f32.mrf.mxu0
        %v6964 = vadd.f32 %v6921, %v6963
        %v6965 = vpop.f32.mrf.mxu0
        %v6966 = vadd.f32 %v6923, %v6965
        %v6967 = vpop.f32.mrf.mxu0
        %v6968 = vadd.f32 %v6925, %v6967
        %v6969 = vpop.f32.mrf.mxu0
        %v6970 = vadd.f32 %v6927, %v6969
        %6971 = vdwg.mxu0
        %6972 = vmatprep.subr.bf16.mxu0 %v5082
        %6973 = vmatpush1.bf16.msra.mxu0 %v5081
        %6974 = vmatprep.subr.bf16.mxu0 %v5078
        %6975 = vmatpush1.bf16.msra.mxu0 %v5077
        %6976 = vmatprep.subr.bf16.mxu0 %v5074
        %6977 = vmatpush1.bf16.msra.mxu0 %v5073
        %6978 = vmatprep.subr.bf16.mxu0 %v5070
        %6979 = vmatpush1.bf16.msra.mxu0 %v5069
        %6980 = vmatprep.subr.bf16.mxu0 %v5066
        %6981 = vmatpush1.bf16.msra.mxu0 %v5065
        %6982 = vmatprep.subr.bf16.mxu0 %v5062
        %6983 = vmatpush1.bf16.msra.mxu0 %v5061
        %6984 = vmatprep.subr.bf16.mxu0 %v5058
        %6985 = vmatpush1.bf16.msra.mxu0 %v5057
        %6986 = vmatprep.subr.bf16.mxu0 %v5054
        %6987 = vmatpush1.bf16.msra.mxu0 %v5053
        %6988 = vmatprep.subr.bf16.mxu0 %v5114
        %6989 = vmatpush2.bf16.msra.mxu0 %v5113
        %6990 = vmatprep.subr.bf16.mxu0 %v5110
        %6991 = vmatpush2.bf16.msra.mxu0 %v5109
        %6992 = vmatprep.subr.bf16.mxu0 %v5106
        %6993 = vmatpush2.bf16.msra.mxu0 %v5105
        %6994 = vmatprep.subr.bf16.mxu0 %v5102
        %6995 = vmatpush2.bf16.msra.mxu0 %v5101
        %6996 = vmatprep.subr.bf16.mxu0 %v5098
        %6997 = vmatpush2.bf16.msra.mxu0 %v5097
        %6998 = vmatprep.subr.bf16.mxu0 %v5094
        %6999 = vmatpush2.bf16.msra.mxu0 %v5093
        %7000 = vmatprep.subr.bf16.mxu0 %v5090
        %7001 = vmatpush2.bf16.msra.mxu0 %v5089
        %7002 = vmatprep.subr.bf16.mxu0 %v5086
        %7003 = vmatpush2.bf16.msra.mxu0 %v5085
        %7004 = vmatprep.mubr.bf16.mxu0 %v1984
        %7005 = vmatmul.mubr.bf16.gmra.mxu0 %v1980
        %v7006 = vpop.f32.mrf.mxu0
        %v7007 = vadd.f32 %v6964, %v7006
        %v7008 = vpop.f32.mrf.mxu0
        %v7009 = vadd.f32 %v6966, %v7008
        %v7010 = vpop.f32.mrf.mxu0
        %v7011 = vadd.f32 %v6968, %v7010
        %v7012 = vpop.f32.mrf.mxu0
        %v7013 = vadd.f32 %v6970, %v7012
        %7014 = vdwg.mxu0
        %7015 = vmatprep.subr.bf16.mxu0 %v5146
        %7016 = vmatpush1.bf16.msra.mxu0 %v5145
        %7017 = vmatprep.subr.bf16.mxu0 %v5142
        %7018 = vmatpush1.bf16.msra.mxu0 %v5141
        %7019 = vmatprep.subr.bf16.mxu0 %v5138
        %7020 = vmatpush1.bf16.msra.mxu0 %v5137
        %7021 = vmatprep.subr.bf16.mxu0 %v5134
        %7022 = vmatpush1.bf16.msra.mxu0 %v5133
        %7023 = vmatprep.subr.bf16.mxu0 %v5130
        %7024 = vmatpush1.bf16.msra.mxu0 %v5129
        %7025 = vmatprep.subr.bf16.mxu0 %v5126
        %7026 = vmatpush1.bf16.msra.mxu0 %v5125
        %7027 = vmatprep.subr.bf16.mxu0 %v5122
        %7028 = vmatpush1.bf16.msra.mxu0 %v5121
        %7029 = vmatprep.subr.bf16.mxu0 %v5118
        %7030 = vmatpush1.bf16.msra.mxu0 %v5117
        %7031 = vmatprep.subr.bf16.mxu0 %v5178
        %7032 = vmatpush2.bf16.msra.mxu0 %v5177
        %7033 = vmatprep.subr.bf16.mxu0 %v5174
        %7034 = vmatpush2.bf16.msra.mxu0 %v5173
        %7035 = vmatprep.subr.bf16.mxu0 %v5170
        %7036 = vmatpush2.bf16.msra.mxu0 %v5169
        %7037 = vmatprep.subr.bf16.mxu0 %v5166
        %7038 = vmatpush2.bf16.msra.mxu0 %v5165
        %7039 = vmatprep.subr.bf16.mxu0 %v5162
        %7040 = vmatpush2.bf16.msra.mxu0 %v5161
        %7041 = vmatprep.subr.bf16.mxu0 %v5158
        %7042 = vmatpush2.bf16.msra.mxu0 %v5157
        %7043 = vmatprep.subr.bf16.mxu0 %v5154
        %7044 = vmatpush2.bf16.msra.mxu0 %v5153
        %7045 = vmatprep.subr.bf16.mxu0 %v5150
        %7046 = vmatpush2.bf16.msra.mxu0 %v5149
        %7047 = vmatprep.mubr.bf16.mxu0 %v1985
        %7048 = vmatmul.mubr.bf16.gmra.mxu0 %v1981
        %v7049 = vpop.f32.mrf.mxu0
        %v7050 = vadd.f32 %v7007, %v7049
        %v7051 = vpop.f32.mrf.mxu0
        %v7052 = vadd.f32 %v7009, %v7051
        %v7053 = vpop.f32.mrf.mxu0
        %v7054 = vadd.f32 %v7011, %v7053
        %v7055 = vpop.f32.mrf.mxu0
        %v7056 = vadd.f32 %v7013, %v7055
        %7057 = vdwg.mxu0
        %7058 = vmatprep.subr.bf16.mxu0 0
        %7059 = vmatpush1.bf16.msra.mxu0 0
        %7060 = vmatprep.subr.bf16.mxu0 0
        %7061 = vmatpush1.bf16.msra.mxu0 0
        %7062 = vmatprep.subr.bf16.mxu0 0
        %7063 = vmatpush1.bf16.msra.mxu0 0
        %7064 = vmatprep.subr.bf16.mxu0 0
        %7065 = vmatpush1.bf16.msra.mxu0 0
        %7066 = vmatprep.subr.bf16.mxu0 %v5194
        %7067 = vmatpush1.bf16.msra.mxu0 %v5193
        %7068 = vmatprep.subr.bf16.mxu0 %v5190
        %7069 = vmatpush1.bf16.msra.mxu0 %v5189
        %7070 = vmatprep.subr.bf16.mxu0 %v5186
        %7071 = vmatpush1.bf16.msra.mxu0 %v5185
        %7072 = vmatprep.subr.bf16.mxu0 %v5182
        %7073 = vmatpush1.bf16.msra.mxu0 %v5181
        %7074 = vmatprep.subr.bf16.mxu0 0
        %7075 = vmatpush2.bf16.msra.mxu0 0
        %7076 = vmatprep.subr.bf16.mxu0 0
        %7077 = vmatpush2.bf16.msra.mxu0 0
        %7078 = vmatprep.subr.bf16.mxu0 0
        %7079 = vmatpush2.bf16.msra.mxu0 0
        %7080 = vmatprep.subr.bf16.mxu0 0
        %7081 = vmatpush2.bf16.msra.mxu0 0
        %7082 = vmatprep.subr.bf16.mxu0 0
        %7083 = vmatpush2.bf16.msra.mxu0 0
        %7084 = vmatprep.subr.bf16.mxu0 0
        %7085 = vmatpush2.bf16.msra.mxu0 0
        %7086 = vmatprep.subr.bf16.mxu0 0
        %7087 = vmatpush2.bf16.msra.mxu0 0
        %7088 = vmatprep.subr.bf16.mxu0 0
        %7089 = vmatpush2.bf16.msra.mxu0 0
        %7090 = vmatprep.mubr.bf16.mxu0 0
        %7091 = vmatmul.mubr.bf16.gmra.mxu0 %v5981
        %v7092 = vpop.f32.mrf.mxu0
        %v7093 = vadd.f32 %v7050, %v7092
        %v7094 = vpop.f32.mrf.mxu0
        %v7095 = vadd.f32 %v7052, %v7094
        %v7096 = vpop.f32.mrf.mxu0
        %v7097 = vadd.f32 %v7054, %v7096
        %v7098 = vpop.f32.mrf.mxu0
        %v7099 = vadd.f32 %v7056, %v7098
        %7100 = vdwg.mxu0
        %v7101 = vmax.f32 %v6534, 0.0
        %v7102 = vmax.f32 %v6536, 0.0
        %v7103 = vmax.f32 %v7093, 0.0
        %v7104 = vmax.f32 %v7095, 0.0
        %v7105 = vmax.f32 %v6538, 0.0
        %v7106 = vmax.f32 %v6540, 0.0
        %v7107 = vmax.f32 %v7097, 0.0
        %v7108 = vmax.f32 %v7099, 0.0
        %v7109 = vpack.c.bf16 %v7105, %v7101
        %v7110 = vpack.c.bf16 %v7106, %v7102
        %v7111 = vpack.c.bf16 %v7107, %v7103
        %v7112 = vpack.c.bf16 %v7108, %v7104
        %v7113 = vld [vmem:[%s648] sm:$0xff]
        %v7114 = vld [vmem:[%s648 + $0x8] sm:$0xff]
        %v7115 = vld [vmem:[%s648 + $0x10] sm:$0xf]
        %v7116 = vld [vmem:[%s648 + $0x14] sm:$0xff]
        %v7117 = vld [vmem:[%s648 + $0x1c] sm:$0xff]
        %v7118 = vld [vmem:[%s648 + $0x24] sm:$0xf]
        %v7119 = vld [vmem:[%s648 + $0x28] sm:$0xff]
        %v7120 = vld [vmem:[%s648 + $0x30] sm:$0xff]
        %v7121 = vld [vmem:[%s648 + $0x38] sm:$0xf]
        %v7122 = vld [vmem:[%s648 + $0x3c] sm:$0xff]
        %v7123 = vld [vmem:[%s648 + $0x44] sm:$0xff]
        %v7124 = vld [vmem:[%s648 + $0x4c] sm:$0xf]
        %v7125 = vld [vmem:[%s648 + $0x50] sm:$0xff]
        %v7126 = vld [vmem:[%s648 + $0x58] sm:$0xff]
        %v7127 = vld [vmem:[%s648 + $0x60] sm:$0xf]
        %v7128 = vld [vmem:[%s648 + $0x64] sm:$0xff]
        %v7129 = vld [vmem:[%s648 + $0x6c] sm:$0xff]
        %v7130 = vld [vmem:[%s648 + $0x74] sm:$0xf]
        %v7131 = vld [vmem:[%s648 + $0x78] sm:$0xff]
        %v7132 = vld [vmem:[%s648 + $0x80] sm:$0xff]
        %v7133 = vld [vmem:[%s648 + $0x88] sm:$0xf]
        %v7134 = vld [vmem:[%s648 + $0x8c] sm:$0xff]
        %v7135 = vld [vmem:[%s648 + $0x94] sm:$0xff]
        %v7136 = vld [vmem:[%s648 + $0x9c] sm:$0xf]
        %v7137 = vld [vmem:[%s648 + $0xa0] sm:$0xff]
        %v7138 = vld [vmem:[%s648 + $0xa8] sm:$0xff]
        %v7139 = vld [vmem:[%s648 + $0xb0] sm:$0xf]
        %v7140 = vld [vmem:[%s648 + $0xb4] sm:$0xff]
        %v7141 = vld [vmem:[%s648 + $0xbc] sm:$0xff]
        %v7142 = vld [vmem:[%s648 + $0xc4] sm:$0xf]
        %v7143 = vld [vmem:[%s648 + $0xc8] sm:$0xff]
        %v7144 = vld [vmem:[%s648 + $0xd0] sm:$0xff]
        %v7145 = vld [vmem:[%s648 + $0xd8] sm:$0xf]
        %v7146 = vld [vmem:[%s648 + $0xdc] sm:$0xff]
        %v7147 = vld [vmem:[%s648 + $0xe4] sm:$0xff]
        %v7148 = vld [vmem:[%s648 + $0xec] sm:$0xf]
        %v7149 = vld [vmem:[%s648 + $0xf0] sm:$0xff]
        %v7150 = vld [vmem:[%s648 + $0xf8] sm:$0xff]
        %v7151 = vld [vmem:[%s648 + $0x100] sm:$0xf]
        %v7152 = vld [vmem:[%s648 + $0x104] sm:$0xff]
        %v7153 = vld [vmem:[%s648 + $0x10c] sm:$0xff]
        %v7154 = vld [vmem:[%s648 + $0x114] sm:$0xf]
        %v7155 = vld [vmem:[%s648 + $0x118] sm:$0xff]
        %v7156 = vld [vmem:[%s648 + $0x120] sm:$0xff]
        %v7157 = vld [vmem:[%s648 + $0x128] sm:$0xf]
        %v7158 = vld [vmem:[%s648 + $0x12c] sm:$0xff]
        %v7159 = vld [vmem:[%s648 + $0x134] sm:$0xff]
        %v7160 = vld [vmem:[%s648 + $0x13c] sm:$0xf]
        %v7161 = vld [vmem:[%s648 + $0x140] sm:$0xff]
        %v7162 = vld [vmem:[%s648 + $0x148] sm:$0xff]
        %v7163 = vld [vmem:[%s648 + $0x150] sm:$0xf]
        %v7164 = vld [vmem:[%s648 + $0x154] sm:$0xff]
        %v7165 = vld [vmem:[%s648 + $0x15c] sm:$0xff]
        %v7166 = vld [vmem:[%s648 + $0x164] sm:$0xf]
        %v7167 = vld [vmem:[%s648 + $0x168] sm:$0xff]
        %v7168 = vld [vmem:[%s648 + $0x170] sm:$0xff]
        %v7169 = vld [vmem:[%s648 + $0x178] sm:$0xf]
        %v7170 = vld [vmem:[%s648 + $0x17c] sm:$0xff]
        %v7171 = vld [vmem:[%s648 + $0x184] sm:$0xff]
        %v7172 = vld [vmem:[%s648 + $0x18c] sm:$0xf]
        %v7173 = vld [vmem:[%s648 + $0x190] sm:$0xff]
        %v7174 = vld [vmem:[%s648 + $0x198] sm:$0xff]
        %v7175 = vld [vmem:[%s648 + $0x1a0] sm:$0xf]
        %v7176 = vld [vmem:[%s648 + $0x1a4] sm:$0xff]
        %v7177 = vld [vmem:[%s648 + $0x1ac] sm:$0xff]
        %v7178 = vld [vmem:[%s648 + $0x1b4] sm:$0xf]
        %v7179 = vld [vmem:[%s648 + $0x1b8] sm:$0xff]
        %v7180 = vld [vmem:[%s648 + $0x1c0] sm:$0xff]
        %v7181 = vld [vmem:[%s648 + $0x1c8] sm:$0xf]
        %v7182 = vld [vmem:[%s648 + $0x1cc] sm:$0xff]
        %v7183 = vld [vmem:[%s648 + $0x1d4] sm:$0xff]
        %v7184 = vld [vmem:[%s648 + $0x1dc] sm:$0xf]
        %v7185 = vld [vmem:[%s648 + $0x1e0] sm:$0xff]
        %v7186 = vld [vmem:[%s648 + $0x1e8] sm:$0xff]
        %v7187 = vld [vmem:[%s648 + $0x1f0] sm:$0xf]
        %v7188 = vld [vmem:[%s648 + $0x1f4] sm:$0xff]
        %v7189 = vld [vmem:[%s648 + $0x1fc] sm:$0xff]
        %v7190 = vld [vmem:[%s648 + $0x204] sm:$0xf]
        %v7191 = vld [vmem:[%s648 + $0x208] sm:$0xff]
        %v7192 = vld [vmem:[%s648 + $0x210] sm:$0xff]
        %v7193 = vld [vmem:[%s648 + $0x218] sm:$0xf]
        %v7194 = vld [vmem:[%s648 + $0x21c] sm:$0xff]
        %v7195 = vld [vmem:[%s648 + $0x224] sm:$0xff]
        %v7196 = vld [vmem:[%s648 + $0x22c] sm:$0xf]
        %v7197 = vld [vmem:[%s648 + $0x230] sm:$0xff]
        %v7198 = vld [vmem:[%s648 + $0x238] sm:$0xff]
        %v7199 = vld [vmem:[%s648 + $0x240] sm:$0xf]
        %v7200 = vld [vmem:[%s648 + $0x244] sm:$0xff]
        %v7201 = vld [vmem:[%s648 + $0x24c] sm:$0xff]
        %v7202 = vld [vmem:[%s648 + $0x254] sm:$0xf]
        %v7203 = vld [vmem:[%s648 + $0x258] sm:$0xff]
        %v7204 = vld [vmem:[%s648 + $0x260] sm:$0xff]
        %v7205 = vld [vmem:[%s648 + $0x268] sm:$0xf]
        %v7206 = vld [vmem:[%s648 + $0x26c] sm:$0xff]
        %v7207 = vld [vmem:[%s648 + $0x274] sm:$0xff]
        %v7208 = vld [vmem:[%s648 + $0x27c] sm:$0xf]
        %v7209 = vld [vmem:[%s648 + $0x280] sm:$0xff]
        %v7210 = vld [vmem:[%s648 + $0x288] sm:$0xff]
        %v7211 = vld [vmem:[%s648 + $0x290] sm:$0xf]
        %v7212 = vld [vmem:[%s648 + $0x294] sm:$0xff]
        %v7213 = vld [vmem:[%s648 + $0x29c] sm:$0xff]
        %v7214 = vld [vmem:[%s648 + $0x2a4] sm:$0xf]
        %v7215 = vld [vmem:[%s648 + $0x2a8] sm:$0xff]
        %v7216 = vld [vmem:[%s648 + $0x2b0] sm:$0xff]
        %v7217 = vld [vmem:[%s648 + $0x2b8] sm:$0xf]
        %v7218 = vld [vmem:[%s648 + $0x2bc] sm:$0xff]
        %v7219 = vld [vmem:[%s648 + $0x2c4] sm:$0xff]
        %v7220 = vld [vmem:[%s648 + $0x2cc] sm:$0xf]
        %v7221 = vld [vmem:[%s648 + $0x2d0] sm:$0xff]
        %v7222 = vld [vmem:[%s648 + $0x2d8] sm:$0xff]
        %v7223 = vld [vmem:[%s648 + $0x2e0] sm:$0xf]
        %v7224 = vld [vmem:[%s648 + $0x2e4] sm:$0xff]
        %v7225 = vld [vmem:[%s648 + $0x2ec] sm:$0xff]
        %v7226 = vld [vmem:[%s648 + $0x2f4] sm:$0xf]
        %v7227 = vld [vmem:[%s648 + $0x2f8] sm:$0xff]
        %v7228 = vld [vmem:[%s648 + $0x300] sm:$0xff]
        %v7229 = vld [vmem:[%s648 + $0x308] sm:$0xf]
        %v7230 = vld [vmem:[%s648 + $0x30c] sm:$0xff]
        %v7231 = vld [vmem:[%s648 + $0x314] sm:$0xff]
        %v7232 = vld [vmem:[%s648 + $0x31c] sm:$0xf]
        %v7233 = vld [vmem:[%s648 + $0x320] sm:$0xff]
        %v7234 = vld [vmem:[%s648 + $0x328] sm:$0xff]
        %v7235 = vld [vmem:[%s648 + $0x330] sm:$0xf]
        %v7236 = vld [vmem:[%s648 + $0x334] sm:$0xff]
        %v7237 = vld [vmem:[%s648 + $0x33c] sm:$0xff]
        %v7238 = vld [vmem:[%s648 + $0x344] sm:$0xf]
        %v7239 = vld [vmem:[%s648 + $0x348] sm:$0xff]
        %v7240 = vld [vmem:[%s648 + $0x350] sm:$0xff]
        %v7241 = vld [vmem:[%s648 + $0x358] sm:$0xf]
        %v7242 = vld [vmem:[%s648 + $0x35c] sm:$0xff]
        %v7243 = vld [vmem:[%s648 + $0x364] sm:$0xff]
        %v7244 = vld [vmem:[%s648 + $0x36c] sm:$0xf]
        %v7245 = vld [vmem:[%s648 + $0x370] sm:$0xff]
        %v7246 = vld [vmem:[%s648 + $0x378] sm:$0xff]
        %v7247 = vld [vmem:[%s648 + $0x380] sm:$0xf]
        %v7248 = vld [vmem:[%s648 + $0x384] sm:$0xff]
        %v7249 = vld [vmem:[%s648 + $0x38c] sm:$0xff]
        %v7250 = vld [vmem:[%s648 + $0x394] sm:$0xf]
        %v7251 = vld [vmem:[%s648 + $0x398] sm:$0xff]
        %v7252 = vld [vmem:[%s648 + $0x3a0] sm:$0xff]
        %v7253 = vld [vmem:[%s648 + $0x3a8] sm:$0xf]
        %v7254 = vld [vmem:[%s648 + $0x3ac] sm:$0xff]
        %v7255 = vld [vmem:[%s648 + $0x3b4] sm:$0xff]
        %v7256 = vld [vmem:[%s648 + $0x3bc] sm:$0xf]
        %v7257 = vld [vmem:[%s648 + $0x3c0] sm:$0xff]
        %v7258 = vld [vmem:[%s648 + $0x3c8] sm:$0xff]
        %v7259 = vld [vmem:[%s648 + $0x3d0] sm:$0xf]
        %v7260 = vld [vmem:[%s648 + $0x3d4] sm:$0xff]
        %v7261 = vld [vmem:[%s648 + $0x3dc] sm:$0xff]
        %v7262 = vld [vmem:[%s648 + $0x3e4] sm:$0xf]
        %v7263 = vld [vmem:[%s648 + $0x3e8] sm:$0xff]
        %v7264 = vld [vmem:[%s648 + $0x3f0] sm:$0xff]
        %v7265 = vld [vmem:[%s648 + $0x3f8] sm:$0xf]
        %v7266 = vld [vmem:[%s648 + $0x3fc] sm:$0xff]
        %v7267 = vld [vmem:[%s648 + $0x404] sm:$0xff]
        %v7268 = vld [vmem:[%s648 + $0x40c] sm:$0xf]
        %v7269 = vld [vmem:[%s648 + $0x410] sm:$0xff]
        %v7270 = vld [vmem:[%s648 + $0x418] sm:$0xff]
        %v7271 = vld [vmem:[%s648 + $0x420] sm:$0xf]
        %v7272 = vld [vmem:[%s648 + $0x424] sm:$0xff]
        %v7273 = vld [vmem:[%s648 + $0x42c] sm:$0xff]
        %v7274 = vld [vmem:[%s648 + $0x434] sm:$0xf]
        %v7275 = vld [vmem:[%s648 + $0x438] sm:$0xff]
        %v7276 = vld [vmem:[%s648 + $0x440] sm:$0xff]
        %v7277 = vld [vmem:[%s648 + $0x448] sm:$0xf]
        %v7278 = vld [vmem:[%s648 + $0x44c] sm:$0xff]
        %v7279 = vld [vmem:[%s648 + $0x454] sm:$0xff]
        %v7280 = vld [vmem:[%s648 + $0x45c] sm:$0xf]
        %v7281 = vld [vmem:[%s648 + $0x460] sm:$0xff]
        %v7282 = vld [vmem:[%s648 + $0x468] sm:$0xff]
        %v7283 = vld [vmem:[%s648 + $0x470] sm:$0xf]
        %v7284 = vld [vmem:[%s648 + $0x474] sm:$0xff]
        %v7285 = vld [vmem:[%s648 + $0x47c] sm:$0xff]
        %v7286 = vld [vmem:[%s648 + $0x484] sm:$0xf]
        %v7287 = vld [vmem:[%s648 + $0x488] sm:$0xff]
        %v7288 = vld [vmem:[%s648 + $0x490] sm:$0xff]
        %v7289 = vld [vmem:[%s648 + $0x498] sm:$0xf]
        %v7290 = vld [vmem:[%s648 + $0x49c] sm:$0xff]
        %v7291 = vld [vmem:[%s648 + $0x4a4] sm:$0xff]
        %v7292 = vld [vmem:[%s648 + $0x4ac] sm:$0xf]
        %v7293 = vld [vmem:[%s648 + $0x4b0] sm:$0xff]
        %v7294 = vld [vmem:[%s648 + $0x4b8] sm:$0xff]
        %v7295 = vld [vmem:[%s648 + $0x4c0] sm:$0xf]
        %v7296 = vld [vmem:[%s648 + $0x4c4] sm:$0xff]
        %v7297 = vld [vmem:[%s648 + $0x4cc] sm:$0xff]
        %v7298 = vld [vmem:[%s648 + $0x4d4] sm:$0xf]
        %v7299 = vld [vmem:[%s648 + $0x4d8] sm:$0xff]
        %v7300 = vld [vmem:[%s648 + $0x4e0] sm:$0xff]
        %v7301 = vld [vmem:[%s648 + $0x4e8] sm:$0xf]
        %v7302 = vld [vmem:[%s648 + $0x4ec] sm:$0xff]
        %v7303 = vld [vmem:[%s648 + $0x4f4] sm:$0xff]
        %v7304 = vld [vmem:[%s648 + $0x4fc] sm:$0xf]
        %v7305 = vld [vmem:[%s700] sm:$0x1f]
        %v7307 = vlaneseq
        %v7308 = vshrl.u32 %v7307, 7
        %v7309 = vsub.s32 0, %v7308
        %v7310 = vrot.slane %v7305, %v7309
        %v7311 = vlaneseq
        %v7312 = vshrl.u32 %v7311, 7
        %v7313 = vsub.s32 1, %v7312
        %v7314 = vrot.slane %v7305, %v7313
        %v7315 = vlaneseq
        %v7316 = vshrl.u32 %v7315, 7
        %v7317 = vsub.s32 2, %v7316
        %v7318 = vrot.slane %v7305, %v7317
        %v7319 = vlaneseq
        %v7320 = vshrl.u32 %v7319, 7
        %v7321 = vsub.s32 3, %v7320
        %v7322 = vrot.slane %v7305, %v7321
        %v7323 = vlaneseq
        %v7324 = vshrl.u32 %v7323, 7
        %v7325 = vsub.s32 4, %v7324
        %v7326 = vrot.slane %v7305, %v7325
        %v7524 = vunpack.c.l.b16 %v7113
        %v7525 = vunpack.c.h.b16 %v7113
        %v7526 = vunpack.c.l.b16 %v7114
        %v7527 = vunpack.c.h.b16 %v7114
        %v7528 = vunpack.c.l.b16 %v7115
        %v7529 = vunpack.c.l.b16 %v7116
        %v7530 = vunpack.c.h.b16 %v7116
        %v7531 = vunpack.c.l.b16 %v7117
        %v7532 = vunpack.c.h.b16 %v7117
        %v7533 = vunpack.c.l.b16 %v7118
        %v7534 = vunpack.c.l.b16 %v7119
        %v7535 = vunpack.c.h.b16 %v7119
        %v7536 = vunpack.c.l.b16 %v7120
        %v7537 = vunpack.c.h.b16 %v7120
        %v7538 = vunpack.c.l.b16 %v7121
        %v7539 = vunpack.c.l.b16 %v7122
        %v7540 = vunpack.c.h.b16 %v7122
        %v7541 = vunpack.c.l.b16 %v7123
        %v7542 = vunpack.c.h.b16 %v7123
        %v7543 = vunpack.c.l.b16 %v7124
        %v7544 = vunpack.c.l.b16 %v7125
        %v7545 = vunpack.c.h.b16 %v7125
        %v7546 = vunpack.c.l.b16 %v7126
        %v7547 = vunpack.c.h.b16 %v7126
        %v7548 = vunpack.c.l.b16 %v7127
        %v7549 = vunpack.c.l.b16 %v7128
        %v7550 = vunpack.c.h.b16 %v7128
        %v7551 = vunpack.c.l.b16 %v7129
        %v7552 = vunpack.c.h.b16 %v7129
        %v7553 = vunpack.c.l.b16 %v7130
        %v7554 = vunpack.c.l.b16 %v7131
        %v7555 = vunpack.c.h.b16 %v7131
        %v7556 = vunpack.c.l.b16 %v7132
        %v7557 = vunpack.c.h.b16 %v7132
        %v7558 = vunpack.c.l.b16 %v7133
        %v7559 = vunpack.c.l.b16 %v7134
        %v7560 = vunpack.c.h.b16 %v7134
        %v7561 = vunpack.c.l.b16 %v7135
        %v7562 = vunpack.c.h.b16 %v7135
        %v7563 = vunpack.c.l.b16 %v7136
        %v7564 = vunpack.c.l.b16 %v7137
        %v7565 = vunpack.c.h.b16 %v7137
        %v7566 = vunpack.c.l.b16 %v7138
        %v7567 = vunpack.c.h.b16 %v7138
        %v7568 = vunpack.c.l.b16 %v7139
        %v7569 = vunpack.c.l.b16 %v7140
        %v7570 = vunpack.c.h.b16 %v7140
        %v7571 = vunpack.c.l.b16 %v7141
        %v7572 = vunpack.c.h.b16 %v7141
        %v7573 = vunpack.c.l.b16 %v7142
        %v7574 = vunpack.c.l.b16 %v7143
        %v7575 = vunpack.c.h.b16 %v7143
        %v7576 = vunpack.c.l.b16 %v7144
        %v7577 = vunpack.c.h.b16 %v7144
        %v7578 = vunpack.c.l.b16 %v7145
        %v7579 = vunpack.c.l.b16 %v7146
        %v7580 = vunpack.c.h.b16 %v7146
        %v7581 = vunpack.c.l.b16 %v7147
        %v7582 = vunpack.c.h.b16 %v7147
        %v7583 = vunpack.c.l.b16 %v7148
        %v7584 = vunpack.c.l.b16 %v7149
        %v7585 = vunpack.c.h.b16 %v7149
        %v7586 = vunpack.c.l.b16 %v7150
        %v7587 = vunpack.c.h.b16 %v7150
        %v7588 = vunpack.c.l.b16 %v7151
        %v7589 = vunpack.c.l.b16 %v7152
        %v7590 = vunpack.c.h.b16 %v7152
        %v7591 = vunpack.c.l.b16 %v7153
        %v7592 = vunpack.c.h.b16 %v7153
        %v7593 = vunpack.c.l.b16 %v7154
        %v7594 = vunpack.c.l.b16 %v7155
        %v7595 = vunpack.c.h.b16 %v7155
        %v7596 = vunpack.c.l.b16 %v7156
        %v7597 = vunpack.c.h.b16 %v7156
        %v7598 = vunpack.c.l.b16 %v7157
        %v7599 = vunpack.c.l.b16 %v7158
        %v7600 = vunpack.c.h.b16 %v7158
        %v7601 = vunpack.c.l.b16 %v7159
        %v7602 = vunpack.c.h.b16 %v7159
        %v7603 = vunpack.c.l.b16 %v7160
        %v7604 = vunpack.c.l.b16 %v7161
        %v7605 = vunpack.c.h.b16 %v7161
        %v7606 = vunpack.c.l.b16 %v7162
        %v7607 = vunpack.c.h.b16 %v7162
        %v7608 = vunpack.c.l.b16 %v7163
        %v7609 = vunpack.c.l.b16 %v7164
        %v7610 = vunpack.c.h.b16 %v7164
        %v7611 = vunpack.c.l.b16 %v7165
        %v7612 = vunpack.c.h.b16 %v7165
        %v7613 = vunpack.c.l.b16 %v7166
        %v7614 = vunpack.c.l.b16 %v7167
        %v7615 = vunpack.c.h.b16 %v7167
        %v7616 = vunpack.c.l.b16 %v7168
        %v7617 = vunpack.c.h.b16 %v7168
        %v7618 = vunpack.c.l.b16 %v7169
        %v7619 = vunpack.c.l.b16 %v7170
        %v7620 = vunpack.c.h.b16 %v7170
        %v7621 = vunpack.c.l.b16 %v7171
        %v7622 = vunpack.c.h.b16 %v7171
        %v7623 = vunpack.c.l.b16 %v7172
        %v7624 = vunpack.c.l.b16 %v7173
        %v7625 = vunpack.c.h.b16 %v7173
        %v7626 = vunpack.c.l.b16 %v7174
        %v7627 = vunpack.c.h.b16 %v7174
        %v7628 = vunpack.c.l.b16 %v7175
        %v7629 = vunpack.c.l.b16 %v7176
        %v7630 = vunpack.c.h.b16 %v7176
        %v7631 = vunpack.c.l.b16 %v7177
        %v7632 = vunpack.c.h.b16 %v7177
        %v7633 = vunpack.c.l.b16 %v7178
        %v7634 = vunpack.c.l.b16 %v7179
        %v7635 = vunpack.c.h.b16 %v7179
        %v7636 = vunpack.c.l.b16 %v7180
        %v7637 = vunpack.c.h.b16 %v7180
        %v7638 = vunpack.c.l.b16 %v7181
        %v7639 = vunpack.c.l.b16 %v7182
        %v7640 = vunpack.c.h.b16 %v7182
        %v7641 = vunpack.c.l.b16 %v7183
        %v7642 = vunpack.c.h.b16 %v7183
        %v7643 = vunpack.c.l.b16 %v7184
        %v7644 = vunpack.c.l.b16 %v7185
        %v7645 = vunpack.c.h.b16 %v7185
        %v7646 = vunpack.c.l.b16 %v7186
        %v7647 = vunpack.c.h.b16 %v7186
        %v7648 = vunpack.c.l.b16 %v7187
        %v7649 = vunpack.c.l.b16 %v7188
        %v7650 = vunpack.c.h.b16 %v7188
        %v7651 = vunpack.c.l.b16 %v7189
        %v7652 = vunpack.c.h.b16 %v7189
        %v7653 = vunpack.c.l.b16 %v7190
        %v7654 = vunpack.c.l.b16 %v7191
        %v7655 = vunpack.c.h.b16 %v7191
        %v7656 = vunpack.c.l.b16 %v7192
        %v7657 = vunpack.c.h.b16 %v7192
        %v7658 = vunpack.c.l.b16 %v7193
        %v7659 = vunpack.c.l.b16 %v7194
        %v7660 = vunpack.c.h.b16 %v7194
        %v7661 = vunpack.c.l.b16 %v7195
        %v7662 = vunpack.c.h.b16 %v7195
        %v7663 = vunpack.c.l.b16 %v7196
        %v7664 = vunpack.c.l.b16 %v7197
        %v7665 = vunpack.c.h.b16 %v7197
        %v7666 = vunpack.c.l.b16 %v7198
        %v7667 = vunpack.c.h.b16 %v7198
        %v7668 = vunpack.c.l.b16 %v7199
        %v7669 = vunpack.c.l.b16 %v7200
        %v7670 = vunpack.c.h.b16 %v7200
        %v7671 = vunpack.c.l.b16 %v7201
        %v7672 = vunpack.c.h.b16 %v7201
        %v7673 = vunpack.c.l.b16 %v7202
        %v7674 = vunpack.c.l.b16 %v7203
        %v7675 = vunpack.c.h.b16 %v7203
        %v7676 = vunpack.c.l.b16 %v7204
        %v7677 = vunpack.c.h.b16 %v7204
        %v7678 = vunpack.c.l.b16 %v7205
        %v7679 = vunpack.c.l.b16 %v7206
        %v7680 = vunpack.c.h.b16 %v7206
        %v7681 = vunpack.c.l.b16 %v7207
        %v7682 = vunpack.c.h.b16 %v7207
        %v7683 = vunpack.c.l.b16 %v7208
        %v7684 = vunpack.c.l.b16 %v7209
        %v7685 = vunpack.c.h.b16 %v7209
        %v7686 = vunpack.c.l.b16 %v7210
        %v7687 = vunpack.c.h.b16 %v7210
        %v7688 = vunpack.c.l.b16 %v7211
        %v7689 = vunpack.c.l.b16 %v7212
        %v7690 = vunpack.c.h.b16 %v7212
        %v7691 = vunpack.c.l.b16 %v7213
        %v7692 = vunpack.c.h.b16 %v7213
        %v7693 = vunpack.c.l.b16 %v7214
        %v7694 = vunpack.c.l.b16 %v7215
        %v7695 = vunpack.c.h.b16 %v7215
        %v7696 = vunpack.c.l.b16 %v7216
        %v7697 = vunpack.c.h.b16 %v7216
        %v7698 = vunpack.c.l.b16 %v7217
        %v7699 = vunpack.c.l.b16 %v7218
        %v7700 = vunpack.c.h.b16 %v7218
        %v7701 = vunpack.c.l.b16 %v7219
        %v7702 = vunpack.c.h.b16 %v7219
        %v7703 = vunpack.c.l.b16 %v7220
        %v7704 = vunpack.c.l.b16 %v7221
        %v7705 = vunpack.c.h.b16 %v7221
        %v7706 = vunpack.c.l.b16 %v7222
        %v7707 = vunpack.c.h.b16 %v7222
        %v7708 = vunpack.c.l.b16 %v7223
        %v7709 = vunpack.c.l.b16 %v7224
        %v7710 = vunpack.c.h.b16 %v7224
        %v7711 = vunpack.c.l.b16 %v7225
        %v7712 = vunpack.c.h.b16 %v7225
        %v7713 = vunpack.c.l.b16 %v7226
        %v7714 = vunpack.c.l.b16 %v7227
        %v7715 = vunpack.c.h.b16 %v7227
        %v7716 = vunpack.c.l.b16 %v7228
        %v7717 = vunpack.c.h.b16 %v7228
        %v7718 = vunpack.c.l.b16 %v7229
        %v7719 = vunpack.c.l.b16 %v7230
        %v7720 = vunpack.c.h.b16 %v7230
        %v7721 = vunpack.c.l.b16 %v7231
        %v7722 = vunpack.c.h.b16 %v7231
        %v7723 = vunpack.c.l.b16 %v7232
        %v7724 = vunpack.c.l.b16 %v7233
        %v7725 = vunpack.c.h.b16 %v7233
        %v7726 = vunpack.c.l.b16 %v7234
        %v7727 = vunpack.c.h.b16 %v7234
        %v7728 = vunpack.c.l.b16 %v7235
        %v7729 = vunpack.c.l.b16 %v7236
        %v7730 = vunpack.c.h.b16 %v7236
        %v7731 = vunpack.c.l.b16 %v7237
        %v7732 = vunpack.c.h.b16 %v7237
        %v7733 = vunpack.c.l.b16 %v7238
        %v7734 = vunpack.c.l.b16 %v7239
        %v7735 = vunpack.c.h.b16 %v7239
        %v7736 = vunpack.c.l.b16 %v7240
        %v7737 = vunpack.c.h.b16 %v7240
        %v7738 = vunpack.c.l.b16 %v7241
        %v7739 = vunpack.c.l.b16 %v7242
        %v7740 = vunpack.c.h.b16 %v7242
        %v7741 = vunpack.c.l.b16 %v7243
        %v7742 = vunpack.c.h.b16 %v7243
        %v7743 = vunpack.c.l.b16 %v7244
        %v7744 = vunpack.c.l.b16 %v7245
        %v7745 = vunpack.c.h.b16 %v7245
        %v7746 = vunpack.c.l.b16 %v7246
        %v7747 = vunpack.c.h.b16 %v7246
        %v7748 = vunpack.c.l.b16 %v7247
        %v7749 = vunpack.c.l.b16 %v7248
        %v7750 = vunpack.c.h.b16 %v7248
        %v7751 = vunpack.c.l.b16 %v7249
        %v7752 = vunpack.c.h.b16 %v7249
        %v7753 = vunpack.c.l.b16 %v7250
        %v7754 = vunpack.c.l.b16 %v7251
        %v7755 = vunpack.c.h.b16 %v7251
        %v7756 = vunpack.c.l.b16 %v7252
        %v7757 = vunpack.c.h.b16 %v7252
        %v7758 = vunpack.c.l.b16 %v7253
        %v7759 = vunpack.c.l.b16 %v7254
        %v7760 = vunpack.c.h.b16 %v7254
        %v7761 = vunpack.c.l.b16 %v7255
        %v7762 = vunpack.c.h.b16 %v7255
        %v7763 = vunpack.c.l.b16 %v7256
        %v7764 = vunpack.c.l.b16 %v7257
        %v7765 = vunpack.c.h.b16 %v7257
        %v7766 = vunpack.c.l.b16 %v7258
        %v7767 = vunpack.c.h.b16 %v7258
        %v7768 = vunpack.c.l.b16 %v7259
        %v7769 = vunpack.c.l.b16 %v7260
        %v7770 = vunpack.c.h.b16 %v7260
        %v7771 = vunpack.c.l.b16 %v7261
        %v7772 = vunpack.c.h.b16 %v7261
        %v7773 = vunpack.c.l.b16 %v7262
        %v7774 = vunpack.c.l.b16 %v7263
        %v7775 = vunpack.c.h.b16 %v7263
        %v7776 = vunpack.c.l.b16 %v7264
        %v7777 = vunpack.c.h.b16 %v7264
        %v7778 = vunpack.c.l.b16 %v7265
        %v7779 = vunpack.c.l.b16 %v7266
        %v7780 = vunpack.c.h.b16 %v7266
        %v7781 = vunpack.c.l.b16 %v7267
        %v7782 = vunpack.c.h.b16 %v7267
        %v7783 = vunpack.c.l.b16 %v7268
        %v7784 = vunpack.c.l.b16 %v7269
        %v7785 = vunpack.c.h.b16 %v7269
        %v7786 = vunpack.c.l.b16 %v7270
        %v7787 = vunpack.c.h.b16 %v7270
        %v7788 = vunpack.c.l.b16 %v7271
        %v7789 = vunpack.c.l.b16 %v7272
        %v7790 = vunpack.c.h.b16 %v7272
        %v7791 = vunpack.c.l.b16 %v7273
        %v7792 = vunpack.c.h.b16 %v7273
        %v7793 = vunpack.c.l.b16 %v7274
        %v7794 = vunpack.c.l.b16 %v7275
        %v7795 = vunpack.c.h.b16 %v7275
        %v7796 = vunpack.c.l.b16 %v7276
        %v7797 = vunpack.c.h.b16 %v7276
        %v7798 = vunpack.c.l.b16 %v7277
        %v7799 = vunpack.c.l.b16 %v7278
        %v7800 = vunpack.c.h.b16 %v7278
        %v7801 = vunpack.c.l.b16 %v7279
        %v7802 = vunpack.c.h.b16 %v7279
        %v7803 = vunpack.c.l.b16 %v7280
        %v7804 = vunpack.c.l.b16 %v7281
        %v7805 = vunpack.c.h.b16 %v7281
        %v7806 = vunpack.c.l.b16 %v7282
        %v7807 = vunpack.c.h.b16 %v7282
        %v7808 = vunpack.c.l.b16 %v7283
        %v7809 = vunpack.c.l.b16 %v7284
        %v7810 = vunpack.c.h.b16 %v7284
        %v7811 = vunpack.c.l.b16 %v7285
        %v7812 = vunpack.c.h.b16 %v7285
        %v7813 = vunpack.c.l.b16 %v7286
        %v7814 = vunpack.c.l.b16 %v7287
        %v7815 = vunpack.c.h.b16 %v7287
        %v7816 = vunpack.c.l.b16 %v7288
        %v7817 = vunpack.c.h.b16 %v7288
        %v7818 = vunpack.c.l.b16 %v7289
        %v7819 = vunpack.c.l.b16 %v7290
        %v7820 = vunpack.c.h.b16 %v7290
        %v7821 = vunpack.c.l.b16 %v7291
        %v7822 = vunpack.c.h.b16 %v7291
        %v7823 = vunpack.c.l.b16 %v7292
        %v7824 = vunpack.c.l.b16 %v7293
        %v7825 = vunpack.c.h.b16 %v7293
        %v7826 = vunpack.c.l.b16 %v7294
        %v7827 = vunpack.c.h.b16 %v7294
        %v7828 = vunpack.c.l.b16 %v7295
        %v7829 = vunpack.c.l.b16 %v7296
        %v7830 = vunpack.c.h.b16 %v7296
        %v7831 = vunpack.c.l.b16 %v7297
        %v7832 = vunpack.c.h.b16 %v7297
        %v7833 = vunpack.c.l.b16 %v7298
        %v7834 = vunpack.c.l.b16 %v7299
        %v7835 = vunpack.c.h.b16 %v7299
        %v7836 = vunpack.c.l.b16 %v7300
        %v7837 = vunpack.c.h.b16 %v7300
        %v7838 = vunpack.c.l.b16 %v7301
        %v7839 = vunpack.c.l.b16 %v7302
        %v7840 = vunpack.c.h.b16 %v7302
        %v7841 = vunpack.c.l.b16 %v7303
        %v7842 = vunpack.c.h.b16 %v7303
        %v7843 = vunpack.c.l.b16 %v7304
        %v7844 = vpack.c.b16 %v7529, %v7524
        %v7845 = vpack.c.b16 %v7530, %v7525
        %v7846 = vpack.c.b16 %v7531, %v7526
        %v7847 = vpack.c.b16 %v7532, %v7527
        %v7848 = vpack.c.b16 %v7533, %v7528
        %v7849 = vpack.c.b16 %v7539, %v7534
        %v7850 = vpack.c.b16 %v7540, %v7535
        %v7851 = vpack.c.b16 %v7541, %v7536
        %v7852 = vpack.c.b16 %v7542, %v7537
        %v7853 = vpack.c.b16 %v7543, %v7538
        %v7854 = vpack.c.b16 %v7549, %v7544
        %v7855 = vpack.c.b16 %v7550, %v7545
        %v7856 = vpack.c.b16 %v7551, %v7546
        %v7857 = vpack.c.b16 %v7552, %v7547
        %v7858 = vpack.c.b16 %v7553, %v7548
        %v7859 = vpack.c.b16 %v7559, %v7554
        %v7860 = vpack.c.b16 %v7560, %v7555
        %v7861 = vpack.c.b16 %v7561, %v7556
        %v7862 = vpack.c.b16 %v7562, %v7557
        %v7863 = vpack.c.b16 %v7563, %v7558
        %v7864 = vpack.c.b16 %v7569, %v7564
        %v7865 = vpack.c.b16 %v7570, %v7565
        %v7866 = vpack.c.b16 %v7571, %v7566
        %v7867 = vpack.c.b16 %v7572, %v7567
        %v7868 = vpack.c.b16 %v7573, %v7568
        %v7869 = vpack.c.b16 %v7579, %v7574
        %v7870 = vpack.c.b16 %v7580, %v7575
        %v7871 = vpack.c.b16 %v7581, %v7576
        %v7872 = vpack.c.b16 %v7582, %v7577
        %v7873 = vpack.c.b16 %v7583, %v7578
        %v7874 = vpack.c.b16 %v7589, %v7584
        %v7875 = vpack.c.b16 %v7590, %v7585
        %v7876 = vpack.c.b16 %v7591, %v7586
        %v7877 = vpack.c.b16 %v7592, %v7587
        %v7878 = vpack.c.b16 %v7593, %v7588
        %v7879 = vpack.c.b16 %v7599, %v7594
        %v7880 = vpack.c.b16 %v7600, %v7595
        %v7881 = vpack.c.b16 %v7601, %v7596
        %v7882 = vpack.c.b16 %v7602, %v7597
        %v7883 = vpack.c.b16 %v7603, %v7598
        %v7884 = vpack.c.b16 %v7609, %v7604
        %v7885 = vpack.c.b16 %v7610, %v7605
        %v7886 = vpack.c.b16 %v7611, %v7606
        %v7887 = vpack.c.b16 %v7612, %v7607
        %v7888 = vpack.c.b16 %v7613, %v7608
        %v7889 = vpack.c.b16 %v7619, %v7614
        %v7890 = vpack.c.b16 %v7620, %v7615
        %v7891 = vpack.c.b16 %v7621, %v7616
        %v7892 = vpack.c.b16 %v7622, %v7617
        %v7893 = vpack.c.b16 %v7623, %v7618
        %v7894 = vpack.c.b16 %v7629, %v7624
        %v7895 = vpack.c.b16 %v7630, %v7625
        %v7896 = vpack.c.b16 %v7631, %v7626
        %v7897 = vpack.c.b16 %v7632, %v7627
        %v7898 = vpack.c.b16 %v7633, %v7628
        %v7899 = vpack.c.b16 %v7639, %v7634
        %v7900 = vpack.c.b16 %v7640, %v7635
        %v7901 = vpack.c.b16 %v7641, %v7636
        %v7902 = vpack.c.b16 %v7642, %v7637
        %v7903 = vpack.c.b16 %v7643, %v7638
        %v7904 = vpack.c.b16 %v7649, %v7644
        %v7905 = vpack.c.b16 %v7650, %v7645
        %v7906 = vpack.c.b16 %v7651, %v7646
        %v7907 = vpack.c.b16 %v7652, %v7647
        %v7908 = vpack.c.b16 %v7653, %v7648
        %v7909 = vpack.c.b16 %v7659, %v7654
        %v7910 = vpack.c.b16 %v7660, %v7655
        %v7911 = vpack.c.b16 %v7661, %v7656
        %v7912 = vpack.c.b16 %v7662, %v7657
        %v7913 = vpack.c.b16 %v7663, %v7658
        %v7914 = vpack.c.b16 %v7669, %v7664
        %v7915 = vpack.c.b16 %v7670, %v7665
        %v7916 = vpack.c.b16 %v7671, %v7666
        %v7917 = vpack.c.b16 %v7672, %v7667
        %v7918 = vpack.c.b16 %v7673, %v7668
        %v7919 = vpack.c.b16 %v7679, %v7674
        %v7920 = vpack.c.b16 %v7680, %v7675
        %v7921 = vpack.c.b16 %v7681, %v7676
        %v7922 = vpack.c.b16 %v7682, %v7677
        %v7923 = vpack.c.b16 %v7683, %v7678
        %v7924 = vpack.c.b16 %v7689, %v7684
        %v7925 = vpack.c.b16 %v7690, %v7685
        %v7926 = vpack.c.b16 %v7691, %v7686
        %v7927 = vpack.c.b16 %v7692, %v7687
        %v7928 = vpack.c.b16 %v7693, %v7688
        %v7929 = vpack.c.b16 %v7699, %v7694
        %v7930 = vpack.c.b16 %v7700, %v7695
        %v7931 = vpack.c.b16 %v7701, %v7696
        %v7932 = vpack.c.b16 %v7702, %v7697
        %v7933 = vpack.c.b16 %v7703, %v7698
        %v7934 = vpack.c.b16 %v7709, %v7704
        %v7935 = vpack.c.b16 %v7710, %v7705
        %v7936 = vpack.c.b16 %v7711, %v7706
        %v7937 = vpack.c.b16 %v7712, %v7707
        %v7938 = vpack.c.b16 %v7713, %v7708
        %v7939 = vpack.c.b16 %v7719, %v7714
        %v7940 = vpack.c.b16 %v7720, %v7715
        %v7941 = vpack.c.b16 %v7721, %v7716
        %v7942 = vpack.c.b16 %v7722, %v7717
        %v7943 = vpack.c.b16 %v7723, %v7718
        %v7944 = vpack.c.b16 %v7729, %v7724
        %v7945 = vpack.c.b16 %v7730, %v7725
        %v7946 = vpack.c.b16 %v7731, %v7726
        %v7947 = vpack.c.b16 %v7732, %v7727
        %v7948 = vpack.c.b16 %v7733, %v7728
        %v7949 = vpack.c.b16 %v7739, %v7734
        %v7950 = vpack.c.b16 %v7740, %v7735
        %v7951 = vpack.c.b16 %v7741, %v7736
        %v7952 = vpack.c.b16 %v7742, %v7737
        %v7953 = vpack.c.b16 %v7743, %v7738
        %v7954 = vpack.c.b16 %v7749, %v7744
        %v7955 = vpack.c.b16 %v7750, %v7745
        %v7956 = vpack.c.b16 %v7751, %v7746
        %v7957 = vpack.c.b16 %v7752, %v7747
        %v7958 = vpack.c.b16 %v7753, %v7748
        %v7959 = vpack.c.b16 %v7759, %v7754
        %v7960 = vpack.c.b16 %v7760, %v7755
        %v7961 = vpack.c.b16 %v7761, %v7756
        %v7962 = vpack.c.b16 %v7762, %v7757
        %v7963 = vpack.c.b16 %v7763, %v7758
        %v7964 = vpack.c.b16 %v7769, %v7764
        %v7965 = vpack.c.b16 %v7770, %v7765
        %v7966 = vpack.c.b16 %v7771, %v7766
        %v7967 = vpack.c.b16 %v7772, %v7767
        %v7968 = vpack.c.b16 %v7773, %v7768
        %v7969 = vpack.c.b16 %v7779, %v7774
        %v7970 = vpack.c.b16 %v7780, %v7775
        %v7971 = vpack.c.b16 %v7781, %v7776
        %v7972 = vpack.c.b16 %v7782, %v7777
        %v7973 = vpack.c.b16 %v7783, %v7778
        %v7974 = vpack.c.b16 %v7789, %v7784
        %v7975 = vpack.c.b16 %v7790, %v7785
        %v7976 = vpack.c.b16 %v7791, %v7786
        %v7977 = vpack.c.b16 %v7792, %v7787
        %v7978 = vpack.c.b16 %v7793, %v7788
        %v7979 = vpack.c.b16 %v7799, %v7794
        %v7980 = vpack.c.b16 %v7800, %v7795
        %v7981 = vpack.c.b16 %v7801, %v7796
        %v7982 = vpack.c.b16 %v7802, %v7797
        %v7983 = vpack.c.b16 %v7803, %v7798
        %v7984 = vpack.c.b16 %v7809, %v7804
        %v7985 = vpack.c.b16 %v7810, %v7805
        %v7986 = vpack.c.b16 %v7811, %v7806
        %v7987 = vpack.c.b16 %v7812, %v7807
        %v7988 = vpack.c.b16 %v7813, %v7808
        %v7989 = vpack.c.b16 %v7819, %v7814
        %v7990 = vpack.c.b16 %v7820, %v7815
        %v7991 = vpack.c.b16 %v7821, %v7816
        %v7992 = vpack.c.b16 %v7822, %v7817
        %v7993 = vpack.c.b16 %v7823, %v7818
        %v7994 = vpack.c.b16 %v7829, %v7824
        %v7995 = vpack.c.b16 %v7830, %v7825
        %v7996 = vpack.c.b16 %v7831, %v7826
        %v7997 = vpack.c.b16 %v7832, %v7827
        %v7998 = vpack.c.b16 %v7833, %v7828
        %v7999 = vpack.c.b16 %v7839, %v7834
        %v8000 = vpack.c.b16 %v7840, %v7835
        %v8001 = vpack.c.b16 %v7841, %v7836
        %v8002 = vpack.c.b16 %v7842, %v7837
        %v8003 = vpack.c.b16 %v7843, %v7838
        %8164 = vmatprep.subr.bf16.mxu0 %v7880
        %8165 = vmatpush1.bf16.msra.mxu0 %v7879
        %8166 = vmatprep.subr.bf16.mxu0 %v7875
        %8167 = vmatpush1.bf16.msra.mxu0 %v7874
        %8168 = vmatprep.subr.bf16.mxu0 %v7870
        %8169 = vmatpush1.bf16.msra.mxu0 %v7869
        %8170 = vmatprep.subr.bf16.mxu0 %v7865
        %8171 = vmatpush1.bf16.msra.mxu0 %v7864
        %8172 = vmatprep.subr.bf16.mxu0 %v7860
        %8173 = vmatpush1.bf16.msra.mxu0 %v7859
        %8174 = vmatprep.subr.bf16.mxu0 %v7855
        %8175 = vmatpush1.bf16.msra.mxu0 %v7854
        %8176 = vmatprep.subr.bf16.mxu0 %v7850
        %8177 = vmatpush1.bf16.msra.mxu0 %v7849
        %8178 = vmatprep.subr.bf16.mxu0 %v7845
        %8179 = vmatpush1.bf16.msra.mxu0 %v7844
        %8180 = vmatprep.subr.bf16.mxu0 %v7920
        %8181 = vmatpush2.bf16.msra.mxu0 %v7919
        %8182 = vmatprep.subr.bf16.mxu0 %v7915
        %8183 = vmatpush2.bf16.msra.mxu0 %v7914
        %8184 = vmatprep.subr.bf16.mxu0 %v7910
        %8185 = vmatpush2.bf16.msra.mxu0 %v7909
        %8186 = vmatprep.subr.bf16.mxu0 %v7905
        %8187 = vmatpush2.bf16.msra.mxu0 %v7904
        %8188 = vmatprep.subr.bf16.mxu0 %v7900
        %8189 = vmatpush2.bf16.msra.mxu0 %v7899
        %8190 = vmatprep.subr.bf16.mxu0 %v7895
        %8191 = vmatpush2.bf16.msra.mxu0 %v7894
        %8192 = vmatprep.subr.bf16.mxu0 %v7890
        %8193 = vmatpush2.bf16.msra.mxu0 %v7889
        %8194 = vmatprep.subr.bf16.mxu0 %v7885
        %8195 = vmatpush2.bf16.msra.mxu0 %v7884
        %8196 = vmatprep.mubr.bf16.mxu0 %v7110
        %8197 = vmatmul.mubr.bf16.gmra.mxu0 %v7109
        %v8198 = vpop.f32.mrf.mxu0
        %v8199 = vadd.f32 %v7310, %v8198
        %v8200 = vpop.f32.mrf.mxu0
        %v8201 = vadd.f32 %v7314, %v8200
        %v8202 = vpop.f32.mrf.mxu0
        %v8203 = vadd.f32 %v7310, %v8202
        %v8204 = vpop.f32.mrf.mxu0
        %v8205 = vadd.f32 %v7314, %v8204
        %8206 = vdwg.mxu0
        %8207 = vmatprep.subr.bf16.mxu0 %v7960
        %8208 = vmatpush1.bf16.msra.mxu0 %v7959
        %8209 = vmatprep.subr.bf16.mxu0 %v7955
        %8210 = vmatpush1.bf16.msra.mxu0 %v7954
        %8211 = vmatprep.subr.bf16.mxu0 %v7950
        %8212 = vmatpush1.bf16.msra.mxu0 %v7949
        %8213 = vmatprep.subr.bf16.mxu0 %v7945
        %8214 = vmatpush1.bf16.msra.mxu0 %v7944
        %8215 = vmatprep.subr.bf16.mxu0 %v7940
        %8216 = vmatpush1.bf16.msra.mxu0 %v7939
        %8217 = vmatprep.subr.bf16.mxu0 %v7935
        %8218 = vmatpush1.bf16.msra.mxu0 %v7934
        %8219 = vmatprep.subr.bf16.mxu0 %v7930
        %8220 = vmatpush1.bf16.msra.mxu0 %v7929
        %8221 = vmatprep.subr.bf16.mxu0 %v7925
        %8222 = vmatpush1.bf16.msra.mxu0 %v7924
        %8223 = vmatprep.subr.bf16.mxu0 %v8000
        %8224 = vmatpush2.bf16.msra.mxu0 %v7999
        %8225 = vmatprep.subr.bf16.mxu0 %v7995
        %8226 = vmatpush2.bf16.msra.mxu0 %v7994
        %8227 = vmatprep.subr.bf16.mxu0 %v7990
        %8228 = vmatpush2.bf16.msra.mxu0 %v7989
        %8229 = vmatprep.subr.bf16.mxu0 %v7985
        %8230 = vmatpush2.bf16.msra.mxu0 %v7984
        %8231 = vmatprep.subr.bf16.mxu0 %v7980
        %8232 = vmatpush2.bf16.msra.mxu0 %v7979
        %8233 = vmatprep.subr.bf16.mxu0 %v7975
        %8234 = vmatpush2.bf16.msra.mxu0 %v7974
        %8235 = vmatprep.subr.bf16.mxu0 %v7970
        %8236 = vmatpush2.bf16.msra.mxu0 %v7969
        %8237 = vmatprep.subr.bf16.mxu0 %v7965
        %8238 = vmatpush2.bf16.msra.mxu0 %v7964
        %8239 = vmatprep.mubr.bf16.mxu0 %v7112
        %8240 = vmatmul.mubr.bf16.gmra.mxu0 %v7111
        %v8241 = vpop.f32.mrf.mxu0
        %v8242 = vadd.f32 %v8199, %v8241
        %v8243 = vpop.f32.mrf.mxu0
        %v8244 = vadd.f32 %v8201, %v8243
        %v8245 = vpop.f32.mrf.mxu0
        %v8246 = vadd.f32 %v8203, %v8245
        %v8247 = vpop.f32.mrf.mxu0
        %v8248 = vadd.f32 %v8205, %v8247
        %8249 = vdwg.mxu0
        %8250 = vmatprep.subr.bf16.mxu0 %v7882
        %8251 = vmatpush1.bf16.msra.mxu0 %v7881
        %8252 = vmatprep.subr.bf16.mxu0 %v7877
        %8253 = vmatpush1.bf16.msra.mxu0 %v7876
        %8254 = vmatprep.subr.bf16.mxu0 %v7872
        %8255 = vmatpush1.bf16.msra.mxu0 %v7871
        %8256 = vmatprep.subr.bf16.mxu0 %v7867
        %8257 = vmatpush1.bf16.msra.mxu0 %v7866
        %8258 = vmatprep.subr.bf16.mxu0 %v7862
        %8259 = vmatpush1.bf16.msra.mxu0 %v7861
        %8260 = vmatprep.subr.bf16.mxu0 %v7857
        %8261 = vmatpush1.bf16.msra.mxu0 %v7856
        %8262 = vmatprep.subr.bf16.mxu0 %v7852
        %8263 = vmatpush1.bf16.msra.mxu0 %v7851
        %8264 = vmatprep.subr.bf16.mxu0 %v7847
        %8265 = vmatpush1.bf16.msra.mxu0 %v7846
        %8266 = vmatprep.subr.bf16.mxu0 %v7922
        %8267 = vmatpush2.bf16.msra.mxu0 %v7921
        %8268 = vmatprep.subr.bf16.mxu0 %v7917
        %8269 = vmatpush2.bf16.msra.mxu0 %v7916
        %8270 = vmatprep.subr.bf16.mxu0 %v7912
        %8271 = vmatpush2.bf16.msra.mxu0 %v7911
        %8272 = vmatprep.subr.bf16.mxu0 %v7907
        %8273 = vmatpush2.bf16.msra.mxu0 %v7906
        %8274 = vmatprep.subr.bf16.mxu0 %v7902
        %8275 = vmatpush2.bf16.msra.mxu0 %v7901
        %8276 = vmatprep.subr.bf16.mxu0 %v7897
        %8277 = vmatpush2.bf16.msra.mxu0 %v7896
        %8278 = vmatprep.subr.bf16.mxu0 %v7892
        %8279 = vmatpush2.bf16.msra.mxu0 %v7891
        %8280 = vmatprep.subr.bf16.mxu0 %v7887
        %8281 = vmatpush2.bf16.msra.mxu0 %v7886
        %8282 = vmatprep.mubr.bf16.mxu0 %v7110
        %8283 = vmatmul.mubr.bf16.gmra.mxu0 %v7109
        %v8284 = vpop.f32.mrf.mxu0
        %v8285 = vadd.f32 %v7318, %v8284
        %v8286 = vpop.f32.mrf.mxu0
        %v8287 = vadd.f32 %v7322, %v8286
        %v8288 = vpop.f32.mrf.mxu0
        %v8289 = vadd.f32 %v7318, %v8288
        %v8290 = vpop.f32.mrf.mxu0
        %v8291 = vadd.f32 %v7322, %v8290
        %8292 = vdwg.mxu0
        %8293 = vmatprep.subr.bf16.mxu0 %v7962
        %8294 = vmatpush1.bf16.msra.mxu0 %v7961
        %8295 = vmatprep.subr.bf16.mxu0 %v7957
        %8296 = vmatpush1.bf16.msra.mxu0 %v7956
        %8297 = vmatprep.subr.bf16.mxu0 %v7952
        %8298 = vmatpush1.bf16.msra.mxu0 %v7951
        %8299 = vmatprep.subr.bf16.mxu0 %v7947
        %8300 = vmatpush1.bf16.msra.mxu0 %v7946
        %8301 = vmatprep.subr.bf16.mxu0 %v7942
        %8302 = vmatpush1.bf16.msra.mxu0 %v7941
        %8303 = vmatprep.subr.bf16.mxu0 %v7937
        %8304 = vmatpush1.bf16.msra.mxu0 %v7936
        %8305 = vmatprep.subr.bf16.mxu0 %v7932
        %8306 = vmatpush1.bf16.msra.mxu0 %v7931
        %8307 = vmatprep.subr.bf16.mxu0 %v7927
        %8308 = vmatpush1.bf16.msra.mxu0 %v7926
        %8309 = vmatprep.subr.bf16.mxu0 %v8002
        %8310 = vmatpush2.bf16.msra.mxu0 %v8001
        %8311 = vmatprep.subr.bf16.mxu0 %v7997
        %8312 = vmatpush2.bf16.msra.mxu0 %v7996
        %8313 = vmatprep.subr.bf16.mxu0 %v7992
        %8314 = vmatpush2.bf16.msra.mxu0 %v7991
        %8315 = vmatprep.subr.bf16.mxu0 %v7987
        %8316 = vmatpush2.bf16.msra.mxu0 %v7986
        %8317 = vmatprep.subr.bf16.mxu0 %v7982
        %8318 = vmatpush2.bf16.msra.mxu0 %v7981
        %8319 = vmatprep.subr.bf16.mxu0 %v7977
        %8320 = vmatpush2.bf16.msra.mxu0 %v7976
        %8321 = vmatprep.subr.bf16.mxu0 %v7972
        %8322 = vmatpush2.bf16.msra.mxu0 %v7971
        %8323 = vmatprep.subr.bf16.mxu0 %v7967
        %8324 = vmatpush2.bf16.msra.mxu0 %v7966
        %8325 = vmatprep.mubr.bf16.mxu0 %v7112
        %8326 = vmatmul.mubr.bf16.gmra.mxu0 %v7111
        %v8327 = vpop.f32.mrf.mxu0
        %v8328 = vadd.f32 %v8285, %v8327
        %v8329 = vpop.f32.mrf.mxu0
        %v8330 = vadd.f32 %v8287, %v8329
        %v8331 = vpop.f32.mrf.mxu0
        %v8332 = vadd.f32 %v8289, %v8331
        %v8333 = vpop.f32.mrf.mxu0
        %v8334 = vadd.f32 %v8291, %v8333
        %8335 = vdwg.mxu0
        %8336 = vmatprep.subr.bf16.mxu0 0
        %8337 = vmatpush1.bf16.msra.mxu0 %v7883
        %8338 = vmatprep.subr.bf16.mxu0 0
        %8339 = vmatpush1.bf16.msra.mxu0 %v7878
        %8340 = vmatprep.subr.bf16.mxu0 0
        %8341 = vmatpush1.bf16.msra.mxu0 %v7873
        %8342 = vmatprep.subr.bf16.mxu0 0
        %8343 = vmatpush1.bf16.msra.mxu0 %v7868
        %8344 = vmatprep.subr.bf16.mxu0 0
        %8345 = vmatpush1.bf16.msra.mxu0 %v7863
        %8346 = vmatprep.subr.bf16.mxu0 0
        %8347 = vmatpush1.bf16.msra.mxu0 %v7858
        %8348 = vmatprep.subr.bf16.mxu0 0
        %8349 = vmatpush1.bf16.msra.mxu0 %v7853
        %8350 = vmatprep.subr.bf16.mxu0 0
        %8351 = vmatpush1.bf16.msra.mxu0 %v7848
        %8352 = vmatprep.subr.bf16.mxu0 0
        %8353 = vmatpush2.bf16.msra.mxu0 %v7923
        %8354 = vmatprep.subr.bf16.mxu0 0
        %8355 = vmatpush2.bf16.msra.mxu0 %v7918
        %8356 = vmatprep.subr.bf16.mxu0 0
        %8357 = vmatpush2.bf16.msra.mxu0 %v7913
        %8358 = vmatprep.subr.bf16.mxu0 0
        %8359 = vmatpush2.bf16.msra.mxu0 %v7908
        %8360 = vmatprep.subr.bf16.mxu0 0
        %8361 = vmatpush2.bf16.msra.mxu0 %v7903
        %8362 = vmatprep.subr.bf16.mxu0 0
        %8363 = vmatpush2.bf16.msra.mxu0 %v7898
        %8364 = vmatprep.subr.bf16.mxu0 0
        %8365 = vmatpush2.bf16.msra.mxu0 %v7893
        %8366 = vmatprep.subr.bf16.mxu0 0
        %8367 = vmatpush2.bf16.msra.mxu0 %v7888
        %8368 = vmatprep.mubr.bf16.mxu0 %v7110
        %8369 = vmatmul.mubr.bf16.gmra.mxu0 %v7109
        %v8370 = vpop.f32.mrf.mxu0
        %v8371 = vadd.f32 %v7326, %v8370
        %v8372 = vpop.f32.mrf.mxu0
        %v8373 = vpop.f32.mrf.mxu0
        %v8374 = vadd.f32 %v7326, %v8373
        %v8375 = vpop.f32.mrf.mxu0
        %8376 = vdwg.mxu0
        %8377 = vmatprep.subr.bf16.mxu0 0
        %8378 = vmatpush1.bf16.msra.mxu0 %v7963
        %8379 = vmatprep.subr.bf16.mxu0 0
        %8380 = vmatpush1.bf16.msra.mxu0 %v7958
        %8381 = vmatprep.subr.bf16.mxu0 0
        %8382 = vmatpush1.bf16.msra.mxu0 %v7953
        %8383 = vmatprep.subr.bf16.mxu0 0
        %8384 = vmatpush1.bf16.msra.mxu0 %v7948
        %8385 = vmatprep.subr.bf16.mxu0 0
        %8386 = vmatpush1.bf16.msra.mxu0 %v7943
        %8387 = vmatprep.subr.bf16.mxu0 0
        %8388 = vmatpush1.bf16.msra.mxu0 %v7938
        %8389 = vmatprep.subr.bf16.mxu0 0
        %8390 = vmatpush1.bf16.msra.mxu0 %v7933
        %8391 = vmatprep.subr.bf16.mxu0 0
        %8392 = vmatpush1.bf16.msra.mxu0 %v7928
        %8393 = vmatprep.subr.bf16.mxu0 0
        %8394 = vmatpush2.bf16.msra.mxu0 %v8003
        %8395 = vmatprep.subr.bf16.mxu0 0
        %8396 = vmatpush2.bf16.msra.mxu0 %v7998
        %8397 = vmatprep.subr.bf16.mxu0 0
        %8398 = vmatpush2.bf16.msra.mxu0 %v7993
        %8399 = vmatprep.subr.bf16.mxu0 0
        %8400 = vmatpush2.bf16.msra.mxu0 %v7988
        %8401 = vmatprep.subr.bf16.mxu0 0
        %8402 = vmatpush2.bf16.msra.mxu0 %v7983
        %8403 = vmatprep.subr.bf16.mxu0 0
        %8404 = vmatpush2.bf16.msra.mxu0 %v7978
        %8405 = vmatprep.subr.bf16.mxu0 0
        %8406 = vmatpush2.bf16.msra.mxu0 %v7973
        %8407 = vmatprep.subr.bf16.mxu0 0
        %8408 = vmatpush2.bf16.msra.mxu0 %v7968
        %8409 = vmatprep.mubr.bf16.mxu0 %v7112
        %8410 = vmatmul.mubr.bf16.gmra.mxu0 %v7111
        %v8411 = vpop.f32.mrf.mxu0
        %v8412 = vadd.f32 %v8371, %v8411
        %v8413 = vpop.f32.mrf.mxu0
        %v8414 = vpop.f32.mrf.mxu0
        %v8415 = vadd.f32 %v8374, %v8414
        %v8416 = vpop.f32.mrf.mxu0
        %8417 = vdwg.mxu0
        %v8428 = vcombine.low %v8242, %v8244
        %v8429 = vcombine.high %v8242, %v8244
        %v8430 = vcombine.low %v8328, %v8330
        %v8431 = vcombine.high %v8328, %v8330
        %v8433 = vunpack.c.l.s4 1983009808
        %v8434 = vunpack.c.0.s8 %v8433
        %v8435 = vlaneseq
        %v8436 = vshrl.u32 %v8435, 7
        %v8437 = vsub.s32 %v8434, %v8436
        %v8438 = vrot.slane %v8428, %v8437
        %v8440 = vunpack.c.l.s4 1983009808
        %v8441 = vunpack.c.0.s8 %v8440
        %v8442 = vlaneseq
        %v8443 = vshrl.u32 %v8442, 7
        %v8444 = vsub.s32 %v8441, %v8443
        %v8445 = vrot.slane %v8429, %v8444
        %v8447 = vunpack.c.l.s4 1983009808
        %v8448 = vunpack.c.0.s8 %v8447
        %v8449 = vlaneseq
        %v8450 = vshrl.u32 %v8449, 7
        %v8451 = vsub.s32 %v8448, %v8450
        %v8452 = vrot.slane %v8430, %v8451
        %v8454 = vunpack.c.l.s4 1983009808
        %v8455 = vunpack.c.0.s8 %v8454
        %v8456 = vlaneseq
        %v8457 = vshrl.u32 %v8456, 7
        %v8458 = vsub.s32 %v8455, %v8457
        %v8459 = vrot.slane %v8431, %v8458
        %v8460 = vcombine.low %v8438, %v8452
        %v8461 = vcombine.high %v8438, %v8452
        %v8462 = vcombine.low %v8445, %v8459
        %v8463 = vcombine.high %v8445, %v8459
        %v8464 = vcombine.high %v8412, %v8412
        %v8466 = vunpack.c.l.s4 1983009808
        %v8467 = vunpack.c.0.s8 %v8466
        %v8468 = vlaneseq
        %v8469 = vshrl.u32 %v8468, 7
        %v8470 = vsub.s32 %v8467, %v8469
        %v8471 = vrot.slane %v8412, %v8470
        %v8473 = vunpack.c.l.s4 1983009808
        %v8474 = vunpack.c.0.s8 %v8473
        %v8475 = vlaneseq
        %v8476 = vshrl.u32 %v8475, 7
        %v8477 = vsub.s32 %v8474, %v8476
        %v8478 = vrot.slane %v8464, %v8477
        %v8479 = vcombine.high %v8471, %v8471
        %v8480 = vcombine.high %v8478, %v8478
        %v8481 = vcombine.low %v8246, %v8248
        %v8482 = vcombine.high %v8246, %v8248
        %v8483 = vcombine.low %v8332, %v8334
        %v8484 = vcombine.high %v8332, %v8334
        %v8486 = vunpack.c.l.s4 1983009808
        %v8487 = vunpack.c.0.s8 %v8486
        %v8488 = vlaneseq
        %v8489 = vshrl.u32 %v8488, 7
        %v8490 = vsub.s32 %v8487, %v8489
        %v8491 = vrot.slane %v8481, %v8490
        %v8493 = vunpack.c.l.s4 1983009808
        %v8494 = vunpack.c.0.s8 %v8493
        %v8495 = vlaneseq
        %v8496 = vshrl.u32 %v8495, 7
        %v8497 = vsub.s32 %v8494, %v8496
        %v8498 = vrot.slane %v8482, %v8497
        %v8500 = vunpack.c.l.s4 1983009808
        %v8501 = vunpack.c.0.s8 %v8500
        %v8502 = vlaneseq
        %v8503 = vshrl.u32 %v8502, 7
        %v8504 = vsub.s32 %v8501, %v8503
        %v8505 = vrot.slane %v8483, %v8504
        %v8507 = vunpack.c.l.s4 1983009808
        %v8508 = vunpack.c.0.s8 %v8507
        %v8509 = vlaneseq
        %v8510 = vshrl.u32 %v8509, 7
        %v8511 = vsub.s32 %v8508, %v8510
        %v8512 = vrot.slane %v8484, %v8511
        %v8513 = vcombine.low %v8491, %v8505
        %v8514 = vcombine.high %v8491, %v8505
        %v8515 = vcombine.low %v8498, %v8512
        %v8516 = vcombine.high %v8498, %v8512
        %v8517 = vcombine.high %v8415, %v8415
        %v8519 = vunpack.c.l.s4 1983009808
        %v8520 = vunpack.c.0.s8 %v8519
        %v8521 = vlaneseq
        %v8522 = vshrl.u32 %v8521, 7
        %v8523 = vsub.s32 %v8520, %v8522
        %v8524 = vrot.slane %v8415, %v8523
        %v8526 = vunpack.c.l.s4 1983009808
        %v8527 = vunpack.c.0.s8 %v8526
        %v8528 = vlaneseq
        %v8529 = vshrl.u32 %v8528, 7
        %v8530 = vsub.s32 %v8527, %v8529
        %v8531 = vrot.slane %v8517, %v8530
        %v8532 = vcombine.high %v8524, %v8524
        %v8533 = vcombine.high %v8531, %v8531
        %8550 = vst [vmem:[%s683] sm:$0xff] %v8460
        %8551 = vst [vmem:[%s683 + $0x8] sm:$0x3] %v8471
        %8552 = vst [vmem:[%s683 + $0xa] sm:$0xff] %v8461
        %8553 = vst [vmem:[%s683 + $0x12] sm:$0x3] %v8479
        %8554 = vst [vmem:[%s683 + $0x14] sm:$0xff] %v8462
        %8555 = vst [vmem:[%s683 + $0x1c] sm:$0x3] %v8478
        %8556 = vst [vmem:[%s683 + $0x1e] sm:$0xff] %v8463
        %8557 = vst [vmem:[%s683 + $0x26] sm:$0x3] %v8480
        %8558 = vst [vmem:[%s683 + $0x28] sm:$0xff] %v8513
        %8559 = vst [vmem:[%s683 + $0x30] sm:$0x3] %v8524
        %8560 = vst [vmem:[%s683 + $0x32] sm:$0xff] %v8514
        %8561 = vst [vmem:[%s683 + $0x3a] sm:$0x3] %v8532
        %8562 = vst [vmem:[%s683 + $0x3c] sm:$0xff] %v8515
        %8563 = vst [vmem:[%s683 + $0x44] sm:$0x3] %v8531
        %8564 = vst [vmem:[%s683 + $0x46] sm:$0xff] %v8516
        %8565 = vst [vmem:[%s683 + $0x4e] sm:$0x3] %v8533
        %s8566 = sand.u32 %s158, 1
        %s8567 = sand.u32 %s158, 1
        %s8568 = smul.addr %s8567, 80
        %s8569 = scalar_lea.vmem [#allocation3], %s8568
        // Predicated region
        $region67: #{convnet_forward.3} parent=61 // pred_check
          %p8570 = pneg %p168
        $region68: #{convnet_forward.3} parent=61 // pred_check_branch
          %8572 = sbr.rel (%p8570) target = $region70
        $region69: #{convnet_forward.3} parent=61 // pred_region
          %s8573 = smul.u32 8, %s20
          %s8574 = smul.u32 5, %s21
          %s8575 = ssub.s32 1, %s8573
          %s8576 = smul.u32 32, %s8575
          %s8577 = smul.u32 %s8576, 5
          %p8578 = scmp.ne.s32.totalorder 0, %s8577
          %s8579 = smul.addr %s8573, 10
          %s8580 = sadd.s32 %s8574, %s8579
          %s8581 = smul.addr %s8580, 2
          %s8582 = scalar_lea.vmem %s5, %s8581
          // Predicated region
          $region71: #{convnet_forward.3} parent=69 // pred_check
            %p8583 = pneg %p8578
          $region72: #{convnet_forward.3} parent=69 // pred_check_branch
            %8585 = sbr.rel (%p8583) target = $region74
          $region73: #{convnet_forward.3} parent=69 // pred_region
            // Predicated region
            $region75: #{convnet_forward.3} parent=73 // pred_check
              _
            $region76: #{convnet_forward.3} parent=73 // pred_check_branch
              %8587 = sbr.rel (0) target = $region78
            $region77: #{convnet_forward.3} parent=73 // pred_region
              %s8588 = scalar_lea.vmem %s8569, 8 [#allocation3]
              %s8589 = scalar_lea.vmem %s8582, 8
              // While loop
              $region79: #{convnet_forward.3} parent=77 // loop_pre_header
                _
              $region80: #{convnet_forward.3} parent=77 // loop_header
                %s8591 = sphi 0, %s8593
                %p8592 = scmp.ge.s32.totalorder %s8591, %s8575
                %s8596 = sphi 0, %s8603
                %s8597 = sphi %s8569, %s8606
                %s8598 = sphi %s8582, %s8607
              $region81: #{convnet_forward.3} parent=77 // loop_header_branch
                %8595 = sbr.rel (%p8592) target = $region85
              $region82: #{convnet_forward.3} parent=77 // loop_body
                %v8599 = vld [vmem:[%s8597] sm:$0xff]
                %8600 = vst [vmem:[%s8598] sm:$0xff] %v8599
                %s8601 = sadd.s32 1, %s8596
                %p8602 = scmp.ge.s32.totalorder %s8601, %s8575
                %s8603 = scalar_select %p8602, 0, %s8601
                %s8604 = smul.u32 %s8603, 10
                %s8605 = smul.u32 %s8603, 20
                %s8606 = scalar_lea.vmem %s8569, %s8604 [#allocation3]
                %s8607 = scalar_lea.vmem %s8582, %s8605
              $region83: #{convnet_forward.3} parent=77 // loop_footer
                %s8593 = sadd.s32 %s8591, 1
              $region84: #{convnet_forward.3} parent=77 // loop_footer_branch
                %8590 = sbr.rel target = $region80
              $region85: #{convnet_forward.3} parent=77 // loop_exit
                _
              %s8609 = ssub.s32 4, 1
              // While loop
              $region86: #{convnet_forward.3} parent=77 // loop_pre_header
                _
              $region87: #{convnet_forward.3} parent=77 // loop_header
                %s8611 = sphi 0, %s8613
                %p8612 = scmp.ge.s32.totalorder %s8611, %s8575
                %s8616 = sphi 0, %s8623
                %s8617 = sphi %s8588, %s8626
                %s8618 = sphi %s8589, %s8627
              $region88: #{convnet_forward.3} parent=77 // loop_header_branch
                %8615 = sbr.rel (%p8612) target = $region92
              $region89: #{convnet_forward.3} parent=77 // loop_body
                %v8619 = vld [vmem:[%s8617] sm:%s8609]
                %8620 = vst [vmem:[%s8618] sm:%s8609] %v8619
                %s8621 = sadd.s32 1, %s8616
                %p8622 = scmp.ge.s32.totalorder %s8621, %s8575
                %s8623 = scalar_select %p8622, 0, %s8621
                %s8624 = smul.u32 %s8623, 10
                %s8625 = smul.u32 %s8623, 20
                %s8626 = scalar_lea.vmem %s8588, %s8624 [#allocation3]
                %s8627 = scalar_lea.vmem %s8589, %s8625
              $region90: #{convnet_forward.3} parent=77 // loop_footer
                %s8613 = sadd.s32 %s8611, 1
              $region91: #{convnet_forward.3} parent=77 // loop_footer_branch
                %8610 = sbr.rel target = $region87
              $region92: #{convnet_forward.3} parent=77 // loop_exit
                _
            $region78: #{convnet_forward.3} parent=73 // pred_fallthru
              _
          $region74: #{convnet_forward.3} parent=69 // pred_fallthru
            _
          %8628 = vnop
        $region70: #{convnet_forward.3} parent=61 // pred_fallthru
          _
      $region62: #{convnet_forward.3} parent=5 // pred_fallthru
        _
      %p8629 = scmp.le.s32.totalorder 2, %s11
      // Predicated region
      $region93: #{convnet_forward.3} parent=5 // pred_check
        %p8630 = pneg %p8629
      $region94: #{convnet_forward.3} parent=5 // pred_check_branch
        %8632 = sbr.rel (%p8630) target = $region96
      $region95: #{convnet_forward.3} parent=5 // pred_region
        %s8633 = ssub.s32 %s11, 2
        // Predicated region
        $region97: #{convnet_forward.3} parent=95 // pred_check
          %p8634 = pneg %p174
        $region98: #{convnet_forward.3} parent=95 // pred_check_branch
          %8636 = sbr.rel (%p8634) target = $region100
        $region99: #{convnet_forward.3} parent=95 // pred_region
          %s8637 = sand.u32 %s159, 1
          %s8638 = sand.u32 %s159, 1
          %s8639 = smul.addr %s8638, 80
          %s8640 = scalar_lea.vmem [#allocation3], %s8639
        $region100: #{convnet_forward.3} parent=95 // pred_fallthru
          _
      $region96: #{convnet_forward.3} parent=5 // pred_fallthru
        _
    $region6: #{convnet_forward.3} parent=1 // loop_footer
      %s15 = sadd.s32 1, %s11
    $region7: #{convnet_forward.3} parent=1 // loop_footer_branch
      %10 = sbr.rel target = $region3
    $region8: #{convnet_forward.3} parent=1 // loop_exit
      _

</llo_original>
